<compile_context>
chip_gen: v6e
topology: v6e:2x2x1
jax: 0.10.0
libtpu: 0.0.40
codegen_flags: <defaults>
</compile_context>

<pallas_src>
import functools

import numpy as np
import jax
import jax.numpy as jnp
from jax.experimental import pallas as pl
from jax.experimental.pallas import tpu as pltpu


def _cdiv(a, b):
    return (a + b - 1) // b


def _round_up(x, m):
    return _cdiv(x, m) * m


# ----------------------------------------------------------------------------
# Generic fused matmul (+ optional bias) (+ activation) Pallas kernel.
# 2-D grid over (row blocks, col blocks); weights / bias resident per column
# block, f32 accumulation on the MXU.
# ----------------------------------------------------------------------------

def _apply_act(acc, activation):
    if activation == "relu":
        return jnp.maximum(acc, 0.0)
    if activation == "sigmoid":
        # Exact sigmoid (review: strict parity on the final layer; it is tiny
        # and HBM-bound, the exact divide is free).
        return 1.0 / (1.0 + jnp.exp(-acc))
    return acc


def _mm_bias_kernel(x_ref, w_ref, b_ref, o_ref, *, activation):
    acc = jnp.dot(x_ref[...], w_ref[...], preferred_element_type=jnp.float32)
    acc = acc + b_ref[...]
    o_ref[...] = _apply_act(acc, activation).astype(o_ref.dtype)


def _mm_kernel(x_ref, w_ref, o_ref, *, activation):
    acc = jnp.dot(x_ref[...], w_ref[...], preferred_element_type=jnp.float32)
    o_ref[...] = _apply_act(acc, activation).astype(o_ref.dtype)


def _pick_tile_n(N):
    # Largest lane-friendly tile that divides N exactly (no N padding needed).
    for tn in (512, 384, 256, 128):
        if N % tn == 0:
            return tn
    return N


def _pick_tile_m(M, target):
    if M <= 16:
        return _round_up(max(M, 1), 8)
    # >= 2 row blocks so both v7x TensorCores get work; keep padding waste low.
    nb = max(_cdiv(M, target), 2)
    return _round_up(_cdiv(M, nb), 8)


def matmul_bias_act(x, w, b=None, *, activation="none", tile_m=512,
                    out_dtype=jnp.float32):
    """out = act(x @ w [+ b]).   x: [M, K]   w: [K, N]   b: [N] or None."""
    M, K = x.shape
    K2, N = w.shape
    assert K == K2, (K, K2)

    tm = _pick_tile_m(M, tile_m)
    gm = _cdiv(M, tm)
    Mp = gm * tm
    if Mp != M:
        x = jnp.pad(x, ((0, Mp - M), (0, 0)))
    tn = _pick_tile_n(N)
    gn = N // tn

    in_specs = [
        pl.BlockSpec((tm, K), lambda i, j: (i, 0)),   # activations, row-tiled
        pl.BlockSpec((K, tn), lambda i, j: (0, j)),   # weights, col-tiled
    ]
    args = [x, w]
    if b is not None:
        in_specs.append(pl.BlockSpec((1, tn), lambda i, j: (0, j)))
        args.append(b.reshape(1, N).astype(jnp.float32))
        kernel = functools.partial(_mm_bias_kernel, activation=activation)
    else:
        # Review: no zero-bias placeholder input when there is no bias.
        kernel = functools.partial(_mm_kernel, activation=activation)

    out = pl.pallas_call(
        kernel,
        out_shape=jax.ShapeDtypeStruct((Mp, N), out_dtype),
        grid=(gm, gn),
        in_specs=in_specs,
        out_specs=pl.BlockSpec((tm, tn), lambda i, j: (i, j)),
        compiler_params=pltpu.CompilerParams(
            dimension_semantics=("parallel", "parallel"),
            vmem_limit_bytes=48 * 1024 * 1024,   # fits v7x 64 MiB; >= v5e scoped
        ),
    )(*args)
    return out[:M] if Mp != M else out


# ----------------------------------------------------------------------------
# ConvTranspose3d (k=(3,4,4), s=2, p=1, output_padding=1) via sub-pixel phase
# decomposition: one lane-dense matmul per layer.
#
#   out[od, oh, ow] gets input taps with od = 2d-1+kd, oh = 2h-1+kh, ...
#   Split by output parity (pd, ph, pw): every phase only needs input shifts
#   drawn from a 2x3x3 window of the padded input, so K = 18*Ci (vs 48*Ci of
#   dilated im2col, 7/8 of which was zeros) and the 8 phases are folded into
#   the matmul N dimension (N = 8*Co).
# ----------------------------------------------------------------------------

# Tap -> kernel-index tables (static).  _KD[a, pd] = kd for D-shift a in the
# padded input; _KHW[off, parity] = kh/kw for shift `off`.  Mask = 0 where the
# (shift, parity) pair carries no kernel tap.
_KD = np.zeros((2, 2), np.int32)
_MD = np.zeros((2, 2), np.float32)
_KD[0, 0], _MD[0, 0] = 1, 1.0      # even od:  d = md      -> kd = 1
_KD[0, 1], _MD[0, 1] = 2, 1.0      # odd  od:  d = md      -> kd = 2
_KD[1, 1], _MD[1, 1] = 0, 1.0      # odd  od:  d = md + 1  -> kd = 0

_KHW = np.zeros((3, 2), np.int32)
_MHW = np.zeros((3, 2), np.float32)
_KHW[0, 0], _MHW[0, 0] = 3, 1.0    # even: padded shift 0 -> kh = 3
_KHW[1, 0], _MHW[1, 0] = 1, 1.0    # even: padded shift 1 -> kh = 1
_KHW[1, 1], _MHW[1, 1] = 2, 1.0    # odd : padded shift 1 -> kh = 2
_KHW[2, 1], _MHW[2, 1] = 0, 1.0    # odd : padded shift 2 -> kh = 0


def _phase_weight(w):
    """PyTorch weight [Ci, Co, 3, 4, 4] -> matmul weight [18*Ci, 8*Co].

    K order: (d-shift a, h-shift b, w-shift c, ci); N order: (pd, ph, pw, co).
    """
    Ci, Co = w.shape[0], w.shape[1]
    kd = _KD[:, :, None, None, None, None]
    kh = _KHW[None, None, :, :, None, None]
    kw = _KHW[None, None, None, None, :, :]
    mask = (_MD[:, :, None, None, None, None]
            * _MHW[None, None, :, :, None, None]
            * _MHW[None, None, None, None, :, :])
    wg = w[:, :, kd, kh, kw] * mask            # [Ci, Co, 2,2, 3,2, 3,2]
    wg = wg.transpose(2, 4, 6, 0, 3, 5, 7, 1)  # [a, b, c, Ci, pd, ph, pw, Co]
    return wg.reshape(18 * Ci, 8 * Co)


def conv_transpose3d_phase(x_cl, w, b, *, activation, out_dtype):
    """Channels-last ConvTranspose3d. x_cl: [B,D,H,W,Ci] -> [B,2D,2H+1,2W+1,Co]."""
    B, D, H, W, Ci = x_cl.shape
    Co = w.shape[1]
    x_cl = x_cl.astype(jnp.bfloat16)

    # Pad: D back by 1, H/W front by 1 and back by 2 (covers all phase taps).
    xp = jnp.pad(x_cl, ((0, 0), (0, 1), (1, 2), (1, 2), (0, 0)))

    # 18 shifted views -> [B, D, H+1, W+1, 18, Ci] -> [M, 18*Ci]  (bf16)
    taps = []
    for a in range(2):
        for bb in range(3):
            for cc in range(3):
                taps.append(xp[:, a:a + D, bb:bb + H + 1, cc:cc + W + 1, :])
    M = B * D * (H + 1) * (W + 1)
    patches = jnp.stack(taps, axis=4).reshape(M, 18 * Ci)

    wmat = _phase_weight(w).astype(jnp.bfloat16)          # [18*Ci, 8*Co]
    bias8 = jnp.tile(b, 8)                                # (pd,ph,pw)-major, co-minor

    out = matmul_bias_act(patches, wmat, bias8, activation=activation,
                          out_dtype=out_dtype)            # [M, 8*Co]

    # Interleave phases: [B,D,H+1,W+1, pd,ph,pw, Co] -> [B, 2D, 2H+2, 2W+2, Co]
    y = out.reshape(B, D, H + 1, W + 1, 2, 2, 2, Co)
    y = y.transpose(0, 1, 4, 2, 5, 3, 6, 7)
    y = y.reshape(B, 2 * D, 2 * H + 2, 2 * W + 2, Co)
    # Drop the garbage last odd row/col (Ho = 2H+1, Wo = 2W+1).
    return y[:, :, :2 * H + 1, :2 * W + 1, :]


# ----------------------------------------------------------------------------
# Trilinear upsample (align_corners=True) as two Pallas matmuls:
#   1) D-resize (transposed product -> lane-dense wide axis)
#   2) fused H,W resize with the Kronecker matrix A_h (x) A_w  (N = Ht*Wt)
# Output is emitted directly in NCDHW.
# ----------------------------------------------------------------------------

def _interp_matrix(out_size, in_size):
    if out_size == 1:
        return jnp.zeros((1, in_size), jnp.float32).at[0, 0].set(1.0)
    src = jnp.arange(out_size, dtype=jnp.float32) * ((in_size - 1) / (out_size - 1))
    i0 = jnp.clip(jnp.floor(src).astype(jnp.int32), 0, in_size - 1)
    i1 = jnp.clip(i0 + 1, 0, in_size - 1)
    w1 = src - i0.astype(jnp.float32)
    w0 = 1.0 - w1
    rows = jnp.arange(out_size)
    m = jnp.zeros((out_size, in_size), jnp.float32)
    m = m.at[rows, i0].add(w0)
    m = m.at[rows, i1].add(w1)
    return m                                              # [out_size, in_size]


def trilinear_upsample_to_ncdhw(x_cl, size):
    """x_cl: [B, Do, Ho, Wo, Co] -> [B, Co, Dt, Ht, Wt], align_corners=True."""
    B, Do, Ho, Wo, Co = x_cl.shape
    Dt, Ht, Wt = size
    Ad = _interp_matrix(Dt, Do)                           # [Dt, Do]
    Ahw = jnp.einsum("ij,kl->ikjl", _interp_matrix(Ht, Ho),
                     _interp_matrix(Wt, Wo)).reshape(Ht * Wt, Ho * Wo)

    # 1) D resize: A_d @ X  with the wide axis (B*Ho*Wo*Co) on lanes.
    xd = x_cl.transpose(1, 0, 2, 3, 4).reshape(Do, B * Ho * Wo * Co)
    yd = matmul_bias_act(Ad, xd, None, activation="none")  # [Dt, B*Ho*Wo*Co]

    # 2) fused H,W resize: one matmul, K = Ho*Wo, N = Ht*Wt.
    yd = yd.reshape(Dt, B, Ho, Wo, Co).transpose(1, 4, 0, 2, 3)
    yd = yd.reshape(B * Co * Dt, Ho * Wo)
    y = matmul_bias_act(yd, Ahw.T, None, activation="none")  # [B*Co*Dt, Ht*Wt]
    return y.reshape(B, Co, Dt, Ht, Wt)


# ----------------------------------------------------------------------------
# Decoder3D forward
# ----------------------------------------------------------------------------

def decoder3d_forward(z, params, *, grid_size, temporal_size, img_size):
    B = z.shape[0]
    F = params["lin_w"].shape[0]
    g = grid_size

    # Linear(latent -> embed_dim * g * g * temporal_size)
    h = matmul_bias_act(z, params["lin_w"].T, params["lin_b"], activation="none")

    # view(B, -1, 10, g, g) — 10 is hard-coded in the reference module —
    # then go channels-last once for the whole conv stack.
    C0 = F // (10 * g * g)
    x = h.reshape(B, C0, 10, g, g).transpose(0, 2, 3, 4, 1)   # [B, 10, g, g, C0]

    x = conv_transpose3d_phase(x, params["dc1_w"], params["dc1_b"],
                               activation="relu", out_dtype=jnp.bfloat16)
    x = conv_transpose3d_phase(x, params["dc2_w"], params["dc2_b"],
                               activation="relu", out_dtype=jnp.bfloat16)
    x = conv_transpose3d_phase(x, params["dc3_w"], params["dc3_b"],
                               activation="sigmoid", out_dtype=jnp.float32)

    return trilinear_upsample_to_ncdhw(x, (temporal_size, img_size, img_size))


# ----------------------------------------------------------------------------
# Parameter init (deterministic, shapes follow the PyTorch __init__)
# ----------------------------------------------------------------------------

def init_params(key, *, latent_dim, embed_dim, img_size, patch_size,
                out_channels, temporal_size):
    g = img_size // patch_size
    F = embed_dim * g * g * temporal_size
    ks = jax.random.split(key, 8)

    def nrm(k, shape, scale=0.05):
        return (scale * jax.random.normal(k, shape)).astype(jnp.float32)

    return {
        "lin_w": nrm(ks[0], (F, latent_dim)),                         # Linear
        "lin_b": nrm(ks[1], (F,)),
        "dc1_w": nrm(ks[2], (embed_dim, embed_dim // 2, 3, 4, 4)),    # ConvT3d
        "dc1_b": nrm(ks[3], (embed_dim // 2,)),
        "dc2_w": nrm(ks[4], (embed_dim // 2, embed_dim // 4, 3, 4, 4)),
        "dc2_b": nrm(ks[5], (embed_dim // 4,)),
        "dc3_w": nrm(ks[6], (embed_dim // 4, out_channels, 3, 4, 4)),
        "dc3_b": nrm(ks[7], (out_channels,)),
    }


# ----------------------------------------------------------------------------
# main
# ----------------------------------------------------------------------------

if __name__ == "__main__":
    latent_dim = 16
    embed_dim = 32
    img_size = 16
    patch_size = 8
    out_channels = 4
    temporal_size = 10   # must be 10: the reference view() hard-codes 10
    batch = 2

    key = jax.random.PRNGKey(0)
    kp, kz = jax.random.split(key)

    params = init_params(
        kp, latent_dim=latent_dim, embed_dim=embed_dim, img_size=img_size,
        patch_size=patch_size, out_channels=out_channels,
        temporal_size=temporal_size)

    z = jax.random.normal(kz, (batch, latent_dim), dtype=jnp.float32)

    fwd = jax.jit(functools.partial(
        decoder3d_forward, grid_size=img_size // patch_size,
        temporal_size=temporal_size, img_size=img_size))

    out = fwd(z, params)
    jax.block_until_ready(out)

    assert out.shape == (batch, out_channels, temporal_size, img_size, img_size)
    assert bool(jnp.all(jnp.isfinite(out)))
    assert bool(jnp.all((out >= 0.0) & (out <= 1.0)))   # sigmoid + lerp range
    print("KERNEL_OK")
</pallas_src>

<mosaic_0001>
module attributes {stable_mosaic.version = 11 : i64} {
  func.func private @main(%arg0: i32) attributes {dimension_semantics = [#tpu.dimension_semantics<core_parallel>], iteration_bounds = array<i64: 2>, tpu.core_type = #tpu.core_type<sc_scalar_subcore>, window_params = []} {
    return
  }
}

module attributes {stable_mosaic.version = 11 : i64} {
  func.func private @main(%arg0: i32) attributes {dimension_semantics = [#tpu.dimension_semantics<core_parallel>], iteration_bounds = array<i64: 2>, tpu.core_type = #tpu.core_type<sc_scalar_subcore>, window_params = []} {
    return
  }
}

module attributes {stable_mosaic.version = 11 : i64} {
  func.func @_mm_bias_kernel(%arg0: i32, %arg1: i32, %arg2: memref<8x16xf32, #tpu.memory_space<vmem>>, %arg3: memref<16x256xf32, #tpu.memory_space<vmem>>, %arg4: memref<1x256xf32, #tpu.memory_space<vmem>>, %arg5: memref<8x256xf32, #tpu.memory_space<vmem>>) attributes {dimension_semantics = [#tpu.dimension_semantics<parallel>, #tpu.dimension_semantics<parallel>], iteration_bounds = array<i64: 1, 5>, scalar_prefetch = 0 : i64, scratch_operands = 0 : i64, tpu.core_type = #tpu.core_type<tc>, window_params = [{transform_indices = @transform_0, window_bounds = array<i64: 8, 16>}, {transform_indices = @transform_1, window_bounds = array<i64: 16, 256>}, {transform_indices = @transform_2, window_bounds = array<i64: 1, 256>}, {transform_indices = @transform_3, window_bounds = array<i64: 8, 256>}]} {
    %c0 = arith.constant 0 : index
    %c0_0 = arith.constant 0 : index
    %0 = vector.load %arg2[%c0, %c0_0] : memref<8x16xf32, #tpu.memory_space<vmem>>, vector<8x16xf32>
    %c0_1 = arith.constant 0 : index
    %c0_2 = arith.constant 0 : index
    %1 = vector.load %arg3[%c0_1, %c0_2] : memref<16x256xf32, #tpu.memory_space<vmem>>, vector<16x256xf32>
    %cst = arith.constant dense<0.000000e+00> : vector<8x256xf32>
    %2 = tpu.matmul %0, %1, %cst {dimension_numbers = #tpu.dot_dimension_numbers<[1], [0], [0], [1], [0, 0, 1, 1], [], []>} : vector<8x16xf32>, vector<16x256xf32>, vector<8x256xf32> -> vector<8x256xf32>
    %c0_3 = arith.constant 0 : index
    %c0_4 = arith.constant 0 : index
    %3 = vector.load %arg4[%c0_3, %c0_4] : memref<1x256xf32, #tpu.memory_space<vmem>>, vector<1x256xf32>
    %4 = vector.broadcast %3 : vector<1x256xf32> to vector<8x256xf32>
    %5 = arith.addf %2, %4 : vector<8x256xf32>
    %c0_5 = arith.constant 0 : index
    %c0_6 = arith.constant 0 : index
    %6 = vector.load %arg5[%c0_5, %c0_6] : memref<8x256xf32, #tpu.memory_space<vmem>>, vector<8x256xf32>
    tpu.vector_store %arg5[%c0_5, %c0_6], %5 {strides = array<i32>} : memref<8x256xf32, #tpu.memory_space<vmem>>, vector<8x256xf32>,
    return
  }
  func.func @transform_0(%arg0: i32, %arg1: i32) -> (i32, i32) {
    %c0_i32 = arith.constant 0 : i32
    %c0_i32_0 = arith.constant 0 : i32
    return %arg0, %c0_i32 : i32, i32
  }
  func.func @transform_1(%arg0: i32, %arg1: i32) -> (i32, i32) {
    %c0_i32 = arith.constant 0 : i32
    %c0_i32_0 = arith.constant 0 : i32
    return %c0_i32, %arg1 : i32, i32
  }
  func.func @transform_2(%arg0: i32, %arg1: i32) -> (i32, i32) {
    %c0_i32 = arith.constant 0 : i32
    %c0_i32_0 = arith.constant 0 : i32
    return %c0_i32, %arg1 : i32, i32
  }
  func.func @transform_3(%arg0: i32, %arg1: i32) -> (i32, i32) {
    %c0_i32 = arith.constant 0 : i32
    return %arg0, %arg1 : i32, i32
  }
}

module attributes {stable_mosaic.version = 11 : i64} {
  func.func @_mm_bias_kernel(%arg0: i32, %arg1: i32, %arg2: memref<96x576xbf16, #tpu.memory_space<vmem>>, %arg3: memref<576x128xbf16, #tpu.memory_space<vmem>>, %arg4: memref<1x128xf32, #tpu.memory_space<vmem>>, %arg5: memref<96x128xbf16, #tpu.memory_space<vmem>>) attributes {dimension_semantics = [#tpu.dimension_semantics<parallel>, #tpu.dimension_semantics<parallel>], iteration_bounds = array<i64: 2, 1>, scalar_prefetch = 0 : i64, scratch_operands = 0 : i64, tpu.core_type = #tpu.core_type<tc>, window_params = [{transform_indices = @transform_0, window_bounds = array<i64: 96, 576>}, {transform_indices = @transform_1, window_bounds = array<i64: 576, 128>}, {transform_indices = @transform_2, window_bounds = array<i64: 1, 128>}, {transform_indices = @transform_3, window_bounds = array<i64: 96, 128>}]} {
    %c0 = arith.constant 0 : index
    %c0_0 = arith.constant 0 : index
    %0 = vector.load %arg2[%c0, %c0_0] : memref<96x576xbf16, #tpu.memory_space<vmem>>, vector<96x576xbf16>
    %c0_1 = arith.constant 0 : index
    %c0_2 = arith.constant 0 : index
    %1 = vector.load %arg3[%c0_1, %c0_2] : memref<576x128xbf16, #tpu.memory_space<vmem>>, vector<576x128xbf16>
    %cst = arith.constant dense<0.000000e+00> : vector<96x128xf32>
    %2 = tpu.matmul %0, %1, %cst {dimension_numbers = #tpu.dot_dimension_numbers<[1], [0], [0], [1], [0, 0, 1, 1], [], []>} : vector<96x576xbf16>, vector<576x128xbf16>, vector<96x128xf32> -> vector<96x128xf32>
    %c0_3 = arith.constant 0 : index
    %c0_4 = arith.constant 0 : index
    %3 = vector.load %arg4[%c0_3, %c0_4] : memref<1x128xf32, #tpu.memory_space<vmem>>, vector<1x128xf32>
    %4 = vector.broadcast %3 : vector<1x128xf32> to vector<96x128xf32>
    %5 = arith.addf %2, %4 : vector<96x128xf32>
    %cst_5 = arith.constant 0.000000e+00 : f32
    %6 = vector.broadcast %cst_5 : f32 to vector<96x128xf32>
    %7 = arith.maximumf %5, %6 : vector<96x128xf32>
    %8 = arith.truncf %7 : vector<96x128xf32> to vector<96x128xbf16>
    %c0_6 = arith.constant 0 : index
    %c0_7 = arith.constant 0 : index
    %9 = vector.load %arg5[%c0_6, %c0_7] : memref<96x128xbf16, #tpu.memory_space<vmem>>, vector<96x128xbf16>
    tpu.vector_store %arg5[%c0_6, %c0_7], %8 {strides = array<i32>} : memref<96x128xbf16, #tpu.memory_space<vmem>>, vector<96x128xbf16>,
    return
  }
  func.func @transform_0(%arg0: i32, %arg1: i32) -> (i32, i32) {
    %c0_i32 = arith.constant 0 : i32
    %c0_i32_0 = arith.constant 0 : i32
    return %arg0, %c0_i32 : i32, i32
  }
  func.func @transform_1(%arg0: i32, %arg1: i32) -> (i32, i32) {
    %c0_i32 = arith.constant 0 : i32
    %c0_i32_0 = arith.constant 0 : i32
    return %c0_i32, %arg1 : i32, i32
  }
  func.func @transform_2(%arg0: i32, %arg1: i32) -> (i32, i32) {
    %c0_i32 = arith.constant 0 : i32
    %c0_i32_0 = arith.constant 0 : i32
    return %c0_i32, %arg1 : i32, i32
  }
  func.func @transform_3(%arg0: i32, %arg1: i32) -> (i32, i32) {
    %c0_i32 = arith.constant 0 : i32
    return %arg0, %arg1 : i32, i32
  }
}

module attributes {stable_mosaic.version = 11 : i64} {
  func.func @_mm_bias_kernel(%arg0: i32, %arg1: i32, %arg2: memref<480x288xbf16, #tpu.memory_space<vmem>>, %arg3: memref<288x64xbf16, #tpu.memory_space<vmem>>, %arg4: memref<1x64xf32, #tpu.memory_space<vmem>>, %arg5: memref<480x64xbf16, #tpu.memory_space<vmem>>) attributes {dimension_semantics = [#tpu.dimension_semantics<parallel>, #tpu.dimension_semantics<parallel>], iteration_bounds = array<i64: 3, 1>, scalar_prefetch = 0 : i64, scratch_operands = 0 : i64, tpu.core_type = #tpu.core_type<tc>, window_params = [{transform_indices = @transform_0, window_bounds = array<i64: 480, 288>}, {transform_indices = @transform_1, window_bounds = array<i64: 288, 64>}, {transform_indices = @transform_2, window_bounds = array<i64: 1, 64>}, {transform_indices = @transform_3, window_bounds = array<i64: 480, 64>}]} {
    %c0 = arith.constant 0 : index
    %c0_0 = arith.constant 0 : index
    %0 = vector.load %arg2[%c0, %c0_0] : memref<480x288xbf16, #tpu.memory_space<vmem>>, vector<480x288xbf16>
    %c0_1 = arith.constant 0 : index
    %c0_2 = arith.constant 0 : index
    %1 = vector.load %arg3[%c0_1, %c0_2] : memref<288x64xbf16, #tpu.memory_space<vmem>>, vector<288x64xbf16>
    %cst = arith.constant dense<0.000000e+00> : vector<480x64xf32>
    %2 = tpu.matmul %0, %1, %cst {dimension_numbers = #tpu.dot_dimension_numbers<[1], [0], [0], [1], [0, 0, 1, 1], [], []>} : vector<480x288xbf16>, vector<288x64xbf16>, vector<480x64xf32> -> vector<480x64xf32>
    %c0_3 = arith.constant 0 : index
    %c0_4 = arith.constant 0 : index
    %3 = vector.load %arg4[%c0_3, %c0_4] : memref<1x64xf32, #tpu.memory_space<vmem>>, vector<1x64xf32>
    %4 = vector.broadcast %3 : vector<1x64xf32> to vector<480x64xf32>
    %5 = arith.addf %2, %4 : vector<480x64xf32>
    %cst_5 = arith.constant 0.000000e+00 : f32
    %6 = vector.broadcast %cst_5 : f32 to vector<480x64xf32>
    %7 = arith.maximumf %5, %6 : vector<480x64xf32>
    %8 = arith.truncf %7 : vector<480x64xf32> to vector<480x64xbf16>
    %c0_6 = arith.constant 0 : index
    %c0_7 = arith.constant 0 : index
    %9 = vector.load %arg5[%c0_6, %c0_7] : memref<480x64xbf16, #tpu.memory_space<vmem>>, vector<480x64xbf16>
    tpu.vector_store %arg5[%c0_6, %c0_7], %8 {strides = array<i32>} : memref<480x64xbf16, #tpu.memory_space<vmem>>, vector<480x64xbf16>,
    return
  }
  func.func @transform_0(%arg0: i32, %arg1: i32) -> (i32, i32) {
    %c0_i32 = arith.constant 0 : i32
    %c0_i32_0 = arith.constant 0 : i32
    return %arg0, %c0_i32 : i32, i32
  }
  func.func @transform_1(%arg0: i32, %arg1: i32) -> (i32, i32) {
    %c0_i32 = arith.constant 0 : i32
    %c0_i32_0 = arith.constant 0 : i32
    return %c0_i32, %arg1 : i32, i32
  }
  func.func @transform_2(%arg0: i32, %arg1: i32) -> (i32, i32) {
    %c0_i32 = arith.constant 0 : i32
    %c0_i32_0 = arith.constant 0 : i32
    return %c0_i32, %arg1 : i32, i32
  }
  func.func @transform_3(%arg0: i32, %arg1: i32) -> (i32, i32) {
    %c0_i32 = arith.constant 0 : i32
    return %arg0, %arg1 : i32, i32
  }
}

module attributes {stable_mosaic.version = 11 : i64} {
  func.func @_mm_bias_kernel(%arg0: i32, %arg1: i32, %arg2: memref<504x144xbf16, #tpu.memory_space<vmem>>, %arg3: memref<144x32xbf16, #tpu.memory_space<vmem>>, %arg4: memref<1x32xf32, #tpu.memory_space<vmem>>, %arg5: memref<504x32xf32, #tpu.memory_space<vmem>>) attributes {dimension_semantics = [#tpu.dimension_semantics<parallel>, #tpu.dimension_semantics<parallel>], iteration_bounds = array<i64: 23, 1>, scalar_prefetch = 0 : i64, scratch_operands = 0 : i64, tpu.core_type = #tpu.core_type<tc>, window_params = [{transform_indices = @transform_0, window_bounds = array<i64: 504, 144>}, {transform_indices = @transform_1, window_bounds = array<i64: 144, 32>}, {transform_indices = @transform_2, window_bounds = array<i64: 1, 32>}, {transform_indices = @transform_3, window_bounds = array<i64: 504, 32>}]} {
    %c0 = arith.constant 0 : index
    %c0_0 = arith.constant 0 : index
    %0 = vector.load %arg2[%c0, %c0_0] : memref<504x144xbf16, #tpu.memory_space<vmem>>, vector<504x144xbf16>
    %c0_1 = arith.constant 0 : index
    %c0_2 = arith.constant 0 : index
    %1 = vector.load %arg3[%c0_1, %c0_2] : memref<144x32xbf16, #tpu.memory_space<vmem>>, vector<144x32xbf16>
    %cst = arith.constant dense<0.000000e+00> : vector<504x32xf32>
    %2 = tpu.matmul %0, %1, %cst {dimension_numbers = #tpu.dot_dimension_numbers<[1], [0], [0], [1], [0, 0, 1, 1], [], []>} : vector<504x144xbf16>, vector<144x32xbf16>, vector<504x32xf32> -> vector<504x32xf32>
    %c0_3 = arith.constant 0 : index
    %c0_4 = arith.constant 0 : index
    %3 = vector.load %arg4[%c0_3, %c0_4] : memref<1x32xf32, #tpu.memory_space<vmem>>, vector<1x32xf32>
    %4 = vector.broadcast %3 : vector<1x32xf32> to vector<504x32xf32>
    %5 = arith.addf %2, %4 : vector<504x32xf32>
    %cst_5 = arith.constant 0.000000e+00 : f32
    %6 = vector.broadcast %cst_5 : f32 to vector<504x32xf32>
    %7 = arith.subf %6, %5 : vector<504x32xf32>
    %8 = math.exp %7 : vector<504x32xf32>
    %cst_6 = arith.constant 1.000000e+00 : f32
    %9 = vector.broadcast %cst_6 : f32 to vector<504x32xf32>
    %10 = arith.addf %9, %8 : vector<504x32xf32>
    %cst_7 = arith.constant 1.000000e+00 : f32
    %11 = vector.broadcast %cst_7 : f32 to vector<504x32xf32>
    %12 = arith.divf %11, %10 : vector<504x32xf32>
    %c0_8 = arith.constant 0 : index
    %c0_9 = arith.constant 0 : index
    %13 = vector.load %arg5[%c0_8, %c0_9] : memref<504x32xf32, #tpu.memory_space<vmem>>, vector<504x32xf32>
    tpu.vector_store %arg5[%c0_8, %c0_9], %12 {strides = array<i32>} : memref<504x32xf32, #tpu.memory_space<vmem>>, vector<504x32xf32>,
    return
  }
  func.func @transform_0(%arg0: i32, %arg1: i32) -> (i32, i32) {
    %c0_i32 = arith.constant 0 : i32
    %c0_i32_0 = arith.constant 0 : i32
    return %arg0, %c0_i32 : i32, i32
  }
  func.func @transform_1(%arg0: i32, %arg1: i32) -> (i32, i32) {
    %c0_i32 = arith.constant 0 : i32
    %c0_i32_0 = arith.constant 0 : i32
    return %c0_i32, %arg1 : i32, i32
  }
  func.func @transform_2(%arg0: i32, %arg1: i32) -> (i32, i32) {
    %c0_i32 = arith.constant 0 : i32
    %c0_i32_0 = arith.constant 0 : i32
    return %c0_i32, %arg1 : i32, i32
  }
  func.func @transform_3(%arg0: i32, %arg1: i32) -> (i32, i32) {
    %c0_i32 = arith.constant 0 : i32
    return %arg0, %arg1 : i32, i32
  }
}

module attributes {stable_mosaic.version = 11 : i64} {
  func.func @_mm_kernel(%arg0: i32, %arg1: i32, %arg2: memref<16x80xf32, #tpu.memory_space<vmem>>, %arg3: memref<80x4232xf32, #tpu.memory_space<vmem>>, %arg4: memref<16x4232xf32, #tpu.memory_space<vmem>>) attributes {dimension_semantics = [#tpu.dimension_semantics<parallel>, #tpu.dimension_semantics<parallel>], iteration_bounds = array<i64: 1, 1>, scalar_prefetch = 0 : i64, scratch_operands = 0 : i64, tpu.core_type = #tpu.core_type<tc>, window_params = [{transform_indices = @transform_0, window_bounds = array<i64: 16, 80>}, {transform_indices = @transform_1, window_bounds = array<i64: 80, 4232>}, {transform_indices = @transform_2, window_bounds = array<i64: 16, 4232>}]} {
    %c0 = arith.constant 0 : index
    %c0_0 = arith.constant 0 : index
    %0 = vector.load %arg2[%c0, %c0_0] : memref<16x80xf32, #tpu.memory_space<vmem>>, vector<16x80xf32>
    %c0_1 = arith.constant 0 : index
    %c0_2 = arith.constant 0 : index
    %1 = vector.load %arg3[%c0_1, %c0_2] : memref<80x4232xf32, #tpu.memory_space<vmem>>, vector<80x4232xf32>
    %cst = arith.constant dense<0.000000e+00> : vector<16x4232xf32>
    %2 = tpu.matmul %0, %1, %cst {dimension_numbers = #tpu.dot_dimension_numbers<[1], [0], [0], [1], [0, 0, 1, 1], [], []>} : vector<16x80xf32>, vector<80x4232xf32>, vector<16x4232xf32> -> vector<16x4232xf32>
    %c0_3 = arith.constant 0 : index
    %c0_4 = arith.constant 0 : index
    %3 = vector.load %arg4[%c0_3, %c0_4] : memref<16x4232xf32, #tpu.memory_space<vmem>>, vector<16x4232xf32>
    tpu.vector_store %arg4[%c0_3, %c0_4], %2 {strides = array<i32>} : memref<16x4232xf32, #tpu.memory_space<vmem>>, vector<16x4232xf32>,
    return
  }
  func.func @transform_0(%arg0: i32, %arg1: i32) -> (i32, i32) {
    %c0_i32 = arith.constant 0 : i32
    %c0_i32_0 = arith.constant 0 : i32
    return %arg0, %c0_i32 : i32, i32
  }
  func.func @transform_1(%arg0: i32, %arg1: i32) -> (i32, i32) {
    %c0_i32 = arith.constant 0 : i32
    %c0_i32_0 = arith.constant 0 : i32
    return %c0_i32, %arg1 : i32, i32
  }
  func.func @transform_2(%arg0: i32, %arg1: i32) -> (i32, i32) {
    %c0_i32 = arith.constant 0 : i32
    return %arg0, %arg1 : i32, i32
  }
}

module attributes {stable_mosaic.version = 11 : i64} {
  func.func @_mm_kernel(%arg0: i32, %arg1: i32, %arg2: memref<40x529xf32, #tpu.memory_space<vmem>>, %arg3: memref<529x256xf32, #tpu.memory_space<vmem>>, %arg4: memref<40x256xf32, #tpu.memory_space<vmem>>) attributes {dimension_semantics = [#tpu.dimension_semantics<parallel>, #tpu.dimension_semantics<parallel>], iteration_bounds = array<i64: 2, 1>, scalar_prefetch = 0 : i64, scratch_operands = 0 : i64, tpu.core_type = #tpu.core_type<tc>, window_params = [{transform_indices = @transform_0, window_bounds = array<i64: 40, 529>}, {transform_indices = @transform_1, window_bounds = array<i64: 529, 256>}, {transform_indices = @transform_2, window_bounds = array<i64: 40, 256>}]} {
    %c0 = arith.constant 0 : index
    %c0_0 = arith.constant 0 : index
    %0 = vector.load %arg2[%c0, %c0_0] : memref<40x529xf32, #tpu.memory_space<vmem>>, vector<40x529xf32>
    %c0_1 = arith.constant 0 : index
    %c0_2 = arith.constant 0 : index
    %1 = vector.load %arg3[%c0_1, %c0_2] : memref<529x256xf32, #tpu.memory_space<vmem>>, vector<529x256xf32>
    %cst = arith.constant dense<0.000000e+00> : vector<40x256xf32>
    %2 = tpu.matmul %0, %1, %cst {dimension_numbers = #tpu.dot_dimension_numbers<[1], [0], [0], [1], [0, 0, 1, 1], [], []>} : vector<40x529xf32>, vector<529x256xf32>, vector<40x256xf32> -> vector<40x256xf32>
    %c0_3 = arith.constant 0 : index
    %c0_4 = arith.constant 0 : index
    %3 = vector.load %arg4[%c0_3, %c0_4] : memref<40x256xf32, #tpu.memory_space<vmem>>, vector<40x256xf32>
    tpu.vector_store %arg4[%c0_3, %c0_4], %2 {strides = array<i32>} : memref<40x256xf32, #tpu.memory_space<vmem>>, vector<40x256xf32>,
    return
  }
  func.func @transform_0(%arg0: i32, %arg1: i32) -> (i32, i32) {
    %c0_i32 = arith.constant 0 : i32
    %c0_i32_0 = arith.constant 0 : i32
    return %arg0, %c0_i32 : i32, i32
  }
  func.func @transform_1(%arg0: i32, %arg1: i32) -> (i32, i32) {
    %c0_i32 = arith.constant 0 : i32
    %c0_i32_0 = arith.constant 0 : i32
    return %c0_i32, %arg1 : i32, i32
  }
  func.func @transform_2(%arg0: i32, %arg1: i32) -> (i32, i32) {
    %c0_i32 = arith.constant 0 : i32
    return %arg0, %arg1 : i32, i32
  }
}

</mosaic_0001>

<llo_original>
// kernel: decoder3d_forward.6
$region0: #{decoder3d_forward.6}
  #allocation0 [shape = 'u32[]', space=smem, size = 0x4, offset = 0x4, fixed_abs, tag = 'smem constant byte address 0x4 - core index']
  #allocation1 [shape = 'u32[144,128]{1,0:T(1,128)}', space=vmem, size = 0x12000, scoped, tag = 'internal scratch']
  %s0 = inlined_call_operand.vmem [shape: f32[8,16], index: 0, kind: input, shape index: {}]
  %s1 = inlined_call_operand.hbm [shape: f32[16,1280], index: 1, kind: input, shape index: {}]
  %s2 = inlined_call_operand.vmem [shape: f32[1,1280], index: 2, kind: input, shape index: {}]
  %s3 = inlined_call_operand.vmem [shape: f32[8,1280], index: 3, kind: output, shape index: {}]
  %s4 = sld [smem:[#allocation0]]
  $region49: #{decoder3d_forward.6} parent=0
    _
  %s6 = ssub.s32 1, %s4
  %s7 = scalar_select 0, %s6, %s4
  $region1: #{decoder3d_forward.6} parent=0
    #allocation2 [shape = 'u8[32768]{0}', space=vmem, size = 0x8000, scoped, tag = 'input window, operand 1']
    #allocation3 [shape = 's32[2]{0}', space=sflag, size = 0x8, scoped, tag = 'scoped memory for decoder3d_forward.6']
    %8 = vsyncpa [#allocation3], 0
    %s9 = scalar_lea.sflag [#allocation3], 1
    %10 = vsyncpa %s9, 0
    loop: start=0, step=1, limit=7
    $region2: #{decoder3d_forward.6} parent=1 // loop_pre_header
      _
    $region3: #{decoder3d_forward.6} parent=1 // loop_header
      %s12 = sphi 0, %s16
      %p13 = scmp.ge.s32.totalorder %s12, 7
      %s19 = sphi 0, %s31
      %s20 = sphi 0, %s27
      %s21 = sphi 0, %s19
      %s22 = sphi 0, %s20
      %s23 = sphi 0, %s21
      %s24 = sphi 0, %s22
      %s34 = sphi 0, %s36
      %s37 = sphi 0, %s34
      %s38 = sphi 0, %s37
      %s54 = sphi 0, %s38
      %s60 = sphi 0, %s62
      %s63 = sphi 0, %s60
      %s64 = sphi 0, %s63
      %s80 = sphi 0, %s64
      %s86 = sphi 0, %s88
      %s89 = sphi 0, %s86
      %s90 = sphi 0, %s89
      %s106 = sphi 0, %s90
      %s114 = sphi 0, %s116
      %s117 = sphi 0, %s114
      %s118 = sphi 0, %s117
      %s134 = sphi 0, %s118
    $region4: #{decoder3d_forward.6} parent=1 // loop_header_branch
      %15 = sbr.rel (%p13) target = $region8
    $region5: #{decoder3d_forward.6} parent=1 // loop_body
      %s17 = ssub.s32 %s12, 1
      %s18 = ssub.s32 %s12, 2
      %s25 = sadd.s32 1, %s20
      %p26 = scmp.ge.s32.totalorder %s25, 5
      %s27 = scalar_select %p26, 0, %s25
      %s28 = sadd.s32 1, %s19
      %s29 = scalar_select %p26, %s28, %s19
      %p30 = scmp.ge.s32.totalorder %s29, 1
      %s31 = scalar_select %p30, 0, %s29
      %s32 = ssub.s32 %s19, %s31
      %p33 = scmp.eq.s32.totalorder %s32, 0
      %s35 = sadd.s32 %s34, 1
      %s36 = scalar_select %p33, %s34, %s35
      %p39 = pneg %p33
      %p40 = scmp.eq.s32.totalorder %s12, 4
      %p41 = por %p39, %p40
      %p42 = scmp.ne.s32.totalorder %s34, %s37
      %p43 = scmp.eq.s32.totalorder %s12, 0
      %p44 = por %p42, %p43
      %p45 = scmp.ne.s32.totalorder %s34, %s37
      %p46 = scmp.eq.s32.totalorder %s17, 4
      %p47 = por %p45, %p46
      %p48 = scmp.ne.s32.totalorder %s37, %s38
      %p49 = scmp.eq.s32.totalorder %s17, 0
      %p50 = por %p48, %p49
      %p51 = scmp.ne.s32.totalorder %s37, %s38
      %p52 = scmp.eq.s32.totalorder %s18, 4
      %p53 = por %p51, %p52
      %p55 = scmp.ne.s32.totalorder %s38, %s54
      %p56 = scmp.eq.s32.totalorder %s18, 0
      %p57 = por %p55, %p56
      %s58 = ssub.s32 %s20, %s27
      %p59 = scmp.eq.s32.totalorder %s58, 0
      %s61 = sadd.s32 %s60, 1
      %s62 = scalar_select %p59, %s60, %s61
      %p65 = pneg %p59
      %p66 = scmp.eq.s32.totalorder %s12, 4
      %p67 = por %p65, %p66
      %p68 = scmp.ne.s32.totalorder %s60, %s63
      %p69 = scmp.eq.s32.totalorder %s12, 0
      %p70 = por %p68, %p69
      %p71 = scmp.ne.s32.totalorder %s60, %s63
      %p72 = scmp.eq.s32.totalorder %s17, 4
      %p73 = por %p71, %p72
      %p74 = scmp.ne.s32.totalorder %s63, %s64
      %p75 = scmp.eq.s32.totalorder %s17, 0
      %p76 = por %p74, %p75
      %p77 = scmp.ne.s32.totalorder %s63, %s64
      %p78 = scmp.eq.s32.totalorder %s18, 4
      %p79 = por %p77, %p78
      %p81 = scmp.ne.s32.totalorder %s64, %s80
      %p82 = scmp.eq.s32.totalorder %s18, 0
      %p83 = por %p81, %p82
      %s84 = ssub.s32 %s20, %s27
      %p85 = scmp.eq.s32.totalorder %s84, 0
      %s87 = sadd.s32 %s86, 1
      %s88 = scalar_select %p85, %s86, %s87
      %p91 = pneg %p85
      %p92 = scmp.eq.s32.totalorder %s12, 4
      %p93 = por %p91, %p92
      %p94 = scmp.ne.s32.totalorder %s86, %s89
      %p95 = scmp.eq.s32.totalorder %s12, 0
      %p96 = por %p94, %p95
      %p97 = scmp.ne.s32.totalorder %s86, %s89
      %p98 = scmp.eq.s32.totalorder %s17, 4
      %p99 = por %p97, %p98
      %p100 = scmp.ne.s32.totalorder %s89, %s90
      %p101 = scmp.eq.s32.totalorder %s17, 0
      %p102 = por %p100, %p101
      %p103 = scmp.ne.s32.totalorder %s89, %s90
      %p104 = scmp.eq.s32.totalorder %s18, 4
      %p105 = por %p103, %p104
      %p107 = scmp.ne.s32.totalorder %s90, %s106
      %p108 = scmp.eq.s32.totalorder %s18, 0
      %p109 = por %p107, %p108
      %s110 = ssub.s32 %s19, %s31
      %s111 = ssub.s32 %s20, %s27
      %s112 = sor.u32 %s110, %s111
      %p113 = scmp.eq.s32.totalorder %s112, 0
      %s115 = sadd.s32 %s114, 1
      %s116 = scalar_select %p113, %s114, %s115
      %p119 = pneg %p113
      %p120 = scmp.eq.s32.totalorder %s12, 4
      %p121 = por %p119, %p120
      %p122 = scmp.ne.s32.totalorder %s114, %s117
      %p123 = scmp.eq.s32.totalorder %s12, 0
      %p124 = por %p122, %p123
      %p125 = scmp.ne.s32.totalorder %s114, %s117
      %p126 = scmp.eq.s32.totalorder %s17, 4
      %p127 = por %p125, %p126
      %p128 = scmp.ne.s32.totalorder %s117, %s118
      %p129 = scmp.eq.s32.totalorder %s17, 0
      %p130 = por %p128, %p129
      %p131 = scmp.ne.s32.totalorder %s117, %s118
      %p132 = scmp.eq.s32.totalorder %s18, 4
      %p133 = por %p131, %p132
      %p135 = scmp.ne.s32.totalorder %s118, %s134
      %p136 = scmp.eq.s32.totalorder %s18, 0
      %p137 = por %p135, %p136
      %p138 = scmp.le.s32.totalorder 1, %s12
      %p139 = scmp.lt.s32.totalorder %s12, 6
      %p140 = pnand %p138, %p139
      %p141 = pneg %p140
      // Predicated region
      $region9: #{decoder3d_forward.6} parent=5 // pred_check
        _
      $region10: #{decoder3d_forward.6} parent=5 // pred_check_branch
        %143 = sbr.rel (%p140) target = $region12
      $region11: #{decoder3d_forward.6} parent=5 // pred_region
        %s144 = ssub.s32 %s12, 1
        // Predicated region
        $region13: #{decoder3d_forward.6} parent=11 // pred_check
          %p145 = pneg %p50
        $region14: #{decoder3d_forward.6} parent=11 // pred_check_branch
          %147 = sbr.rel (%p145) target = $region16
        $region15: #{decoder3d_forward.6} parent=11 // pred_region
          %p148 = scmp.lt.s32.totalorder %s21, 0
          %s149 = scalar_select %p148, %s21, 0
          %s150 = smul.addr %s149, 8
          %s151 = scalar_lea.vmem %s0, %s150
        $region16: #{decoder3d_forward.6} parent=11 // pred_fallthru
          _
      $region12: #{decoder3d_forward.6} parent=5 // pred_fallthru
        _
      %p152 = scmp.lt.s32.totalorder %s12, 5
      // Predicated region
      $region17: #{decoder3d_forward.6} parent=5 // pred_check
        %p153 = pneg %p152
      $region18: #{decoder3d_forward.6} parent=5 // pred_check_branch
        %155 = sbr.rel (%p153) target = $region20
      $region19: #{decoder3d_forward.6} parent=5 // pred_region
        // Predicated region
        $region21: #{decoder3d_forward.6} parent=19 // pred_check
          %p156 = pneg %p70
        $region22: #{decoder3d_forward.6} parent=19 // pred_check_branch
          %158 = sbr.rel (%p156) target = $region24
        $region23: #{decoder3d_forward.6} parent=19 // pred_region
          %s159 = sand.u32 %s60, 1
          %s160 = scalar_lea.sflag [#allocation3], %s159
          %s161 = sand.u32 %s60, 1
          %s162 = smul.addr %s161, 32
          %s163 = scalar_lea.vmem [#allocation2], %s162
          %s164 = smul.u32 2, %s20
          %s166 = ssub.s32 512, 512
          %167 = vsyncadd %s160, %s166
          %s168 = smul.addr %s164, 128
          %s169 = scalar_lea.hbm %s1, %s168
          %s170 = sshll.u32 %s163, 4
          %s171 = int_to_ptr.vmem [resolvable:$true] %s170
          %176 = dma.hbm_to_vmem [thread:$0]  %s169, 512, %s171, %s160, 1280, 256, 16
        $region24: #{decoder3d_forward.6} parent=19 // pred_fallthru
          _
        // Predicated region
        $region25: #{decoder3d_forward.6} parent=19 // pred_check
          %p177 = pneg %p96
        $region26: #{decoder3d_forward.6} parent=19 // pred_check_branch
          %179 = sbr.rel (%p177) target = $region28
        $region27: #{decoder3d_forward.6} parent=19 // pred_region
          %s180 = smul.u32 2, %s20
          %p181 = scmp.lt.s32.totalorder %s180, 9
          %s182 = scalar_select %p181, %s180, 9
          %s183 = scalar_lea.vmem %s2, %s182
          %s184 = smul.u32 2, %s20
        $region28: #{decoder3d_forward.6} parent=19 // pred_fallthru
          _
      $region20: #{decoder3d_forward.6} parent=5 // pred_fallthru
        _
      %p185 = scmp.le.s32.totalorder 1, %s12
      %p186 = scmp.lt.s32.totalorder %s12, 6
      %p187 = pnand %p185, %p186
      %p188 = pneg %p187
      // Predicated region
      $region29: #{decoder3d_forward.6} parent=5 // pred_check
        _
      $region30: #{decoder3d_forward.6} parent=5 // pred_check_branch
        %190 = sbr.rel (%p187) target = $region32
      $region31: #{decoder3d_forward.6} parent=5 // pred_region
        %s191 = ssub.s32 %s12, 1
        %s192 = sand.u32 %s63, 1
        %s193 = scalar_lea.sflag [#allocation3], %s192
        %s194 = sand.u32 %s63, 1
        %s195 = smul.addr %s194, 32
        %s196 = scalar_lea.vmem [#allocation2], %s195
        // Predicated region
        $region33: #{decoder3d_forward.6} parent=31 // pred_check
          %p197 = pneg %p76
        $region34: #{decoder3d_forward.6} parent=31 // pred_check_branch
          %199 = sbr.rel (%p197) target = $region36
        $region35: #{decoder3d_forward.6} parent=31 // pred_region
          %200 = dma.done %s193, 512
        $region36: #{decoder3d_forward.6} parent=31 // pred_fallthru
          _
        %p201 = scmp.lt.s32.totalorder %s21, 0
        %s202 = scalar_select %p201, %s21, 0
        %s203 = smul.addr %s202, 8
        %s204 = scalar_lea.vmem %s0, %s203
        %p205 = pneg %p50
        %p206 = pneg %p47
        %s207 = sand.u32 %s63, 1
        %s208 = scalar_lea.sflag [#allocation3], %s207
        %s209 = sand.u32 %s63, 1
        %s210 = smul.addr %s209, 32
        %s211 = scalar_lea.vmem [#allocation2], %s210
        %p212 = pneg %p76
        %p213 = pneg %p73
        %s214 = smul.u32 2, %s22
        %p215 = scmp.lt.s32.totalorder %s214, 9
        %s216 = scalar_select %p215, %s214, 9
        %s217 = scalar_lea.vmem %s2, %s216
        %p218 = pneg %p102
        %p219 = pneg %p99
        %p220 = pneg %p130
        %p221 = pneg %p127
        %s222 = smul.u32 2, %s22
        %p223 = scmp.lt.s32.totalorder %s21, 0
        %s224 = scalar_select %p223, %s21, 0
        %p225 = scmp.lt.s32.totalorder %s222, 9
        %s226 = scalar_select %p225, %s222, 9
        %s227 = smul.addr %s224, 10
        %s228 = sadd.s32 %s226, %s227
        %s229 = smul.addr %s228, 8
        %s230 = scalar_lea.vmem %s3, %s229
        %p231 = scmp.lt.s32.totalorder %s21, 0
        %s232 = scalar_select %p231, %s21, 0
        %s233 = smul.addr %s232, 8
        %s234 = scalar_lea.vmem %s0, %s233
        %s235 = smul.u32 2, %s22
        %s236 = smul.u32 2, %s22
        %p237 = scmp.lt.s32.totalorder %s236, 9
        %s238 = scalar_select %p237, %s236, 9
        %s239 = scalar_lea.vmem %s2, %s238
        %s240 = smul.u32 2, %s22
        %s241 = smul.u32 2, %s22
        %p242 = scmp.lt.s32.totalorder %s21, 0
        %s243 = scalar_select %p242, %s21, 0
        %p244 = scmp.lt.s32.totalorder %s241, 9
        %s245 = scalar_select %p244, %s241, 9
        %s246 = smul.addr %s243, 10
        %s247 = sadd.s32 %s245, %s246
        %s248 = smul.addr %s247, 8
        %s249 = scalar_lea.vmem %s3, %s248
        %s250 = smul.u32 2, %s22
        %v251 = vld [vmem:[%s234] sm:$0xff]
        %v252 = vld [vmem:[%s196] sm:$0xff]
        %v253 = vld [vmem:[%s196 + $0x8] sm:$0xff]
        %v254 = vld [vmem:[%s196 + $0x10] sm:$0xff]
        %v255 = vld [vmem:[%s196 + $0x18] sm:$0xff]
        %v256 = vld [vmem:[%s239] sm:$0x3]
        %v258 = vlaneseq
        %v259 = vshrl.u32 %v258, 7
        %v260 = vsub.s32 0, %v259
        %v261 = vrot.slane %v256, %v260
        %v262 = vlaneseq
        %v263 = vshrl.u32 %v262, 7
        %v264 = vsub.s32 1, %v263
        %v265 = vrot.slane %v256, %v264
        %vm268 = vcmask 130048
        %v270 = vsel %vm268, %v251, 0
        %272 = vmatprep.subr.mxu0 0.0
        %273 = vmatpush1.msra.mxu0 0.0
        %274 = vmatprep.subr.mxu0 0.0
        %275 = vmatpush1.msra.mxu0 0.0
        %276 = vmatprep.subr.mxu0 0.0
        %277 = vmatpush1.msra.mxu0 0.0
        %278 = vmatprep.subr.mxu0 0.0
        %279 = vmatpush1.msra.mxu0 0.0
        %280 = vmatprep.subr.mxu0 0.0
        %281 = vmatpush1.msra.mxu0 0.0
        %282 = vmatprep.subr.mxu0 0.0
        %283 = vmatpush1.msra.mxu0 0.0
        %284 = vmatprep.subr.mxu0 0.0
        %285 = vmatpush1.msra.mxu0 0.0
        %286 = vmatprep.subr.mxu0 0.0
        %287 = vmatpush1.msra.mxu0 0.0
        %288 = vmatprep.subr.mxu0 0.0
        %289 = vmatpush1.msra.mxu0 0.0
        %290 = vmatprep.subr.mxu0 0.0
        %291 = vmatpush1.msra.mxu0 0.0
        %292 = vmatprep.subr.mxu0 0.0
        %293 = vmatpush1.msra.mxu0 0.0
        %294 = vmatprep.subr.mxu0 0.0
        %295 = vmatpush1.msra.mxu0 0.0
        %296 = vmatprep.subr.mxu0 0.0
        %297 = vmatpush1.msra.mxu0 0.0
        %298 = vmatprep.subr.mxu0 0.0
        %299 = vmatpush1.msra.mxu0 0.0
        %300 = vmatprep.subr.mxu0 %v255
        %301 = vmatpush1.msra.mxu0 %v254
        %302 = vmatprep.subr.mxu0 %v253
        %303 = vmatpush1.msra.mxu0 %v252
        %304 = vmatprep.subr.mxu0 0.0
        %305 = vmatpush2.msra.mxu0 0.0
        %306 = vmatprep.subr.mxu0 0.0
        %307 = vmatpush2.msra.mxu0 0.0
        %308 = vmatprep.subr.mxu0 0.0
        %309 = vmatpush2.msra.mxu0 0.0
        %310 = vmatprep.subr.mxu0 0.0
        %311 = vmatpush2.msra.mxu0 0.0
        %312 = vmatprep.subr.mxu0 0.0
        %313 = vmatpush2.msra.mxu0 0.0
        %314 = vmatprep.subr.mxu0 0.0
        %315 = vmatpush2.msra.mxu0 0.0
        %316 = vmatprep.subr.mxu0 0.0
        %317 = vmatpush2.msra.mxu0 0.0
        %318 = vmatprep.subr.mxu0 0.0
        %319 = vmatpush2.msra.mxu0 0.0
        %320 = vmatprep.subr.mxu0 0.0
        %321 = vmatpush2.msra.mxu0 0.0
        %322 = vmatprep.subr.mxu0 0.0
        %323 = vmatpush2.msra.mxu0 0.0
        %324 = vmatprep.subr.mxu0 0.0
        %325 = vmatpush2.msra.mxu0 0.0
        %326 = vmatprep.subr.mxu0 0.0
        %327 = vmatpush2.msra.mxu0 0.0
        %328 = vmatprep.subr.mxu0 0.0
        %329 = vmatpush2.msra.mxu0 0.0
        %330 = vmatprep.subr.mxu0 0.0
        %331 = vmatpush2.msra.mxu0 0.0
        %332 = vmatprep.subr.mxu0 0.0
        %333 = vmatpush2.msra.mxu0 0.0
        %334 = vmatprep.subr.mxu0 0.0
        %335 = vmatpush2.msra.mxu0 0.0
        %336 = vmatprep.mubr.f32.mxu0 0.0
        %337 = vmatmul.mubr.f32.gmra.mxu0 %v270
        %v338 = vpop.f32.mrf.mxu0
        %v339 = vadd.f32 %v261, %v338
        %v340 = vpop.f32.mrf.mxu0
        %v341 = vadd.f32 %v265, %v340
        %342 = vdwg.mxu0
        %343 = vst [vmem:[%s249] sm:$0xff] %v339
        %344 = vst [vmem:[%s249 + $0x8] sm:$0xff] %v341
        %s345 = smul.u32 2, %s22
        %p346 = scmp.lt.s32.totalorder %s21, 0
        %s347 = scalar_select %p346, %s21, 0
        %p348 = scmp.lt.s32.totalorder %s345, 9
        %s349 = scalar_select %p348, %s345, 9
        %s350 = smul.addr %s347, 10
        %s351 = sadd.s32 %s349, %s350
        %s352 = smul.addr %s351, 8
        %s353 = scalar_lea.vmem %s3, %s352
        // Predicated region
        $region37: #{decoder3d_forward.6} parent=31 // pred_check
          %p354 = pneg %p127
        $region38: #{decoder3d_forward.6} parent=31 // pred_check_branch
          %356 = sbr.rel (%p354) target = $region40
        $region39: #{decoder3d_forward.6} parent=31 // pred_region
          %s357 = smul.u32 2, %s22
        $region40: #{decoder3d_forward.6} parent=31 // pred_fallthru
          _
      $region32: #{decoder3d_forward.6} parent=5 // pred_fallthru
        _
      %p358 = scmp.le.s32.totalorder 2, %s12
      // Predicated region
      $region41: #{decoder3d_forward.6} parent=5 // pred_check
        %p359 = pneg %p358
      $region42: #{decoder3d_forward.6} parent=5 // pred_check_branch
        %361 = sbr.rel (%p359) target = $region44
      $region43: #{decoder3d_forward.6} parent=5 // pred_region
        %s362 = ssub.s32 %s12, 2
        // Predicated region
        $region45: #{decoder3d_forward.6} parent=43 // pred_check
          %p363 = pneg %p133
        $region46: #{decoder3d_forward.6} parent=43 // pred_check_branch
          %365 = sbr.rel (%p363) target = $region48
        $region47: #{decoder3d_forward.6} parent=43 // pred_region
          %s366 = smul.u32 2, %s24
          %p367 = scmp.lt.s32.totalorder %s23, 0
          %s368 = scalar_select %p367, %s23, 0
          %p369 = scmp.lt.s32.totalorder %s366, 9
          %s370 = scalar_select %p369, %s366, 9
          %s371 = smul.addr %s368, 10
          %s372 = sadd.s32 %s370, %s371
          %s373 = smul.addr %s372, 8
          %s374 = scalar_lea.vmem %s3, %s373
        $region48: #{decoder3d_forward.6} parent=43 // pred_fallthru
          _
      $region44: #{decoder3d_forward.6} parent=5 // pred_fallthru
        _
    $region6: #{decoder3d_forward.6} parent=1 // loop_footer
      %s16 = sadd.s32 1, %s12
    $region7: #{decoder3d_forward.6} parent=1 // loop_footer_branch
      %11 = sbr.rel target = $region3
    $region8: #{decoder3d_forward.6} parent=1 // loop_exit
      _
    %375 = vsyncpa [#allocation3], 1
    %s376 = scalar_lea.sflag [#allocation3], 1
    %377 = vsyncpa %s376, 1

// kernel: tile.18
$region0: #{tile.18}
  #allocation0 [shape = 's32[1]{0}', space=sflag, size = 0x4, scoped, tag = 'scoped memory for tile.18']
  %s0 = inlined_call_operand.vmem [shape: f32[16], index: 0, kind: input, shape index: {}]
  %s1 = inlined_call_operand.vmem [shape: f32[8,16], index: 1, kind: output, shape index: {}]
  // Predicated region
  $region2: #{tile.18} parent=0 // pred_check
    _
  $region3: #{tile.18} parent=0 // pred_check_branch
    %3 = sbr.rel (0) target = $region5
  $region4: #{tile.18} parent=0 // pred_region
    _
  $region5: #{tile.18} parent=0 // pred_fallthru
    _
  %v4 = vld [vmem:[%s0] ss:$0 sm:$0xff]
  %5 = vst [vmem:[%s1] sm:$0xff] %v4

// kernel: tile.19
$region0: #{tile.19}
  %s0 = inlined_call_operand.vmem [shape: f32[8,16], index: 0, kind: input, shape index: {}]
  %s1 = inlined_call_operand.vmem [shape: f32[1,128], index: 1, kind: output, shape index: {}]
  $region1: #{tile.19} parent=0
    #allocation0 [shape = 'u8[4096]{0}', space=vmem, size = 0x1000, scoped, tag = 'scoped mem for output reshape']
    %v2 = vld [vmem:[%s0] sm:$0x1]
    %vm3 = vcmask 130048
    %4 = vst.msk [vmem:[#allocation0] sm:$0x1] %vm3, %v2
    %s5 = scalar_lea.vmem %s0, 7
    %v6 = vld [vmem:[%s5] sm:$0x1]
    %7 = vrot.lane.b32.xlu0 %v6, 112
    %v8 = vpop.permute.xlu0 %7
    %vm9 = vcmask 1048448
    %10 = vst.msk [vmem:[#allocation0] sm:$0x1] %vm9, %v8
    %s11 = scalar_lea.vmem %s0, 6
    %v12 = vld [vmem:[%s11] sm:$0x1]
    %13 = vrot.lane.b32.xlu0 %v12, 96
    %v14 = vpop.permute.xlu0 %13
    %vm15 = vcmask 917248
    %16 = vst.msk [vmem:[#allocation0] sm:$0x1] %vm15, %v14
    %s17 = scalar_lea.vmem %s0, 5
    %v18 = vld [vmem:[%s17] sm:$0x1]
    %19 = vrot.lane.b32.xlu0 %v18, 80
    %v20 = vpop.permute.xlu0 %19
    %vm21 = vcmask 786048
    %22 = vst.msk [vmem:[#allocation0] sm:$0x1] %vm21, %v20
    %s23 = scalar_lea.vmem %s0, 4
    %v24 = vld [vmem:[%s23] sm:$0x1]
    %25 = vrot.lane.b32.xlu0 %v24, 64
    %v26 = vpop.permute.xlu0 %25
    %vm27 = vcmask 654848
    %28 = vst.msk [vmem:[#allocation0] sm:$0x1] %vm27, %v26
    %s29 = scalar_lea.vmem %s0, 3
    %v30 = vld [vmem:[%s29] sm:$0x1]
    %31 = vrot.lane.b32.xlu0 %v30, 48
    %v32 = vpop.permute.xlu0 %31
    %vm33 = vcmask 523648
    %34 = vst.msk [vmem:[#allocation0] sm:$0x1] %vm33, %v32
    %s35 = scalar_lea.vmem %s0, 2
    %v36 = vld [vmem:[%s35] sm:$0x1]
    %37 = vrot.lane.b32.xlu0 %v36, 32
    %v38 = vpop.permute.xlu0 %37
    %vm39 = vcmask 392448
    %40 = vst.msk [vmem:[#allocation0] sm:$0x1] %vm39, %v38
    %s41 = scalar_lea.vmem %s0, 1
    %v42 = vld [vmem:[%s41] sm:$0x1]
    %43 = vrot.lane.b32.xlu0 %v42, 16
    %v44 = vpop.permute.xlu0 %43
    %vm45 = vcmask 261248
    %46 = vst.msk [vmem:[#allocation0] sm:$0x1] %vm45, %v44
    %s48 = sshll.u32 1, 1
    %s49 = ssub.s32 %s48, 1
    %v51 = vld [vmem:[#allocation0] sm:%s49]
    %s52 = sshll.u32 1, 1
    %s53 = ssub.s32 %s52, 1
    %54 = vst [vmem:[%s1] sm:%s53] %v51

// kernel: decoder3d_forward.7
$region0: #{decoder3d_forward.7}
  #allocation0 [shape = 'u32[]', space=smem, size = 0x4, offset = 0x4, fixed_abs, tag = 'smem constant byte address 0x4 - core index']
  #allocation1 [shape = 'u32[144,128]{1,0:T(1,128)}', space=vmem, size = 0x12000, scoped, tag = 'internal scratch']
  %s0 = inlined_call_operand.vmem [shape: bf16[192,576], index: 0, kind: input, shape index: {}]
  %s1 = inlined_call_operand.vmem [shape: bf16[576,128], index: 1, kind: input, shape index: {}]
  %s2 = inlined_call_operand.vmem [shape: f32[1,128], index: 2, kind: input, shape index: {}]
  %s3 = inlined_call_operand.vmem [shape: bf16[192,128], index: 3, kind: output, shape index: {}]
  %s4 = sld [smem:[#allocation0]]
  $region45: #{decoder3d_forward.7} parent=0
    _
  %s6 = ssub.s32 1, %s4
  %s7 = scalar_select 0, %s6, %s4
  loop: start=0, step=1, limit=4
  $region2: #{decoder3d_forward.7} parent=0 // loop_pre_header
    _
  $region3: #{decoder3d_forward.7} parent=0 // loop_header
    %s9 = sphi 0, %s13
    %p10 = scmp.ge.s32.totalorder %s9, 4
    %s16 = sphi 0, %s28
    %s17 = sphi 0, %s24
    %s18 = sphi 0, %s16
    %s19 = sphi 0, %s17
    %s20 = sphi 0, %s18
    %s21 = sphi 0, %s19
    %s31 = sphi 0, %s33
    %s34 = sphi 0, %s31
    %s35 = sphi 0, %s34
    %s51 = sphi 0, %s35
    %s57 = sphi 0, %s59
    %s60 = sphi 0, %s57
    %s61 = sphi 0, %s60
    %s77 = sphi 0, %s61
    %s83 = sphi 0, %s85
    %s86 = sphi 0, %s83
    %s87 = sphi 0, %s86
    %s103 = sphi 0, %s87
    %s111 = sphi 0, %s113
    %s114 = sphi 0, %s111
    %s115 = sphi 0, %s114
    %s131 = sphi 0, %s115
  $region4: #{decoder3d_forward.7} parent=0 // loop_header_branch
    %12 = sbr.rel (%p10) target = $region8
  $region5: #{decoder3d_forward.7} parent=0 // loop_body
    %s14 = ssub.s32 %s9, 1
    %s15 = ssub.s32 %s9, 2
    %s22 = sadd.s32 1, %s17
    %p23 = scmp.ge.s32.totalorder %s22, 1
    %s24 = scalar_select %p23, 0, %s22
    %s25 = sadd.s32 1, %s16
    %s26 = scalar_select %p23, %s25, %s16
    %p27 = scmp.ge.s32.totalorder %s26, 2
    %s28 = scalar_select %p27, 0, %s26
    %s29 = ssub.s32 %s16, %s28
    %p30 = scmp.eq.s32.totalorder %s29, 0
    %s32 = sadd.s32 %s31, 1
    %s33 = scalar_select %p30, %s31, %s32
    %p36 = pneg %p30
    %p37 = scmp.eq.s32.totalorder %s9, 1
    %p38 = por %p36, %p37
    %p39 = scmp.ne.s32.totalorder %s31, %s34
    %p40 = scmp.eq.s32.totalorder %s9, 0
    %p41 = por %p39, %p40
    %p42 = scmp.ne.s32.totalorder %s31, %s34
    %p43 = scmp.eq.s32.totalorder %s14, 1
    %p44 = por %p42, %p43
    %p45 = scmp.ne.s32.totalorder %s34, %s35
    %p46 = scmp.eq.s32.totalorder %s14, 0
    %p47 = por %p45, %p46
    %p48 = scmp.ne.s32.totalorder %s34, %s35
    %p49 = scmp.eq.s32.totalorder %s15, 1
    %p50 = por %p48, %p49
    %p52 = scmp.ne.s32.totalorder %s35, %s51
    %p53 = scmp.eq.s32.totalorder %s15, 0
    %p54 = por %p52, %p53
    %s55 = ssub.s32 %s17, %s24
    %p56 = scmp.eq.s32.totalorder %s55, 0
    %s58 = sadd.s32 %s57, 1
    %s59 = scalar_select %p56, %s57, %s58
    %p62 = pneg %p56
    %p63 = scmp.eq.s32.totalorder %s9, 1
    %p64 = por %p62, %p63
    %p65 = scmp.ne.s32.totalorder %s57, %s60
    %p66 = scmp.eq.s32.totalorder %s9, 0
    %p67 = por %p65, %p66
    %p68 = scmp.ne.s32.totalorder %s57, %s60
    %p69 = scmp.eq.s32.totalorder %s14, 1
    %p70 = por %p68, %p69
    %p71 = scmp.ne.s32.totalorder %s60, %s61
    %p72 = scmp.eq.s32.totalorder %s14, 0
    %p73 = por %p71, %p72
    %p74 = scmp.ne.s32.totalorder %s60, %s61
    %p75 = scmp.eq.s32.totalorder %s15, 1
    %p76 = por %p74, %p75
    %p78 = scmp.ne.s32.totalorder %s61, %s77
    %p79 = scmp.eq.s32.totalorder %s15, 0
    %p80 = por %p78, %p79
    %s81 = ssub.s32 %s17, %s24
    %p82 = scmp.eq.s32.totalorder %s81, 0
    %s84 = sadd.s32 %s83, 1
    %s85 = scalar_select %p82, %s83, %s84
    %p88 = pneg %p82
    %p89 = scmp.eq.s32.totalorder %s9, 1
    %p90 = por %p88, %p89
    %p91 = scmp.ne.s32.totalorder %s83, %s86
    %p92 = scmp.eq.s32.totalorder %s9, 0
    %p93 = por %p91, %p92
    %p94 = scmp.ne.s32.totalorder %s83, %s86
    %p95 = scmp.eq.s32.totalorder %s14, 1
    %p96 = por %p94, %p95
    %p97 = scmp.ne.s32.totalorder %s86, %s87
    %p98 = scmp.eq.s32.totalorder %s14, 0
    %p99 = por %p97, %p98
    %p100 = scmp.ne.s32.totalorder %s86, %s87
    %p101 = scmp.eq.s32.totalorder %s15, 1
    %p102 = por %p100, %p101
    %p104 = scmp.ne.s32.totalorder %s87, %s103
    %p105 = scmp.eq.s32.totalorder %s15, 0
    %p106 = por %p104, %p105
    %s107 = ssub.s32 %s16, %s28
    %s108 = ssub.s32 %s17, %s24
    %s109 = sor.u32 %s107, %s108
    %p110 = scmp.eq.s32.totalorder %s109, 0
    %s112 = sadd.s32 %s111, 1
    %s113 = scalar_select %p110, %s111, %s112
    %p116 = pneg %p110
    %p117 = scmp.eq.s32.totalorder %s9, 1
    %p118 = por %p116, %p117
    %p119 = scmp.ne.s32.totalorder %s111, %s114
    %p120 = scmp.eq.s32.totalorder %s9, 0
    %p121 = por %p119, %p120
    %p122 = scmp.ne.s32.totalorder %s111, %s114
    %p123 = scmp.eq.s32.totalorder %s14, 1
    %p124 = por %p122, %p123
    %p125 = scmp.ne.s32.totalorder %s114, %s115
    %p126 = scmp.eq.s32.totalorder %s14, 0
    %p127 = por %p125, %p126
    %p128 = scmp.ne.s32.totalorder %s114, %s115
    %p129 = scmp.eq.s32.totalorder %s15, 1
    %p130 = por %p128, %p129
    %p132 = scmp.ne.s32.totalorder %s115, %s131
    %p133 = scmp.eq.s32.totalorder %s15, 0
    %p134 = por %p132, %p133
    %p135 = scmp.le.s32.totalorder 1, %s9
    %p136 = scmp.lt.s32.totalorder %s9, 3
    %p137 = pnand %p135, %p136
    %p138 = pneg %p137
    // Predicated region
    $region9: #{decoder3d_forward.7} parent=5 // pred_check
      _
    $region10: #{decoder3d_forward.7} parent=5 // pred_check_branch
      %140 = sbr.rel (%p137) target = $region12
    $region11: #{decoder3d_forward.7} parent=5 // pred_region
      %s141 = ssub.s32 %s9, 1
      // Predicated region
      $region13: #{decoder3d_forward.7} parent=11 // pred_check
        %p142 = pneg %p73
      $region14: #{decoder3d_forward.7} parent=11 // pred_check_branch
        %144 = sbr.rel (%p142) target = $region16
      $region15: #{decoder3d_forward.7} parent=11 // pred_region
        %p145 = scmp.lt.s32.totalorder %s19, 0
        %s146 = scalar_select %p145, %s19, 0
        %s147 = smul.addr %s146, 4
        %s148 = scalar_lea.vmem %s1, %s147
      $region16: #{decoder3d_forward.7} parent=11 // pred_fallthru
        _
      // Predicated region
      $region17: #{decoder3d_forward.7} parent=11 // pred_check
        %p149 = pneg %p99
      $region18: #{decoder3d_forward.7} parent=11 // pred_check_branch
        %151 = sbr.rel (%p149) target = $region20
      $region19: #{decoder3d_forward.7} parent=11 // pred_region
        %p152 = scmp.lt.s32.totalorder %s19, 0
        %s153 = scalar_select %p152, %s19, 0
        %s154 = scalar_lea.vmem %s2, %s153
      $region20: #{decoder3d_forward.7} parent=11 // pred_fallthru
        _
    $region12: #{decoder3d_forward.7} parent=5 // pred_fallthru
      _
    %p155 = scmp.lt.s32.totalorder %s9, 2
    // Predicated region
    $region21: #{decoder3d_forward.7} parent=5 // pred_check
      %p156 = pneg %p155
    $region22: #{decoder3d_forward.7} parent=5 // pred_check_branch
      %158 = sbr.rel (%p156) target = $region24
    $region23: #{decoder3d_forward.7} parent=5 // pred_region
      // Predicated region
      $region25: #{decoder3d_forward.7} parent=23 // pred_check
        %p159 = pneg %p41
      $region26: #{decoder3d_forward.7} parent=23 // pred_check_branch
        %161 = sbr.rel (%p159) target = $region28
      $region27: #{decoder3d_forward.7} parent=23 // pred_region
        %s162 = smul.u32 12, %s16
        %p163 = scmp.lt.s32.totalorder %s162, 23
        %s164 = scalar_select %p163, %s162, 23
        %s165 = smul.addr %s164, 5
        %s166 = smul.addr %s165, 4
        %s167 = scalar_lea.vmem %s0, %s166
        %s168 = smul.u32 12, %s16
      $region28: #{decoder3d_forward.7} parent=23 // pred_fallthru
        _
    $region24: #{decoder3d_forward.7} parent=5 // pred_fallthru
      _
    %p169 = scmp.le.s32.totalorder 1, %s9
    %p170 = scmp.lt.s32.totalorder %s9, 3
    %p171 = pnand %p169, %p170
    %p172 = pneg %p171
    // Predicated region
    $region29: #{decoder3d_forward.7} parent=5 // pred_check
      _
    $region30: #{decoder3d_forward.7} parent=5 // pred_check_branch
      %174 = sbr.rel (%p171) target = $region32
    $region31: #{decoder3d_forward.7} parent=5 // pred_region
      %s175 = ssub.s32 %s9, 1
      %s176 = smul.u32 12, %s18
      %p177 = scmp.lt.s32.totalorder %s176, 23
      %s178 = scalar_select %p177, %s176, 23
      %s179 = smul.addr %s178, 5
      %s180 = smul.addr %s179, 4
      %s181 = scalar_lea.vmem %s0, %s180
      %p182 = pneg %p47
      %p183 = pneg %p44
      %p184 = scmp.lt.s32.totalorder %s19, 0
      %s185 = scalar_select %p184, %s19, 0
      %s186 = smul.addr %s185, 4
      %s187 = scalar_lea.vmem %s1, %s186
      %p188 = pneg %p73
      %p189 = pneg %p70
      %p190 = scmp.lt.s32.totalorder %s19, 0
      %s191 = scalar_select %p190, %s19, 0
      %s192 = scalar_lea.vmem %s2, %s191
      %p193 = pneg %p99
      %p194 = pneg %p96
      %p195 = pneg %p127
      %p196 = pneg %p124
      %s197 = smul.u32 12, %s18
      %p198 = scmp.lt.s32.totalorder %s197, 23
      %s199 = scalar_select %p198, %s197, 23
      %p200 = scmp.lt.s32.totalorder %s19, 0
      %s201 = scalar_select %p200, %s19, 0
      %s202 = sadd.s32 %s201, %s199
      %s203 = smul.addr %s202, 4
      %s204 = scalar_lea.vmem %s3, %s203
      %s205 = smul.u32 12, %s18
      %p206 = scmp.lt.s32.totalorder %s205, 23
      %s207 = scalar_select %p206, %s205, 23
      %s208 = smul.addr %s207, 5
      %s209 = smul.addr %s208, 4
      %s210 = scalar_lea.vmem %s0, %s209
      %s211 = smul.u32 12, %s18
      %p212 = scmp.lt.s32.totalorder %s19, 0
      %s213 = scalar_select %p212, %s19, 0
      %s214 = smul.addr %s213, 4
      %s215 = scalar_lea.vmem %s1, %s214
      %p216 = scmp.lt.s32.totalorder %s19, 0
      %s217 = scalar_select %p216, %s19, 0
      %s218 = scalar_lea.vmem %s2, %s217
      %s219 = smul.u32 12, %s18
      %p220 = scmp.lt.s32.totalorder %s219, 23
      %s221 = scalar_select %p220, %s219, 23
      %p222 = scmp.lt.s32.totalorder %s19, 0
      %s223 = scalar_select %p222, %s19, 0
      %s224 = sadd.s32 %s223, %s221
      %s225 = smul.addr %s224, 4
      %s226 = scalar_lea.vmem %s3, %s225
      %s227 = smul.u32 12, %s18
      %v229 = vld [vmem:[%s210] sm:$0xff]
      %v230 = vld [vmem:[%s210 + $0x8] sm:$0xff]
      %v231 = vld [vmem:[%s210 + $0x10] sm:$0xf]
      %v232 = vld [vmem:[%s210 + $0x14] sm:$0xff]
      %v233 = vld [vmem:[%s210 + $0x1c] sm:$0xff]
      %v234 = vld [vmem:[%s210 + $0x24] sm:$0xf]
      %v235 = vld [vmem:[%s210 + $0x28] sm:$0xff]
      %v236 = vld [vmem:[%s210 + $0x30] sm:$0xff]
      %v237 = vld [vmem:[%s210 + $0x38] sm:$0xf]
      %v238 = vld [vmem:[%s210 + $0x3c] sm:$0xff]
      %v239 = vld [vmem:[%s210 + $0x44] sm:$0xff]
      %v240 = vld [vmem:[%s210 + $0x4c] sm:$0xf]
      %v241 = vld [vmem:[%s210 + $0x50] sm:$0xff]
      %v242 = vld [vmem:[%s210 + $0x58] sm:$0xff]
      %v243 = vld [vmem:[%s210 + $0x60] sm:$0xf]
      %v244 = vld [vmem:[%s210 + $0x64] sm:$0xff]
      %v245 = vld [vmem:[%s210 + $0x6c] sm:$0xff]
      %v246 = vld [vmem:[%s210 + $0x74] sm:$0xf]
      %v247 = vld [vmem:[%s210 + $0x78] sm:$0xff]
      %v248 = vld [vmem:[%s210 + $0x80] sm:$0xff]
      %v249 = vld [vmem:[%s210 + $0x88] sm:$0xf]
      %v250 = vld [vmem:[%s210 + $0x8c] sm:$0xff]
      %v251 = vld [vmem:[%s210 + $0x94] sm:$0xff]
      %v252 = vld [vmem:[%s210 + $0x9c] sm:$0xf]
      %v253 = vld [vmem:[%s210 + $0xa0] sm:$0xff]
      %v254 = vld [vmem:[%s210 + $0xa8] sm:$0xff]
      %v255 = vld [vmem:[%s210 + $0xb0] sm:$0xf]
      %v256 = vld [vmem:[%s210 + $0xb4] sm:$0xff]
      %v257 = vld [vmem:[%s210 + $0xbc] sm:$0xff]
      %v258 = vld [vmem:[%s210 + $0xc4] sm:$0xf]
      %v259 = vld [vmem:[%s210 + $0xc8] sm:$0xff]
      %v260 = vld [vmem:[%s210 + $0xd0] sm:$0xff]
      %v261 = vld [vmem:[%s210 + $0xd8] sm:$0xf]
      %v262 = vld [vmem:[%s210 + $0xdc] sm:$0xff]
      %v263 = vld [vmem:[%s210 + $0xe4] sm:$0xff]
      %v264 = vld [vmem:[%s210 + $0xec] sm:$0xf]
      %v265 = vld [vmem:[%s215] sm:$0xf]
      %v266 = vld [vmem:[%s215 + $0x4] sm:$0xf]
      %v267 = vld [vmem:[%s215 + $0x8] sm:$0xf]
      %v268 = vld [vmem:[%s215 + $0xc] sm:$0xf]
      %v269 = vld [vmem:[%s215 + $0x10] sm:$0xf]
      %v270 = vld [vmem:[%s215 + $0x14] sm:$0xf]
      %v271 = vld [vmem:[%s215 + $0x18] sm:$0xf]
      %v272 = vld [vmem:[%s215 + $0x1c] sm:$0xf]
      %v273 = vld [vmem:[%s215 + $0x20] sm:$0xf]
      %v274 = vld [vmem:[%s215 + $0x24] sm:$0xf]
      %v275 = vld [vmem:[%s215 + $0x28] sm:$0xf]
      %v276 = vld [vmem:[%s215 + $0x2c] sm:$0xf]
      %v277 = vld [vmem:[%s215 + $0x30] sm:$0xf]
      %v278 = vld [vmem:[%s215 + $0x34] sm:$0xf]
      %v279 = vld [vmem:[%s215 + $0x38] sm:$0xf]
      %v280 = vld [vmem:[%s215 + $0x3c] sm:$0xf]
      %v281 = vld [vmem:[%s215 + $0x40] sm:$0xf]
      %v282 = vld [vmem:[%s215 + $0x44] sm:$0xf]
      %v283 = vld [vmem:[%s215 + $0x48] sm:$0xf]
      %v284 = vld [vmem:[%s215 + $0x4c] sm:$0xf]
      %v285 = vld [vmem:[%s215 + $0x50] sm:$0xf]
      %v286 = vld [vmem:[%s215 + $0x54] sm:$0xf]
      %v287 = vld [vmem:[%s215 + $0x58] sm:$0xf]
      %v288 = vld [vmem:[%s215 + $0x5c] sm:$0xf]
      %v289 = vld [vmem:[%s215 + $0x60] sm:$0xf]
      %v290 = vld [vmem:[%s215 + $0x64] sm:$0xf]
      %v291 = vld [vmem:[%s215 + $0x68] sm:$0xf]
      %v292 = vld [vmem:[%s215 + $0x6c] sm:$0xf]
      %v293 = vld [vmem:[%s215 + $0x70] sm:$0xf]
      %v294 = vld [vmem:[%s215 + $0x74] sm:$0xf]
      %v295 = vld [vmem:[%s215 + $0x78] sm:$0xf]
      %v296 = vld [vmem:[%s215 + $0x7c] sm:$0xf]
      %v297 = vld [vmem:[%s215 + $0x80] sm:$0xf]
      %v298 = vld [vmem:[%s215 + $0x84] sm:$0xf]
      %v299 = vld [vmem:[%s215 + $0x88] sm:$0xf]
      %v300 = vld [vmem:[%s215 + $0x8c] sm:$0xf]
      %v301 = vld [vmem:[%s215 + $0x90] sm:$0xf]
      %v302 = vld [vmem:[%s215 + $0x94] sm:$0xf]
      %v303 = vld [vmem:[%s215 + $0x98] sm:$0xf]
      %v304 = vld [vmem:[%s215 + $0x9c] sm:$0xf]
      %v305 = vld [vmem:[%s215 + $0xa0] sm:$0xf]
      %v306 = vld [vmem:[%s215 + $0xa4] sm:$0xf]
      %v307 = vld [vmem:[%s215 + $0xa8] sm:$0xf]
      %v308 = vld [vmem:[%s215 + $0xac] sm:$0xf]
      %v309 = vld [vmem:[%s215 + $0xb0] sm:$0xf]
      %v310 = vld [vmem:[%s215 + $0xb4] sm:$0xf]
      %v311 = vld [vmem:[%s215 + $0xb8] sm:$0xf]
      %v312 = vld [vmem:[%s215 + $0xbc] sm:$0xf]
      %v313 = vld [vmem:[%s215 + $0xc0] sm:$0xf]
      %v314 = vld [vmem:[%s215 + $0xc4] sm:$0xf]
      %v315 = vld [vmem:[%s215 + $0xc8] sm:$0xf]
      %v316 = vld [vmem:[%s215 + $0xcc] sm:$0xf]
      %v317 = vld [vmem:[%s215 + $0xd0] sm:$0xf]
      %v318 = vld [vmem:[%s215 + $0xd4] sm:$0xf]
      %v319 = vld [vmem:[%s215 + $0xd8] sm:$0xf]
      %v320 = vld [vmem:[%s215 + $0xdc] sm:$0xf]
      %v321 = vld [vmem:[%s215 + $0xe0] sm:$0xf]
      %v322 = vld [vmem:[%s215 + $0xe4] sm:$0xf]
      %v323 = vld [vmem:[%s215 + $0xe8] sm:$0xf]
      %v324 = vld [vmem:[%s215 + $0xec] sm:$0xf]
      %v325 = vld [vmem:[%s215 + $0xf0] sm:$0xf]
      %v326 = vld [vmem:[%s215 + $0xf4] sm:$0xf]
      %v327 = vld [vmem:[%s215 + $0xf8] sm:$0xf]
      %v328 = vld [vmem:[%s215 + $0xfc] sm:$0xf]
      %v329 = vld [vmem:[%s215 + $0x100] sm:$0xf]
      %v330 = vld [vmem:[%s215 + $0x104] sm:$0xf]
      %v331 = vld [vmem:[%s215 + $0x108] sm:$0xf]
      %v332 = vld [vmem:[%s215 + $0x10c] sm:$0xf]
      %v333 = vld [vmem:[%s215 + $0x110] sm:$0xf]
      %v334 = vld [vmem:[%s215 + $0x114] sm:$0xf]
      %v335 = vld [vmem:[%s215 + $0x118] sm:$0xf]
      %v336 = vld [vmem:[%s215 + $0x11c] sm:$0xf]
      %v337 = vld [vmem:[%s218] sm:$0x1]
      %v339 = vlaneseq
      %v340 = vshrl.u32 %v339, 7
      %v341 = vsub.s32 0, %v340
      %v342 = vrot.slane %v337, %v341
      %v380 = vunpack.c.l.b16 %v229
      %v381 = vunpack.c.h.b16 %v229
      %v382 = vunpack.c.l.b16 %v230
      %v383 = vunpack.c.h.b16 %v230
      %v384 = vunpack.c.l.b16 %v231
      %v385 = vunpack.c.l.b16 %v232
      %v386 = vunpack.c.h.b16 %v232
      %v387 = vunpack.c.l.b16 %v233
      %v388 = vunpack.c.h.b16 %v233
      %v389 = vunpack.c.l.b16 %v234
      %v390 = vunpack.c.l.b16 %v235
      %v391 = vunpack.c.h.b16 %v235
      %v392 = vunpack.c.l.b16 %v236
      %v393 = vunpack.c.h.b16 %v236
      %v394 = vunpack.c.l.b16 %v237
      %v395 = vunpack.c.l.b16 %v238
      %v396 = vunpack.c.h.b16 %v238
      %v397 = vunpack.c.l.b16 %v239
      %v398 = vunpack.c.h.b16 %v239
      %v399 = vunpack.c.l.b16 %v240
      %v400 = vunpack.c.l.b16 %v241
      %v401 = vunpack.c.h.b16 %v241
      %v402 = vunpack.c.l.b16 %v242
      %v403 = vunpack.c.h.b16 %v242
      %v404 = vunpack.c.l.b16 %v243
      %v405 = vunpack.c.l.b16 %v244
      %v406 = vunpack.c.h.b16 %v244
      %v407 = vunpack.c.l.b16 %v245
      %v408 = vunpack.c.h.b16 %v245
      %v409 = vunpack.c.l.b16 %v246
      %v410 = vunpack.c.l.b16 %v247
      %v411 = vunpack.c.h.b16 %v247
      %v412 = vunpack.c.l.b16 %v248
      %v413 = vunpack.c.h.b16 %v248
      %v414 = vunpack.c.l.b16 %v249
      %v415 = vunpack.c.l.b16 %v250
      %v416 = vunpack.c.h.b16 %v250
      %v417 = vunpack.c.l.b16 %v251
      %v418 = vunpack.c.h.b16 %v251
      %v419 = vunpack.c.l.b16 %v252
      %v420 = vunpack.c.l.b16 %v253
      %v421 = vunpack.c.h.b16 %v253
      %v422 = vunpack.c.l.b16 %v254
      %v423 = vunpack.c.h.b16 %v254
      %v424 = vunpack.c.l.b16 %v255
      %v425 = vunpack.c.l.b16 %v256
      %v426 = vunpack.c.h.b16 %v256
      %v427 = vunpack.c.l.b16 %v257
      %v428 = vunpack.c.h.b16 %v257
      %v429 = vunpack.c.l.b16 %v258
      %v430 = vunpack.c.l.b16 %v259
      %v431 = vunpack.c.h.b16 %v259
      %v432 = vunpack.c.l.b16 %v260
      %v433 = vunpack.c.h.b16 %v260
      %v434 = vunpack.c.l.b16 %v261
      %v435 = vunpack.c.l.b16 %v262
      %v436 = vunpack.c.h.b16 %v262
      %v437 = vunpack.c.l.b16 %v263
      %v438 = vunpack.c.h.b16 %v263
      %v439 = vunpack.c.l.b16 %v264
      %v440 = vpack.c.b16 %v385, %v380
      %v441 = vpack.c.b16 %v386, %v381
      %v442 = vpack.c.b16 %v387, %v382
      %v443 = vpack.c.b16 %v388, %v383
      %v444 = vpack.c.b16 %v389, %v384
      %v445 = vpack.c.b16 %v395, %v390
      %v446 = vpack.c.b16 %v396, %v391
      %v447 = vpack.c.b16 %v397, %v392
      %v448 = vpack.c.b16 %v398, %v393
      %v449 = vpack.c.b16 %v399, %v394
      %v450 = vpack.c.b16 %v405, %v400
      %v451 = vpack.c.b16 %v406, %v401
      %v452 = vpack.c.b16 %v407, %v402
      %v453 = vpack.c.b16 %v408, %v403
      %v454 = vpack.c.b16 %v409, %v404
      %v455 = vpack.c.b16 %v415, %v410
      %v456 = vpack.c.b16 %v416, %v411
      %v457 = vpack.c.b16 %v417, %v412
      %v458 = vpack.c.b16 %v418, %v413
      %v459 = vpack.c.b16 %v419, %v414
      %v460 = vpack.c.b16 %v425, %v420
      %v461 = vpack.c.b16 %v426, %v421
      %v462 = vpack.c.b16 %v427, %v422
      %v463 = vpack.c.b16 %v428, %v423
      %v464 = vpack.c.b16 %v429, %v424
      %v465 = vpack.c.b16 %v435, %v430
      %v466 = vpack.c.b16 %v436, %v431
      %v467 = vpack.c.b16 %v437, %v432
      %v468 = vpack.c.b16 %v438, %v433
      %v469 = vpack.c.b16 %v439, %v434
      %v566 = vunpack.c.l.b16 %v265
      %v567 = vunpack.c.l.b16 %v266
      %v568 = vunpack.c.l.b16 %v267
      %v569 = vunpack.c.l.b16 %v268
      %v570 = vunpack.c.l.b16 %v269
      %v571 = vunpack.c.l.b16 %v270
      %v572 = vunpack.c.l.b16 %v271
      %v573 = vunpack.c.l.b16 %v272
      %v574 = vunpack.c.l.b16 %v273
      %v575 = vunpack.c.l.b16 %v274
      %v576 = vunpack.c.l.b16 %v275
      %v577 = vunpack.c.l.b16 %v276
      %v578 = vunpack.c.l.b16 %v277
      %v579 = vunpack.c.l.b16 %v278
      %v580 = vunpack.c.l.b16 %v279
      %v581 = vunpack.c.l.b16 %v280
      %v582 = vunpack.c.l.b16 %v281
      %v583 = vunpack.c.l.b16 %v282
      %v584 = vunpack.c.l.b16 %v283
      %v585 = vunpack.c.l.b16 %v284
      %v586 = vunpack.c.l.b16 %v285
      %v587 = vunpack.c.l.b16 %v286
      %v588 = vunpack.c.l.b16 %v287
      %v589 = vunpack.c.l.b16 %v288
      %v590 = vunpack.c.l.b16 %v289
      %v591 = vunpack.c.l.b16 %v290
      %v592 = vunpack.c.l.b16 %v291
      %v593 = vunpack.c.l.b16 %v292
      %v594 = vunpack.c.l.b16 %v293
      %v595 = vunpack.c.l.b16 %v294
      %v596 = vunpack.c.l.b16 %v295
      %v597 = vunpack.c.l.b16 %v296
      %v598 = vunpack.c.l.b16 %v297
      %v599 = vunpack.c.l.b16 %v298
      %v600 = vunpack.c.l.b16 %v299
      %v601 = vunpack.c.l.b16 %v300
      %v602 = vunpack.c.l.b16 %v301
      %v603 = vunpack.c.l.b16 %v302
      %v604 = vunpack.c.l.b16 %v303
      %v605 = vunpack.c.l.b16 %v304
      %v606 = vunpack.c.l.b16 %v305
      %v607 = vunpack.c.l.b16 %v306
      %v608 = vunpack.c.l.b16 %v307
      %v609 = vunpack.c.l.b16 %v308
      %v610 = vunpack.c.l.b16 %v309
      %v611 = vunpack.c.l.b16 %v310
      %v612 = vunpack.c.l.b16 %v311
      %v613 = vunpack.c.l.b16 %v312
      %v614 = vunpack.c.l.b16 %v313
      %v615 = vunpack.c.l.b16 %v314
      %v616 = vunpack.c.l.b16 %v315
      %v617 = vunpack.c.l.b16 %v316
      %v618 = vunpack.c.l.b16 %v317
      %v619 = vunpack.c.l.b16 %v318
      %v620 = vunpack.c.l.b16 %v319
      %v621 = vunpack.c.l.b16 %v320
      %v622 = vunpack.c.l.b16 %v321
      %v623 = vunpack.c.l.b16 %v322
      %v624 = vunpack.c.l.b16 %v323
      %v625 = vunpack.c.l.b16 %v324
      %v626 = vunpack.c.l.b16 %v325
      %v627 = vunpack.c.l.b16 %v326
      %v628 = vunpack.c.l.b16 %v327
      %v629 = vunpack.c.l.b16 %v328
      %v630 = vunpack.c.l.b16 %v329
      %v631 = vunpack.c.l.b16 %v330
      %v632 = vunpack.c.l.b16 %v331
      %v633 = vunpack.c.l.b16 %v332
      %v634 = vunpack.c.l.b16 %v333
      %v635 = vunpack.c.l.b16 %v334
      %v636 = vunpack.c.l.b16 %v335
      %v637 = vunpack.c.l.b16 %v336
      %v638 = vpack.c.b16 %v567, %v566
      %v639 = vpack.c.b16 %v569, %v568
      %v640 = vpack.c.b16 %v571, %v570
      %v641 = vpack.c.b16 %v573, %v572
      %v642 = vpack.c.b16 %v575, %v574
      %v643 = vpack.c.b16 %v577, %v576
      %v644 = vpack.c.b16 %v579, %v578
      %v645 = vpack.c.b16 %v581, %v580
      %v646 = vpack.c.b16 %v583, %v582
      %v647 = vpack.c.b16 %v585, %v584
      %v648 = vpack.c.b16 %v587, %v586
      %v649 = vpack.c.b16 %v589, %v588
      %v650 = vpack.c.b16 %v591, %v590
      %v651 = vpack.c.b16 %v593, %v592
      %v652 = vpack.c.b16 %v595, %v594
      %v653 = vpack.c.b16 %v597, %v596
      %v654 = vpack.c.b16 %v599, %v598
      %v655 = vpack.c.b16 %v601, %v600
      %v656 = vpack.c.b16 %v603, %v602
      %v657 = vpack.c.b16 %v605, %v604
      %v658 = vpack.c.b16 %v607, %v606
      %v659 = vpack.c.b16 %v609, %v608
      %v660 = vpack.c.b16 %v611, %v610
      %v661 = vpack.c.b16 %v613, %v612
      %v662 = vpack.c.b16 %v615, %v614
      %v663 = vpack.c.b16 %v617, %v616
      %v664 = vpack.c.b16 %v619, %v618
      %v665 = vpack.c.b16 %v621, %v620
      %v666 = vpack.c.b16 %v623, %v622
      %v667 = vpack.c.b16 %v625, %v624
      %v668 = vpack.c.b16 %v627, %v626
      %v669 = vpack.c.b16 %v629, %v628
      %v670 = vpack.c.b16 %v631, %v630
      %v671 = vpack.c.b16 %v633, %v632
      %v672 = vpack.c.b16 %v635, %v634
      %v673 = vpack.c.b16 %v637, %v636
      %vm710 = vcmask 523264
      %v712 = vsel %vm710, %v444, 0
      %v715 = vsel %vm710, %v449, 0
      %v718 = vsel %vm710, %v454, 0
      %v721 = vsel %vm710, %v459, 0
      %v724 = vsel %vm710, %v464, 0
      %v727 = vsel %vm710, %v469, 0
      %729 = vmatprep.subr.bf16.mxu0 0
      %730 = vmatpush1.bf16.msra.mxu0 %v645
      %731 = vmatprep.subr.bf16.mxu0 0
      %732 = vmatpush1.bf16.msra.mxu0 %v644
      %733 = vmatprep.subr.bf16.mxu0 0
      %734 = vmatpush1.bf16.msra.mxu0 %v643
      %735 = vmatprep.subr.bf16.mxu0 0
      %736 = vmatpush1.bf16.msra.mxu0 %v642
      %737 = vmatprep.subr.bf16.mxu0 0
      %738 = vmatpush1.bf16.msra.mxu0 %v641
      %739 = vmatprep.subr.bf16.mxu0 0
      %740 = vmatpush1.bf16.msra.mxu0 %v640
      %741 = vmatprep.subr.bf16.mxu0 0
      %742 = vmatpush1.bf16.msra.mxu0 %v639
      %743 = vmatprep.subr.bf16.mxu0 0
      %744 = vmatpush1.bf16.msra.mxu0 %v638
      %745 = vmatprep.subr.bf16.mxu0 0
      %746 = vmatpush2.bf16.msra.mxu0 %v653
      %747 = vmatprep.subr.bf16.mxu0 0
      %748 = vmatpush2.bf16.msra.mxu0 %v652
      %749 = vmatprep.subr.bf16.mxu0 0
      %750 = vmatpush2.bf16.msra.mxu0 %v651
      %751 = vmatprep.subr.bf16.mxu0 0
      %752 = vmatpush2.bf16.msra.mxu0 %v650
      %753 = vmatprep.subr.bf16.mxu0 0
      %754 = vmatpush2.bf16.msra.mxu0 %v649
      %755 = vmatprep.subr.bf16.mxu0 0
      %756 = vmatpush2.bf16.msra.mxu0 %v648
      %757 = vmatprep.subr.bf16.mxu0 0
      %758 = vmatpush2.bf16.msra.mxu0 %v647
      %759 = vmatprep.subr.bf16.mxu0 0
      %760 = vmatpush2.bf16.msra.mxu0 %v646
      %761 = vmatprep.mubr.bf16.mxu0 %v441
      %762 = vmatmul.mubr.bf16.gmra.mxu0 %v440
      %v763 = vpop.f32.mrf.mxu0
      %v764 = vadd.f32 %v342, %v763
      %v765 = vpop.f32.mrf.mxu0
      %v766 = vpop.f32.mrf.mxu0
      %v767 = vadd.f32 %v342, %v766
      %v768 = vpop.f32.mrf.mxu0
      %769 = vmatprep.mubr.bf16.mxu0 %v446
      %770 = vmatmul.mubr.bf16.gmra.mxu0 %v445
      %v771 = vpop.f32.mrf.mxu0
      %v772 = vadd.f32 %v342, %v771
      %v773 = vpop.f32.mrf.mxu0
      %v774 = vpop.f32.mrf.mxu0
      %v775 = vadd.f32 %v342, %v774
      %v776 = vpop.f32.mrf.mxu0
      %777 = vmatprep.mubr.bf16.mxu0 %v451
      %778 = vmatmul.mubr.bf16.gmra.mxu0 %v450
      %v779 = vpop.f32.mrf.mxu0
      %v780 = vadd.f32 %v342, %v779
      %v781 = vpop.f32.mrf.mxu0
      %v782 = vpop.f32.mrf.mxu0
      %v783 = vadd.f32 %v342, %v782
      %v784 = vpop.f32.mrf.mxu0
      %785 = vmatprep.mubr.bf16.mxu0 %v456
      %786 = vmatmul.mubr.bf16.gmra.mxu0 %v455
      %v787 = vpop.f32.mrf.mxu0
      %v788 = vadd.f32 %v342, %v787
      %v789 = vpop.f32.mrf.mxu0
      %v790 = vpop.f32.mrf.mxu0
      %v791 = vadd.f32 %v342, %v790
      %v792 = vpop.f32.mrf.mxu0
      %793 = vmatprep.mubr.bf16.mxu0 %v461
      %794 = vmatmul.mubr.bf16.gmra.mxu0 %v460
      %v795 = vpop.f32.mrf.mxu0
      %v796 = vadd.f32 %v342, %v795
      %v797 = vpop.f32.mrf.mxu0
      %v798 = vpop.f32.mrf.mxu0
      %v799 = vadd.f32 %v342, %v798
      %v800 = vpop.f32.mrf.mxu0
      %801 = vmatprep.mubr.bf16.mxu0 %v466
      %802 = vmatmul.mubr.bf16.gmra.mxu0 %v465
      %v803 = vpop.f32.mrf.mxu0
      %v804 = vadd.f32 %v342, %v803
      %v805 = vpop.f32.mrf.mxu0
      %v806 = vpop.f32.mrf.mxu0
      %v807 = vadd.f32 %v342, %v806
      %v808 = vpop.f32.mrf.mxu0
      %809 = vdwg.mxu0
      %810 = vmatprep.subr.bf16.mxu0 0
      %811 = vmatpush1.bf16.msra.mxu0 %v661
      %812 = vmatprep.subr.bf16.mxu0 0
      %813 = vmatpush1.bf16.msra.mxu0 %v660
      %814 = vmatprep.subr.bf16.mxu0 0
      %815 = vmatpush1.bf16.msra.mxu0 %v659
      %816 = vmatprep.subr.bf16.mxu0 0
      %817 = vmatpush1.bf16.msra.mxu0 %v658
      %818 = vmatprep.subr.bf16.mxu0 0
      %819 = vmatpush1.bf16.msra.mxu0 %v657
      %820 = vmatprep.subr.bf16.mxu0 0
      %821 = vmatpush1.bf16.msra.mxu0 %v656
      %822 = vmatprep.subr.bf16.mxu0 0
      %823 = vmatpush1.bf16.msra.mxu0 %v655
      %824 = vmatprep.subr.bf16.mxu0 0
      %825 = vmatpush1.bf16.msra.mxu0 %v654
      %826 = vmatprep.subr.bf16.mxu0 0
      %827 = vmatpush2.bf16.msra.mxu0 %v669
      %828 = vmatprep.subr.bf16.mxu0 0
      %829 = vmatpush2.bf16.msra.mxu0 %v668
      %830 = vmatprep.subr.bf16.mxu0 0
      %831 = vmatpush2.bf16.msra.mxu0 %v667
      %832 = vmatprep.subr.bf16.mxu0 0
      %833 = vmatpush2.bf16.msra.mxu0 %v666
      %834 = vmatprep.subr.bf16.mxu0 0
      %835 = vmatpush2.bf16.msra.mxu0 %v665
      %836 = vmatprep.subr.bf16.mxu0 0
      %837 = vmatpush2.bf16.msra.mxu0 %v664
      %838 = vmatprep.subr.bf16.mxu0 0
      %839 = vmatpush2.bf16.msra.mxu0 %v663
      %840 = vmatprep.subr.bf16.mxu0 0
      %841 = vmatpush2.bf16.msra.mxu0 %v662
      %842 = vmatprep.mubr.bf16.mxu0 %v443
      %843 = vmatmul.mubr.bf16.gmra.mxu0 %v442
      %v844 = vpop.f32.mrf.mxu0
      %v845 = vadd.f32 %v764, %v844
      %v846 = vpop.f32.mrf.mxu0
      %v847 = vpop.f32.mrf.mxu0
      %v848 = vadd.f32 %v767, %v847
      %v849 = vpop.f32.mrf.mxu0
      %850 = vmatprep.mubr.bf16.mxu0 %v448
      %851 = vmatmul.mubr.bf16.gmra.mxu0 %v447
      %v852 = vpop.f32.mrf.mxu0
      %v853 = vadd.f32 %v772, %v852
      %v854 = vpop.f32.mrf.mxu0
      %v855 = vpop.f32.mrf.mxu0
      %v856 = vadd.f32 %v775, %v855
      %v857 = vpop.f32.mrf.mxu0
      %858 = vmatprep.mubr.bf16.mxu0 %v453
      %859 = vmatmul.mubr.bf16.gmra.mxu0 %v452
      %v860 = vpop.f32.mrf.mxu0
      %v861 = vadd.f32 %v780, %v860
      %v862 = vpop.f32.mrf.mxu0
      %v863 = vpop.f32.mrf.mxu0
      %v864 = vadd.f32 %v783, %v863
      %v865 = vpop.f32.mrf.mxu0
      %866 = vmatprep.mubr.bf16.mxu0 %v458
      %867 = vmatmul.mubr.bf16.gmra.mxu0 %v457
      %v868 = vpop.f32.mrf.mxu0
      %v869 = vadd.f32 %v788, %v868
      %v870 = vpop.f32.mrf.mxu0
      %v871 = vpop.f32.mrf.mxu0
      %v872 = vadd.f32 %v791, %v871
      %v873 = vpop.f32.mrf.mxu0
      %874 = vmatprep.mubr.bf16.mxu0 %v463
      %875 = vmatmul.mubr.bf16.gmra.mxu0 %v462
      %v876 = vpop.f32.mrf.mxu0
      %v877 = vadd.f32 %v796, %v876
      %v878 = vpop.f32.mrf.mxu0
      %v879 = vpop.f32.mrf.mxu0
      %v880 = vadd.f32 %v799, %v879
      %v881 = vpop.f32.mrf.mxu0
      %882 = vmatprep.mubr.bf16.mxu0 %v468
      %883 = vmatmul.mubr.bf16.gmra.mxu0 %v467
      %v884 = vpop.f32.mrf.mxu0
      %v885 = vadd.f32 %v804, %v884
      %v886 = vpop.f32.mrf.mxu0
      %v887 = vpop.f32.mrf.mxu0
      %v888 = vadd.f32 %v807, %v887
      %v889 = vpop.f32.mrf.mxu0
      %890 = vdwg.mxu0
      %891 = vmatprep.subr.bf16.mxu0 0
      %892 = vmatpush1.bf16.msra.mxu0 0
      %893 = vmatprep.subr.bf16.mxu0 0
      %894 = vmatpush1.bf16.msra.mxu0 0
      %895 = vmatprep.subr.bf16.mxu0 0
      %896 = vmatpush1.bf16.msra.mxu0 0
      %897 = vmatprep.subr.bf16.mxu0 0
      %898 = vmatpush1.bf16.msra.mxu0 0
      %899 = vmatprep.subr.bf16.mxu0 0
      %900 = vmatpush1.bf16.msra.mxu0 %v673
      %901 = vmatprep.subr.bf16.mxu0 0
      %902 = vmatpush1.bf16.msra.mxu0 %v672
      %903 = vmatprep.subr.bf16.mxu0 0
      %904 = vmatpush1.bf16.msra.mxu0 %v671
      %905 = vmatprep.subr.bf16.mxu0 0
      %906 = vmatpush1.bf16.msra.mxu0 %v670
      %907 = vmatprep.subr.bf16.mxu0 0
      %908 = vmatpush2.bf16.msra.mxu0 0
      %909 = vmatprep.subr.bf16.mxu0 0
      %910 = vmatpush2.bf16.msra.mxu0 0
      %911 = vmatprep.subr.bf16.mxu0 0
      %912 = vmatpush2.bf16.msra.mxu0 0
      %913 = vmatprep.subr.bf16.mxu0 0
      %914 = vmatpush2.bf16.msra.mxu0 0
      %915 = vmatprep.subr.bf16.mxu0 0
      %916 = vmatpush2.bf16.msra.mxu0 0
      %917 = vmatprep.subr.bf16.mxu0 0
      %918 = vmatpush2.bf16.msra.mxu0 0
      %919 = vmatprep.subr.bf16.mxu0 0
      %920 = vmatpush2.bf16.msra.mxu0 0
      %921 = vmatprep.subr.bf16.mxu0 0
      %922 = vmatpush2.bf16.msra.mxu0 0
      %923 = vmatprep.mubr.bf16.mxu0 0
      %924 = vmatmul.mubr.bf16.gmra.mxu0 %v712
      %v925 = vpop.f32.mrf.mxu0
      %v926 = vadd.f32 %v845, %v925
      %v927 = vpop.f32.mrf.mxu0
      %v928 = vpop.f32.mrf.mxu0
      %v929 = vadd.f32 %v848, %v928
      %v930 = vpop.f32.mrf.mxu0
      %931 = vmatprep.mubr.bf16.mxu0 0
      %932 = vmatmul.mubr.bf16.gmra.mxu0 %v715
      %v933 = vpop.f32.mrf.mxu0
      %v934 = vadd.f32 %v853, %v933
      %v935 = vpop.f32.mrf.mxu0
      %v936 = vpop.f32.mrf.mxu0
      %v937 = vadd.f32 %v856, %v936
      %v938 = vpop.f32.mrf.mxu0
      %939 = vmatprep.mubr.bf16.mxu0 0
      %940 = vmatmul.mubr.bf16.gmra.mxu0 %v718
      %v941 = vpop.f32.mrf.mxu0
      %v942 = vadd.f32 %v861, %v941
      %v943 = vpop.f32.mrf.mxu0
      %v944 = vpop.f32.mrf.mxu0
      %v945 = vadd.f32 %v864, %v944
      %v946 = vpop.f32.mrf.mxu0
      %947 = vmatprep.mubr.bf16.mxu0 0
      %948 = vmatmul.mubr.bf16.gmra.mxu0 %v721
      %v949 = vpop.f32.mrf.mxu0
      %v950 = vadd.f32 %v869, %v949
      %v951 = vpop.f32.mrf.mxu0
      %v952 = vpop.f32.mrf.mxu0
      %v953 = vadd.f32 %v872, %v952
      %v954 = vpop.f32.mrf.mxu0
      %955 = vmatprep.mubr.bf16.mxu0 0
      %956 = vmatmul.mubr.bf16.gmra.mxu0 %v724
      %v957 = vpop.f32.mrf.mxu0
      %v958 = vadd.f32 %v877, %v957
      %v959 = vpop.f32.mrf.mxu0
      %v960 = vpop.f32.mrf.mxu0
      %v961 = vadd.f32 %v880, %v960
      %v962 = vpop.f32.mrf.mxu0
      %963 = vmatprep.mubr.bf16.mxu0 0
      %964 = vmatmul.mubr.bf16.gmra.mxu0 %v727
      %v965 = vpop.f32.mrf.mxu0
      %v966 = vadd.f32 %v885, %v965
      %v967 = vpop.f32.mrf.mxu0
      %v968 = vpop.f32.mrf.mxu0
      %v969 = vadd.f32 %v888, %v968
      %v970 = vpop.f32.mrf.mxu0
      %971 = vdwg.mxu0
      %v972 = vmax.f32 %v926, 0.0
      %v973 = vmax.f32 %v929, 0.0
      %v974 = vmax.f32 %v934, 0.0
      %v975 = vmax.f32 %v937, 0.0
      %v976 = vmax.f32 %v942, 0.0
      %v977 = vmax.f32 %v945, 0.0
      %v978 = vmax.f32 %v950, 0.0
      %v979 = vmax.f32 %v953, 0.0
      %v980 = vmax.f32 %v958, 0.0
      %v981 = vmax.f32 %v961, 0.0
      %v982 = vmax.f32 %v966, 0.0
      %v983 = vmax.f32 %v969, 0.0
      %v984 = vpack.c.bf16 %v973, %v972
      %v985 = vpack.c.bf16 %v975, %v974
      %v986 = vpack.c.bf16 %v977, %v976
      %v987 = vpack.c.bf16 %v979, %v978
      %v988 = vpack.c.bf16 %v981, %v980
      %v989 = vpack.c.bf16 %v983, %v982
      %v996 = vunpack.c.l.b16 %v984
      %v997 = vunpack.c.h.b16 %v984
      %v998 = vunpack.c.l.b16 %v985
      %v999 = vunpack.c.h.b16 %v985
      %v1000 = vunpack.c.l.b16 %v986
      %v1001 = vunpack.c.h.b16 %v986
      %v1002 = vunpack.c.l.b16 %v987
      %v1003 = vunpack.c.h.b16 %v987
      %v1004 = vunpack.c.l.b16 %v988
      %v1005 = vunpack.c.h.b16 %v988
      %v1006 = vunpack.c.l.b16 %v989
      %v1007 = vunpack.c.h.b16 %v989
      %v1008 = vpack.c.b16 %v996, %v996
      %v1009 = vpack.c.b16 %v997, %v997
      %v1010 = vpack.c.b16 %v998, %v998
      %v1011 = vpack.c.b16 %v999, %v999
      %v1012 = vpack.c.b16 %v1000, %v1000
      %v1013 = vpack.c.b16 %v1001, %v1001
      %v1014 = vpack.c.b16 %v1002, %v1002
      %v1015 = vpack.c.b16 %v1003, %v1003
      %v1016 = vpack.c.b16 %v1004, %v1004
      %v1017 = vpack.c.b16 %v1005, %v1005
      %v1018 = vpack.c.b16 %v1006, %v1006
      %v1019 = vpack.c.b16 %v1007, %v1007
      %1032 = vst [vmem:[%s226] sm:$0xf] %v1008
      %1033 = vst [vmem:[%s226 + $0x4] sm:$0xf] %v1009
      %1034 = vst [vmem:[%s226 + $0x8] sm:$0xf] %v1010
      %1035 = vst [vmem:[%s226 + $0xc] sm:$0xf] %v1011
      %1036 = vst [vmem:[%s226 + $0x10] sm:$0xf] %v1012
      %1037 = vst [vmem:[%s226 + $0x14] sm:$0xf] %v1013
      %1038 = vst [vmem:[%s226 + $0x18] sm:$0xf] %v1014
      %1039 = vst [vmem:[%s226 + $0x1c] sm:$0xf] %v1015
      %1040 = vst [vmem:[%s226 + $0x20] sm:$0xf] %v1016
      %1041 = vst [vmem:[%s226 + $0x24] sm:$0xf] %v1017
      %1042 = vst [vmem:[%s226 + $0x28] sm:$0xf] %v1018
      %1043 = vst [vmem:[%s226 + $0x2c] sm:$0xf] %v1019
      %s1044 = smul.u32 12, %s18
      %p1045 = scmp.lt.s32.totalorder %s1044, 23
      %s1046 = scalar_select %p1045, %s1044, 23
      %p1047 = scmp.lt.s32.totalorder %s19, 0
      %s1048 = scalar_select %p1047, %s19, 0
      %s1049 = sadd.s32 %s1048, %s1046
      %s1050 = smul.addr %s1049, 4
      %s1051 = scalar_lea.vmem %s3, %s1050
      // Predicated region
      $region33: #{decoder3d_forward.7} parent=31 // pred_check
        %p1052 = pneg %p124
      $region34: #{decoder3d_forward.7} parent=31 // pred_check_branch
        %1054 = sbr.rel (%p1052) target = $region36
      $region35: #{decoder3d_forward.7} parent=31 // pred_region
        %s1055 = smul.u32 12, %s18
      $region36: #{decoder3d_forward.7} parent=31 // pred_fallthru
        _
    $region32: #{decoder3d_forward.7} parent=5 // pred_fallthru
      _
    %p1056 = scmp.le.s32.totalorder 2, %s9
    // Predicated region
    $region37: #{decoder3d_forward.7} parent=5 // pred_check
      %p1057 = pneg %p1056
    $region38: #{decoder3d_forward.7} parent=5 // pred_check_branch
      %1059 = sbr.rel (%p1057) target = $region40
    $region39: #{decoder3d_forward.7} parent=5 // pred_region
      %s1060 = ssub.s32 %s9, 2
      // Predicated region
      $region41: #{decoder3d_forward.7} parent=39 // pred_check
        %p1061 = pneg %p130
      $region42: #{decoder3d_forward.7} parent=39 // pred_check_branch
        %1063 = sbr.rel (%p1061) target = $region44
      $region43: #{decoder3d_forward.7} parent=39 // pred_region
        %s1064 = smul.u32 12, %s20
        %p1065 = scmp.lt.s32.totalorder %s1064, 23
        %s1066 = scalar_select %p1065, %s1064, 23
        %p1067 = scmp.lt.s32.totalorder %s21, 0
        %s1068 = scalar_select %p1067, %s21, 0
        %s1069 = sadd.s32 %s1068, %s1066
        %s1070 = smul.addr %s1069, 4
        %s1071 = scalar_lea.vmem %s3, %s1070
      $region44: #{decoder3d_forward.7} parent=39 // pred_fallthru
        _
    $region40: #{decoder3d_forward.7} parent=5 // pred_fallthru
      _
  $region6: #{decoder3d_forward.7} parent=0 // loop_footer
    %s13 = sadd.s32 1, %s9
  $region7: #{decoder3d_forward.7} parent=0 // loop_footer_branch
    %8 = sbr.rel target = $region3
  $region8: #{decoder3d_forward.7} parent=0 // loop_exit
    _

// kernel: tile.23
$region0: #{tile.23}
  #allocation0 [shape = 's32[1]{0}', space=sflag, size = 0x4, scoped, tag = 'scoped memory for tile.23']
  %s0 = inlined_call_operand.vmem [shape: f32[8], index: 0, kind: input, shape index: {}]
  %s1 = inlined_call_operand.vmem [shape: f32[8,8], index: 1, kind: output, shape index: {}]
  // Predicated region
  $region2: #{tile.23} parent=0 // pred_check
    _
  $region3: #{tile.23} parent=0 // pred_check_branch
    %3 = sbr.rel (0) target = $region5
  $region4: #{tile.23} parent=0 // pred_region
    _
  $region5: #{tile.23} parent=0 // pred_fallthru
    _
  %v4 = vld [vmem:[%s0] ss:$0 sm:$0xff]
  %5 = vst [vmem:[%s1] sm:$0xff] %v4

// kernel: tile.24
$region0: #{tile.24}
  %s0 = inlined_call_operand.vmem [shape: f32[8,8], index: 0, kind: input, shape index: {}]
  %s1 = inlined_call_operand.vmem [shape: f32[1,64], index: 1, kind: output, shape index: {}]
  $region1: #{tile.24} parent=0
    #allocation0 [shape = 'u8[4096]{0}', space=vmem, size = 0x1000, scoped, tag = 'scoped mem for output reshape']
    %v2 = vld [vmem:[%s0] sm:$0x1]
    %vm3 = vcmask 64512
    %4 = vst.msk [vmem:[#allocation0] sm:$0x1] %vm3, %v2
    %s5 = scalar_lea.vmem %s0, 7
    %v6 = vld [vmem:[%s5] sm:$0x1]
    %7 = vrot.lane.b32.xlu0 %v6, 56
    %v8 = vpop.permute.xlu0 %7
    %vm9 = vcmask 523712
    %10 = vst.msk [vmem:[#allocation0] sm:$0x1] %vm9, %v8
    %s11 = scalar_lea.vmem %s0, 6
    %v12 = vld [vmem:[%s11] sm:$0x1]
    %13 = vrot.lane.b32.xlu0 %v12, 48
    %v14 = vpop.permute.xlu0 %13
    %vm15 = vcmask 458112
    %16 = vst.msk [vmem:[#allocation0] sm:$0x1] %vm15, %v14
    %s17 = scalar_lea.vmem %s0, 5
    %v18 = vld [vmem:[%s17] sm:$0x1]
    %19 = vrot.lane.b32.xlu0 %v18, 40
    %v20 = vpop.permute.xlu0 %19
    %vm21 = vcmask 392512
    %22 = vst.msk [vmem:[#allocation0] sm:$0x1] %vm21, %v20
    %s23 = scalar_lea.vmem %s0, 4
    %v24 = vld [vmem:[%s23] sm:$0x1]
    %25 = vrot.lane.b32.xlu0 %v24, 32
    %v26 = vpop.permute.xlu0 %25
    %vm27 = vcmask 326912
    %28 = vst.msk [vmem:[#allocation0] sm:$0x1] %vm27, %v26
    %s29 = scalar_lea.vmem %s0, 3
    %v30 = vld [vmem:[%s29] sm:$0x1]
    %31 = vrot.lane.b32.xlu0 %v30, 24
    %v32 = vpop.permute.xlu0 %31
    %vm33 = vcmask 261312
    %34 = vst.msk [vmem:[#allocation0] sm:$0x1] %vm33, %v32
    %s35 = scalar_lea.vmem %s0, 2
    %v36 = vld [vmem:[%s35] sm:$0x1]
    %37 = vrot.lane.b32.xlu0 %v36, 16
    %v38 = vpop.permute.xlu0 %37
    %vm39 = vcmask 195712
    %40 = vst.msk [vmem:[#allocation0] sm:$0x1] %vm39, %v38
    %s41 = scalar_lea.vmem %s0, 1
    %v42 = vld [vmem:[%s41] sm:$0x1]
    %43 = vrot.lane.b32.xlu0 %v42, 8
    %v44 = vpop.permute.xlu0 %43
    %vm45 = vcmask 130112
    %46 = vst.msk [vmem:[#allocation0] sm:$0x1] %vm45, %v44
    %s48 = sshll.u32 1, 1
    %s49 = ssub.s32 %s48, 1
    %v51 = vld [vmem:[#allocation0] sm:%s49]
    %s52 = sshll.u32 1, 1
    %s53 = ssub.s32 %s52, 1
    %54 = vst [vmem:[%s1] sm:%s53] %v51

// kernel: decoder3d_forward.8
$region0: #{decoder3d_forward.8}
  #allocation0 [shape = 'u32[]', space=smem, size = 0x4, offset = 0x4, fixed_abs, tag = 'smem constant byte address 0x4 - core index']
  #allocation1 [shape = 'u32[144,128]{1,0:T(1,128)}', space=vmem, size = 0x12000, scoped, tag = 'internal scratch']
  %s0 = inlined_call_operand.vmem [shape: bf16[1440,288], index: 0, kind: input, shape index: {}]
  %s1 = inlined_call_operand.vmem [shape: bf16[288,64], index: 1, kind: input, shape index: {}]
  %s2 = inlined_call_operand.vmem [shape: f32[1,64], index: 2, kind: input, shape index: {}]
  %s3 = inlined_call_operand.vmem [shape: bf16[1440,64], index: 3, kind: output, shape index: {}]
  %s4 = sld [smem:[#allocation0]]
  $region45: #{decoder3d_forward.8} parent=0
    _
  %s6 = ssub.s32 1, %s4
  %s7 = scalar_select 0, %s6, %s4
  loop: start=0, step=1, limit=5
  $region2: #{decoder3d_forward.8} parent=0 // loop_pre_header
    _
  $region3: #{decoder3d_forward.8} parent=0 // loop_header
    %s9 = sphi 0, %s13
    %p10 = scmp.ge.s32.totalorder %s9, 5
    %s16 = sphi 0, %s28
    %s17 = sphi 0, %s24
    %s18 = sphi 0, %s16
    %s19 = sphi 0, %s17
    %s20 = sphi 0, %s18
    %s21 = sphi 0, %s19
    %s31 = sphi 0, %s33
    %s34 = sphi 0, %s31
    %s35 = sphi 0, %s34
    %s51 = sphi 0, %s35
    %s57 = sphi 0, %s59
    %s60 = sphi 0, %s57
    %s61 = sphi 0, %s60
    %s77 = sphi 0, %s61
    %s83 = sphi 0, %s85
    %s86 = sphi 0, %s83
    %s87 = sphi 0, %s86
    %s103 = sphi 0, %s87
    %s111 = sphi 0, %s113
    %s114 = sphi 0, %s111
    %s115 = sphi 0, %s114
    %s131 = sphi 0, %s115
  $region4: #{decoder3d_forward.8} parent=0 // loop_header_branch
    %12 = sbr.rel (%p10) target = $region8
  $region5: #{decoder3d_forward.8} parent=0 // loop_body
    %s14 = ssub.s32 %s9, 1
    %s15 = ssub.s32 %s9, 2
    %s22 = sadd.s32 1, %s17
    %p23 = scmp.ge.s32.totalorder %s22, 1
    %s24 = scalar_select %p23, 0, %s22
    %s25 = sadd.s32 1, %s16
    %s26 = scalar_select %p23, %s25, %s16
    %p27 = scmp.ge.s32.totalorder %s26, 3
    %s28 = scalar_select %p27, 0, %s26
    %s29 = ssub.s32 %s16, %s28
    %p30 = scmp.eq.s32.totalorder %s29, 0
    %s32 = sadd.s32 %s31, 1
    %s33 = scalar_select %p30, %s31, %s32
    %p36 = pneg %p30
    %p37 = scmp.eq.s32.totalorder %s9, 2
    %p38 = por %p36, %p37
    %p39 = scmp.ne.s32.totalorder %s31, %s34
    %p40 = scmp.eq.s32.totalorder %s9, 0
    %p41 = por %p39, %p40
    %p42 = scmp.ne.s32.totalorder %s31, %s34
    %p43 = scmp.eq.s32.totalorder %s14, 2
    %p44 = por %p42, %p43
    %p45 = scmp.ne.s32.totalorder %s34, %s35
    %p46 = scmp.eq.s32.totalorder %s14, 0
    %p47 = por %p45, %p46
    %p48 = scmp.ne.s32.totalorder %s34, %s35
    %p49 = scmp.eq.s32.totalorder %s15, 2
    %p50 = por %p48, %p49
    %p52 = scmp.ne.s32.totalorder %s35, %s51
    %p53 = scmp.eq.s32.totalorder %s15, 0
    %p54 = por %p52, %p53
    %s55 = ssub.s32 %s17, %s24
    %p56 = scmp.eq.s32.totalorder %s55, 0
    %s58 = sadd.s32 %s57, 1
    %s59 = scalar_select %p56, %s57, %s58
    %p62 = pneg %p56
    %p63 = scmp.eq.s32.totalorder %s9, 2
    %p64 = por %p62, %p63
    %p65 = scmp.ne.s32.totalorder %s57, %s60
    %p66 = scmp.eq.s32.totalorder %s9, 0
    %p67 = por %p65, %p66
    %p68 = scmp.ne.s32.totalorder %s57, %s60
    %p69 = scmp.eq.s32.totalorder %s14, 2
    %p70 = por %p68, %p69
    %p71 = scmp.ne.s32.totalorder %s60, %s61
    %p72 = scmp.eq.s32.totalorder %s14, 0
    %p73 = por %p71, %p72
    %p74 = scmp.ne.s32.totalorder %s60, %s61
    %p75 = scmp.eq.s32.totalorder %s15, 2
    %p76 = por %p74, %p75
    %p78 = scmp.ne.s32.totalorder %s61, %s77
    %p79 = scmp.eq.s32.totalorder %s15, 0
    %p80 = por %p78, %p79
    %s81 = ssub.s32 %s17, %s24
    %p82 = scmp.eq.s32.totalorder %s81, 0
    %s84 = sadd.s32 %s83, 1
    %s85 = scalar_select %p82, %s83, %s84
    %p88 = pneg %p82
    %p89 = scmp.eq.s32.totalorder %s9, 2
    %p90 = por %p88, %p89
    %p91 = scmp.ne.s32.totalorder %s83, %s86
    %p92 = scmp.eq.s32.totalorder %s9, 0
    %p93 = por %p91, %p92
    %p94 = scmp.ne.s32.totalorder %s83, %s86
    %p95 = scmp.eq.s32.totalorder %s14, 2
    %p96 = por %p94, %p95
    %p97 = scmp.ne.s32.totalorder %s86, %s87
    %p98 = scmp.eq.s32.totalorder %s14, 0
    %p99 = por %p97, %p98
    %p100 = scmp.ne.s32.totalorder %s86, %s87
    %p101 = scmp.eq.s32.totalorder %s15, 2
    %p102 = por %p100, %p101
    %p104 = scmp.ne.s32.totalorder %s87, %s103
    %p105 = scmp.eq.s32.totalorder %s15, 0
    %p106 = por %p104, %p105
    %s107 = ssub.s32 %s16, %s28
    %s108 = ssub.s32 %s17, %s24
    %s109 = sor.u32 %s107, %s108
    %p110 = scmp.eq.s32.totalorder %s109, 0
    %s112 = sadd.s32 %s111, 1
    %s113 = scalar_select %p110, %s111, %s112
    %p116 = pneg %p110
    %p117 = scmp.eq.s32.totalorder %s9, 2
    %p118 = por %p116, %p117
    %p119 = scmp.ne.s32.totalorder %s111, %s114
    %p120 = scmp.eq.s32.totalorder %s9, 0
    %p121 = por %p119, %p120
    %p122 = scmp.ne.s32.totalorder %s111, %s114
    %p123 = scmp.eq.s32.totalorder %s14, 2
    %p124 = por %p122, %p123
    %p125 = scmp.ne.s32.totalorder %s114, %s115
    %p126 = scmp.eq.s32.totalorder %s14, 0
    %p127 = por %p125, %p126
    %p128 = scmp.ne.s32.totalorder %s114, %s115
    %p129 = scmp.eq.s32.totalorder %s15, 2
    %p130 = por %p128, %p129
    %p132 = scmp.ne.s32.totalorder %s115, %s131
    %p133 = scmp.eq.s32.totalorder %s15, 0
    %p134 = por %p132, %p133
    %p135 = scmp.le.s32.totalorder 1, %s9
    %p136 = scmp.lt.s32.totalorder %s9, 4
    %p137 = pnand %p135, %p136
    %p138 = pneg %p137
    // Predicated region
    $region9: #{decoder3d_forward.8} parent=5 // pred_check
      _
    $region10: #{decoder3d_forward.8} parent=5 // pred_check_branch
      %140 = sbr.rel (%p137) target = $region12
    $region11: #{decoder3d_forward.8} parent=5 // pred_region
      %s141 = ssub.s32 %s9, 1
      // Predicated region
      $region13: #{decoder3d_forward.8} parent=11 // pred_check
        %p142 = pneg %p73
      $region14: #{decoder3d_forward.8} parent=11 // pred_check_branch
        %144 = sbr.rel (%p142) target = $region16
      $region15: #{decoder3d_forward.8} parent=11 // pred_region
        %p145 = scmp.lt.s32.totalorder %s19, 0
        %s146 = scalar_select %p145, %s19, 0
        %s147 = smul.addr %s146, 4
        %s148 = scalar_lea.vmem %s1, %s147
      $region16: #{decoder3d_forward.8} parent=11 // pred_fallthru
        _
      // Predicated region
      $region17: #{decoder3d_forward.8} parent=11 // pred_check
        %p149 = pneg %p99
      $region18: #{decoder3d_forward.8} parent=11 // pred_check_branch
        %151 = sbr.rel (%p149) target = $region20
      $region19: #{decoder3d_forward.8} parent=11 // pred_region
        %p152 = scmp.lt.s32.totalorder %s19, 0
        %s153 = scalar_select %p152, %s19, 0
        %s154 = scalar_lea.vmem %s2, %s153
      $region20: #{decoder3d_forward.8} parent=11 // pred_fallthru
        _
    $region12: #{decoder3d_forward.8} parent=5 // pred_fallthru
      _
    %p155 = scmp.lt.s32.totalorder %s9, 3
    // Predicated region
    $region21: #{decoder3d_forward.8} parent=5 // pred_check
      %p156 = pneg %p155
    $region22: #{decoder3d_forward.8} parent=5 // pred_check_branch
      %158 = sbr.rel (%p156) target = $region24
    $region23: #{decoder3d_forward.8} parent=5 // pred_region
      // Predicated region
      $region25: #{decoder3d_forward.8} parent=23 // pred_check
        %p159 = pneg %p41
      $region26: #{decoder3d_forward.8} parent=23 // pred_check_branch
        %161 = sbr.rel (%p159) target = $region28
      $region27: #{decoder3d_forward.8} parent=23 // pred_region
        %s162 = smul.u32 60, %s16
        %p163 = scmp.lt.s32.totalorder %s162, 179
        %s164 = scalar_select %p163, %s162, 179
        %s165 = smul.addr %s164, 3
        %s166 = smul.addr %s165, 4
        %s167 = scalar_lea.vmem %s0, %s166
        %s168 = smul.u32 60, %s16
      $region28: #{decoder3d_forward.8} parent=23 // pred_fallthru
        _
    $region24: #{decoder3d_forward.8} parent=5 // pred_fallthru
      _
    %p169 = scmp.le.s32.totalorder 1, %s9
    %p170 = scmp.lt.s32.totalorder %s9, 4
    %p171 = pnand %p169, %p170
    %p172 = pneg %p171
    // Predicated region
    $region29: #{decoder3d_forward.8} parent=5 // pred_check
      _
    $region30: #{decoder3d_forward.8} parent=5 // pred_check_branch
      %174 = sbr.rel (%p171) target = $region32
    $region31: #{decoder3d_forward.8} parent=5 // pred_region
      %s175 = ssub.s32 %s9, 1
      %s176 = smul.u32 60, %s18
      %p177 = scmp.lt.s32.totalorder %s176, 179
      %s178 = scalar_select %p177, %s176, 179
      %s179 = smul.addr %s178, 3
      %s180 = smul.addr %s179, 4
      %s181 = scalar_lea.vmem %s0, %s180
      %p182 = pneg %p47
      %p183 = pneg %p44
      %p184 = scmp.lt.s32.totalorder %s19, 0
      %s185 = scalar_select %p184, %s19, 0
      %s186 = smul.addr %s185, 4
      %s187 = scalar_lea.vmem %s1, %s186
      %p188 = pneg %p73
      %p189 = pneg %p70
      %p190 = scmp.lt.s32.totalorder %s19, 0
      %s191 = scalar_select %p190, %s19, 0
      %s192 = scalar_lea.vmem %s2, %s191
      %p193 = pneg %p99
      %p194 = pneg %p96
      %p195 = pneg %p127
      %p196 = pneg %p124
      %s197 = smul.u32 60, %s18
      %p198 = scmp.lt.s32.totalorder %s197, 179
      %s199 = scalar_select %p198, %s197, 179
      %p200 = scmp.lt.s32.totalorder %s19, 0
      %s201 = scalar_select %p200, %s19, 0
      %s202 = sadd.s32 %s201, %s199
      %s203 = smul.addr %s202, 4
      %s204 = scalar_lea.vmem %s3, %s203
      %s205 = smul.u32 60, %s18
      %p206 = scmp.lt.s32.totalorder %s205, 179
      %s207 = scalar_select %p206, %s205, 179
      %s208 = smul.addr %s207, 3
      %s209 = smul.addr %s208, 4
      %s210 = scalar_lea.vmem %s0, %s209
      %s211 = smul.u32 60, %s18
      %p212 = scmp.lt.s32.totalorder %s19, 0
      %s213 = scalar_select %p212, %s19, 0
      %s214 = smul.addr %s213, 4
      %s215 = scalar_lea.vmem %s1, %s214
      %p216 = scmp.lt.s32.totalorder %s19, 0
      %s217 = scalar_select %p216, %s19, 0
      %s218 = scalar_lea.vmem %s2, %s217
      %s219 = smul.u32 60, %s18
      %p220 = scmp.lt.s32.totalorder %s219, 179
      %s221 = scalar_select %p220, %s219, 179
      %p222 = scmp.lt.s32.totalorder %s19, 0
      %s223 = scalar_select %p222, %s19, 0
      %s224 = sadd.s32 %s223, %s221
      %s225 = smul.addr %s224, 4
      %s226 = scalar_lea.vmem %s3, %s225
      %s227 = smul.u32 60, %s18
      %v229 = vld [vmem:[%s210] sm:$0xff]
      %v230 = vld [vmem:[%s210 + $0x8] sm:$0xf]
      %v231 = vld [vmem:[%s210 + $0xc] sm:$0xff]
      %v232 = vld [vmem:[%s210 + $0x14] sm:$0xf]
      %v233 = vld [vmem:[%s210 + $0x18] sm:$0xff]
      %v234 = vld [vmem:[%s210 + $0x20] sm:$0xf]
      %v235 = vld [vmem:[%s210 + $0x24] sm:$0xff]
      %v236 = vld [vmem:[%s210 + $0x2c] sm:$0xf]
      %v237 = vld [vmem:[%s210 + $0x30] sm:$0xff]
      %v238 = vld [vmem:[%s210 + $0x38] sm:$0xf]
      %v239 = vld [vmem:[%s210 + $0x3c] sm:$0xff]
      %v240 = vld [vmem:[%s210 + $0x44] sm:$0xf]
      %v241 = vld [vmem:[%s210 + $0x48] sm:$0xff]
      %v242 = vld [vmem:[%s210 + $0x50] sm:$0xf]
      %v243 = vld [vmem:[%s210 + $0x54] sm:$0xff]
      %v244 = vld [vmem:[%s210 + $0x5c] sm:$0xf]
      %v245 = vld [vmem:[%s210 + $0x60] sm:$0xff]
      %v246 = vld [vmem:[%s210 + $0x68] sm:$0xf]
      %v247 = vld [vmem:[%s210 + $0x6c] sm:$0xff]
      %v248 = vld [vmem:[%s210 + $0x74] sm:$0xf]
      %v249 = vld [vmem:[%s210 + $0x78] sm:$0xff]
      %v250 = vld [vmem:[%s210 + $0x80] sm:$0xf]
      %v251 = vld [vmem:[%s210 + $0x84] sm:$0xff]
      %v252 = vld [vmem:[%s210 + $0x8c] sm:$0xf]
      %v253 = vld [vmem:[%s210 + $0x90] sm:$0xff]
      %v254 = vld [vmem:[%s210 + $0x98] sm:$0xf]
      %v255 = vld [vmem:[%s210 + $0x9c] sm:$0xff]
      %v256 = vld [vmem:[%s210 + $0xa4] sm:$0xf]
      %v257 = vld [vmem:[%s210 + $0xa8] sm:$0xff]
      %v258 = vld [vmem:[%s210 + $0xb0] sm:$0xf]
      %v259 = vld [vmem:[%s210 + $0xb4] sm:$0xff]
      %v260 = vld [vmem:[%s210 + $0xbc] sm:$0xf]
      %v261 = vld [vmem:[%s210 + $0xc0] sm:$0xff]
      %v262 = vld [vmem:[%s210 + $0xc8] sm:$0xf]
      %v263 = vld [vmem:[%s210 + $0xcc] sm:$0xff]
      %v264 = vld [vmem:[%s210 + $0xd4] sm:$0xf]
      %v265 = vld [vmem:[%s210 + $0xd8] sm:$0xff]
      %v266 = vld [vmem:[%s210 + $0xe0] sm:$0xf]
      %v267 = vld [vmem:[%s210 + $0xe4] sm:$0xff]
      %v268 = vld [vmem:[%s210 + $0xec] sm:$0xf]
      %v269 = vld [vmem:[%s210 + $0xf0] sm:$0xff]
      %v270 = vld [vmem:[%s210 + $0xf8] sm:$0xf]
      %v271 = vld [vmem:[%s210 + $0xfc] sm:$0xff]
      %v272 = vld [vmem:[%s210 + $0x104] sm:$0xf]
      %v273 = vld [vmem:[%s210 + $0x108] sm:$0xff]
      %v274 = vld [vmem:[%s210 + $0x110] sm:$0xf]
      %v275 = vld [vmem:[%s210 + $0x114] sm:$0xff]
      %v276 = vld [vmem:[%s210 + $0x11c] sm:$0xf]
      %v277 = vld [vmem:[%s210 + $0x120] sm:$0xff]
      %v278 = vld [vmem:[%s210 + $0x128] sm:$0xf]
      %v279 = vld [vmem:[%s210 + $0x12c] sm:$0xff]
      %v280 = vld [vmem:[%s210 + $0x134] sm:$0xf]
      %v281 = vld [vmem:[%s210 + $0x138] sm:$0xff]
      %v282 = vld [vmem:[%s210 + $0x140] sm:$0xf]
      %v283 = vld [vmem:[%s210 + $0x144] sm:$0xff]
      %v284 = vld [vmem:[%s210 + $0x14c] sm:$0xf]
      %v285 = vld [vmem:[%s210 + $0x150] sm:$0xff]
      %v286 = vld [vmem:[%s210 + $0x158] sm:$0xf]
      %v287 = vld [vmem:[%s210 + $0x15c] sm:$0xff]
      %v288 = vld [vmem:[%s210 + $0x164] sm:$0xf]
      %v289 = vld [vmem:[%s210 + $0x168] sm:$0xff]
      %v290 = vld [vmem:[%s210 + $0x170] sm:$0xf]
      %v291 = vld [vmem:[%s210 + $0x174] sm:$0xff]
      %v292 = vld [vmem:[%s210 + $0x17c] sm:$0xf]
      %v293 = vld [vmem:[%s210 + $0x180] sm:$0xff]
      %v294 = vld [vmem:[%s210 + $0x188] sm:$0xf]
      %v295 = vld [vmem:[%s210 + $0x18c] sm:$0xff]
      %v296 = vld [vmem:[%s210 + $0x194] sm:$0xf]
      %v297 = vld [vmem:[%s210 + $0x198] sm:$0xff]
      %v298 = vld [vmem:[%s210 + $0x1a0] sm:$0xf]
      %v299 = vld [vmem:[%s210 + $0x1a4] sm:$0xff]
      %v300 = vld [vmem:[%s210 + $0x1ac] sm:$0xf]
      %v301 = vld [vmem:[%s210 + $0x1b0] sm:$0xff]
      %v302 = vld [vmem:[%s210 + $0x1b8] sm:$0xf]
      %v303 = vld [vmem:[%s210 + $0x1bc] sm:$0xff]
      %v304 = vld [vmem:[%s210 + $0x1c4] sm:$0xf]
      %v305 = vld [vmem:[%s210 + $0x1c8] sm:$0xff]
      %v306 = vld [vmem:[%s210 + $0x1d0] sm:$0xf]
      %v307 = vld [vmem:[%s210 + $0x1d4] sm:$0xff]
      %v308 = vld [vmem:[%s210 + $0x1dc] sm:$0xf]
      %v309 = vld [vmem:[%s210 + $0x1e0] sm:$0xff]
      %v310 = vld [vmem:[%s210 + $0x1e8] sm:$0xf]
      %v311 = vld [vmem:[%s210 + $0x1ec] sm:$0xff]
      %v312 = vld [vmem:[%s210 + $0x1f4] sm:$0xf]
      %v313 = vld [vmem:[%s210 + $0x1f8] sm:$0xff]
      %v314 = vld [vmem:[%s210 + $0x200] sm:$0xf]
      %v315 = vld [vmem:[%s210 + $0x204] sm:$0xff]
      %v316 = vld [vmem:[%s210 + $0x20c] sm:$0xf]
      %v317 = vld [vmem:[%s210 + $0x210] sm:$0xff]
      %v318 = vld [vmem:[%s210 + $0x218] sm:$0xf]
      %v319 = vld [vmem:[%s210 + $0x21c] sm:$0xff]
      %v320 = vld [vmem:[%s210 + $0x224] sm:$0xf]
      %v321 = vld [vmem:[%s210 + $0x228] sm:$0xff]
      %v322 = vld [vmem:[%s210 + $0x230] sm:$0xf]
      %v323 = vld [vmem:[%s210 + $0x234] sm:$0xff]
      %v324 = vld [vmem:[%s210 + $0x23c] sm:$0xf]
      %v325 = vld [vmem:[%s210 + $0x240] sm:$0xff]
      %v326 = vld [vmem:[%s210 + $0x248] sm:$0xf]
      %v327 = vld [vmem:[%s210 + $0x24c] sm:$0xff]
      %v328 = vld [vmem:[%s210 + $0x254] sm:$0xf]
      %v329 = vld [vmem:[%s210 + $0x258] sm:$0xff]
      %v330 = vld [vmem:[%s210 + $0x260] sm:$0xf]
      %v331 = vld [vmem:[%s210 + $0x264] sm:$0xff]
      %v332 = vld [vmem:[%s210 + $0x26c] sm:$0xf]
      %v333 = vld [vmem:[%s210 + $0x270] sm:$0xff]
      %v334 = vld [vmem:[%s210 + $0x278] sm:$0xf]
      %v335 = vld [vmem:[%s210 + $0x27c] sm:$0xff]
      %v336 = vld [vmem:[%s210 + $0x284] sm:$0xf]
      %v337 = vld [vmem:[%s210 + $0x288] sm:$0xff]
      %v338 = vld [vmem:[%s210 + $0x290] sm:$0xf]
      %v339 = vld [vmem:[%s210 + $0x294] sm:$0xff]
      %v340 = vld [vmem:[%s210 + $0x29c] sm:$0xf]
      %v341 = vld [vmem:[%s210 + $0x2a0] sm:$0xff]
      %v342 = vld [vmem:[%s210 + $0x2a8] sm:$0xf]
      %v343 = vld [vmem:[%s210 + $0x2ac] sm:$0xff]
      %v344 = vld [vmem:[%s210 + $0x2b4] sm:$0xf]
      %v345 = vld [vmem:[%s210 + $0x2b8] sm:$0xff]
      %v346 = vld [vmem:[%s210 + $0x2c0] sm:$0xf]
      %v347 = vld [vmem:[%s210 + $0x2c4] sm:$0xff]
      %v348 = vld [vmem:[%s210 + $0x2cc] sm:$0xf]
      %v349 = vld [vmem:[%s215] sm:$0xf]
      %v350 = vld [vmem:[%s215 + $0x4] sm:$0xf]
      %v351 = vld [vmem:[%s215 + $0x8] sm:$0xf]
      %v352 = vld [vmem:[%s215 + $0xc] sm:$0xf]
      %v353 = vld [vmem:[%s215 + $0x10] sm:$0xf]
      %v354 = vld [vmem:[%s215 + $0x14] sm:$0xf]
      %v355 = vld [vmem:[%s215 + $0x18] sm:$0xf]
      %v356 = vld [vmem:[%s215 + $0x1c] sm:$0xf]
      %v357 = vld [vmem:[%s215 + $0x20] sm:$0xf]
      %v358 = vld [vmem:[%s215 + $0x24] sm:$0xf]
      %v359 = vld [vmem:[%s215 + $0x28] sm:$0xf]
      %v360 = vld [vmem:[%s215 + $0x2c] sm:$0xf]
      %v361 = vld [vmem:[%s215 + $0x30] sm:$0xf]
      %v362 = vld [vmem:[%s215 + $0x34] sm:$0xf]
      %v363 = vld [vmem:[%s215 + $0x38] sm:$0xf]
      %v364 = vld [vmem:[%s215 + $0x3c] sm:$0xf]
      %v365 = vld [vmem:[%s215 + $0x40] sm:$0xf]
      %v366 = vld [vmem:[%s215 + $0x44] sm:$0xf]
      %v367 = vld [vmem:[%s215 + $0x48] sm:$0xf]
      %v368 = vld [vmem:[%s215 + $0x4c] sm:$0xf]
      %v369 = vld [vmem:[%s215 + $0x50] sm:$0xf]
      %v370 = vld [vmem:[%s215 + $0x54] sm:$0xf]
      %v371 = vld [vmem:[%s215 + $0x58] sm:$0xf]
      %v372 = vld [vmem:[%s215 + $0x5c] sm:$0xf]
      %v373 = vld [vmem:[%s215 + $0x60] sm:$0xf]
      %v374 = vld [vmem:[%s215 + $0x64] sm:$0xf]
      %v375 = vld [vmem:[%s215 + $0x68] sm:$0xf]
      %v376 = vld [vmem:[%s215 + $0x6c] sm:$0xf]
      %v377 = vld [vmem:[%s215 + $0x70] sm:$0xf]
      %v378 = vld [vmem:[%s215 + $0x74] sm:$0xf]
      %v379 = vld [vmem:[%s215 + $0x78] sm:$0xf]
      %v380 = vld [vmem:[%s215 + $0x7c] sm:$0xf]
      %v381 = vld [vmem:[%s215 + $0x80] sm:$0xf]
      %v382 = vld [vmem:[%s215 + $0x84] sm:$0xf]
      %v383 = vld [vmem:[%s215 + $0x88] sm:$0xf]
      %v384 = vld [vmem:[%s215 + $0x8c] sm:$0xf]
      %v385 = vld [vmem:[%s218] sm:$0x1]
      %v387 = vlaneseq
      %v388 = vshrl.u32 %v387, 7
      %v389 = vsub.s32 0, %v388
      %v390 = vrot.slane %v385, %v389
      %v512 = vunpack.c.l.b16 %v229
      %v513 = vunpack.c.h.b16 %v229
      %v514 = vunpack.c.l.b16 %v230
      %v515 = vunpack.c.l.b16 %v231
      %v516 = vunpack.c.h.b16 %v231
      %v517 = vunpack.c.l.b16 %v232
      %v518 = vunpack.c.l.b16 %v233
      %v519 = vunpack.c.h.b16 %v233
      %v520 = vunpack.c.l.b16 %v234
      %v521 = vunpack.c.l.b16 %v235
      %v522 = vunpack.c.h.b16 %v235
      %v523 = vunpack.c.l.b16 %v236
      %v524 = vunpack.c.l.b16 %v237
      %v525 = vunpack.c.h.b16 %v237
      %v526 = vunpack.c.l.b16 %v238
      %v527 = vunpack.c.l.b16 %v239
      %v528 = vunpack.c.h.b16 %v239
      %v529 = vunpack.c.l.b16 %v240
      %v530 = vunpack.c.l.b16 %v241
      %v531 = vunpack.c.h.b16 %v241
      %v532 = vunpack.c.l.b16 %v242
      %v533 = vunpack.c.l.b16 %v243
      %v534 = vunpack.c.h.b16 %v243
      %v535 = vunpack.c.l.b16 %v244
      %v536 = vunpack.c.l.b16 %v245
      %v537 = vunpack.c.h.b16 %v245
      %v538 = vunpack.c.l.b16 %v246
      %v539 = vunpack.c.l.b16 %v247
      %v540 = vunpack.c.h.b16 %v247
      %v541 = vunpack.c.l.b16 %v248
      %v542 = vunpack.c.l.b16 %v249
      %v543 = vunpack.c.h.b16 %v249
      %v544 = vunpack.c.l.b16 %v250
      %v545 = vunpack.c.l.b16 %v251
      %v546 = vunpack.c.h.b16 %v251
      %v547 = vunpack.c.l.b16 %v252
      %v548 = vunpack.c.l.b16 %v253
      %v549 = vunpack.c.h.b16 %v253
      %v550 = vunpack.c.l.b16 %v254
      %v551 = vunpack.c.l.b16 %v255
      %v552 = vunpack.c.h.b16 %v255
      %v553 = vunpack.c.l.b16 %v256
      %v554 = vunpack.c.l.b16 %v257
      %v555 = vunpack.c.h.b16 %v257
      %v556 = vunpack.c.l.b16 %v258
      %v557 = vunpack.c.l.b16 %v259
      %v558 = vunpack.c.h.b16 %v259
      %v559 = vunpack.c.l.b16 %v260
      %v560 = vunpack.c.l.b16 %v261
      %v561 = vunpack.c.h.b16 %v261
      %v562 = vunpack.c.l.b16 %v262
      %v563 = vunpack.c.l.b16 %v263
      %v564 = vunpack.c.h.b16 %v263
      %v565 = vunpack.c.l.b16 %v264
      %v566 = vunpack.c.l.b16 %v265
      %v567 = vunpack.c.h.b16 %v265
      %v568 = vunpack.c.l.b16 %v266
      %v569 = vunpack.c.l.b16 %v267
      %v570 = vunpack.c.h.b16 %v267
      %v571 = vunpack.c.l.b16 %v268
      %v572 = vunpack.c.l.b16 %v269
      %v573 = vunpack.c.h.b16 %v269
      %v574 = vunpack.c.l.b16 %v270
      %v575 = vunpack.c.l.b16 %v271
      %v576 = vunpack.c.h.b16 %v271
      %v577 = vunpack.c.l.b16 %v272
      %v578 = vunpack.c.l.b16 %v273
      %v579 = vunpack.c.h.b16 %v273
      %v580 = vunpack.c.l.b16 %v274
      %v581 = vunpack.c.l.b16 %v275
      %v582 = vunpack.c.h.b16 %v275
      %v583 = vunpack.c.l.b16 %v276
      %v584 = vunpack.c.l.b16 %v277
      %v585 = vunpack.c.h.b16 %v277
      %v586 = vunpack.c.l.b16 %v278
      %v587 = vunpack.c.l.b16 %v279
      %v588 = vunpack.c.h.b16 %v279
      %v589 = vunpack.c.l.b16 %v280
      %v590 = vunpack.c.l.b16 %v281
      %v591 = vunpack.c.h.b16 %v281
      %v592 = vunpack.c.l.b16 %v282
      %v593 = vunpack.c.l.b16 %v283
      %v594 = vunpack.c.h.b16 %v283
      %v595 = vunpack.c.l.b16 %v284
      %v596 = vunpack.c.l.b16 %v285
      %v597 = vunpack.c.h.b16 %v285
      %v598 = vunpack.c.l.b16 %v286
      %v599 = vunpack.c.l.b16 %v287
      %v600 = vunpack.c.h.b16 %v287
      %v601 = vunpack.c.l.b16 %v288
      %v602 = vunpack.c.l.b16 %v289
      %v603 = vunpack.c.h.b16 %v289
      %v604 = vunpack.c.l.b16 %v290
      %v605 = vunpack.c.l.b16 %v291
      %v606 = vunpack.c.h.b16 %v291
      %v607 = vunpack.c.l.b16 %v292
      %v608 = vunpack.c.l.b16 %v293
      %v609 = vunpack.c.h.b16 %v293
      %v610 = vunpack.c.l.b16 %v294
      %v611 = vunpack.c.l.b16 %v295
      %v612 = vunpack.c.h.b16 %v295
      %v613 = vunpack.c.l.b16 %v296
      %v614 = vunpack.c.l.b16 %v297
      %v615 = vunpack.c.h.b16 %v297
      %v616 = vunpack.c.l.b16 %v298
      %v617 = vunpack.c.l.b16 %v299
      %v618 = vunpack.c.h.b16 %v299
      %v619 = vunpack.c.l.b16 %v300
      %v620 = vunpack.c.l.b16 %v301
      %v621 = vunpack.c.h.b16 %v301
      %v622 = vunpack.c.l.b16 %v302
      %v623 = vunpack.c.l.b16 %v303
      %v624 = vunpack.c.h.b16 %v303
      %v625 = vunpack.c.l.b16 %v304
      %v626 = vunpack.c.l.b16 %v305
      %v627 = vunpack.c.h.b16 %v305
      %v628 = vunpack.c.l.b16 %v306
      %v629 = vunpack.c.l.b16 %v307
      %v630 = vunpack.c.h.b16 %v307
      %v631 = vunpack.c.l.b16 %v308
      %v632 = vunpack.c.l.b16 %v309
      %v633 = vunpack.c.h.b16 %v309
      %v634 = vunpack.c.l.b16 %v310
      %v635 = vunpack.c.l.b16 %v311
      %v636 = vunpack.c.h.b16 %v311
      %v637 = vunpack.c.l.b16 %v312
      %v638 = vunpack.c.l.b16 %v313
      %v639 = vunpack.c.h.b16 %v313
      %v640 = vunpack.c.l.b16 %v314
      %v641 = vunpack.c.l.b16 %v315
      %v642 = vunpack.c.h.b16 %v315
      %v643 = vunpack.c.l.b16 %v316
      %v644 = vunpack.c.l.b16 %v317
      %v645 = vunpack.c.h.b16 %v317
      %v646 = vunpack.c.l.b16 %v318
      %v647 = vunpack.c.l.b16 %v319
      %v648 = vunpack.c.h.b16 %v319
      %v649 = vunpack.c.l.b16 %v320
      %v650 = vunpack.c.l.b16 %v321
      %v651 = vunpack.c.h.b16 %v321
      %v652 = vunpack.c.l.b16 %v322
      %v653 = vunpack.c.l.b16 %v323
      %v654 = vunpack.c.h.b16 %v323
      %v655 = vunpack.c.l.b16 %v324
      %v656 = vunpack.c.l.b16 %v325
      %v657 = vunpack.c.h.b16 %v325
      %v658 = vunpack.c.l.b16 %v326
      %v659 = vunpack.c.l.b16 %v327
      %v660 = vunpack.c.h.b16 %v327
      %v661 = vunpack.c.l.b16 %v328
      %v662 = vunpack.c.l.b16 %v329
      %v663 = vunpack.c.h.b16 %v329
      %v664 = vunpack.c.l.b16 %v330
      %v665 = vunpack.c.l.b16 %v331
      %v666 = vunpack.c.h.b16 %v331
      %v667 = vunpack.c.l.b16 %v332
      %v668 = vunpack.c.l.b16 %v333
      %v669 = vunpack.c.h.b16 %v333
      %v670 = vunpack.c.l.b16 %v334
      %v671 = vunpack.c.l.b16 %v335
      %v672 = vunpack.c.h.b16 %v335
      %v673 = vunpack.c.l.b16 %v336
      %v674 = vunpack.c.l.b16 %v337
      %v675 = vunpack.c.h.b16 %v337
      %v676 = vunpack.c.l.b16 %v338
      %v677 = vunpack.c.l.b16 %v339
      %v678 = vunpack.c.h.b16 %v339
      %v679 = vunpack.c.l.b16 %v340
      %v680 = vunpack.c.l.b16 %v341
      %v681 = vunpack.c.h.b16 %v341
      %v682 = vunpack.c.l.b16 %v342
      %v683 = vunpack.c.l.b16 %v343
      %v684 = vunpack.c.h.b16 %v343
      %v685 = vunpack.c.l.b16 %v344
      %v686 = vunpack.c.l.b16 %v345
      %v687 = vunpack.c.h.b16 %v345
      %v688 = vunpack.c.l.b16 %v346
      %v689 = vunpack.c.l.b16 %v347
      %v690 = vunpack.c.h.b16 %v347
      %v691 = vunpack.c.l.b16 %v348
      %v692 = vpack.c.b16 %v515, %v512
      %v693 = vpack.c.b16 %v516, %v513
      %v694 = vpack.c.b16 %v517, %v514
      %v695 = vpack.c.b16 %v521, %v518
      %v696 = vpack.c.b16 %v522, %v519
      %v697 = vpack.c.b16 %v523, %v520
      %v698 = vpack.c.b16 %v527, %v524
      %v699 = vpack.c.b16 %v528, %v525
      %v700 = vpack.c.b16 %v529, %v526
      %v701 = vpack.c.b16 %v533, %v530
      %v702 = vpack.c.b16 %v534, %v531
      %v703 = vpack.c.b16 %v535, %v532
      %v704 = vpack.c.b16 %v539, %v536
      %v705 = vpack.c.b16 %v540, %v537
      %v706 = vpack.c.b16 %v541, %v538
      %v707 = vpack.c.b16 %v545, %v542
      %v708 = vpack.c.b16 %v546, %v543
      %v709 = vpack.c.b16 %v547, %v544
      %v710 = vpack.c.b16 %v551, %v548
      %v711 = vpack.c.b16 %v552, %v549
      %v712 = vpack.c.b16 %v553, %v550
      %v713 = vpack.c.b16 %v557, %v554
      %v714 = vpack.c.b16 %v558, %v555
      %v715 = vpack.c.b16 %v559, %v556
      %v716 = vpack.c.b16 %v563, %v560
      %v717 = vpack.c.b16 %v564, %v561
      %v718 = vpack.c.b16 %v565, %v562
      %v719 = vpack.c.b16 %v569, %v566
      %v720 = vpack.c.b16 %v570, %v567
      %v721 = vpack.c.b16 %v571, %v568
      %v722 = vpack.c.b16 %v575, %v572
      %v723 = vpack.c.b16 %v576, %v573
      %v724 = vpack.c.b16 %v577, %v574
      %v725 = vpack.c.b16 %v581, %v578
      %v726 = vpack.c.b16 %v582, %v579
      %v727 = vpack.c.b16 %v583, %v580
      %v728 = vpack.c.b16 %v587, %v584
      %v729 = vpack.c.b16 %v588, %v585
      %v730 = vpack.c.b16 %v589, %v586
      %v731 = vpack.c.b16 %v593, %v590
      %v732 = vpack.c.b16 %v594, %v591
      %v733 = vpack.c.b16 %v595, %v592
      %v734 = vpack.c.b16 %v599, %v596
      %v735 = vpack.c.b16 %v600, %v597
      %v736 = vpack.c.b16 %v601, %v598
      %v737 = vpack.c.b16 %v605, %v602
      %v738 = vpack.c.b16 %v606, %v603
      %v739 = vpack.c.b16 %v607, %v604
      %v740 = vpack.c.b16 %v611, %v608
      %v741 = vpack.c.b16 %v612, %v609
      %v742 = vpack.c.b16 %v613, %v610
      %v743 = vpack.c.b16 %v617, %v614
      %v744 = vpack.c.b16 %v618, %v615
      %v745 = vpack.c.b16 %v619, %v616
      %v746 = vpack.c.b16 %v623, %v620
      %v747 = vpack.c.b16 %v624, %v621
      %v748 = vpack.c.b16 %v625, %v622
      %v749 = vpack.c.b16 %v629, %v626
      %v750 = vpack.c.b16 %v630, %v627
      %v751 = vpack.c.b16 %v631, %v628
      %v752 = vpack.c.b16 %v635, %v632
      %v753 = vpack.c.b16 %v636, %v633
      %v754 = vpack.c.b16 %v637, %v634
      %v755 = vpack.c.b16 %v641, %v638
      %v756 = vpack.c.b16 %v642, %v639
      %v757 = vpack.c.b16 %v643, %v640
      %v758 = vpack.c.b16 %v647, %v644
      %v759 = vpack.c.b16 %v648, %v645
      %v760 = vpack.c.b16 %v649, %v646
      %v761 = vpack.c.b16 %v653, %v650
      %v762 = vpack.c.b16 %v654, %v651
      %v763 = vpack.c.b16 %v655, %v652
      %v764 = vpack.c.b16 %v659, %v656
      %v765 = vpack.c.b16 %v660, %v657
      %v766 = vpack.c.b16 %v661, %v658
      %v767 = vpack.c.b16 %v665, %v662
      %v768 = vpack.c.b16 %v666, %v663
      %v769 = vpack.c.b16 %v667, %v664
      %v770 = vpack.c.b16 %v671, %v668
      %v771 = vpack.c.b16 %v672, %v669
      %v772 = vpack.c.b16 %v673, %v670
      %v773 = vpack.c.b16 %v677, %v674
      %v774 = vpack.c.b16 %v678, %v675
      %v775 = vpack.c.b16 %v679, %v676
      %v776 = vpack.c.b16 %v683, %v680
      %v777 = vpack.c.b16 %v684, %v681
      %v778 = vpack.c.b16 %v685, %v682
      %v779 = vpack.c.b16 %v689, %v686
      %v780 = vpack.c.b16 %v690, %v687
      %v781 = vpack.c.b16 %v691, %v688
      %v878 = vunpack.c.l.b16 %v349
      %v879 = vunpack.c.l.b16 %v350
      %v880 = vunpack.c.l.b16 %v351
      %v881 = vunpack.c.l.b16 %v352
      %v882 = vunpack.c.l.b16 %v353
      %v883 = vunpack.c.l.b16 %v354
      %v884 = vunpack.c.l.b16 %v355
      %v885 = vunpack.c.l.b16 %v356
      %v886 = vunpack.c.l.b16 %v357
      %v887 = vunpack.c.l.b16 %v358
      %v888 = vunpack.c.l.b16 %v359
      %v889 = vunpack.c.l.b16 %v360
      %v890 = vunpack.c.l.b16 %v361
      %v891 = vunpack.c.l.b16 %v362
      %v892 = vunpack.c.l.b16 %v363
      %v893 = vunpack.c.l.b16 %v364
      %v894 = vunpack.c.l.b16 %v365
      %v895 = vunpack.c.l.b16 %v366
      %v896 = vunpack.c.l.b16 %v367
      %v897 = vunpack.c.l.b16 %v368
      %v898 = vunpack.c.l.b16 %v369
      %v899 = vunpack.c.l.b16 %v370
      %v900 = vunpack.c.l.b16 %v371
      %v901 = vunpack.c.l.b16 %v372
      %v902 = vunpack.c.l.b16 %v373
      %v903 = vunpack.c.l.b16 %v374
      %v904 = vunpack.c.l.b16 %v375
      %v905 = vunpack.c.l.b16 %v376
      %v906 = vunpack.c.l.b16 %v377
      %v907 = vunpack.c.l.b16 %v378
      %v908 = vunpack.c.l.b16 %v379
      %v909 = vunpack.c.l.b16 %v380
      %v910 = vunpack.c.l.b16 %v381
      %v911 = vunpack.c.l.b16 %v382
      %v912 = vunpack.c.l.b16 %v383
      %v913 = vunpack.c.l.b16 %v384
      %v914 = vpack.c.b16 %v879, %v878
      %v915 = vpack.c.b16 %v881, %v880
      %v916 = vpack.c.b16 %v883, %v882
      %v917 = vpack.c.b16 %v885, %v884
      %v918 = vpack.c.b16 %v887, %v886
      %v919 = vpack.c.b16 %v889, %v888
      %v920 = vpack.c.b16 %v891, %v890
      %v921 = vpack.c.b16 %v893, %v892
      %v922 = vpack.c.b16 %v895, %v894
      %v923 = vpack.c.b16 %v897, %v896
      %v924 = vpack.c.b16 %v899, %v898
      %v925 = vpack.c.b16 %v901, %v900
      %v926 = vpack.c.b16 %v903, %v902
      %v927 = vpack.c.b16 %v905, %v904
      %v928 = vpack.c.b16 %v907, %v906
      %v929 = vpack.c.b16 %v909, %v908
      %v930 = vpack.c.b16 %v911, %v910
      %v931 = vpack.c.b16 %v913, %v912
      %vm950 = vcmask 261120
      %v952 = vsel %vm950, %v694, 0
      %v955 = vsel %vm950, %v697, 0
      %v958 = vsel %vm950, %v700, 0
      %v961 = vsel %vm950, %v703, 0
      %v964 = vsel %vm950, %v706, 0
      %v967 = vsel %vm950, %v709, 0
      %v970 = vsel %vm950, %v712, 0
      %v973 = vsel %vm950, %v715, 0
      %v976 = vsel %vm950, %v718, 0
      %v979 = vsel %vm950, %v721, 0
      %v982 = vsel %vm950, %v724, 0
      %v985 = vsel %vm950, %v727, 0
      %v988 = vsel %vm950, %v730, 0
      %v991 = vsel %vm950, %v733, 0
      %v994 = vsel %vm950, %v736, 0
      %v997 = vsel %vm950, %v739, 0
      %v1000 = vsel %vm950, %v742, 0
      %v1003 = vsel %vm950, %v745, 0
      %v1006 = vsel %vm950, %v748, 0
      %v1009 = vsel %vm950, %v751, 0
      %v1012 = vsel %vm950, %v754, 0
      %v1015 = vsel %vm950, %v757, 0
      %v1018 = vsel %vm950, %v760, 0
      %v1021 = vsel %vm950, %v763, 0
      %v1024 = vsel %vm950, %v766, 0
      %v1027 = vsel %vm950, %v769, 0
      %v1030 = vsel %vm950, %v772, 0
      %v1033 = vsel %vm950, %v775, 0
      %v1036 = vsel %vm950, %v778, 0
      %v1039 = vsel %vm950, %v781, 0
      %1041 = vmatprep.subr.bf16.mxu0 0
      %1042 = vmatpush1.bf16.msra.mxu0 %v921
      %1043 = vmatprep.subr.bf16.mxu0 0
      %1044 = vmatpush1.bf16.msra.mxu0 %v920
      %1045 = vmatprep.subr.bf16.mxu0 0
      %1046 = vmatpush1.bf16.msra.mxu0 %v919
      %1047 = vmatprep.subr.bf16.mxu0 0
      %1048 = vmatpush1.bf16.msra.mxu0 %v918
      %1049 = vmatprep.subr.bf16.mxu0 0
      %1050 = vmatpush1.bf16.msra.mxu0 %v917
      %1051 = vmatprep.subr.bf16.mxu0 0
      %1052 = vmatpush1.bf16.msra.mxu0 %v916
      %1053 = vmatprep.subr.bf16.mxu0 0
      %1054 = vmatpush1.bf16.msra.mxu0 %v915
      %1055 = vmatprep.subr.bf16.mxu0 0
      %1056 = vmatpush1.bf16.msra.mxu0 %v914
      %1057 = vmatprep.subr.bf16.mxu0 0
      %1058 = vmatpush2.bf16.msra.mxu0 %v929
      %1059 = vmatprep.subr.bf16.mxu0 0
      %1060 = vmatpush2.bf16.msra.mxu0 %v928
      %1061 = vmatprep.subr.bf16.mxu0 0
      %1062 = vmatpush2.bf16.msra.mxu0 %v927
      %1063 = vmatprep.subr.bf16.mxu0 0
      %1064 = vmatpush2.bf16.msra.mxu0 %v926
      %1065 = vmatprep.subr.bf16.mxu0 0
      %1066 = vmatpush2.bf16.msra.mxu0 %v925
      %1067 = vmatprep.subr.bf16.mxu0 0
      %1068 = vmatpush2.bf16.msra.mxu0 %v924
      %1069 = vmatprep.subr.bf16.mxu0 0
      %1070 = vmatpush2.bf16.msra.mxu0 %v923
      %1071 = vmatprep.subr.bf16.mxu0 0
      %1072 = vmatpush2.bf16.msra.mxu0 %v922
      %1073 = vmatprep.mubr.bf16.mxu0 %v693
      %1074 = vmatmul.mubr.bf16.gmra.mxu0 %v692
      %v1075 = vpop.f32.mrf.mxu0
      %v1076 = vadd.f32 %v390, %v1075
      %v1077 = vpop.f32.mrf.mxu0
      %v1078 = vpop.f32.mrf.mxu0
      %v1079 = vadd.f32 %v390, %v1078
      %v1080 = vpop.f32.mrf.mxu0
      %1081 = vmatprep.mubr.bf16.mxu0 %v696
      %1082 = vmatmul.mubr.bf16.gmra.mxu0 %v695
      %v1083 = vpop.f32.mrf.mxu0
      %v1084 = vadd.f32 %v390, %v1083
      %v1085 = vpop.f32.mrf.mxu0
      %v1086 = vpop.f32.mrf.mxu0
      %v1087 = vadd.f32 %v390, %v1086
      %v1088 = vpop.f32.mrf.mxu0
      %1089 = vmatprep.mubr.bf16.mxu0 %v699
      %1090 = vmatmul.mubr.bf16.gmra.mxu0 %v698
      %v1091 = vpop.f32.mrf.mxu0
      %v1092 = vadd.f32 %v390, %v1091
      %v1093 = vpop.f32.mrf.mxu0
      %v1094 = vpop.f32.mrf.mxu0
      %v1095 = vadd.f32 %v390, %v1094
      %v1096 = vpop.f32.mrf.mxu0
      %1097 = vmatprep.mubr.bf16.mxu0 %v702
      %1098 = vmatmul.mubr.bf16.gmra.mxu0 %v701
      %v1099 = vpop.f32.mrf.mxu0
      %v1100 = vadd.f32 %v390, %v1099
      %v1101 = vpop.f32.mrf.mxu0
      %v1102 = vpop.f32.mrf.mxu0
      %v1103 = vadd.f32 %v390, %v1102
      %v1104 = vpop.f32.mrf.mxu0
      %1105 = vmatprep.mubr.bf16.mxu0 %v705
      %1106 = vmatmul.mubr.bf16.gmra.mxu0 %v704
      %v1107 = vpop.f32.mrf.mxu0
      %v1108 = vadd.f32 %v390, %v1107
      %v1109 = vpop.f32.mrf.mxu0
      %v1110 = vpop.f32.mrf.mxu0
      %v1111 = vadd.f32 %v390, %v1110
      %v1112 = vpop.f32.mrf.mxu0
      %1113 = vmatprep.mubr.bf16.mxu0 %v708
      %1114 = vmatmul.mubr.bf16.gmra.mxu0 %v707
      %v1115 = vpop.f32.mrf.mxu0
      %v1116 = vadd.f32 %v390, %v1115
      %v1117 = vpop.f32.mrf.mxu0
      %v1118 = vpop.f32.mrf.mxu0
      %v1119 = vadd.f32 %v390, %v1118
      %v1120 = vpop.f32.mrf.mxu0
      %1121 = vmatprep.mubr.bf16.mxu0 %v711
      %1122 = vmatmul.mubr.bf16.gmra.mxu0 %v710
      %v1123 = vpop.f32.mrf.mxu0
      %v1124 = vadd.f32 %v390, %v1123
      %v1125 = vpop.f32.mrf.mxu0
      %v1126 = vpop.f32.mrf.mxu0
      %v1127 = vadd.f32 %v390, %v1126
      %v1128 = vpop.f32.mrf.mxu0
      %1129 = vmatprep.mubr.bf16.mxu0 %v714
      %1130 = vmatmul.mubr.bf16.gmra.mxu0 %v713
      %v1131 = vpop.f32.mrf.mxu0
      %v1132 = vadd.f32 %v390, %v1131
      %v1133 = vpop.f32.mrf.mxu0
      %v1134 = vpop.f32.mrf.mxu0
      %v1135 = vadd.f32 %v390, %v1134
      %v1136 = vpop.f32.mrf.mxu0
      %1137 = vmatprep.mubr.bf16.mxu0 %v717
      %1138 = vmatmul.mubr.bf16.gmra.mxu0 %v716
      %v1139 = vpop.f32.mrf.mxu0
      %v1140 = vadd.f32 %v390, %v1139
      %v1141 = vpop.f32.mrf.mxu0
      %v1142 = vpop.f32.mrf.mxu0
      %v1143 = vadd.f32 %v390, %v1142
      %v1144 = vpop.f32.mrf.mxu0
      %1145 = vmatprep.mubr.bf16.mxu0 %v720
      %1146 = vmatmul.mubr.bf16.gmra.mxu0 %v719
      %v1147 = vpop.f32.mrf.mxu0
      %v1148 = vadd.f32 %v390, %v1147
      %v1149 = vpop.f32.mrf.mxu0
      %v1150 = vpop.f32.mrf.mxu0
      %v1151 = vadd.f32 %v390, %v1150
      %v1152 = vpop.f32.mrf.mxu0
      %1153 = vmatprep.mubr.bf16.mxu0 %v723
      %1154 = vmatmul.mubr.bf16.gmra.mxu0 %v722
      %v1155 = vpop.f32.mrf.mxu0
      %v1156 = vadd.f32 %v390, %v1155
      %v1157 = vpop.f32.mrf.mxu0
      %v1158 = vpop.f32.mrf.mxu0
      %v1159 = vadd.f32 %v390, %v1158
      %v1160 = vpop.f32.mrf.mxu0
      %1161 = vmatprep.mubr.bf16.mxu0 %v726
      %1162 = vmatmul.mubr.bf16.gmra.mxu0 %v725
      %v1163 = vpop.f32.mrf.mxu0
      %v1164 = vadd.f32 %v390, %v1163
      %v1165 = vpop.f32.mrf.mxu0
      %v1166 = vpop.f32.mrf.mxu0
      %v1167 = vadd.f32 %v390, %v1166
      %v1168 = vpop.f32.mrf.mxu0
      %1169 = vmatprep.mubr.bf16.mxu0 %v729
      %1170 = vmatmul.mubr.bf16.gmra.mxu0 %v728
      %v1171 = vpop.f32.mrf.mxu0
      %v1172 = vadd.f32 %v390, %v1171
      %v1173 = vpop.f32.mrf.mxu0
      %v1174 = vpop.f32.mrf.mxu0
      %v1175 = vadd.f32 %v390, %v1174
      %v1176 = vpop.f32.mrf.mxu0
      %1177 = vmatprep.mubr.bf16.mxu0 %v732
      %1178 = vmatmul.mubr.bf16.gmra.mxu0 %v731
      %v1179 = vpop.f32.mrf.mxu0
      %v1180 = vadd.f32 %v390, %v1179
      %v1181 = vpop.f32.mrf.mxu0
      %v1182 = vpop.f32.mrf.mxu0
      %v1183 = vadd.f32 %v390, %v1182
      %v1184 = vpop.f32.mrf.mxu0
      %1185 = vmatprep.mubr.bf16.mxu0 %v735
      %1186 = vmatmul.mubr.bf16.gmra.mxu0 %v734
      %v1187 = vpop.f32.mrf.mxu0
      %v1188 = vadd.f32 %v390, %v1187
      %v1189 = vpop.f32.mrf.mxu0
      %v1190 = vpop.f32.mrf.mxu0
      %v1191 = vadd.f32 %v390, %v1190
      %v1192 = vpop.f32.mrf.mxu0
      %1193 = vmatprep.mubr.bf16.mxu0 %v738
      %1194 = vmatmul.mubr.bf16.gmra.mxu0 %v737
      %v1195 = vpop.f32.mrf.mxu0
      %v1196 = vadd.f32 %v390, %v1195
      %v1197 = vpop.f32.mrf.mxu0
      %v1198 = vpop.f32.mrf.mxu0
      %v1199 = vadd.f32 %v390, %v1198
      %v1200 = vpop.f32.mrf.mxu0
      %1201 = vmatprep.mubr.bf16.mxu0 %v741
      %1202 = vmatmul.mubr.bf16.gmra.mxu0 %v740
      %v1203 = vpop.f32.mrf.mxu0
      %v1204 = vadd.f32 %v390, %v1203
      %v1205 = vpop.f32.mrf.mxu0
      %v1206 = vpop.f32.mrf.mxu0
      %v1207 = vadd.f32 %v390, %v1206
      %v1208 = vpop.f32.mrf.mxu0
      %1209 = vmatprep.mubr.bf16.mxu0 %v744
      %1210 = vmatmul.mubr.bf16.gmra.mxu0 %v743
      %v1211 = vpop.f32.mrf.mxu0
      %v1212 = vadd.f32 %v390, %v1211
      %v1213 = vpop.f32.mrf.mxu0
      %v1214 = vpop.f32.mrf.mxu0
      %v1215 = vadd.f32 %v390, %v1214
      %v1216 = vpop.f32.mrf.mxu0
      %1217 = vmatprep.mubr.bf16.mxu0 %v747
      %1218 = vmatmul.mubr.bf16.gmra.mxu0 %v746
      %v1219 = vpop.f32.mrf.mxu0
      %v1220 = vadd.f32 %v390, %v1219
      %v1221 = vpop.f32.mrf.mxu0
      %v1222 = vpop.f32.mrf.mxu0
      %v1223 = vadd.f32 %v390, %v1222
      %v1224 = vpop.f32.mrf.mxu0
      %1225 = vmatprep.mubr.bf16.mxu0 %v750
      %1226 = vmatmul.mubr.bf16.gmra.mxu0 %v749
      %v1227 = vpop.f32.mrf.mxu0
      %v1228 = vadd.f32 %v390, %v1227
      %v1229 = vpop.f32.mrf.mxu0
      %v1230 = vpop.f32.mrf.mxu0
      %v1231 = vadd.f32 %v390, %v1230
      %v1232 = vpop.f32.mrf.mxu0
      %1233 = vmatprep.mubr.bf16.mxu0 %v753
      %1234 = vmatmul.mubr.bf16.gmra.mxu0 %v752
      %v1235 = vpop.f32.mrf.mxu0
      %v1236 = vadd.f32 %v390, %v1235
      %v1237 = vpop.f32.mrf.mxu0
      %v1238 = vpop.f32.mrf.mxu0
      %v1239 = vadd.f32 %v390, %v1238
      %v1240 = vpop.f32.mrf.mxu0
      %1241 = vmatprep.mubr.bf16.mxu0 %v756
      %1242 = vmatmul.mubr.bf16.gmra.mxu0 %v755
      %v1243 = vpop.f32.mrf.mxu0
      %v1244 = vadd.f32 %v390, %v1243
      %v1245 = vpop.f32.mrf.mxu0
      %v1246 = vpop.f32.mrf.mxu0
      %v1247 = vadd.f32 %v390, %v1246
      %v1248 = vpop.f32.mrf.mxu0
      %1249 = vmatprep.mubr.bf16.mxu0 %v759
      %1250 = vmatmul.mubr.bf16.gmra.mxu0 %v758
      %v1251 = vpop.f32.mrf.mxu0
      %v1252 = vadd.f32 %v390, %v1251
      %v1253 = vpop.f32.mrf.mxu0
      %v1254 = vpop.f32.mrf.mxu0
      %v1255 = vadd.f32 %v390, %v1254
      %v1256 = vpop.f32.mrf.mxu0
      %1257 = vmatprep.mubr.bf16.mxu0 %v762
      %1258 = vmatmul.mubr.bf16.gmra.mxu0 %v761
      %v1259 = vpop.f32.mrf.mxu0
      %v1260 = vadd.f32 %v390, %v1259
      %v1261 = vpop.f32.mrf.mxu0
      %v1262 = vpop.f32.mrf.mxu0
      %v1263 = vadd.f32 %v390, %v1262
      %v1264 = vpop.f32.mrf.mxu0
      %1265 = vmatprep.mubr.bf16.mxu0 %v765
      %1266 = vmatmul.mubr.bf16.gmra.mxu0 %v764
      %v1267 = vpop.f32.mrf.mxu0
      %v1268 = vadd.f32 %v390, %v1267
      %v1269 = vpop.f32.mrf.mxu0
      %v1270 = vpop.f32.mrf.mxu0
      %v1271 = vadd.f32 %v390, %v1270
      %v1272 = vpop.f32.mrf.mxu0
      %1273 = vmatprep.mubr.bf16.mxu0 %v768
      %1274 = vmatmul.mubr.bf16.gmra.mxu0 %v767
      %v1275 = vpop.f32.mrf.mxu0
      %v1276 = vadd.f32 %v390, %v1275
      %v1277 = vpop.f32.mrf.mxu0
      %v1278 = vpop.f32.mrf.mxu0
      %v1279 = vadd.f32 %v390, %v1278
      %v1280 = vpop.f32.mrf.mxu0
      %1281 = vmatprep.mubr.bf16.mxu0 %v771
      %1282 = vmatmul.mubr.bf16.gmra.mxu0 %v770
      %v1283 = vpop.f32.mrf.mxu0
      %v1284 = vadd.f32 %v390, %v1283
      %v1285 = vpop.f32.mrf.mxu0
      %v1286 = vpop.f32.mrf.mxu0
      %v1287 = vadd.f32 %v390, %v1286
      %v1288 = vpop.f32.mrf.mxu0
      %1289 = vmatprep.mubr.bf16.mxu0 %v774
      %1290 = vmatmul.mubr.bf16.gmra.mxu0 %v773
      %v1291 = vpop.f32.mrf.mxu0
      %v1292 = vadd.f32 %v390, %v1291
      %v1293 = vpop.f32.mrf.mxu0
      %v1294 = vpop.f32.mrf.mxu0
      %v1295 = vadd.f32 %v390, %v1294
      %v1296 = vpop.f32.mrf.mxu0
      %1297 = vmatprep.mubr.bf16.mxu0 %v777
      %1298 = vmatmul.mubr.bf16.gmra.mxu0 %v776
      %v1299 = vpop.f32.mrf.mxu0
      %v1300 = vadd.f32 %v390, %v1299
      %v1301 = vpop.f32.mrf.mxu0
      %v1302 = vpop.f32.mrf.mxu0
      %v1303 = vadd.f32 %v390, %v1302
      %v1304 = vpop.f32.mrf.mxu0
      %1305 = vmatprep.mubr.bf16.mxu0 %v780
      %1306 = vmatmul.mubr.bf16.gmra.mxu0 %v779
      %v1307 = vpop.f32.mrf.mxu0
      %v1308 = vadd.f32 %v390, %v1307
      %v1309 = vpop.f32.mrf.mxu0
      %v1310 = vpop.f32.mrf.mxu0
      %v1311 = vadd.f32 %v390, %v1310
      %v1312 = vpop.f32.mrf.mxu0
      %1313 = vdwg.mxu0
      %1314 = vmatprep.subr.bf16.mxu0 0
      %1315 = vmatpush1.bf16.msra.mxu0 0
      %1316 = vmatprep.subr.bf16.mxu0 0
      %1317 = vmatpush1.bf16.msra.mxu0 0
      %1318 = vmatprep.subr.bf16.mxu0 0
      %1319 = vmatpush1.bf16.msra.mxu0 0
      %1320 = vmatprep.subr.bf16.mxu0 0
      %1321 = vmatpush1.bf16.msra.mxu0 0
      %1322 = vmatprep.subr.bf16.mxu0 0
      %1323 = vmatpush1.bf16.msra.mxu0 0
      %1324 = vmatprep.subr.bf16.mxu0 0
      %1325 = vmatpush1.bf16.msra.mxu0 0
      %1326 = vmatprep.subr.bf16.mxu0 0
      %1327 = vmatpush1.bf16.msra.mxu0 %v931
      %1328 = vmatprep.subr.bf16.mxu0 0
      %1329 = vmatpush1.bf16.msra.mxu0 %v930
      %1330 = vmatprep.subr.bf16.mxu0 0
      %1331 = vmatpush2.bf16.msra.mxu0 0
      %1332 = vmatprep.subr.bf16.mxu0 0
      %1333 = vmatpush2.bf16.msra.mxu0 0
      %1334 = vmatprep.subr.bf16.mxu0 0
      %1335 = vmatpush2.bf16.msra.mxu0 0
      %1336 = vmatprep.subr.bf16.mxu0 0
      %1337 = vmatpush2.bf16.msra.mxu0 0
      %1338 = vmatprep.subr.bf16.mxu0 0
      %1339 = vmatpush2.bf16.msra.mxu0 0
      %1340 = vmatprep.subr.bf16.mxu0 0
      %1341 = vmatpush2.bf16.msra.mxu0 0
      %1342 = vmatprep.subr.bf16.mxu0 0
      %1343 = vmatpush2.bf16.msra.mxu0 0
      %1344 = vmatprep.subr.bf16.mxu0 0
      %1345 = vmatpush2.bf16.msra.mxu0 0
      %1346 = vmatprep.mubr.bf16.mxu0 0
      %1347 = vmatmul.mubr.bf16.gmra.mxu0 %v952
      %v1348 = vpop.f32.mrf.mxu0
      %v1349 = vadd.f32 %v1076, %v1348
      %v1350 = vpop.f32.mrf.mxu0
      %v1351 = vpop.f32.mrf.mxu0
      %v1352 = vadd.f32 %v1079, %v1351
      %v1353 = vpop.f32.mrf.mxu0
      %1354 = vmatprep.mubr.bf16.mxu0 0
      %1355 = vmatmul.mubr.bf16.gmra.mxu0 %v955
      %v1356 = vpop.f32.mrf.mxu0
      %v1357 = vadd.f32 %v1084, %v1356
      %v1358 = vpop.f32.mrf.mxu0
      %v1359 = vpop.f32.mrf.mxu0
      %v1360 = vadd.f32 %v1087, %v1359
      %v1361 = vpop.f32.mrf.mxu0
      %1362 = vmatprep.mubr.bf16.mxu0 0
      %1363 = vmatmul.mubr.bf16.gmra.mxu0 %v958
      %v1364 = vpop.f32.mrf.mxu0
      %v1365 = vadd.f32 %v1092, %v1364
      %v1366 = vpop.f32.mrf.mxu0
      %v1367 = vpop.f32.mrf.mxu0
      %v1368 = vadd.f32 %v1095, %v1367
      %v1369 = vpop.f32.mrf.mxu0
      %1370 = vmatprep.mubr.bf16.mxu0 0
      %1371 = vmatmul.mubr.bf16.gmra.mxu0 %v961
      %v1372 = vpop.f32.mrf.mxu0
      %v1373 = vadd.f32 %v1100, %v1372
      %v1374 = vpop.f32.mrf.mxu0
      %v1375 = vpop.f32.mrf.mxu0
      %v1376 = vadd.f32 %v1103, %v1375
      %v1377 = vpop.f32.mrf.mxu0
      %1378 = vmatprep.mubr.bf16.mxu0 0
      %1379 = vmatmul.mubr.bf16.gmra.mxu0 %v964
      %v1380 = vpop.f32.mrf.mxu0
      %v1381 = vadd.f32 %v1108, %v1380
      %v1382 = vpop.f32.mrf.mxu0
      %v1383 = vpop.f32.mrf.mxu0
      %v1384 = vadd.f32 %v1111, %v1383
      %v1385 = vpop.f32.mrf.mxu0
      %1386 = vmatprep.mubr.bf16.mxu0 0
      %1387 = vmatmul.mubr.bf16.gmra.mxu0 %v967
      %v1388 = vpop.f32.mrf.mxu0
      %v1389 = vadd.f32 %v1116, %v1388
      %v1390 = vpop.f32.mrf.mxu0
      %v1391 = vpop.f32.mrf.mxu0
      %v1392 = vadd.f32 %v1119, %v1391
      %v1393 = vpop.f32.mrf.mxu0
      %1394 = vmatprep.mubr.bf16.mxu0 0
      %1395 = vmatmul.mubr.bf16.gmra.mxu0 %v970
      %v1396 = vpop.f32.mrf.mxu0
      %v1397 = vadd.f32 %v1124, %v1396
      %v1398 = vpop.f32.mrf.mxu0
      %v1399 = vpop.f32.mrf.mxu0
      %v1400 = vadd.f32 %v1127, %v1399
      %v1401 = vpop.f32.mrf.mxu0
      %1402 = vmatprep.mubr.bf16.mxu0 0
      %1403 = vmatmul.mubr.bf16.gmra.mxu0 %v973
      %v1404 = vpop.f32.mrf.mxu0
      %v1405 = vadd.f32 %v1132, %v1404
      %v1406 = vpop.f32.mrf.mxu0
      %v1407 = vpop.f32.mrf.mxu0
      %v1408 = vadd.f32 %v1135, %v1407
      %v1409 = vpop.f32.mrf.mxu0
      %1410 = vmatprep.mubr.bf16.mxu0 0
      %1411 = vmatmul.mubr.bf16.gmra.mxu0 %v976
      %v1412 = vpop.f32.mrf.mxu0
      %v1413 = vadd.f32 %v1140, %v1412
      %v1414 = vpop.f32.mrf.mxu0
      %v1415 = vpop.f32.mrf.mxu0
      %v1416 = vadd.f32 %v1143, %v1415
      %v1417 = vpop.f32.mrf.mxu0
      %1418 = vmatprep.mubr.bf16.mxu0 0
      %1419 = vmatmul.mubr.bf16.gmra.mxu0 %v979
      %v1420 = vpop.f32.mrf.mxu0
      %v1421 = vadd.f32 %v1148, %v1420
      %v1422 = vpop.f32.mrf.mxu0
      %v1423 = vpop.f32.mrf.mxu0
      %v1424 = vadd.f32 %v1151, %v1423
      %v1425 = vpop.f32.mrf.mxu0
      %1426 = vmatprep.mubr.bf16.mxu0 0
      %1427 = vmatmul.mubr.bf16.gmra.mxu0 %v982
      %v1428 = vpop.f32.mrf.mxu0
      %v1429 = vadd.f32 %v1156, %v1428
      %v1430 = vpop.f32.mrf.mxu0
      %v1431 = vpop.f32.mrf.mxu0
      %v1432 = vadd.f32 %v1159, %v1431
      %v1433 = vpop.f32.mrf.mxu0
      %1434 = vmatprep.mubr.bf16.mxu0 0
      %1435 = vmatmul.mubr.bf16.gmra.mxu0 %v985
      %v1436 = vpop.f32.mrf.mxu0
      %v1437 = vadd.f32 %v1164, %v1436
      %v1438 = vpop.f32.mrf.mxu0
      %v1439 = vpop.f32.mrf.mxu0
      %v1440 = vadd.f32 %v1167, %v1439
      %v1441 = vpop.f32.mrf.mxu0
      %1442 = vmatprep.mubr.bf16.mxu0 0
      %1443 = vmatmul.mubr.bf16.gmra.mxu0 %v988
      %v1444 = vpop.f32.mrf.mxu0
      %v1445 = vadd.f32 %v1172, %v1444
      %v1446 = vpop.f32.mrf.mxu0
      %v1447 = vpop.f32.mrf.mxu0
      %v1448 = vadd.f32 %v1175, %v1447
      %v1449 = vpop.f32.mrf.mxu0
      %1450 = vmatprep.mubr.bf16.mxu0 0
      %1451 = vmatmul.mubr.bf16.gmra.mxu0 %v991
      %v1452 = vpop.f32.mrf.mxu0
      %v1453 = vadd.f32 %v1180, %v1452
      %v1454 = vpop.f32.mrf.mxu0
      %v1455 = vpop.f32.mrf.mxu0
      %v1456 = vadd.f32 %v1183, %v1455
      %v1457 = vpop.f32.mrf.mxu0
      %1458 = vmatprep.mubr.bf16.mxu0 0
      %1459 = vmatmul.mubr.bf16.gmra.mxu0 %v994
      %v1460 = vpop.f32.mrf.mxu0
      %v1461 = vadd.f32 %v1188, %v1460
      %v1462 = vpop.f32.mrf.mxu0
      %v1463 = vpop.f32.mrf.mxu0
      %v1464 = vadd.f32 %v1191, %v1463
      %v1465 = vpop.f32.mrf.mxu0
      %1466 = vmatprep.mubr.bf16.mxu0 0
      %1467 = vmatmul.mubr.bf16.gmra.mxu0 %v997
      %v1468 = vpop.f32.mrf.mxu0
      %v1469 = vadd.f32 %v1196, %v1468
      %v1470 = vpop.f32.mrf.mxu0
      %v1471 = vpop.f32.mrf.mxu0
      %v1472 = vadd.f32 %v1199, %v1471
      %v1473 = vpop.f32.mrf.mxu0
      %1474 = vmatprep.mubr.bf16.mxu0 0
      %1475 = vmatmul.mubr.bf16.gmra.mxu0 %v1000
      %v1476 = vpop.f32.mrf.mxu0
      %v1477 = vadd.f32 %v1204, %v1476
      %v1478 = vpop.f32.mrf.mxu0
      %v1479 = vpop.f32.mrf.mxu0
      %v1480 = vadd.f32 %v1207, %v1479
      %v1481 = vpop.f32.mrf.mxu0
      %1482 = vmatprep.mubr.bf16.mxu0 0
      %1483 = vmatmul.mubr.bf16.gmra.mxu0 %v1003
      %v1484 = vpop.f32.mrf.mxu0
      %v1485 = vadd.f32 %v1212, %v1484
      %v1486 = vpop.f32.mrf.mxu0
      %v1487 = vpop.f32.mrf.mxu0
      %v1488 = vadd.f32 %v1215, %v1487
      %v1489 = vpop.f32.mrf.mxu0
      %1490 = vmatprep.mubr.bf16.mxu0 0
      %1491 = vmatmul.mubr.bf16.gmra.mxu0 %v1006
      %v1492 = vpop.f32.mrf.mxu0
      %v1493 = vadd.f32 %v1220, %v1492
      %v1494 = vpop.f32.mrf.mxu0
      %v1495 = vpop.f32.mrf.mxu0
      %v1496 = vadd.f32 %v1223, %v1495
      %v1497 = vpop.f32.mrf.mxu0
      %1498 = vmatprep.mubr.bf16.mxu0 0
      %1499 = vmatmul.mubr.bf16.gmra.mxu0 %v1009
      %v1500 = vpop.f32.mrf.mxu0
      %v1501 = vadd.f32 %v1228, %v1500
      %v1502 = vpop.f32.mrf.mxu0
      %v1503 = vpop.f32.mrf.mxu0
      %v1504 = vadd.f32 %v1231, %v1503
      %v1505 = vpop.f32.mrf.mxu0
      %1506 = vmatprep.mubr.bf16.mxu0 0
      %1507 = vmatmul.mubr.bf16.gmra.mxu0 %v1012
      %v1508 = vpop.f32.mrf.mxu0
      %v1509 = vadd.f32 %v1236, %v1508
      %v1510 = vpop.f32.mrf.mxu0
      %v1511 = vpop.f32.mrf.mxu0
      %v1512 = vadd.f32 %v1239, %v1511
      %v1513 = vpop.f32.mrf.mxu0
      %1514 = vmatprep.mubr.bf16.mxu0 0
      %1515 = vmatmul.mubr.bf16.gmra.mxu0 %v1015
      %v1516 = vpop.f32.mrf.mxu0
      %v1517 = vadd.f32 %v1244, %v1516
      %v1518 = vpop.f32.mrf.mxu0
      %v1519 = vpop.f32.mrf.mxu0
      %v1520 = vadd.f32 %v1247, %v1519
      %v1521 = vpop.f32.mrf.mxu0
      %1522 = vmatprep.mubr.bf16.mxu0 0
      %1523 = vmatmul.mubr.bf16.gmra.mxu0 %v1018
      %v1524 = vpop.f32.mrf.mxu0
      %v1525 = vadd.f32 %v1252, %v1524
      %v1526 = vpop.f32.mrf.mxu0
      %v1527 = vpop.f32.mrf.mxu0
      %v1528 = vadd.f32 %v1255, %v1527
      %v1529 = vpop.f32.mrf.mxu0
      %1530 = vmatprep.mubr.bf16.mxu0 0
      %1531 = vmatmul.mubr.bf16.gmra.mxu0 %v1021
      %v1532 = vpop.f32.mrf.mxu0
      %v1533 = vadd.f32 %v1260, %v1532
      %v1534 = vpop.f32.mrf.mxu0
      %v1535 = vpop.f32.mrf.mxu0
      %v1536 = vadd.f32 %v1263, %v1535
      %v1537 = vpop.f32.mrf.mxu0
      %1538 = vmatprep.mubr.bf16.mxu0 0
      %1539 = vmatmul.mubr.bf16.gmra.mxu0 %v1024
      %v1540 = vpop.f32.mrf.mxu0
      %v1541 = vadd.f32 %v1268, %v1540
      %v1542 = vpop.f32.mrf.mxu0
      %v1543 = vpop.f32.mrf.mxu0
      %v1544 = vadd.f32 %v1271, %v1543
      %v1545 = vpop.f32.mrf.mxu0
      %1546 = vmatprep.mubr.bf16.mxu0 0
      %1547 = vmatmul.mubr.bf16.gmra.mxu0 %v1027
      %v1548 = vpop.f32.mrf.mxu0
      %v1549 = vadd.f32 %v1276, %v1548
      %v1550 = vpop.f32.mrf.mxu0
      %v1551 = vpop.f32.mrf.mxu0
      %v1552 = vadd.f32 %v1279, %v1551
      %v1553 = vpop.f32.mrf.mxu0
      %1554 = vmatprep.mubr.bf16.mxu0 0
      %1555 = vmatmul.mubr.bf16.gmra.mxu0 %v1030
      %v1556 = vpop.f32.mrf.mxu0
      %v1557 = vadd.f32 %v1284, %v1556
      %v1558 = vpop.f32.mrf.mxu0
      %v1559 = vpop.f32.mrf.mxu0
      %v1560 = vadd.f32 %v1287, %v1559
      %v1561 = vpop.f32.mrf.mxu0
      %1562 = vmatprep.mubr.bf16.mxu0 0
      %1563 = vmatmul.mubr.bf16.gmra.mxu0 %v1033
      %v1564 = vpop.f32.mrf.mxu0
      %v1565 = vadd.f32 %v1292, %v1564
      %v1566 = vpop.f32.mrf.mxu0
      %v1567 = vpop.f32.mrf.mxu0
      %v1568 = vadd.f32 %v1295, %v1567
      %v1569 = vpop.f32.mrf.mxu0
      %1570 = vmatprep.mubr.bf16.mxu0 0
      %1571 = vmatmul.mubr.bf16.gmra.mxu0 %v1036
      %v1572 = vpop.f32.mrf.mxu0
      %v1573 = vadd.f32 %v1300, %v1572
      %v1574 = vpop.f32.mrf.mxu0
      %v1575 = vpop.f32.mrf.mxu0
      %v1576 = vadd.f32 %v1303, %v1575
      %v1577 = vpop.f32.mrf.mxu0
      %1578 = vmatprep.mubr.bf16.mxu0 0
      %1579 = vmatmul.mubr.bf16.gmra.mxu0 %v1039
      %v1580 = vpop.f32.mrf.mxu0
      %v1581 = vadd.f32 %v1308, %v1580
      %v1582 = vpop.f32.mrf.mxu0
      %v1583 = vpop.f32.mrf.mxu0
      %v1584 = vadd.f32 %v1311, %v1583
      %v1585 = vpop.f32.mrf.mxu0
      %1586 = vdwg.mxu0
      %v1587 = vmax.f32 %v1349, 0.0
      %v1588 = vmax.f32 %v1352, 0.0
      %v1589 = vmax.f32 %v1357, 0.0
      %v1590 = vmax.f32 %v1360, 0.0
      %v1591 = vmax.f32 %v1365, 0.0
      %v1592 = vmax.f32 %v1368, 0.0
      %v1593 = vmax.f32 %v1373, 0.0
      %v1594 = vmax.f32 %v1376, 0.0
      %v1595 = vmax.f32 %v1381, 0.0
      %v1596 = vmax.f32 %v1384, 0.0
      %v1597 = vmax.f32 %v1389, 0.0
      %v1598 = vmax.f32 %v1392, 0.0
      %v1599 = vmax.f32 %v1397, 0.0
      %v1600 = vmax.f32 %v1400, 0.0
      %v1601 = vmax.f32 %v1405, 0.0
      %v1602 = vmax.f32 %v1408, 0.0
      %v1603 = vmax.f32 %v1413, 0.0
      %v1604 = vmax.f32 %v1416, 0.0
      %v1605 = vmax.f32 %v1421, 0.0
      %v1606 = vmax.f32 %v1424, 0.0
      %v1607 = vmax.f32 %v1429, 0.0
      %v1608 = vmax.f32 %v1432, 0.0
      %v1609 = vmax.f32 %v1437, 0.0
      %v1610 = vmax.f32 %v1440, 0.0
      %v1611 = vmax.f32 %v1445, 0.0
      %v1612 = vmax.f32 %v1448, 0.0
      %v1613 = vmax.f32 %v1453, 0.0
      %v1614 = vmax.f32 %v1456, 0.0
      %v1615 = vmax.f32 %v1461, 0.0
      %v1616 = vmax.f32 %v1464, 0.0
      %v1617 = vmax.f32 %v1469, 0.0
      %v1618 = vmax.f32 %v1472, 0.0
      %v1619 = vmax.f32 %v1477, 0.0
      %v1620 = vmax.f32 %v1480, 0.0
      %v1621 = vmax.f32 %v1485, 0.0
      %v1622 = vmax.f32 %v1488, 0.0
      %v1623 = vmax.f32 %v1493, 0.0
      %v1624 = vmax.f32 %v1496, 0.0
      %v1625 = vmax.f32 %v1501, 0.0
      %v1626 = vmax.f32 %v1504, 0.0
      %v1627 = vmax.f32 %v1509, 0.0
      %v1628 = vmax.f32 %v1512, 0.0
      %v1629 = vmax.f32 %v1517, 0.0
      %v1630 = vmax.f32 %v1520, 0.0
      %v1631 = vmax.f32 %v1525, 0.0
      %v1632 = vmax.f32 %v1528, 0.0
      %v1633 = vmax.f32 %v1533, 0.0
      %v1634 = vmax.f32 %v1536, 0.0
      %v1635 = vmax.f32 %v1541, 0.0
      %v1636 = vmax.f32 %v1544, 0.0
      %v1637 = vmax.f32 %v1549, 0.0
      %v1638 = vmax.f32 %v1552, 0.0
      %v1639 = vmax.f32 %v1557, 0.0
      %v1640 = vmax.f32 %v1560, 0.0
      %v1641 = vmax.f32 %v1565, 0.0
      %v1642 = vmax.f32 %v1568, 0.0
      %v1643 = vmax.f32 %v1573, 0.0
      %v1644 = vmax.f32 %v1576, 0.0
      %v1645 = vmax.f32 %v1581, 0.0
      %v1646 = vmax.f32 %v1584, 0.0
      %v1647 = vpack.c.bf16 %v1588, %v1587
      %v1648 = vpack.c.bf16 %v1590, %v1589
      %v1649 = vpack.c.bf16 %v1592, %v1591
      %v1650 = vpack.c.bf16 %v1594, %v1593
      %v1651 = vpack.c.bf16 %v1596, %v1595
      %v1652 = vpack.c.bf16 %v1598, %v1597
      %v1653 = vpack.c.bf16 %v1600, %v1599
      %v1654 = vpack.c.bf16 %v1602, %v1601
      %v1655 = vpack.c.bf16 %v1604, %v1603
      %v1656 = vpack.c.bf16 %v1606, %v1605
      %v1657 = vpack.c.bf16 %v1608, %v1607
      %v1658 = vpack.c.bf16 %v1610, %v1609
      %v1659 = vpack.c.bf16 %v1612, %v1611
      %v1660 = vpack.c.bf16 %v1614, %v1613
      %v1661 = vpack.c.bf16 %v1616, %v1615
      %v1662 = vpack.c.bf16 %v1618, %v1617
      %v1663 = vpack.c.bf16 %v1620, %v1619
      %v1664 = vpack.c.bf16 %v1622, %v1621
      %v1665 = vpack.c.bf16 %v1624, %v1623
      %v1666 = vpack.c.bf16 %v1626, %v1625
      %v1667 = vpack.c.bf16 %v1628, %v1627
      %v1668 = vpack.c.bf16 %v1630, %v1629
      %v1669 = vpack.c.bf16 %v1632, %v1631
      %v1670 = vpack.c.bf16 %v1634, %v1633
      %v1671 = vpack.c.bf16 %v1636, %v1635
      %v1672 = vpack.c.bf16 %v1638, %v1637
      %v1673 = vpack.c.bf16 %v1640, %v1639
      %v1674 = vpack.c.bf16 %v1642, %v1641
      %v1675 = vpack.c.bf16 %v1644, %v1643
      %v1676 = vpack.c.bf16 %v1646, %v1645
      %v1707 = vunpack.c.l.b16 %v1647
      %v1708 = vunpack.c.h.b16 %v1647
      %v1709 = vunpack.c.l.b16 %v1648
      %v1710 = vunpack.c.h.b16 %v1648
      %v1711 = vunpack.c.l.b16 %v1649
      %v1712 = vunpack.c.h.b16 %v1649
      %v1713 = vunpack.c.l.b16 %v1650
      %v1714 = vunpack.c.h.b16 %v1650
      %v1715 = vunpack.c.l.b16 %v1651
      %v1716 = vunpack.c.h.b16 %v1651
      %v1717 = vunpack.c.l.b16 %v1652
      %v1718 = vunpack.c.h.b16 %v1652
      %v1719 = vunpack.c.l.b16 %v1653
      %v1720 = vunpack.c.h.b16 %v1653
      %v1721 = vunpack.c.l.b16 %v1654
      %v1722 = vunpack.c.h.b16 %v1654
      %v1723 = vunpack.c.l.b16 %v1655
      %v1724 = vunpack.c.h.b16 %v1655
      %v1725 = vunpack.c.l.b16 %v1656
      %v1726 = vunpack.c.h.b16 %v1656
      %v1727 = vunpack.c.l.b16 %v1657
      %v1728 = vunpack.c.h.b16 %v1657
      %v1729 = vunpack.c.l.b16 %v1658
      %v1730 = vunpack.c.h.b16 %v1658
      %v1731 = vunpack.c.l.b16 %v1659
      %v1732 = vunpack.c.h.b16 %v1659
      %v1733 = vunpack.c.l.b16 %v1660
      %v1734 = vunpack.c.h.b16 %v1660
      %v1735 = vunpack.c.l.b16 %v1661
      %v1736 = vunpack.c.h.b16 %v1661
      %v1737 = vunpack.c.l.b16 %v1662
      %v1738 = vunpack.c.h.b16 %v1662
      %v1739 = vunpack.c.l.b16 %v1663
      %v1740 = vunpack.c.h.b16 %v1663
      %v1741 = vunpack.c.l.b16 %v1664
      %v1742 = vunpack.c.h.b16 %v1664
      %v1743 = vunpack.c.l.b16 %v1665
      %v1744 = vunpack.c.h.b16 %v1665
      %v1745 = vunpack.c.l.b16 %v1666
      %v1746 = vunpack.c.h.b16 %v1666
      %v1747 = vunpack.c.l.b16 %v1667
      %v1748 = vunpack.c.h.b16 %v1667
      %v1749 = vunpack.c.l.b16 %v1668
      %v1750 = vunpack.c.h.b16 %v1668
      %v1751 = vunpack.c.l.b16 %v1669
      %v1752 = vunpack.c.h.b16 %v1669
      %v1753 = vunpack.c.l.b16 %v1670
      %v1754 = vunpack.c.h.b16 %v1670
      %v1755 = vunpack.c.l.b16 %v1671
      %v1756 = vunpack.c.h.b16 %v1671
      %v1757 = vunpack.c.l.b16 %v1672
      %v1758 = vunpack.c.h.b16 %v1672
      %v1759 = vunpack.c.l.b16 %v1673
      %v1760 = vunpack.c.h.b16 %v1673
      %v1761 = vunpack.c.l.b16 %v1674
      %v1762 = vunpack.c.h.b16 %v1674
      %v1763 = vunpack.c.l.b16 %v1675
      %v1764 = vunpack.c.h.b16 %v1675
      %v1765 = vunpack.c.l.b16 %v1676
      %v1766 = vunpack.c.h.b16 %v1676
      %v1767 = vpack.c.b16 %v1707, %v1707
      %v1768 = vpack.c.b16 %v1708, %v1708
      %v1769 = vpack.c.b16 %v1709, %v1709
      %v1770 = vpack.c.b16 %v1710, %v1710
      %v1771 = vpack.c.b16 %v1711, %v1711
      %v1772 = vpack.c.b16 %v1712, %v1712
      %v1773 = vpack.c.b16 %v1713, %v1713
      %v1774 = vpack.c.b16 %v1714, %v1714
      %v1775 = vpack.c.b16 %v1715, %v1715
      %v1776 = vpack.c.b16 %v1716, %v1716
      %v1777 = vpack.c.b16 %v1717, %v1717
      %v1778 = vpack.c.b16 %v1718, %v1718
      %v1779 = vpack.c.b16 %v1719, %v1719
      %v1780 = vpack.c.b16 %v1720, %v1720
      %v1781 = vpack.c.b16 %v1721, %v1721
      %v1782 = vpack.c.b16 %v1722, %v1722
      %v1783 = vpack.c.b16 %v1723, %v1723
      %v1784 = vpack.c.b16 %v1724, %v1724
      %v1785 = vpack.c.b16 %v1725, %v1725
      %v1786 = vpack.c.b16 %v1726, %v1726
      %v1787 = vpack.c.b16 %v1727, %v1727
      %v1788 = vpack.c.b16 %v1728, %v1728
      %v1789 = vpack.c.b16 %v1729, %v1729
      %v1790 = vpack.c.b16 %v1730, %v1730
      %v1791 = vpack.c.b16 %v1731, %v1731
      %v1792 = vpack.c.b16 %v1732, %v1732
      %v1793 = vpack.c.b16 %v1733, %v1733
      %v1794 = vpack.c.b16 %v1734, %v1734
      %v1795 = vpack.c.b16 %v1735, %v1735
      %v1796 = vpack.c.b16 %v1736, %v1736
      %v1797 = vpack.c.b16 %v1737, %v1737
      %v1798 = vpack.c.b16 %v1738, %v1738
      %v1799 = vpack.c.b16 %v1739, %v1739
      %v1800 = vpack.c.b16 %v1740, %v1740
      %v1801 = vpack.c.b16 %v1741, %v1741
      %v1802 = vpack.c.b16 %v1742, %v1742
      %v1803 = vpack.c.b16 %v1743, %v1743
      %v1804 = vpack.c.b16 %v1744, %v1744
      %v1805 = vpack.c.b16 %v1745, %v1745
      %v1806 = vpack.c.b16 %v1746, %v1746
      %v1807 = vpack.c.b16 %v1747, %v1747
      %v1808 = vpack.c.b16 %v1748, %v1748
      %v1809 = vpack.c.b16 %v1749, %v1749
      %v1810 = vpack.c.b16 %v1750, %v1750
      %v1811 = vpack.c.b16 %v1751, %v1751
      %v1812 = vpack.c.b16 %v1752, %v1752
      %v1813 = vpack.c.b16 %v1753, %v1753
      %v1814 = vpack.c.b16 %v1754, %v1754
      %v1815 = vpack.c.b16 %v1755, %v1755
      %v1816 = vpack.c.b16 %v1756, %v1756
      %v1817 = vpack.c.b16 %v1757, %v1757
      %v1818 = vpack.c.b16 %v1758, %v1758
      %v1819 = vpack.c.b16 %v1759, %v1759
      %v1820 = vpack.c.b16 %v1760, %v1760
      %v1821 = vpack.c.b16 %v1761, %v1761
      %v1822 = vpack.c.b16 %v1762, %v1762
      %v1823 = vpack.c.b16 %v1763, %v1763
      %v1824 = vpack.c.b16 %v1764, %v1764
      %v1825 = vpack.c.b16 %v1765, %v1765
      %v1826 = vpack.c.b16 %v1766, %v1766
      %vm1887 = vcmask 519168
      %1888 = vst.msk [vmem:[%s226] sm:$0xf] %vm1887, %v1767
      %1889 = vst.msk [vmem:[%s226 + $0x4] sm:$0xf] %vm1887, %v1768
      %1890 = vst.msk [vmem:[%s226 + $0x8] sm:$0xf] %vm1887, %v1769
      %1891 = vst.msk [vmem:[%s226 + $0xc] sm:$0xf] %vm1887, %v1770
      %1892 = vst.msk [vmem:[%s226 + $0x10] sm:$0xf] %vm1887, %v1771
      %1893 = vst.msk [vmem:[%s226 + $0x14] sm:$0xf] %vm1887, %v1772
      %1894 = vst.msk [vmem:[%s226 + $0x18] sm:$0xf] %vm1887, %v1773
      %1895 = vst.msk [vmem:[%s226 + $0x1c] sm:$0xf] %vm1887, %v1774
      %1896 = vst.msk [vmem:[%s226 + $0x20] sm:$0xf] %vm1887, %v1775
      %1897 = vst.msk [vmem:[%s226 + $0x24] sm:$0xf] %vm1887, %v1776
      %1898 = vst.msk [vmem:[%s226 + $0x28] sm:$0xf] %vm1887, %v1777
      %1899 = vst.msk [vmem:[%s226 + $0x2c] sm:$0xf] %vm1887, %v1778
      %1900 = vst.msk [vmem:[%s226 + $0x30] sm:$0xf] %vm1887, %v1779
      %1901 = vst.msk [vmem:[%s226 + $0x34] sm:$0xf] %vm1887, %v1780
      %1902 = vst.msk [vmem:[%s226 + $0x38] sm:$0xf] %vm1887, %v1781
      %1903 = vst.msk [vmem:[%s226 + $0x3c] sm:$0xf] %vm1887, %v1782
      %1904 = vst.msk [vmem:[%s226 + $0x40] sm:$0xf] %vm1887, %v1783
      %1905 = vst.msk [vmem:[%s226 + $0x44] sm:$0xf] %vm1887, %v1784
      %1906 = vst.msk [vmem:[%s226 + $0x48] sm:$0xf] %vm1887, %v1785
      %1907 = vst.msk [vmem:[%s226 + $0x4c] sm:$0xf] %vm1887, %v1786
      %1908 = vst.msk [vmem:[%s226 + $0x50] sm:$0xf] %vm1887, %v1787
      %1909 = vst.msk [vmem:[%s226 + $0x54] sm:$0xf] %vm1887, %v1788
      %1910 = vst.msk [vmem:[%s226 + $0x58] sm:$0xf] %vm1887, %v1789
      %1911 = vst.msk [vmem:[%s226 + $0x5c] sm:$0xf] %vm1887, %v1790
      %1912 = vst.msk [vmem:[%s226 + $0x60] sm:$0xf] %vm1887, %v1791
      %1913 = vst.msk [vmem:[%s226 + $0x64] sm:$0xf] %vm1887, %v1792
      %1914 = vst.msk [vmem:[%s226 + $0x68] sm:$0xf] %vm1887, %v1793
      %1915 = vst.msk [vmem:[%s226 + $0x6c] sm:$0xf] %vm1887, %v1794
      %1916 = vst.msk [vmem:[%s226 + $0x70] sm:$0xf] %vm1887, %v1795
      %1917 = vst.msk [vmem:[%s226 + $0x74] sm:$0xf] %vm1887, %v1796
      %1918 = vst.msk [vmem:[%s226 + $0x78] sm:$0xf] %vm1887, %v1797
      %1919 = vst.msk [vmem:[%s226 + $0x7c] sm:$0xf] %vm1887, %v1798
      %1920 = vst.msk [vmem:[%s226 + $0x80] sm:$0xf] %vm1887, %v1799
      %1921 = vst.msk [vmem:[%s226 + $0x84] sm:$0xf] %vm1887, %v1800
      %1922 = vst.msk [vmem:[%s226 + $0x88] sm:$0xf] %vm1887, %v1801
      %1923 = vst.msk [vmem:[%s226 + $0x8c] sm:$0xf] %vm1887, %v1802
      %1924 = vst.msk [vmem:[%s226 + $0x90] sm:$0xf] %vm1887, %v1803
      %1925 = vst.msk [vmem:[%s226 + $0x94] sm:$0xf] %vm1887, %v1804
      %1926 = vst.msk [vmem:[%s226 + $0x98] sm:$0xf] %vm1887, %v1805
      %1927 = vst.msk [vmem:[%s226 + $0x9c] sm:$0xf] %vm1887, %v1806
      %1928 = vst.msk [vmem:[%s226 + $0xa0] sm:$0xf] %vm1887, %v1807
      %1929 = vst.msk [vmem:[%s226 + $0xa4] sm:$0xf] %vm1887, %v1808
      %1930 = vst.msk [vmem:[%s226 + $0xa8] sm:$0xf] %vm1887, %v1809
      %1931 = vst.msk [vmem:[%s226 + $0xac] sm:$0xf] %vm1887, %v1810
      %1932 = vst.msk [vmem:[%s226 + $0xb0] sm:$0xf] %vm1887, %v1811
      %1933 = vst.msk [vmem:[%s226 + $0xb4] sm:$0xf] %vm1887, %v1812
      %1934 = vst.msk [vmem:[%s226 + $0xb8] sm:$0xf] %vm1887, %v1813
      %1935 = vst.msk [vmem:[%s226 + $0xbc] sm:$0xf] %vm1887, %v1814
      %1936 = vst.msk [vmem:[%s226 + $0xc0] sm:$0xf] %vm1887, %v1815
      %1937 = vst.msk [vmem:[%s226 + $0xc4] sm:$0xf] %vm1887, %v1816
      %1938 = vst.msk [vmem:[%s226 + $0xc8] sm:$0xf] %vm1887, %v1817
      %1939 = vst.msk [vmem:[%s226 + $0xcc] sm:$0xf] %vm1887, %v1818
      %1940 = vst.msk [vmem:[%s226 + $0xd0] sm:$0xf] %vm1887, %v1819
      %1941 = vst.msk [vmem:[%s226 + $0xd4] sm:$0xf] %vm1887, %v1820
      %1942 = vst.msk [vmem:[%s226 + $0xd8] sm:$0xf] %vm1887, %v1821
      %1943 = vst.msk [vmem:[%s226 + $0xdc] sm:$0xf] %vm1887, %v1822
      %1944 = vst.msk [vmem:[%s226 + $0xe0] sm:$0xf] %vm1887, %v1823
      %1945 = vst.msk [vmem:[%s226 + $0xe4] sm:$0xf] %vm1887, %v1824
      %1946 = vst.msk [vmem:[%s226 + $0xe8] sm:$0xf] %vm1887, %v1825
      %1947 = vst.msk [vmem:[%s226 + $0xec] sm:$0xf] %vm1887, %v1826
      %s1948 = smul.u32 60, %s18
      %p1949 = scmp.lt.s32.totalorder %s1948, 179
      %s1950 = scalar_select %p1949, %s1948, 179
      %p1951 = scmp.lt.s32.totalorder %s19, 0
      %s1952 = scalar_select %p1951, %s19, 0
      %s1953 = sadd.s32 %s1952, %s1950
      %s1954 = smul.addr %s1953, 4
      %s1955 = scalar_lea.vmem %s3, %s1954
      // Predicated region
      $region33: #{decoder3d_forward.8} parent=31 // pred_check
        %p1956 = pneg %p124
      $region34: #{decoder3d_forward.8} parent=31 // pred_check_branch
        %1958 = sbr.rel (%p1956) target = $region36
      $region35: #{decoder3d_forward.8} parent=31 // pred_region
        %s1959 = smul.u32 60, %s18
      $region36: #{decoder3d_forward.8} parent=31 // pred_fallthru
        _
    $region32: #{decoder3d_forward.8} parent=5 // pred_fallthru
      _
    %p1960 = scmp.le.s32.totalorder 2, %s9
    // Predicated region
    $region37: #{decoder3d_forward.8} parent=5 // pred_check
      %p1961 = pneg %p1960
    $region38: #{decoder3d_forward.8} parent=5 // pred_check_branch
      %1963 = sbr.rel (%p1961) target = $region40
    $region39: #{decoder3d_forward.8} parent=5 // pred_region
      %s1964 = ssub.s32 %s9, 2
      // Predicated region
      $region41: #{decoder3d_forward.8} parent=39 // pred_check
        %p1965 = pneg %p130
      $region42: #{decoder3d_forward.8} parent=39 // pred_check_branch
        %1967 = sbr.rel (%p1965) target = $region44
      $region43: #{decoder3d_forward.8} parent=39 // pred_region
        %s1968 = smul.u32 60, %s20
        %p1969 = scmp.lt.s32.totalorder %s1968, 179
        %s1970 = scalar_select %p1969, %s1968, 179
        %p1971 = scmp.lt.s32.totalorder %s21, 0
        %s1972 = scalar_select %p1971, %s21, 0
        %s1973 = sadd.s32 %s1972, %s1970
        %s1974 = smul.addr %s1973, 4
        %s1975 = scalar_lea.vmem %s3, %s1974
      $region44: #{decoder3d_forward.8} parent=39 // pred_fallthru
        _
    $region40: #{decoder3d_forward.8} parent=5 // pred_fallthru
      _
  $region6: #{decoder3d_forward.8} parent=0 // loop_footer
    %s13 = sadd.s32 1, %s9
  $region7: #{decoder3d_forward.8} parent=0 // loop_footer_branch
    %8 = sbr.rel target = $region3
  $region8: #{decoder3d_forward.8} parent=0 // loop_exit
    _

// kernel: tile.28
$region0: #{tile.28}
  #allocation0 [shape = 's32[1]{0}', space=sflag, size = 0x4, scoped, tag = 'scoped memory for tile.28']
  %s0 = inlined_call_operand.vmem [shape: f32[4], index: 0, kind: input, shape index: {}]
  %s1 = inlined_call_operand.vmem [shape: f32[8,4], index: 1, kind: output, shape index: {}]
  // Predicated region
  $region2: #{tile.28} parent=0 // pred_check
    _
  $region3: #{tile.28} parent=0 // pred_check_branch
    %3 = sbr.rel (0) target = $region5
  $region4: #{tile.28} parent=0 // pred_region
    _
  $region5: #{tile.28} parent=0 // pred_fallthru
    _
  %v4 = vld [vmem:[%s0] ss:$0 sm:$0xff]
  %5 = vst [vmem:[%s1] sm:$0xff] %v4

// kernel: tile.29
$region0: #{tile.29}
  %s0 = inlined_call_operand.vmem [shape: f32[8,4], index: 0, kind: input, shape index: {}]
  %s1 = inlined_call_operand.vmem [shape: f32[1,32], index: 1, kind: output, shape index: {}]
  $region1: #{tile.29} parent=0
    #allocation0 [shape = 'u8[4096]{0}', space=vmem, size = 0x1000, scoped, tag = 'scoped mem for output reshape']
    %v2 = vld [vmem:[%s0] sm:$0x1]
    %vm3 = vcmask 31744
    %4 = vst.msk [vmem:[#allocation0] sm:$0x1] %vm3, %v2
    %s5 = scalar_lea.vmem %s0, 7
    %v6 = vld [vmem:[%s5] sm:$0x1]
    %7 = vrot.lane.b32.xlu0 %v6, 28
    %v8 = vpop.permute.xlu0 %7
    %vm9 = vcmask 261344
    %10 = vst.msk [vmem:[#allocation0] sm:$0x1] %vm9, %v8
    %s11 = scalar_lea.vmem %s0, 6
    %v12 = vld [vmem:[%s11] sm:$0x1]
    %13 = vrot.lane.b32.xlu0 %v12, 24
    %v14 = vpop.permute.xlu0 %13
    %vm15 = vcmask 228544
    %16 = vst.msk [vmem:[#allocation0] sm:$0x1] %vm15, %v14
    %s17 = scalar_lea.vmem %s0, 5
    %v18 = vld [vmem:[%s17] sm:$0x1]
    %19 = vrot.lane.b32.xlu0 %v18, 20
    %v20 = vpop.permute.xlu0 %19
    %vm21 = vcmask 195744
    %22 = vst.msk [vmem:[#allocation0] sm:$0x1] %vm21, %v20
    %s23 = scalar_lea.vmem %s0, 4
    %v24 = vld [vmem:[%s23] sm:$0x1]
    %25 = vrot.lane.b32.xlu0 %v24, 16
    %v26 = vpop.permute.xlu0 %25
    %vm27 = vcmask 162944
    %28 = vst.msk [vmem:[#allocation0] sm:$0x1] %vm27, %v26
    %s29 = scalar_lea.vmem %s0, 3
    %v30 = vld [vmem:[%s29] sm:$0x1]
    %31 = vrot.lane.b32.xlu0 %v30, 12
    %v32 = vpop.permute.xlu0 %31
    %vm33 = vcmask 130144
    %34 = vst.msk [vmem:[#allocation0] sm:$0x1] %vm33, %v32
    %s35 = scalar_lea.vmem %s0, 2
    %v36 = vld [vmem:[%s35] sm:$0x1]
    %37 = vrot.lane.b32.xlu0 %v36, 8
    %v38 = vpop.permute.xlu0 %37
    %vm39 = vcmask 97344
    %40 = vst.msk [vmem:[#allocation0] sm:$0x1] %vm39, %v38
    %s41 = scalar_lea.vmem %s0, 1
    %v42 = vld [vmem:[%s41] sm:$0x1]
    %43 = vrot.lane.b32.xlu0 %v42, 4
    %v44 = vpop.permute.xlu0 %43
    %vm45 = vcmask 64544
    %46 = vst.msk [vmem:[#allocation0] sm:$0x1] %vm45, %v44
    %s48 = sshll.u32 1, 1
    %s49 = ssub.s32 %s48, 1
    %v51 = vld [vmem:[#allocation0] sm:%s49]
    %s52 = sshll.u32 1, 1
    %s53 = ssub.s32 %s52, 1
    %54 = vst [vmem:[%s1] sm:%s53] %v51

// kernel: decoder3d_forward.9
$region0: #{decoder3d_forward.9}
  #allocation0 [shape = 'u32[]', space=smem, size = 0x4, offset = 0x4, fixed_abs, tag = 'smem constant byte address 0x4 - core index']
  #allocation1 [shape = 'u32[144,128]{1,0:T(1,128)}', space=vmem, size = 0x12000, scoped, tag = 'internal scratch']
  %s0 = inlined_call_operand.vmem [shape: bf16[11592,144], index: 0, kind: input, shape index: {}]
  %s1 = inlined_call_operand.vmem [shape: bf16[144,32], index: 1, kind: input, shape index: {}]
  %s2 = inlined_call_operand.vmem [shape: f32[1,32], index: 2, kind: input, shape index: {}]
  %s3 = inlined_call_operand.vmem [shape: f32[11592,32], index: 3, kind: output, shape index: {}]
  %s4 = sld [smem:[#allocation0]]
  $region45: #{decoder3d_forward.9} parent=0
    _
  %s6 = ssub.s32 1, %s4
  %s7 = scalar_select 0, %s6, %s4
  loop: start=0, step=1, limit=25
  $region2: #{decoder3d_forward.9} parent=0 // loop_pre_header
    _
  $region3: #{decoder3d_forward.9} parent=0 // loop_header
    %s9 = sphi 0, %s13
    %p10 = scmp.ge.s32.totalorder %s9, 25
    %s16 = sphi 0, %s28
    %s17 = sphi 0, %s24
    %s18 = sphi 0, %s16
    %s19 = sphi 0, %s17
    %s20 = sphi 0, %s18
    %s21 = sphi 0, %s19
    %s31 = sphi 0, %s33
    %s34 = sphi 0, %s31
    %s35 = sphi 0, %s34
    %s51 = sphi 0, %s35
    %s57 = sphi 0, %s59
    %s60 = sphi 0, %s57
    %s61 = sphi 0, %s60
    %s77 = sphi 0, %s61
    %s83 = sphi 0, %s85
    %s86 = sphi 0, %s83
    %s87 = sphi 0, %s86
    %s103 = sphi 0, %s87
    %s111 = sphi 0, %s113
    %s114 = sphi 0, %s111
    %s115 = sphi 0, %s114
    %s131 = sphi 0, %s115
  $region4: #{decoder3d_forward.9} parent=0 // loop_header_branch
    %12 = sbr.rel (%p10) target = $region8
  $region5: #{decoder3d_forward.9} parent=0 // loop_body
    %s14 = ssub.s32 %s9, 1
    %s15 = ssub.s32 %s9, 2
    %s22 = sadd.s32 1, %s17
    %p23 = scmp.ge.s32.totalorder %s22, 1
    %s24 = scalar_select %p23, 0, %s22
    %s25 = sadd.s32 1, %s16
    %s26 = scalar_select %p23, %s25, %s16
    %p27 = scmp.ge.s32.totalorder %s26, 23
    %s28 = scalar_select %p27, 0, %s26
    %s29 = ssub.s32 %s16, %s28
    %p30 = scmp.eq.s32.totalorder %s29, 0
    %s32 = sadd.s32 %s31, 1
    %s33 = scalar_select %p30, %s31, %s32
    %p36 = pneg %p30
    %p37 = scmp.eq.s32.totalorder %s9, 22
    %p38 = por %p36, %p37
    %p39 = scmp.ne.s32.totalorder %s31, %s34
    %p40 = scmp.eq.s32.totalorder %s9, 0
    %p41 = por %p39, %p40
    %p42 = scmp.ne.s32.totalorder %s31, %s34
    %p43 = scmp.eq.s32.totalorder %s14, 22
    %p44 = por %p42, %p43
    %p45 = scmp.ne.s32.totalorder %s34, %s35
    %p46 = scmp.eq.s32.totalorder %s14, 0
    %p47 = por %p45, %p46
    %p48 = scmp.ne.s32.totalorder %s34, %s35
    %p49 = scmp.eq.s32.totalorder %s15, 22
    %p50 = por %p48, %p49
    %p52 = scmp.ne.s32.totalorder %s35, %s51
    %p53 = scmp.eq.s32.totalorder %s15, 0
    %p54 = por %p52, %p53
    %s55 = ssub.s32 %s17, %s24
    %p56 = scmp.eq.s32.totalorder %s55, 0
    %s58 = sadd.s32 %s57, 1
    %s59 = scalar_select %p56, %s57, %s58
    %p62 = pneg %p56
    %p63 = scmp.eq.s32.totalorder %s9, 22
    %p64 = por %p62, %p63
    %p65 = scmp.ne.s32.totalorder %s57, %s60
    %p66 = scmp.eq.s32.totalorder %s9, 0
    %p67 = por %p65, %p66
    %p68 = scmp.ne.s32.totalorder %s57, %s60
    %p69 = scmp.eq.s32.totalorder %s14, 22
    %p70 = por %p68, %p69
    %p71 = scmp.ne.s32.totalorder %s60, %s61
    %p72 = scmp.eq.s32.totalorder %s14, 0
    %p73 = por %p71, %p72
    %p74 = scmp.ne.s32.totalorder %s60, %s61
    %p75 = scmp.eq.s32.totalorder %s15, 22
    %p76 = por %p74, %p75
    %p78 = scmp.ne.s32.totalorder %s61, %s77
    %p79 = scmp.eq.s32.totalorder %s15, 0
    %p80 = por %p78, %p79
    %s81 = ssub.s32 %s17, %s24
    %p82 = scmp.eq.s32.totalorder %s81, 0
    %s84 = sadd.s32 %s83, 1
    %s85 = scalar_select %p82, %s83, %s84
    %p88 = pneg %p82
    %p89 = scmp.eq.s32.totalorder %s9, 22
    %p90 = por %p88, %p89
    %p91 = scmp.ne.s32.totalorder %s83, %s86
    %p92 = scmp.eq.s32.totalorder %s9, 0
    %p93 = por %p91, %p92
    %p94 = scmp.ne.s32.totalorder %s83, %s86
    %p95 = scmp.eq.s32.totalorder %s14, 22
    %p96 = por %p94, %p95
    %p97 = scmp.ne.s32.totalorder %s86, %s87
    %p98 = scmp.eq.s32.totalorder %s14, 0
    %p99 = por %p97, %p98
    %p100 = scmp.ne.s32.totalorder %s86, %s87
    %p101 = scmp.eq.s32.totalorder %s15, 22
    %p102 = por %p100, %p101
    %p104 = scmp.ne.s32.totalorder %s87, %s103
    %p105 = scmp.eq.s32.totalorder %s15, 0
    %p106 = por %p104, %p105
    %s107 = ssub.s32 %s16, %s28
    %s108 = ssub.s32 %s17, %s24
    %s109 = sor.u32 %s107, %s108
    %p110 = scmp.eq.s32.totalorder %s109, 0
    %s112 = sadd.s32 %s111, 1
    %s113 = scalar_select %p110, %s111, %s112
    %p116 = pneg %p110
    %p117 = scmp.eq.s32.totalorder %s9, 22
    %p118 = por %p116, %p117
    %p119 = scmp.ne.s32.totalorder %s111, %s114
    %p120 = scmp.eq.s32.totalorder %s9, 0
    %p121 = por %p119, %p120
    %p122 = scmp.ne.s32.totalorder %s111, %s114
    %p123 = scmp.eq.s32.totalorder %s14, 22
    %p124 = por %p122, %p123
    %p125 = scmp.ne.s32.totalorder %s114, %s115
    %p126 = scmp.eq.s32.totalorder %s14, 0
    %p127 = por %p125, %p126
    %p128 = scmp.ne.s32.totalorder %s114, %s115
    %p129 = scmp.eq.s32.totalorder %s15, 22
    %p130 = por %p128, %p129
    %p132 = scmp.ne.s32.totalorder %s115, %s131
    %p133 = scmp.eq.s32.totalorder %s15, 0
    %p134 = por %p132, %p133
    %p135 = scmp.le.s32.totalorder 1, %s9
    %p136 = scmp.lt.s32.totalorder %s9, 24
    %p137 = pnand %p135, %p136
    %p138 = pneg %p137
    // Predicated region
    $region9: #{decoder3d_forward.9} parent=5 // pred_check
      _
    $region10: #{decoder3d_forward.9} parent=5 // pred_check_branch
      %140 = sbr.rel (%p137) target = $region12
    $region11: #{decoder3d_forward.9} parent=5 // pred_region
      %s141 = ssub.s32 %s9, 1
      // Predicated region
      $region13: #{decoder3d_forward.9} parent=11 // pred_check
        %p142 = pneg %p73
      $region14: #{decoder3d_forward.9} parent=11 // pred_check_branch
        %144 = sbr.rel (%p142) target = $region16
      $region15: #{decoder3d_forward.9} parent=11 // pred_region
        %p145 = scmp.lt.s32.totalorder %s19, 0
        %s146 = scalar_select %p145, %s19, 0
        %s147 = smul.addr %s146, 4
        %s148 = scalar_lea.vmem %s1, %s147
      $region16: #{decoder3d_forward.9} parent=11 // pred_fallthru
        _
      // Predicated region
      $region17: #{decoder3d_forward.9} parent=11 // pred_check
        %p149 = pneg %p99
      $region18: #{decoder3d_forward.9} parent=11 // pred_check_branch
        %151 = sbr.rel (%p149) target = $region20
      $region19: #{decoder3d_forward.9} parent=11 // pred_region
        %p152 = scmp.lt.s32.totalorder %s19, 0
        %s153 = scalar_select %p152, %s19, 0
        %s154 = scalar_lea.vmem %s2, %s153
      $region20: #{decoder3d_forward.9} parent=11 // pred_fallthru
        _
    $region12: #{decoder3d_forward.9} parent=5 // pred_fallthru
      _
    %p155 = scmp.lt.s32.totalorder %s9, 23
    // Predicated region
    $region21: #{decoder3d_forward.9} parent=5 // pred_check
      %p156 = pneg %p155
    $region22: #{decoder3d_forward.9} parent=5 // pred_check_branch
      %158 = sbr.rel (%p156) target = $region24
    $region23: #{decoder3d_forward.9} parent=5 // pred_region
      // Predicated region
      $region25: #{decoder3d_forward.9} parent=23 // pred_check
        %p159 = pneg %p41
      $region26: #{decoder3d_forward.9} parent=23 // pred_check_branch
        %161 = sbr.rel (%p159) target = $region28
      $region27: #{decoder3d_forward.9} parent=23 // pred_region
        %s162 = smul.u32 63, %s16
        %p163 = scmp.lt.s32.totalorder %s162, 1448
        %s164 = scalar_select %p163, %s162, 1448
        %s165 = smul.addr %s164, 2
        %s166 = smul.addr %s165, 4
        %s167 = scalar_lea.vmem %s0, %s166
        %s168 = smul.u32 63, %s16
      $region28: #{decoder3d_forward.9} parent=23 // pred_fallthru
        _
    $region24: #{decoder3d_forward.9} parent=5 // pred_fallthru
      _
    %p169 = scmp.le.s32.totalorder 1, %s9
    %p170 = scmp.lt.s32.totalorder %s9, 24
    %p171 = pnand %p169, %p170
    %p172 = pneg %p171
    // Predicated region
    $region29: #{decoder3d_forward.9} parent=5 // pred_check
      _
    $region30: #{decoder3d_forward.9} parent=5 // pred_check_branch
      %174 = sbr.rel (%p171) target = $region32
    $region31: #{decoder3d_forward.9} parent=5 // pred_region
      %s175 = ssub.s32 %s9, 1
      %s176 = smul.u32 63, %s18
      %p177 = scmp.lt.s32.totalorder %s176, 1448
      %s178 = scalar_select %p177, %s176, 1448
      %s179 = smul.addr %s178, 2
      %s180 = smul.addr %s179, 4
      %s181 = scalar_lea.vmem %s0, %s180
      %p182 = pneg %p47
      %p183 = pneg %p44
      %p184 = scmp.lt.s32.totalorder %s19, 0
      %s185 = scalar_select %p184, %s19, 0
      %s186 = smul.addr %s185, 4
      %s187 = scalar_lea.vmem %s1, %s186
      %p188 = pneg %p73
      %p189 = pneg %p70
      %p190 = scmp.lt.s32.totalorder %s19, 0
      %s191 = scalar_select %p190, %s19, 0
      %s192 = scalar_lea.vmem %s2, %s191
      %p193 = pneg %p99
      %p194 = pneg %p96
      %p195 = pneg %p127
      %p196 = pneg %p124
      %s197 = smul.u32 63, %s18
      %p198 = scmp.lt.s32.totalorder %s197, 1448
      %s199 = scalar_select %p198, %s197, 1448
      %p200 = scmp.lt.s32.totalorder %s19, 0
      %s201 = scalar_select %p200, %s19, 0
      %s202 = sadd.s32 %s201, %s199
      %s203 = smul.addr %s202, 8
      %s204 = scalar_lea.vmem %s3, %s203
      %s205 = smul.u32 63, %s18
      %p206 = scmp.lt.s32.totalorder %s205, 1448
      %s207 = scalar_select %p206, %s205, 1448
      %s208 = smul.addr %s207, 2
      %s209 = smul.addr %s208, 4
      %s210 = scalar_lea.vmem %s0, %s209
      %s211 = smul.u32 63, %s18
      %p212 = scmp.lt.s32.totalorder %s19, 0
      %s213 = scalar_select %p212, %s19, 0
      %s214 = smul.addr %s213, 4
      %s215 = scalar_lea.vmem %s1, %s214
      %p216 = scmp.lt.s32.totalorder %s19, 0
      %s217 = scalar_select %p216, %s19, 0
      %s218 = scalar_lea.vmem %s2, %s217
      %s219 = smul.u32 63, %s18
      %p220 = scmp.lt.s32.totalorder %s219, 1448
      %s221 = scalar_select %p220, %s219, 1448
      %p222 = scmp.lt.s32.totalorder %s19, 0
      %s223 = scalar_select %p222, %s19, 0
      %s224 = sadd.s32 %s223, %s221
      %s225 = smul.addr %s224, 8
      %s226 = scalar_lea.vmem %s3, %s225
      %s227 = smul.u32 63, %s18
      %v229 = vld [vmem:[%s210] sm:$0xff]
      %v230 = vld [vmem:[%s210 + $0x8] sm:$0xff]
      %v231 = vld [vmem:[%s210 + $0x10] sm:$0xff]
      %v232 = vld [vmem:[%s210 + $0x18] sm:$0xff]
      %v233 = vld [vmem:[%s210 + $0x20] sm:$0xff]
      %v234 = vld [vmem:[%s210 + $0x28] sm:$0xff]
      %v235 = vld [vmem:[%s210 + $0x30] sm:$0xff]
      %v236 = vld [vmem:[%s210 + $0x38] sm:$0xff]
      %v237 = vld [vmem:[%s210 + $0x40] sm:$0xff]
      %v238 = vld [vmem:[%s210 + $0x48] sm:$0xff]
      %v239 = vld [vmem:[%s210 + $0x50] sm:$0xff]
      %v240 = vld [vmem:[%s210 + $0x58] sm:$0xff]
      %v241 = vld [vmem:[%s210 + $0x60] sm:$0xff]
      %v242 = vld [vmem:[%s210 + $0x68] sm:$0xff]
      %v243 = vld [vmem:[%s210 + $0x70] sm:$0xff]
      %v244 = vld [vmem:[%s210 + $0x78] sm:$0xff]
      %v245 = vld [vmem:[%s210 + $0x80] sm:$0xff]
      %v246 = vld [vmem:[%s210 + $0x88] sm:$0xff]
      %v247 = vld [vmem:[%s210 + $0x90] sm:$0xff]
      %v248 = vld [vmem:[%s210 + $0x98] sm:$0xff]
      %v249 = vld [vmem:[%s210 + $0xa0] sm:$0xff]
      %v250 = vld [vmem:[%s210 + $0xa8] sm:$0xff]
      %v251 = vld [vmem:[%s210 + $0xb0] sm:$0xff]
      %v252 = vld [vmem:[%s210 + $0xb8] sm:$0xff]
      %v253 = vld [vmem:[%s210 + $0xc0] sm:$0xff]
      %v254 = vld [vmem:[%s210 + $0xc8] sm:$0xff]
      %v255 = vld [vmem:[%s210 + $0xd0] sm:$0xff]
      %v256 = vld [vmem:[%s210 + $0xd8] sm:$0xff]
      %v257 = vld [vmem:[%s210 + $0xe0] sm:$0xff]
      %v258 = vld [vmem:[%s210 + $0xe8] sm:$0xff]
      %v259 = vld [vmem:[%s210 + $0xf0] sm:$0xff]
      %v260 = vld [vmem:[%s210 + $0xf8] sm:$0xff]
      %v261 = vld [vmem:[%s210 + $0x100] sm:$0xff]
      %v262 = vld [vmem:[%s210 + $0x108] sm:$0xff]
      %v263 = vld [vmem:[%s210 + $0x110] sm:$0xff]
      %v264 = vld [vmem:[%s210 + $0x118] sm:$0xff]
      %v265 = vld [vmem:[%s210 + $0x120] sm:$0xff]
      %v266 = vld [vmem:[%s210 + $0x128] sm:$0xff]
      %v267 = vld [vmem:[%s210 + $0x130] sm:$0xff]
      %v268 = vld [vmem:[%s210 + $0x138] sm:$0xff]
      %v269 = vld [vmem:[%s210 + $0x140] sm:$0xff]
      %v270 = vld [vmem:[%s210 + $0x148] sm:$0xff]
      %v271 = vld [vmem:[%s210 + $0x150] sm:$0xff]
      %v272 = vld [vmem:[%s210 + $0x158] sm:$0xff]
      %v273 = vld [vmem:[%s210 + $0x160] sm:$0xff]
      %v274 = vld [vmem:[%s210 + $0x168] sm:$0xff]
      %v275 = vld [vmem:[%s210 + $0x170] sm:$0xff]
      %v276 = vld [vmem:[%s210 + $0x178] sm:$0xff]
      %v277 = vld [vmem:[%s210 + $0x180] sm:$0xff]
      %v278 = vld [vmem:[%s210 + $0x188] sm:$0xff]
      %v279 = vld [vmem:[%s210 + $0x190] sm:$0xff]
      %v280 = vld [vmem:[%s210 + $0x198] sm:$0xff]
      %v281 = vld [vmem:[%s210 + $0x1a0] sm:$0xff]
      %v282 = vld [vmem:[%s210 + $0x1a8] sm:$0xff]
      %v283 = vld [vmem:[%s210 + $0x1b0] sm:$0xff]
      %v284 = vld [vmem:[%s210 + $0x1b8] sm:$0xff]
      %v285 = vld [vmem:[%s210 + $0x1c0] sm:$0xff]
      %v286 = vld [vmem:[%s210 + $0x1c8] sm:$0xff]
      %v287 = vld [vmem:[%s210 + $0x1d0] sm:$0xff]
      %v288 = vld [vmem:[%s210 + $0x1d8] sm:$0xff]
      %v289 = vld [vmem:[%s210 + $0x1e0] sm:$0xff]
      %v290 = vld [vmem:[%s210 + $0x1e8] sm:$0xff]
      %v291 = vld [vmem:[%s210 + $0x1f0] sm:$0xff]
      %v292 = vld [vmem:[%s215] sm:$0xf]
      %v293 = vld [vmem:[%s215 + $0x4] sm:$0xf]
      %v294 = vld [vmem:[%s215 + $0x8] sm:$0xf]
      %v295 = vld [vmem:[%s215 + $0xc] sm:$0xf]
      %v296 = vld [vmem:[%s215 + $0x10] sm:$0xf]
      %v297 = vld [vmem:[%s215 + $0x14] sm:$0xf]
      %v298 = vld [vmem:[%s215 + $0x18] sm:$0xf]
      %v299 = vld [vmem:[%s215 + $0x1c] sm:$0xf]
      %v300 = vld [vmem:[%s215 + $0x20] sm:$0xf]
      %v301 = vld [vmem:[%s215 + $0x24] sm:$0xf]
      %v302 = vld [vmem:[%s215 + $0x28] sm:$0xf]
      %v303 = vld [vmem:[%s215 + $0x2c] sm:$0xf]
      %v304 = vld [vmem:[%s215 + $0x30] sm:$0xf]
      %v305 = vld [vmem:[%s215 + $0x34] sm:$0xf]
      %v306 = vld [vmem:[%s215 + $0x38] sm:$0xf]
      %v307 = vld [vmem:[%s215 + $0x3c] sm:$0xf]
      %v308 = vld [vmem:[%s215 + $0x40] sm:$0xf]
      %v309 = vld [vmem:[%s215 + $0x44] sm:$0xf]
      %v310 = vld [vmem:[%s218] sm:$0x1]
      %v312 = vlaneseq
      %v313 = vshrl.u32 %v312, 7
      %v314 = vsub.s32 0, %v313
      %v315 = vrot.slane %v310, %v314
      %v380 = vunpack.c.l.b16 %v229
      %v381 = vunpack.c.h.b16 %v229
      %v382 = vunpack.c.l.b16 %v230
      %v383 = vunpack.c.h.b16 %v230
      %v384 = vunpack.c.l.b16 %v231
      %v385 = vunpack.c.h.b16 %v231
      %v386 = vunpack.c.l.b16 %v232
      %v387 = vunpack.c.h.b16 %v232
      %v388 = vunpack.c.l.b16 %v233
      %v389 = vunpack.c.h.b16 %v233
      %v390 = vunpack.c.l.b16 %v234
      %v391 = vunpack.c.h.b16 %v234
      %v392 = vunpack.c.l.b16 %v235
      %v393 = vunpack.c.h.b16 %v235
      %v394 = vunpack.c.l.b16 %v236
      %v395 = vunpack.c.h.b16 %v236
      %v396 = vunpack.c.l.b16 %v237
      %v397 = vunpack.c.h.b16 %v237
      %v398 = vunpack.c.l.b16 %v238
      %v399 = vunpack.c.h.b16 %v238
      %v400 = vunpack.c.l.b16 %v239
      %v401 = vunpack.c.h.b16 %v239
      %v402 = vunpack.c.l.b16 %v240
      %v403 = vunpack.c.h.b16 %v240
      %v404 = vunpack.c.l.b16 %v241
      %v405 = vunpack.c.h.b16 %v241
      %v406 = vunpack.c.l.b16 %v242
      %v407 = vunpack.c.h.b16 %v242
      %v408 = vunpack.c.l.b16 %v243
      %v409 = vunpack.c.h.b16 %v243
      %v410 = vunpack.c.l.b16 %v244
      %v411 = vunpack.c.h.b16 %v244
      %v412 = vunpack.c.l.b16 %v245
      %v413 = vunpack.c.h.b16 %v245
      %v414 = vunpack.c.l.b16 %v246
      %v415 = vunpack.c.h.b16 %v246
      %v416 = vunpack.c.l.b16 %v247
      %v417 = vunpack.c.h.b16 %v247
      %v418 = vunpack.c.l.b16 %v248
      %v419 = vunpack.c.h.b16 %v248
      %v420 = vunpack.c.l.b16 %v249
      %v421 = vunpack.c.h.b16 %v249
      %v422 = vunpack.c.l.b16 %v250
      %v423 = vunpack.c.h.b16 %v250
      %v424 = vunpack.c.l.b16 %v251
      %v425 = vunpack.c.h.b16 %v251
      %v426 = vunpack.c.l.b16 %v252
      %v427 = vunpack.c.h.b16 %v252
      %v428 = vunpack.c.l.b16 %v253
      %v429 = vunpack.c.h.b16 %v253
      %v430 = vunpack.c.l.b16 %v254
      %v431 = vunpack.c.h.b16 %v254
      %v432 = vunpack.c.l.b16 %v255
      %v433 = vunpack.c.h.b16 %v255
      %v434 = vunpack.c.l.b16 %v256
      %v435 = vunpack.c.h.b16 %v256
      %v436 = vunpack.c.l.b16 %v257
      %v437 = vunpack.c.h.b16 %v257
      %v438 = vunpack.c.l.b16 %v258
      %v439 = vunpack.c.h.b16 %v258
      %v440 = vunpack.c.l.b16 %v259
      %v441 = vunpack.c.h.b16 %v259
      %v442 = vunpack.c.l.b16 %v260
      %v443 = vunpack.c.h.b16 %v260
      %v444 = vunpack.c.l.b16 %v261
      %v445 = vunpack.c.h.b16 %v261
      %v446 = vunpack.c.l.b16 %v262
      %v447 = vunpack.c.h.b16 %v262
      %v448 = vunpack.c.l.b16 %v263
      %v449 = vunpack.c.h.b16 %v263
      %v450 = vunpack.c.l.b16 %v264
      %v451 = vunpack.c.h.b16 %v264
      %v452 = vunpack.c.l.b16 %v265
      %v453 = vunpack.c.h.b16 %v265
      %v454 = vunpack.c.l.b16 %v266
      %v455 = vunpack.c.h.b16 %v266
      %v456 = vunpack.c.l.b16 %v267
      %v457 = vunpack.c.h.b16 %v267
      %v458 = vunpack.c.l.b16 %v268
      %v459 = vunpack.c.h.b16 %v268
      %v460 = vunpack.c.l.b16 %v269
      %v461 = vunpack.c.h.b16 %v269
      %v462 = vunpack.c.l.b16 %v270
      %v463 = vunpack.c.h.b16 %v270
      %v464 = vunpack.c.l.b16 %v271
      %v465 = vunpack.c.h.b16 %v271
      %v466 = vunpack.c.l.b16 %v272
      %v467 = vunpack.c.h.b16 %v272
      %v468 = vunpack.c.l.b16 %v273
      %v469 = vunpack.c.h.b16 %v273
      %v470 = vunpack.c.l.b16 %v274
      %v471 = vunpack.c.h.b16 %v274
      %v472 = vunpack.c.l.b16 %v275
      %v473 = vunpack.c.h.b16 %v275
      %v474 = vunpack.c.l.b16 %v276
      %v475 = vunpack.c.h.b16 %v276
      %v476 = vunpack.c.l.b16 %v277
      %v477 = vunpack.c.h.b16 %v277
      %v478 = vunpack.c.l.b16 %v278
      %v479 = vunpack.c.h.b16 %v278
      %v480 = vunpack.c.l.b16 %v279
      %v481 = vunpack.c.h.b16 %v279
      %v482 = vunpack.c.l.b16 %v280
      %v483 = vunpack.c.h.b16 %v280
      %v484 = vunpack.c.l.b16 %v281
      %v485 = vunpack.c.h.b16 %v281
      %v486 = vunpack.c.l.b16 %v282
      %v487 = vunpack.c.h.b16 %v282
      %v488 = vunpack.c.l.b16 %v283
      %v489 = vunpack.c.h.b16 %v283
      %v490 = vunpack.c.l.b16 %v284
      %v491 = vunpack.c.h.b16 %v284
      %v492 = vunpack.c.l.b16 %v285
      %v493 = vunpack.c.h.b16 %v285
      %v494 = vunpack.c.l.b16 %v286
      %v495 = vunpack.c.h.b16 %v286
      %v496 = vunpack.c.l.b16 %v287
      %v497 = vunpack.c.h.b16 %v287
      %v498 = vunpack.c.l.b16 %v288
      %v499 = vunpack.c.h.b16 %v288
      %v500 = vunpack.c.l.b16 %v289
      %v501 = vunpack.c.h.b16 %v289
      %v502 = vunpack.c.l.b16 %v290
      %v503 = vunpack.c.h.b16 %v290
      %v504 = vunpack.c.l.b16 %v291
      %v505 = vunpack.c.h.b16 %v291
      %v506 = vpack.c.b16 %v382, %v380
      %v507 = vpack.c.b16 %v383, %v381
      %v508 = vpack.c.b16 %v386, %v384
      %v509 = vpack.c.b16 %v387, %v385
      %v510 = vpack.c.b16 %v390, %v388
      %v511 = vpack.c.b16 %v391, %v389
      %v512 = vpack.c.b16 %v394, %v392
      %v513 = vpack.c.b16 %v395, %v393
      %v514 = vpack.c.b16 %v398, %v396
      %v515 = vpack.c.b16 %v399, %v397
      %v516 = vpack.c.b16 %v402, %v400
      %v517 = vpack.c.b16 %v403, %v401
      %v518 = vpack.c.b16 %v406, %v404
      %v519 = vpack.c.b16 %v407, %v405
      %v520 = vpack.c.b16 %v410, %v408
      %v521 = vpack.c.b16 %v411, %v409
      %v522 = vpack.c.b16 %v414, %v412
      %v523 = vpack.c.b16 %v415, %v413
      %v524 = vpack.c.b16 %v418, %v416
      %v525 = vpack.c.b16 %v419, %v417
      %v526 = vpack.c.b16 %v422, %v420
      %v527 = vpack.c.b16 %v423, %v421
      %v528 = vpack.c.b16 %v426, %v424
      %v529 = vpack.c.b16 %v427, %v425
      %v530 = vpack.c.b16 %v430, %v428
      %v531 = vpack.c.b16 %v431, %v429
      %v532 = vpack.c.b16 %v434, %v432
      %v533 = vpack.c.b16 %v435, %v433
      %v534 = vpack.c.b16 %v438, %v436
      %v535 = vpack.c.b16 %v439, %v437
      %v536 = vpack.c.b16 %v442, %v440
      %v537 = vpack.c.b16 %v443, %v441
      %v538 = vpack.c.b16 %v446, %v444
      %v539 = vpack.c.b16 %v447, %v445
      %v540 = vpack.c.b16 %v450, %v448
      %v541 = vpack.c.b16 %v451, %v449
      %v542 = vpack.c.b16 %v454, %v452
      %v543 = vpack.c.b16 %v455, %v453
      %v544 = vpack.c.b16 %v458, %v456
      %v545 = vpack.c.b16 %v459, %v457
      %v546 = vpack.c.b16 %v462, %v460
      %v547 = vpack.c.b16 %v463, %v461
      %v548 = vpack.c.b16 %v466, %v464
      %v549 = vpack.c.b16 %v467, %v465
      %v550 = vpack.c.b16 %v470, %v468
      %v551 = vpack.c.b16 %v471, %v469
      %v552 = vpack.c.b16 %v474, %v472
      %v553 = vpack.c.b16 %v475, %v473
      %v554 = vpack.c.b16 %v478, %v476
      %v555 = vpack.c.b16 %v479, %v477
      %v556 = vpack.c.b16 %v482, %v480
      %v557 = vpack.c.b16 %v483, %v481
      %v558 = vpack.c.b16 %v486, %v484
      %v559 = vpack.c.b16 %v487, %v485
      %v560 = vpack.c.b16 %v490, %v488
      %v561 = vpack.c.b16 %v491, %v489
      %v562 = vpack.c.b16 %v494, %v492
      %v563 = vpack.c.b16 %v495, %v493
      %v564 = vpack.c.b16 %v498, %v496
      %v565 = vpack.c.b16 %v499, %v497
      %v566 = vpack.c.b16 %v502, %v500
      %v567 = vpack.c.b16 %v503, %v501
      %v568 = vpack.c.b16 %v504, %v504
      %v569 = vpack.c.b16 %v505, %v505
      %v620 = vunpack.c.l.b16 %v292
      %v621 = vunpack.c.l.b16 %v293
      %v622 = vunpack.c.l.b16 %v294
      %v623 = vunpack.c.l.b16 %v295
      %v624 = vunpack.c.l.b16 %v296
      %v625 = vunpack.c.l.b16 %v297
      %v626 = vunpack.c.l.b16 %v298
      %v627 = vunpack.c.l.b16 %v299
      %v628 = vunpack.c.l.b16 %v300
      %v629 = vunpack.c.l.b16 %v301
      %v630 = vunpack.c.l.b16 %v302
      %v631 = vunpack.c.l.b16 %v303
      %v632 = vunpack.c.l.b16 %v304
      %v633 = vunpack.c.l.b16 %v305
      %v634 = vunpack.c.l.b16 %v306
      %v635 = vunpack.c.l.b16 %v307
      %v636 = vunpack.c.l.b16 %v308
      %v637 = vunpack.c.l.b16 %v309
      %v638 = vpack.c.b16 %v621, %v620
      %v639 = vpack.c.b16 %v623, %v622
      %v640 = vpack.c.b16 %v625, %v624
      %v641 = vpack.c.b16 %v627, %v626
      %v642 = vpack.c.b16 %v629, %v628
      %v643 = vpack.c.b16 %v631, %v630
      %v644 = vpack.c.b16 %v633, %v632
      %v645 = vpack.c.b16 %v635, %v634
      %v646 = vpack.c.b16 %v637, %v636
      %vm656 = vcmask 130048
      %v658 = vsel %vm656, %v507, 0
      %v661 = vsel %vm656, %v509, 0
      %v664 = vsel %vm656, %v511, 0
      %v667 = vsel %vm656, %v513, 0
      %v670 = vsel %vm656, %v515, 0
      %v673 = vsel %vm656, %v517, 0
      %v676 = vsel %vm656, %v519, 0
      %v679 = vsel %vm656, %v521, 0
      %v682 = vsel %vm656, %v523, 0
      %v685 = vsel %vm656, %v525, 0
      %v688 = vsel %vm656, %v527, 0
      %v691 = vsel %vm656, %v529, 0
      %v694 = vsel %vm656, %v531, 0
      %v697 = vsel %vm656, %v533, 0
      %v700 = vsel %vm656, %v535, 0
      %v703 = vsel %vm656, %v537, 0
      %v706 = vsel %vm656, %v539, 0
      %v709 = vsel %vm656, %v541, 0
      %v712 = vsel %vm656, %v543, 0
      %v715 = vsel %vm656, %v545, 0
      %v718 = vsel %vm656, %v547, 0
      %v721 = vsel %vm656, %v549, 0
      %v724 = vsel %vm656, %v551, 0
      %v727 = vsel %vm656, %v553, 0
      %v730 = vsel %vm656, %v555, 0
      %v733 = vsel %vm656, %v557, 0
      %v736 = vsel %vm656, %v559, 0
      %v739 = vsel %vm656, %v561, 0
      %v742 = vsel %vm656, %v563, 0
      %v745 = vsel %vm656, %v565, 0
      %v748 = vsel %vm656, %v567, 0
      %v751 = vsel %vm656, %v569, 0
      %753 = vmatprep.subr.bf16.mxu0 0
      %754 = vmatpush1.bf16.msra.mxu0 %v645
      %755 = vmatprep.subr.bf16.mxu0 0
      %756 = vmatpush1.bf16.msra.mxu0 %v644
      %757 = vmatprep.subr.bf16.mxu0 0
      %758 = vmatpush1.bf16.msra.mxu0 %v643
      %759 = vmatprep.subr.bf16.mxu0 0
      %760 = vmatpush1.bf16.msra.mxu0 %v642
      %761 = vmatprep.subr.bf16.mxu0 0
      %762 = vmatpush1.bf16.msra.mxu0 %v641
      %763 = vmatprep.subr.bf16.mxu0 0
      %764 = vmatpush1.bf16.msra.mxu0 %v640
      %765 = vmatprep.subr.bf16.mxu0 0
      %766 = vmatpush1.bf16.msra.mxu0 %v639
      %767 = vmatprep.subr.bf16.mxu0 0
      %768 = vmatpush1.bf16.msra.mxu0 %v638
      %769 = vmatprep.subr.bf16.mxu0 0
      %770 = vmatpush2.bf16.msra.mxu0 0
      %771 = vmatprep.subr.bf16.mxu0 0
      %772 = vmatpush2.bf16.msra.mxu0 0
      %773 = vmatprep.subr.bf16.mxu0 0
      %774 = vmatpush2.bf16.msra.mxu0 0
      %775 = vmatprep.subr.bf16.mxu0 0
      %776 = vmatpush2.bf16.msra.mxu0 0
      %777 = vmatprep.subr.bf16.mxu0 0
      %778 = vmatpush2.bf16.msra.mxu0 0
      %779 = vmatprep.subr.bf16.mxu0 0
      %780 = vmatpush2.bf16.msra.mxu0 0
      %781 = vmatprep.subr.bf16.mxu0 0
      %782 = vmatpush2.bf16.msra.mxu0 0
      %783 = vmatprep.subr.bf16.mxu0 0
      %784 = vmatpush2.bf16.msra.mxu0 %v646
      %785 = vmatprep.mubr.bf16.mxu0 %v658
      %786 = vmatmul.mubr.bf16.gmra.mxu0 %v506
      %v787 = vpop.f32.mrf.mxu0
      %v788 = vadd.f32 %v315, %v787
      %v789 = vpop.f32.mrf.mxu0
      %v790 = vpop.f32.mrf.mxu0
      %v791 = vadd.f32 %v315, %v790
      %v792 = vpop.f32.mrf.mxu0
      %793 = vmatprep.mubr.bf16.mxu0 %v661
      %794 = vmatmul.mubr.bf16.gmra.mxu0 %v508
      %v795 = vpop.f32.mrf.mxu0
      %v796 = vadd.f32 %v315, %v795
      %v797 = vpop.f32.mrf.mxu0
      %v798 = vpop.f32.mrf.mxu0
      %v799 = vadd.f32 %v315, %v798
      %v800 = vpop.f32.mrf.mxu0
      %801 = vmatprep.mubr.bf16.mxu0 %v664
      %802 = vmatmul.mubr.bf16.gmra.mxu0 %v510
      %v803 = vpop.f32.mrf.mxu0
      %v804 = vadd.f32 %v315, %v803
      %v805 = vpop.f32.mrf.mxu0
      %v806 = vpop.f32.mrf.mxu0
      %v807 = vadd.f32 %v315, %v806
      %v808 = vpop.f32.mrf.mxu0
      %809 = vmatprep.mubr.bf16.mxu0 %v667
      %810 = vmatmul.mubr.bf16.gmra.mxu0 %v512
      %v811 = vpop.f32.mrf.mxu0
      %v812 = vadd.f32 %v315, %v811
      %v813 = vpop.f32.mrf.mxu0
      %v814 = vpop.f32.mrf.mxu0
      %v815 = vadd.f32 %v315, %v814
      %v816 = vpop.f32.mrf.mxu0
      %817 = vmatprep.mubr.bf16.mxu0 %v670
      %818 = vmatmul.mubr.bf16.gmra.mxu0 %v514
      %v819 = vpop.f32.mrf.mxu0
      %v820 = vadd.f32 %v315, %v819
      %v821 = vpop.f32.mrf.mxu0
      %v822 = vpop.f32.mrf.mxu0
      %v823 = vadd.f32 %v315, %v822
      %v824 = vpop.f32.mrf.mxu0
      %825 = vmatprep.mubr.bf16.mxu0 %v673
      %826 = vmatmul.mubr.bf16.gmra.mxu0 %v516
      %v827 = vpop.f32.mrf.mxu0
      %v828 = vadd.f32 %v315, %v827
      %v829 = vpop.f32.mrf.mxu0
      %v830 = vpop.f32.mrf.mxu0
      %v831 = vadd.f32 %v315, %v830
      %v832 = vpop.f32.mrf.mxu0
      %833 = vmatprep.mubr.bf16.mxu0 %v676
      %834 = vmatmul.mubr.bf16.gmra.mxu0 %v518
      %v835 = vpop.f32.mrf.mxu0
      %v836 = vadd.f32 %v315, %v835
      %v837 = vpop.f32.mrf.mxu0
      %v838 = vpop.f32.mrf.mxu0
      %v839 = vadd.f32 %v315, %v838
      %v840 = vpop.f32.mrf.mxu0
      %841 = vmatprep.mubr.bf16.mxu0 %v679
      %842 = vmatmul.mubr.bf16.gmra.mxu0 %v520
      %v843 = vpop.f32.mrf.mxu0
      %v844 = vadd.f32 %v315, %v843
      %v845 = vpop.f32.mrf.mxu0
      %v846 = vpop.f32.mrf.mxu0
      %v847 = vadd.f32 %v315, %v846
      %v848 = vpop.f32.mrf.mxu0
      %849 = vmatprep.mubr.bf16.mxu0 %v682
      %850 = vmatmul.mubr.bf16.gmra.mxu0 %v522
      %v851 = vpop.f32.mrf.mxu0
      %v852 = vadd.f32 %v315, %v851
      %v853 = vpop.f32.mrf.mxu0
      %v854 = vpop.f32.mrf.mxu0
      %v855 = vadd.f32 %v315, %v854
      %v856 = vpop.f32.mrf.mxu0
      %857 = vmatprep.mubr.bf16.mxu0 %v685
      %858 = vmatmul.mubr.bf16.gmra.mxu0 %v524
      %v859 = vpop.f32.mrf.mxu0
      %v860 = vadd.f32 %v315, %v859
      %v861 = vpop.f32.mrf.mxu0
      %v862 = vpop.f32.mrf.mxu0
      %v863 = vadd.f32 %v315, %v862
      %v864 = vpop.f32.mrf.mxu0
      %865 = vmatprep.mubr.bf16.mxu0 %v688
      %866 = vmatmul.mubr.bf16.gmra.mxu0 %v526
      %v867 = vpop.f32.mrf.mxu0
      %v868 = vadd.f32 %v315, %v867
      %v869 = vpop.f32.mrf.mxu0
      %v870 = vpop.f32.mrf.mxu0
      %v871 = vadd.f32 %v315, %v870
      %v872 = vpop.f32.mrf.mxu0
      %873 = vmatprep.mubr.bf16.mxu0 %v691
      %874 = vmatmul.mubr.bf16.gmra.mxu0 %v528
      %v875 = vpop.f32.mrf.mxu0
      %v876 = vadd.f32 %v315, %v875
      %v877 = vpop.f32.mrf.mxu0
      %v878 = vpop.f32.mrf.mxu0
      %v879 = vadd.f32 %v315, %v878
      %v880 = vpop.f32.mrf.mxu0
      %881 = vmatprep.mubr.bf16.mxu0 %v694
      %882 = vmatmul.mubr.bf16.gmra.mxu0 %v530
      %v883 = vpop.f32.mrf.mxu0
      %v884 = vadd.f32 %v315, %v883
      %v885 = vpop.f32.mrf.mxu0
      %v886 = vpop.f32.mrf.mxu0
      %v887 = vadd.f32 %v315, %v886
      %v888 = vpop.f32.mrf.mxu0
      %889 = vmatprep.mubr.bf16.mxu0 %v697
      %890 = vmatmul.mubr.bf16.gmra.mxu0 %v532
      %v891 = vpop.f32.mrf.mxu0
      %v892 = vadd.f32 %v315, %v891
      %v893 = vpop.f32.mrf.mxu0
      %v894 = vpop.f32.mrf.mxu0
      %v895 = vadd.f32 %v315, %v894
      %v896 = vpop.f32.mrf.mxu0
      %897 = vmatprep.mubr.bf16.mxu0 %v700
      %898 = vmatmul.mubr.bf16.gmra.mxu0 %v534
      %v899 = vpop.f32.mrf.mxu0
      %v900 = vadd.f32 %v315, %v899
      %v901 = vpop.f32.mrf.mxu0
      %v902 = vpop.f32.mrf.mxu0
      %v903 = vadd.f32 %v315, %v902
      %v904 = vpop.f32.mrf.mxu0
      %905 = vmatprep.mubr.bf16.mxu0 %v703
      %906 = vmatmul.mubr.bf16.gmra.mxu0 %v536
      %v907 = vpop.f32.mrf.mxu0
      %v908 = vadd.f32 %v315, %v907
      %v909 = vpop.f32.mrf.mxu0
      %v910 = vpop.f32.mrf.mxu0
      %v911 = vadd.f32 %v315, %v910
      %v912 = vpop.f32.mrf.mxu0
      %913 = vmatprep.mubr.bf16.mxu0 %v706
      %914 = vmatmul.mubr.bf16.gmra.mxu0 %v538
      %v915 = vpop.f32.mrf.mxu0
      %v916 = vadd.f32 %v315, %v915
      %v917 = vpop.f32.mrf.mxu0
      %v918 = vpop.f32.mrf.mxu0
      %v919 = vadd.f32 %v315, %v918
      %v920 = vpop.f32.mrf.mxu0
      %921 = vmatprep.mubr.bf16.mxu0 %v709
      %922 = vmatmul.mubr.bf16.gmra.mxu0 %v540
      %v923 = vpop.f32.mrf.mxu0
      %v924 = vadd.f32 %v315, %v923
      %v925 = vpop.f32.mrf.mxu0
      %v926 = vpop.f32.mrf.mxu0
      %v927 = vadd.f32 %v315, %v926
      %v928 = vpop.f32.mrf.mxu0
      %929 = vmatprep.mubr.bf16.mxu0 %v712
      %930 = vmatmul.mubr.bf16.gmra.mxu0 %v542
      %v931 = vpop.f32.mrf.mxu0
      %v932 = vadd.f32 %v315, %v931
      %v933 = vpop.f32.mrf.mxu0
      %v934 = vpop.f32.mrf.mxu0
      %v935 = vadd.f32 %v315, %v934
      %v936 = vpop.f32.mrf.mxu0
      %937 = vmatprep.mubr.bf16.mxu0 %v715
      %938 = vmatmul.mubr.bf16.gmra.mxu0 %v544
      %v939 = vpop.f32.mrf.mxu0
      %v940 = vadd.f32 %v315, %v939
      %v941 = vpop.f32.mrf.mxu0
      %v942 = vpop.f32.mrf.mxu0
      %v943 = vadd.f32 %v315, %v942
      %v944 = vpop.f32.mrf.mxu0
      %945 = vmatprep.mubr.bf16.mxu0 %v718
      %946 = vmatmul.mubr.bf16.gmra.mxu0 %v546
      %v947 = vpop.f32.mrf.mxu0
      %v948 = vadd.f32 %v315, %v947
      %v949 = vpop.f32.mrf.mxu0
      %v950 = vpop.f32.mrf.mxu0
      %v951 = vadd.f32 %v315, %v950
      %v952 = vpop.f32.mrf.mxu0
      %953 = vmatprep.mubr.bf16.mxu0 %v721
      %954 = vmatmul.mubr.bf16.gmra.mxu0 %v548
      %v955 = vpop.f32.mrf.mxu0
      %v956 = vadd.f32 %v315, %v955
      %v957 = vpop.f32.mrf.mxu0
      %v958 = vpop.f32.mrf.mxu0
      %v959 = vadd.f32 %v315, %v958
      %v960 = vpop.f32.mrf.mxu0
      %961 = vmatprep.mubr.bf16.mxu0 %v724
      %962 = vmatmul.mubr.bf16.gmra.mxu0 %v550
      %v963 = vpop.f32.mrf.mxu0
      %v964 = vadd.f32 %v315, %v963
      %v965 = vpop.f32.mrf.mxu0
      %v966 = vpop.f32.mrf.mxu0
      %v967 = vadd.f32 %v315, %v966
      %v968 = vpop.f32.mrf.mxu0
      %969 = vmatprep.mubr.bf16.mxu0 %v727
      %970 = vmatmul.mubr.bf16.gmra.mxu0 %v552
      %v971 = vpop.f32.mrf.mxu0
      %v972 = vadd.f32 %v315, %v971
      %v973 = vpop.f32.mrf.mxu0
      %v974 = vpop.f32.mrf.mxu0
      %v975 = vadd.f32 %v315, %v974
      %v976 = vpop.f32.mrf.mxu0
      %977 = vmatprep.mubr.bf16.mxu0 %v730
      %978 = vmatmul.mubr.bf16.gmra.mxu0 %v554
      %v979 = vpop.f32.mrf.mxu0
      %v980 = vadd.f32 %v315, %v979
      %v981 = vpop.f32.mrf.mxu0
      %v982 = vpop.f32.mrf.mxu0
      %v983 = vadd.f32 %v315, %v982
      %v984 = vpop.f32.mrf.mxu0
      %985 = vmatprep.mubr.bf16.mxu0 %v733
      %986 = vmatmul.mubr.bf16.gmra.mxu0 %v556
      %v987 = vpop.f32.mrf.mxu0
      %v988 = vadd.f32 %v315, %v987
      %v989 = vpop.f32.mrf.mxu0
      %v990 = vpop.f32.mrf.mxu0
      %v991 = vadd.f32 %v315, %v990
      %v992 = vpop.f32.mrf.mxu0
      %993 = vmatprep.mubr.bf16.mxu0 %v736
      %994 = vmatmul.mubr.bf16.gmra.mxu0 %v558
      %v995 = vpop.f32.mrf.mxu0
      %v996 = vadd.f32 %v315, %v995
      %v997 = vpop.f32.mrf.mxu0
      %v998 = vpop.f32.mrf.mxu0
      %v999 = vadd.f32 %v315, %v998
      %v1000 = vpop.f32.mrf.mxu0
      %1001 = vmatprep.mubr.bf16.mxu0 %v739
      %1002 = vmatmul.mubr.bf16.gmra.mxu0 %v560
      %v1003 = vpop.f32.mrf.mxu0
      %v1004 = vadd.f32 %v315, %v1003
      %v1005 = vpop.f32.mrf.mxu0
      %v1006 = vpop.f32.mrf.mxu0
      %v1007 = vadd.f32 %v315, %v1006
      %v1008 = vpop.f32.mrf.mxu0
      %1009 = vmatprep.mubr.bf16.mxu0 %v742
      %1010 = vmatmul.mubr.bf16.gmra.mxu0 %v562
      %v1011 = vpop.f32.mrf.mxu0
      %v1012 = vadd.f32 %v315, %v1011
      %v1013 = vpop.f32.mrf.mxu0
      %v1014 = vpop.f32.mrf.mxu0
      %v1015 = vadd.f32 %v315, %v1014
      %v1016 = vpop.f32.mrf.mxu0
      %1017 = vmatprep.mubr.bf16.mxu0 %v745
      %1018 = vmatmul.mubr.bf16.gmra.mxu0 %v564
      %v1019 = vpop.f32.mrf.mxu0
      %v1020 = vadd.f32 %v315, %v1019
      %v1021 = vpop.f32.mrf.mxu0
      %v1022 = vpop.f32.mrf.mxu0
      %v1023 = vadd.f32 %v315, %v1022
      %v1024 = vpop.f32.mrf.mxu0
      %1025 = vmatprep.mubr.bf16.mxu0 %v748
      %1026 = vmatmul.mubr.bf16.gmra.mxu0 %v566
      %v1027 = vpop.f32.mrf.mxu0
      %v1028 = vadd.f32 %v315, %v1027
      %v1029 = vpop.f32.mrf.mxu0
      %v1030 = vpop.f32.mrf.mxu0
      %v1031 = vadd.f32 %v315, %v1030
      %v1032 = vpop.f32.mrf.mxu0
      %1033 = vmatprep.mubr.bf16.mxu0 %v751
      %1034 = vmatmul.mubr.bf16.gmra.mxu0 %v568
      %v1035 = vpop.f32.mrf.mxu0
      %v1036 = vadd.f32 %v315, %v1035
      %v1037 = vpop.f32.mrf.mxu0
      %v1038 = vpop.f32.mrf.mxu0
      %v1039 = vpop.f32.mrf.mxu0
      %1040 = vdwg.mxu0
      %v1041 = vsub.f32 0.0, %v788
      %v1042 = vsub.f32 0.0, %v791
      %v1043 = vsub.f32 0.0, %v796
      %v1044 = vsub.f32 0.0, %v799
      %v1045 = vsub.f32 0.0, %v804
      %v1046 = vsub.f32 0.0, %v807
      %v1047 = vsub.f32 0.0, %v812
      %v1048 = vsub.f32 0.0, %v815
      %v1049 = vsub.f32 0.0, %v820
      %v1050 = vsub.f32 0.0, %v823
      %v1051 = vsub.f32 0.0, %v828
      %v1052 = vsub.f32 0.0, %v831
      %v1053 = vsub.f32 0.0, %v836
      %v1054 = vsub.f32 0.0, %v839
      %v1055 = vsub.f32 0.0, %v844
      %v1056 = vsub.f32 0.0, %v847
      %v1057 = vsub.f32 0.0, %v852
      %v1058 = vsub.f32 0.0, %v855
      %v1059 = vsub.f32 0.0, %v860
      %v1060 = vsub.f32 0.0, %v863
      %v1061 = vsub.f32 0.0, %v868
      %v1062 = vsub.f32 0.0, %v871
      %v1063 = vsub.f32 0.0, %v876
      %v1064 = vsub.f32 0.0, %v879
      %v1065 = vsub.f32 0.0, %v884
      %v1066 = vsub.f32 0.0, %v887
      %v1067 = vsub.f32 0.0, %v892
      %v1068 = vsub.f32 0.0, %v895
      %v1069 = vsub.f32 0.0, %v900
      %v1070 = vsub.f32 0.0, %v903
      %v1071 = vsub.f32 0.0, %v908
      %v1072 = vsub.f32 0.0, %v911
      %v1073 = vsub.f32 0.0, %v916
      %v1074 = vsub.f32 0.0, %v919
      %v1075 = vsub.f32 0.0, %v924
      %v1076 = vsub.f32 0.0, %v927
      %v1077 = vsub.f32 0.0, %v932
      %v1078 = vsub.f32 0.0, %v935
      %v1079 = vsub.f32 0.0, %v940
      %v1080 = vsub.f32 0.0, %v943
      %v1081 = vsub.f32 0.0, %v948
      %v1082 = vsub.f32 0.0, %v951
      %v1083 = vsub.f32 0.0, %v956
      %v1084 = vsub.f32 0.0, %v959
      %v1085 = vsub.f32 0.0, %v964
      %v1086 = vsub.f32 0.0, %v967
      %v1087 = vsub.f32 0.0, %v972
      %v1088 = vsub.f32 0.0, %v975
      %v1089 = vsub.f32 0.0, %v980
      %v1090 = vsub.f32 0.0, %v983
      %v1091 = vsub.f32 0.0, %v988
      %v1092 = vsub.f32 0.0, %v991
      %v1093 = vsub.f32 0.0, %v996
      %v1094 = vsub.f32 0.0, %v999
      %v1095 = vsub.f32 0.0, %v1004
      %v1096 = vsub.f32 0.0, %v1007
      %v1097 = vsub.f32 0.0, %v1012
      %v1098 = vsub.f32 0.0, %v1015
      %v1099 = vsub.f32 0.0, %v1020
      %v1100 = vsub.f32 0.0, %v1023
      %v1101 = vsub.f32 0.0, %v1028
      %v1102 = vsub.f32 0.0, %v1031
      %v1103 = vsub.f32 0.0, %v1036
      %v1104 = vmul.f32 %v1041, 1.442695
      %v1105 = vpow.pop %v1104
      %v1106 = vmul.f32 %v1042, 1.442695
      %v1107 = vpow.pop %v1106
      %v1108 = vmul.f32 %v1043, 1.442695
      %v1109 = vpow.pop %v1108
      %v1110 = vmul.f32 %v1044, 1.442695
      %v1111 = vpow.pop %v1110
      %v1112 = vmul.f32 %v1045, 1.442695
      %v1113 = vpow.pop %v1112
      %v1114 = vmul.f32 %v1046, 1.442695
      %v1115 = vpow.pop %v1114
      %v1116 = vmul.f32 %v1047, 1.442695
      %v1117 = vpow.pop %v1116
      %v1118 = vmul.f32 %v1048, 1.442695
      %v1119 = vpow.pop %v1118
      %v1120 = vmul.f32 %v1049, 1.442695
      %v1121 = vpow.pop %v1120
      %v1122 = vmul.f32 %v1050, 1.442695
      %v1123 = vpow.pop %v1122
      %v1124 = vmul.f32 %v1051, 1.442695
      %v1125 = vpow.pop %v1124
      %v1126 = vmul.f32 %v1052, 1.442695
      %v1127 = vpow.pop %v1126
      %v1128 = vmul.f32 %v1053, 1.442695
      %v1129 = vpow.pop %v1128
      %v1130 = vmul.f32 %v1054, 1.442695
      %v1131 = vpow.pop %v1130
      %v1132 = vmul.f32 %v1055, 1.442695
      %v1133 = vpow.pop %v1132
      %v1134 = vmul.f32 %v1056, 1.442695
      %v1135 = vpow.pop %v1134
      %v1136 = vmul.f32 %v1057, 1.442695
      %v1137 = vpow.pop %v1136
      %v1138 = vmul.f32 %v1058, 1.442695
      %v1139 = vpow.pop %v1138
      %v1140 = vmul.f32 %v1059, 1.442695
      %v1141 = vpow.pop %v1140
      %v1142 = vmul.f32 %v1060, 1.442695
      %v1143 = vpow.pop %v1142
      %v1144 = vmul.f32 %v1061, 1.442695
      %v1145 = vpow.pop %v1144
      %v1146 = vmul.f32 %v1062, 1.442695
      %v1147 = vpow.pop %v1146
      %v1148 = vmul.f32 %v1063, 1.442695
      %v1149 = vpow.pop %v1148
      %v1150 = vmul.f32 %v1064, 1.442695
      %v1151 = vpow.pop %v1150
      %v1152 = vmul.f32 %v1065, 1.442695
      %v1153 = vpow.pop %v1152
      %v1154 = vmul.f32 %v1066, 1.442695
      %v1155 = vpow.pop %v1154
      %v1156 = vmul.f32 %v1067, 1.442695
      %v1157 = vpow.pop %v1156
      %v1158 = vmul.f32 %v1068, 1.442695
      %v1159 = vpow.pop %v1158
      %v1160 = vmul.f32 %v1069, 1.442695
      %v1161 = vpow.pop %v1160
      %v1162 = vmul.f32 %v1070, 1.442695
      %v1163 = vpow.pop %v1162
      %v1164 = vmul.f32 %v1071, 1.442695
      %v1165 = vpow.pop %v1164
      %v1166 = vmul.f32 %v1072, 1.442695
      %v1167 = vpow.pop %v1166
      %v1168 = vmul.f32 %v1073, 1.442695
      %v1169 = vpow.pop %v1168
      %v1170 = vmul.f32 %v1074, 1.442695
      %v1171 = vpow.pop %v1170
      %v1172 = vmul.f32 %v1075, 1.442695
      %v1173 = vpow.pop %v1172
      %v1174 = vmul.f32 %v1076, 1.442695
      %v1175 = vpow.pop %v1174
      %v1176 = vmul.f32 %v1077, 1.442695
      %v1177 = vpow.pop %v1176
      %v1178 = vmul.f32 %v1078, 1.442695
      %v1179 = vpow.pop %v1178
      %v1180 = vmul.f32 %v1079, 1.442695
      %v1181 = vpow.pop %v1180
      %v1182 = vmul.f32 %v1080, 1.442695
      %v1183 = vpow.pop %v1182
      %v1184 = vmul.f32 %v1081, 1.442695
      %v1185 = vpow.pop %v1184
      %v1186 = vmul.f32 %v1082, 1.442695
      %v1187 = vpow.pop %v1186
      %v1188 = vmul.f32 %v1083, 1.442695
      %v1189 = vpow.pop %v1188
      %v1190 = vmul.f32 %v1084, 1.442695
      %v1191 = vpow.pop %v1190
      %v1192 = vmul.f32 %v1085, 1.442695
      %v1193 = vpow.pop %v1192
      %v1194 = vmul.f32 %v1086, 1.442695
      %v1195 = vpow.pop %v1194
      %v1196 = vmul.f32 %v1087, 1.442695
      %v1197 = vpow.pop %v1196
      %v1198 = vmul.f32 %v1088, 1.442695
      %v1199 = vpow.pop %v1198
      %v1200 = vmul.f32 %v1089, 1.442695
      %v1201 = vpow.pop %v1200
      %v1202 = vmul.f32 %v1090, 1.442695
      %v1203 = vpow.pop %v1202
      %v1204 = vmul.f32 %v1091, 1.442695
      %v1205 = vpow.pop %v1204
      %v1206 = vmul.f32 %v1092, 1.442695
      %v1207 = vpow.pop %v1206
      %v1208 = vmul.f32 %v1093, 1.442695
      %v1209 = vpow.pop %v1208
      %v1210 = vmul.f32 %v1094, 1.442695
      %v1211 = vpow.pop %v1210
      %v1212 = vmul.f32 %v1095, 1.442695
      %v1213 = vpow.pop %v1212
      %v1214 = vmul.f32 %v1096, 1.442695
      %v1215 = vpow.pop %v1214
      %v1216 = vmul.f32 %v1097, 1.442695
      %v1217 = vpow.pop %v1216
      %v1218 = vmul.f32 %v1098, 1.442695
      %v1219 = vpow.pop %v1218
      %v1220 = vmul.f32 %v1099, 1.442695
      %v1221 = vpow.pop %v1220
      %v1222 = vmul.f32 %v1100, 1.442695
      %v1223 = vpow.pop %v1222
      %v1224 = vmul.f32 %v1101, 1.442695
      %v1225 = vpow.pop %v1224
      %v1226 = vmul.f32 %v1102, 1.442695
      %v1227 = vpow.pop %v1226
      %v1228 = vmul.f32 %v1103, 1.442695
      %v1229 = vpow.pop %v1228
      %v1230 = vadd.f32 %v1105, 1.0
      %v1231 = vadd.f32 %v1107, 1.0
      %v1232 = vadd.f32 %v1109, 1.0
      %v1233 = vadd.f32 %v1111, 1.0
      %v1234 = vadd.f32 %v1113, 1.0
      %v1235 = vadd.f32 %v1115, 1.0
      %v1236 = vadd.f32 %v1117, 1.0
      %v1237 = vadd.f32 %v1119, 1.0
      %v1238 = vadd.f32 %v1121, 1.0
      %v1239 = vadd.f32 %v1123, 1.0
      %v1240 = vadd.f32 %v1125, 1.0
      %v1241 = vadd.f32 %v1127, 1.0
      %v1242 = vadd.f32 %v1129, 1.0
      %v1243 = vadd.f32 %v1131, 1.0
      %v1244 = vadd.f32 %v1133, 1.0
      %v1245 = vadd.f32 %v1135, 1.0
      %v1246 = vadd.f32 %v1137, 1.0
      %v1247 = vadd.f32 %v1139, 1.0
      %v1248 = vadd.f32 %v1141, 1.0
      %v1249 = vadd.f32 %v1143, 1.0
      %v1250 = vadd.f32 %v1145, 1.0
      %v1251 = vadd.f32 %v1147, 1.0
      %v1252 = vadd.f32 %v1149, 1.0
      %v1253 = vadd.f32 %v1151, 1.0
      %v1254 = vadd.f32 %v1153, 1.0
      %v1255 = vadd.f32 %v1155, 1.0
      %v1256 = vadd.f32 %v1157, 1.0
      %v1257 = vadd.f32 %v1159, 1.0
      %v1258 = vadd.f32 %v1161, 1.0
      %v1259 = vadd.f32 %v1163, 1.0
      %v1260 = vadd.f32 %v1165, 1.0
      %v1261 = vadd.f32 %v1167, 1.0
      %v1262 = vadd.f32 %v1169, 1.0
      %v1263 = vadd.f32 %v1171, 1.0
      %v1264 = vadd.f32 %v1173, 1.0
      %v1265 = vadd.f32 %v1175, 1.0
      %v1266 = vadd.f32 %v1177, 1.0
      %v1267 = vadd.f32 %v1179, 1.0
      %v1268 = vadd.f32 %v1181, 1.0
      %v1269 = vadd.f32 %v1183, 1.0
      %v1270 = vadd.f32 %v1185, 1.0
      %v1271 = vadd.f32 %v1187, 1.0
      %v1272 = vadd.f32 %v1189, 1.0
      %v1273 = vadd.f32 %v1191, 1.0
      %v1274 = vadd.f32 %v1193, 1.0
      %v1275 = vadd.f32 %v1195, 1.0
      %v1276 = vadd.f32 %v1197, 1.0
      %v1277 = vadd.f32 %v1199, 1.0
      %v1278 = vadd.f32 %v1201, 1.0
      %v1279 = vadd.f32 %v1203, 1.0
      %v1280 = vadd.f32 %v1205, 1.0
      %v1281 = vadd.f32 %v1207, 1.0
      %v1282 = vadd.f32 %v1209, 1.0
      %v1283 = vadd.f32 %v1211, 1.0
      %v1284 = vadd.f32 %v1213, 1.0
      %v1285 = vadd.f32 %v1215, 1.0
      %v1286 = vadd.f32 %v1217, 1.0
      %v1287 = vadd.f32 %v1219, 1.0
      %v1288 = vadd.f32 %v1221, 1.0
      %v1289 = vadd.f32 %v1223, 1.0
      %v1290 = vadd.f32 %v1225, 1.0
      %v1291 = vadd.f32 %v1227, 1.0
      %v1292 = vadd.f32 %v1229, 1.0
      %v1293 = vrcp.pop %v1230
      %v1294 = vmul.f32 1.0, %v1293
      %v1295 = vrcp.pop %v1231
      %v1296 = vmul.f32 1.0, %v1295
      %v1297 = vrcp.pop %v1232
      %v1298 = vmul.f32 1.0, %v1297
      %v1299 = vrcp.pop %v1233
      %v1300 = vmul.f32 1.0, %v1299
      %v1301 = vrcp.pop %v1234
      %v1302 = vmul.f32 1.0, %v1301
      %v1303 = vrcp.pop %v1235
      %v1304 = vmul.f32 1.0, %v1303
      %v1305 = vrcp.pop %v1236
      %v1306 = vmul.f32 1.0, %v1305
      %v1307 = vrcp.pop %v1237
      %v1308 = vmul.f32 1.0, %v1307
      %v1309 = vrcp.pop %v1238
      %v1310 = vmul.f32 1.0, %v1309
      %v1311 = vrcp.pop %v1239
      %v1312 = vmul.f32 1.0, %v1311
      %v1313 = vrcp.pop %v1240
      %v1314 = vmul.f32 1.0, %v1313
      %v1315 = vrcp.pop %v1241
      %v1316 = vmul.f32 1.0, %v1315
      %v1317 = vrcp.pop %v1242
      %v1318 = vmul.f32 1.0, %v1317
      %v1319 = vrcp.pop %v1243
      %v1320 = vmul.f32 1.0, %v1319
      %v1321 = vrcp.pop %v1244
      %v1322 = vmul.f32 1.0, %v1321
      %v1323 = vrcp.pop %v1245
      %v1324 = vmul.f32 1.0, %v1323
      %v1325 = vrcp.pop %v1246
      %v1326 = vmul.f32 1.0, %v1325
      %v1327 = vrcp.pop %v1247
      %v1328 = vmul.f32 1.0, %v1327
      %v1329 = vrcp.pop %v1248
      %v1330 = vmul.f32 1.0, %v1329
      %v1331 = vrcp.pop %v1249
      %v1332 = vmul.f32 1.0, %v1331
      %v1333 = vrcp.pop %v1250
      %v1334 = vmul.f32 1.0, %v1333
      %v1335 = vrcp.pop %v1251
      %v1336 = vmul.f32 1.0, %v1335
      %v1337 = vrcp.pop %v1252
      %v1338 = vmul.f32 1.0, %v1337
      %v1339 = vrcp.pop %v1253
      %v1340 = vmul.f32 1.0, %v1339
      %v1341 = vrcp.pop %v1254
      %v1342 = vmul.f32 1.0, %v1341
      %v1343 = vrcp.pop %v1255
      %v1344 = vmul.f32 1.0, %v1343
      %v1345 = vrcp.pop %v1256
      %v1346 = vmul.f32 1.0, %v1345
      %v1347 = vrcp.pop %v1257
      %v1348 = vmul.f32 1.0, %v1347
      %v1349 = vrcp.pop %v1258
      %v1350 = vmul.f32 1.0, %v1349
      %v1351 = vrcp.pop %v1259
      %v1352 = vmul.f32 1.0, %v1351
      %v1353 = vrcp.pop %v1260
      %v1354 = vmul.f32 1.0, %v1353
      %v1355 = vrcp.pop %v1261
      %v1356 = vmul.f32 1.0, %v1355
      %v1357 = vrcp.pop %v1262
      %v1358 = vmul.f32 1.0, %v1357
      %v1359 = vrcp.pop %v1263
      %v1360 = vmul.f32 1.0, %v1359
      %v1361 = vrcp.pop %v1264
      %v1362 = vmul.f32 1.0, %v1361
      %v1363 = vrcp.pop %v1265
      %v1364 = vmul.f32 1.0, %v1363
      %v1365 = vrcp.pop %v1266
      %v1366 = vmul.f32 1.0, %v1365
      %v1367 = vrcp.pop %v1267
      %v1368 = vmul.f32 1.0, %v1367
      %v1369 = vrcp.pop %v1268
      %v1370 = vmul.f32 1.0, %v1369
      %v1371 = vrcp.pop %v1269
      %v1372 = vmul.f32 1.0, %v1371
      %v1373 = vrcp.pop %v1270
      %v1374 = vmul.f32 1.0, %v1373
      %v1375 = vrcp.pop %v1271
      %v1376 = vmul.f32 1.0, %v1375
      %v1377 = vrcp.pop %v1272
      %v1378 = vmul.f32 1.0, %v1377
      %v1379 = vrcp.pop %v1273
      %v1380 = vmul.f32 1.0, %v1379
      %v1381 = vrcp.pop %v1274
      %v1382 = vmul.f32 1.0, %v1381
      %v1383 = vrcp.pop %v1275
      %v1384 = vmul.f32 1.0, %v1383
      %v1385 = vrcp.pop %v1276
      %v1386 = vmul.f32 1.0, %v1385
      %v1387 = vrcp.pop %v1277
      %v1388 = vmul.f32 1.0, %v1387
      %v1389 = vrcp.pop %v1278
      %v1390 = vmul.f32 1.0, %v1389
      %v1391 = vrcp.pop %v1279
      %v1392 = vmul.f32 1.0, %v1391
      %v1393 = vrcp.pop %v1280
      %v1394 = vmul.f32 1.0, %v1393
      %v1395 = vrcp.pop %v1281
      %v1396 = vmul.f32 1.0, %v1395
      %v1397 = vrcp.pop %v1282
      %v1398 = vmul.f32 1.0, %v1397
      %v1399 = vrcp.pop %v1283
      %v1400 = vmul.f32 1.0, %v1399
      %v1401 = vrcp.pop %v1284
      %v1402 = vmul.f32 1.0, %v1401
      %v1403 = vrcp.pop %v1285
      %v1404 = vmul.f32 1.0, %v1403
      %v1405 = vrcp.pop %v1286
      %v1406 = vmul.f32 1.0, %v1405
      %v1407 = vrcp.pop %v1287
      %v1408 = vmul.f32 1.0, %v1407
      %v1409 = vrcp.pop %v1288
      %v1410 = vmul.f32 1.0, %v1409
      %v1411 = vrcp.pop %v1289
      %v1412 = vmul.f32 1.0, %v1411
      %v1413 = vrcp.pop %v1290
      %v1414 = vmul.f32 1.0, %v1413
      %v1415 = vrcp.pop %v1291
      %v1416 = vmul.f32 1.0, %v1415
      %v1417 = vrcp.pop %v1292
      %v1418 = vmul.f32 1.0, %v1417
      %vm1419 = vcmask 261120
      %1420 = vst.msk [vmem:[%s226] sm:$0xff] %vm1419, %v1294
      %1421 = vst.msk [vmem:[%s226 + $0x8] sm:$0xff] %vm1419, %v1296
      %1422 = vst.msk [vmem:[%s226 + $0x10] sm:$0xff] %vm1419, %v1298
      %1423 = vst.msk [vmem:[%s226 + $0x18] sm:$0xff] %vm1419, %v1300
      %1424 = vst.msk [vmem:[%s226 + $0x20] sm:$0xff] %vm1419, %v1302
      %1425 = vst.msk [vmem:[%s226 + $0x28] sm:$0xff] %vm1419, %v1304
      %1426 = vst.msk [vmem:[%s226 + $0x30] sm:$0xff] %vm1419, %v1306
      %1427 = vst.msk [vmem:[%s226 + $0x38] sm:$0xff] %vm1419, %v1308
      %1428 = vst.msk [vmem:[%s226 + $0x40] sm:$0xff] %vm1419, %v1310
      %1429 = vst.msk [vmem:[%s226 + $0x48] sm:$0xff] %vm1419, %v1312
      %1430 = vst.msk [vmem:[%s226 + $0x50] sm:$0xff] %vm1419, %v1314
      %1431 = vst.msk [vmem:[%s226 + $0x58] sm:$0xff] %vm1419, %v1316
      %1432 = vst.msk [vmem:[%s226 + $0x60] sm:$0xff] %vm1419, %v1318
      %1433 = vst.msk [vmem:[%s226 + $0x68] sm:$0xff] %vm1419, %v1320
      %1434 = vst.msk [vmem:[%s226 + $0x70] sm:$0xff] %vm1419, %v1322
      %1435 = vst.msk [vmem:[%s226 + $0x78] sm:$0xff] %vm1419, %v1324
      %1436 = vst.msk [vmem:[%s226 + $0x80] sm:$0xff] %vm1419, %v1326
      %1437 = vst.msk [vmem:[%s226 + $0x88] sm:$0xff] %vm1419, %v1328
      %1438 = vst.msk [vmem:[%s226 + $0x90] sm:$0xff] %vm1419, %v1330
      %1439 = vst.msk [vmem:[%s226 + $0x98] sm:$0xff] %vm1419, %v1332
      %1440 = vst.msk [vmem:[%s226 + $0xa0] sm:$0xff] %vm1419, %v1334
      %1441 = vst.msk [vmem:[%s226 + $0xa8] sm:$0xff] %vm1419, %v1336
      %1442 = vst.msk [vmem:[%s226 + $0xb0] sm:$0xff] %vm1419, %v1338
      %1443 = vst.msk [vmem:[%s226 + $0xb8] sm:$0xff] %vm1419, %v1340
      %1444 = vst.msk [vmem:[%s226 + $0xc0] sm:$0xff] %vm1419, %v1342
      %1445 = vst.msk [vmem:[%s226 + $0xc8] sm:$0xff] %vm1419, %v1344
      %1446 = vst.msk [vmem:[%s226 + $0xd0] sm:$0xff] %vm1419, %v1346
      %1447 = vst.msk [vmem:[%s226 + $0xd8] sm:$0xff] %vm1419, %v1348
      %1448 = vst.msk [vmem:[%s226 + $0xe0] sm:$0xff] %vm1419, %v1350
      %1449 = vst.msk [vmem:[%s226 + $0xe8] sm:$0xff] %vm1419, %v1352
      %1450 = vst.msk [vmem:[%s226 + $0xf0] sm:$0xff] %vm1419, %v1354
      %1451 = vst.msk [vmem:[%s226 + $0xf8] sm:$0xff] %vm1419, %v1356
      %1452 = vst.msk [vmem:[%s226 + $0x100] sm:$0xff] %vm1419, %v1358
      %1453 = vst.msk [vmem:[%s226 + $0x108] sm:$0xff] %vm1419, %v1360
      %1454 = vst.msk [vmem:[%s226 + $0x110] sm:$0xff] %vm1419, %v1362
      %1455 = vst.msk [vmem:[%s226 + $0x118] sm:$0xff] %vm1419, %v1364
      %1456 = vst.msk [vmem:[%s226 + $0x120] sm:$0xff] %vm1419, %v1366
      %1457 = vst.msk [vmem:[%s226 + $0x128] sm:$0xff] %vm1419, %v1368
      %1458 = vst.msk [vmem:[%s226 + $0x130] sm:$0xff] %vm1419, %v1370
      %1459 = vst.msk [vmem:[%s226 + $0x138] sm:$0xff] %vm1419, %v1372
      %1460 = vst.msk [vmem:[%s226 + $0x140] sm:$0xff] %vm1419, %v1374
      %1461 = vst.msk [vmem:[%s226 + $0x148] sm:$0xff] %vm1419, %v1376
      %1462 = vst.msk [vmem:[%s226 + $0x150] sm:$0xff] %vm1419, %v1378
      %1463 = vst.msk [vmem:[%s226 + $0x158] sm:$0xff] %vm1419, %v1380
      %1464 = vst.msk [vmem:[%s226 + $0x160] sm:$0xff] %vm1419, %v1382
      %1465 = vst.msk [vmem:[%s226 + $0x168] sm:$0xff] %vm1419, %v1384
      %1466 = vst.msk [vmem:[%s226 + $0x170] sm:$0xff] %vm1419, %v1386
      %1467 = vst.msk [vmem:[%s226 + $0x178] sm:$0xff] %vm1419, %v1388
      %1468 = vst.msk [vmem:[%s226 + $0x180] sm:$0xff] %vm1419, %v1390
      %1469 = vst.msk [vmem:[%s226 + $0x188] sm:$0xff] %vm1419, %v1392
      %1470 = vst.msk [vmem:[%s226 + $0x190] sm:$0xff] %vm1419, %v1394
      %1471 = vst.msk [vmem:[%s226 + $0x198] sm:$0xff] %vm1419, %v1396
      %1472 = vst.msk [vmem:[%s226 + $0x1a0] sm:$0xff] %vm1419, %v1398
      %1473 = vst.msk [vmem:[%s226 + $0x1a8] sm:$0xff] %vm1419, %v1400
      %1474 = vst.msk [vmem:[%s226 + $0x1b0] sm:$0xff] %vm1419, %v1402
      %1475 = vst.msk [vmem:[%s226 + $0x1b8] sm:$0xff] %vm1419, %v1404
      %1476 = vst.msk [vmem:[%s226 + $0x1c0] sm:$0xff] %vm1419, %v1406
      %1477 = vst.msk [vmem:[%s226 + $0x1c8] sm:$0xff] %vm1419, %v1408
      %1478 = vst.msk [vmem:[%s226 + $0x1d0] sm:$0xff] %vm1419, %v1410
      %1479 = vst.msk [vmem:[%s226 + $0x1d8] sm:$0xff] %vm1419, %v1412
      %1480 = vst.msk [vmem:[%s226 + $0x1e0] sm:$0xff] %vm1419, %v1414
      %1481 = vst.msk [vmem:[%s226 + $0x1e8] sm:$0xff] %vm1419, %v1416
      %1482 = vst.msk [vmem:[%s226 + $0x1f0] sm:$0xff] %vm1419, %v1418
      %s1483 = smul.u32 63, %s18
      %p1484 = scmp.lt.s32.totalorder %s1483, 1448
      %s1485 = scalar_select %p1484, %s1483, 1448
      %p1486 = scmp.lt.s32.totalorder %s19, 0
      %s1487 = scalar_select %p1486, %s19, 0
      %s1488 = sadd.s32 %s1487, %s1485
      %s1489 = smul.addr %s1488, 8
      %s1490 = scalar_lea.vmem %s3, %s1489
      // Predicated region
      $region33: #{decoder3d_forward.9} parent=31 // pred_check
        %p1491 = pneg %p124
      $region34: #{decoder3d_forward.9} parent=31 // pred_check_branch
        %1493 = sbr.rel (%p1491) target = $region36
      $region35: #{decoder3d_forward.9} parent=31 // pred_region
        %s1494 = smul.u32 63, %s18
      $region36: #{decoder3d_forward.9} parent=31 // pred_fallthru
        _
    $region32: #{decoder3d_forward.9} parent=5 // pred_fallthru
      _
    %p1495 = scmp.le.s32.totalorder 2, %s9
    // Predicated region
    $region37: #{decoder3d_forward.9} parent=5 // pred_check
      %p1496 = pneg %p1495
    $region38: #{decoder3d_forward.9} parent=5 // pred_check_branch
      %1498 = sbr.rel (%p1496) target = $region40
    $region39: #{decoder3d_forward.9} parent=5 // pred_region
      %s1499 = ssub.s32 %s9, 2
      // Predicated region
      $region41: #{decoder3d_forward.9} parent=39 // pred_check
        %p1500 = pneg %p130
      $region42: #{decoder3d_forward.9} parent=39 // pred_check_branch
        %1502 = sbr.rel (%p1500) target = $region44
      $region43: #{decoder3d_forward.9} parent=39 // pred_region
        %s1503 = smul.u32 63, %s20
        %p1504 = scmp.lt.s32.totalorder %s1503, 1448
        %s1505 = scalar_select %p1504, %s1503, 1448
        %p1506 = scmp.lt.s32.totalorder %s21, 0
        %s1507 = scalar_select %p1506, %s21, 0
        %s1508 = sadd.s32 %s1507, %s1505
        %s1509 = smul.addr %s1508, 8
        %s1510 = scalar_lea.vmem %s3, %s1509
      $region44: #{decoder3d_forward.9} parent=39 // pred_fallthru
        _
    $region40: #{decoder3d_forward.9} parent=5 // pred_fallthru
      _
  $region6: #{decoder3d_forward.9} parent=0 // loop_footer
    %s13 = sadd.s32 1, %s9
  $region7: #{decoder3d_forward.9} parent=0 // loop_footer_branch
    %8 = sbr.rel target = $region3
  $region8: #{decoder3d_forward.9} parent=0 // loop_exit
    _

// kernel: decoder3d_forward.10
$region0: #{decoder3d_forward.10}
  #allocation0 [shape = 'u32[]', space=smem, size = 0x4, offset = 0x4, fixed_abs, tag = 'smem constant byte address 0x4 - core index']
  #allocation1 [shape = 'u32[144,128]{1,0:T(1,128)}', space=vmem, size = 0x12000, scoped, tag = 'internal scratch']
  %s0 = inlined_call_operand.vmem [shape: f32[16,80], index: 0, kind: input, shape index: {}]
  %s1 = inlined_call_operand.vmem [shape: f32[80,4232], index: 1, kind: input, shape index: {}]
  %s2 = inlined_call_operand.vmem [shape: f32[16,4232], index: 2, kind: output, shape index: {}]
  %s3 = sld [smem:[#allocation0]]
  $region18: #{decoder3d_forward.10} parent=0
    _
  %s5 = ssub.s32 1, %s3
  %s6 = scalar_select 0, %s5, %s3
  // Predicated region
  $region2: #{decoder3d_forward.10} parent=0 // pred_check
    _
  $region3: #{decoder3d_forward.10} parent=0 // pred_check_branch
    %8 = sbr.rel (0) target = $region5
  $region4: #{decoder3d_forward.10} parent=0 // pred_region
    _
  $region5: #{decoder3d_forward.10} parent=0 // pred_fallthru
    _
  // Predicated region
  $region6: #{decoder3d_forward.10} parent=0 // pred_check
    _
  $region7: #{decoder3d_forward.10} parent=0 // pred_check_branch
    %10 = sbr.rel (0) target = $region9
  $region8: #{decoder3d_forward.10} parent=0 // pred_region
    _
  $region9: #{decoder3d_forward.10} parent=0 // pred_fallthru
    _
  %v11 = vld [vmem:[%s0] sm:$0xff]
  %v12 = vld [vmem:[%s0 + $0x8] sm:$0xff]
  %v13 = vld [vmem:[%s1] sm:$0xff]
  %v14 = vld [vmem:[%s1 + $0x8] sm:$0xff]
  %v15 = vld [vmem:[%s1 + $0x10] sm:$0xff]
  %v16 = vld [vmem:[%s1 + $0x18] sm:$0xff]
  %v17 = vld [vmem:[%s1 + $0x20] sm:$0xff]
  %v18 = vld [vmem:[%s1 + $0x28] sm:$0xff]
  %v19 = vld [vmem:[%s1 + $0x30] sm:$0xff]
  %v20 = vld [vmem:[%s1 + $0x38] sm:$0xff]
  %v21 = vld [vmem:[%s1 + $0x40] sm:$0xff]
  %v22 = vld [vmem:[%s1 + $0x48] sm:$0xff]
  %v23 = vld [vmem:[%s1 + $0x50] sm:$0xff]
  %v24 = vld [vmem:[%s1 + $0x58] sm:$0xff]
  %v25 = vld [vmem:[%s1 + $0x60] sm:$0xff]
  %v26 = vld [vmem:[%s1 + $0x68] sm:$0xff]
  %v27 = vld [vmem:[%s1 + $0x70] sm:$0xff]
  %v28 = vld [vmem:[%s1 + $0x78] sm:$0xff]
  %v29 = vld [vmem:[%s1 + $0x80] sm:$0xff]
  %v30 = vld [vmem:[%s1 + $0x88] sm:$0xff]
  %v31 = vld [vmem:[%s1 + $0x90] sm:$0xff]
  %v32 = vld [vmem:[%s1 + $0x98] sm:$0xff]
  %v33 = vld [vmem:[%s1 + $0xa0] sm:$0xff]
  %v34 = vld [vmem:[%s1 + $0xa8] sm:$0xff]
  %v35 = vld [vmem:[%s1 + $0xb0] sm:$0xff]
  %v36 = vld [vmem:[%s1 + $0xb8] sm:$0xff]
  %v37 = vld [vmem:[%s1 + $0xc0] sm:$0xff]
  %v38 = vld [vmem:[%s1 + $0xc8] sm:$0xff]
  %v39 = vld [vmem:[%s1 + $0xd0] sm:$0xff]
  %v40 = vld [vmem:[%s1 + $0xd8] sm:$0xff]
  %v41 = vld [vmem:[%s1 + $0xe0] sm:$0xff]
  %v42 = vld [vmem:[%s1 + $0xe8] sm:$0xff]
  %v43 = vld [vmem:[%s1 + $0xf0] sm:$0xff]
  %v44 = vld [vmem:[%s1 + $0xf8] sm:$0xff]
  %v45 = vld [vmem:[%s1 + $0x100] sm:$0xff]
  %v46 = vld [vmem:[%s1 + $0x108] sm:$0xff]
  %v47 = vld [vmem:[%s1 + $0x110] sm:$0xff]
  %v48 = vld [vmem:[%s1 + $0x118] sm:$0xff]
  %v49 = vld [vmem:[%s1 + $0x120] sm:$0xff]
  %v50 = vld [vmem:[%s1 + $0x128] sm:$0xff]
  %v51 = vld [vmem:[%s1 + $0x130] sm:$0xff]
  %v52 = vld [vmem:[%s1 + $0x138] sm:$0xff]
  %v53 = vld [vmem:[%s1 + $0x140] sm:$0xff]
  %v54 = vld [vmem:[%s1 + $0x148] sm:$0xff]
  %v55 = vld [vmem:[%s1 + $0x150] sm:$0xff]
  %v56 = vld [vmem:[%s1 + $0x158] sm:$0xff]
  %v57 = vld [vmem:[%s1 + $0x160] sm:$0xff]
  %v58 = vld [vmem:[%s1 + $0x168] sm:$0xff]
  %v59 = vld [vmem:[%s1 + $0x170] sm:$0xff]
  %v60 = vld [vmem:[%s1 + $0x178] sm:$0xff]
  %v61 = vld [vmem:[%s1 + $0x180] sm:$0xff]
  %v62 = vld [vmem:[%s1 + $0x188] sm:$0xff]
  %v63 = vld [vmem:[%s1 + $0x190] sm:$0xff]
  %v64 = vld [vmem:[%s1 + $0x198] sm:$0xff]
  %v65 = vld [vmem:[%s1 + $0x1a0] sm:$0xff]
  %v66 = vld [vmem:[%s1 + $0x1a8] sm:$0xff]
  %v67 = vld [vmem:[%s1 + $0x1b0] sm:$0xff]
  %v68 = vld [vmem:[%s1 + $0x1b8] sm:$0xff]
  %v69 = vld [vmem:[%s1 + $0x1c0] sm:$0xff]
  %v70 = vld [vmem:[%s1 + $0x1c8] sm:$0xff]
  %v71 = vld [vmem:[%s1 + $0x1d0] sm:$0xff]
  %v72 = vld [vmem:[%s1 + $0x1d8] sm:$0xff]
  %v73 = vld [vmem:[%s1 + $0x1e0] sm:$0xff]
  %v74 = vld [vmem:[%s1 + $0x1e8] sm:$0xff]
  %v75 = vld [vmem:[%s1 + $0x1f0] sm:$0xff]
  %v76 = vld [vmem:[%s1 + $0x1f8] sm:$0xff]
  %v77 = vld [vmem:[%s1 + $0x200] sm:$0xff]
  %v78 = vld [vmem:[%s1 + $0x208] sm:$0xff]
  %v79 = vld [vmem:[%s1 + $0x210] sm:$0xff]
  %v80 = vld [vmem:[%s1 + $0x218] sm:$0xff]
  %v81 = vld [vmem:[%s1 + $0x220] sm:$0xff]
  %v82 = vld [vmem:[%s1 + $0x228] sm:$0xff]
  %v83 = vld [vmem:[%s1 + $0x230] sm:$0xff]
  %v84 = vld [vmem:[%s1 + $0x238] sm:$0xff]
  %v85 = vld [vmem:[%s1 + $0x240] sm:$0xff]
  %v86 = vld [vmem:[%s1 + $0x248] sm:$0xff]
  %v87 = vld [vmem:[%s1 + $0x250] sm:$0xff]
  %v88 = vld [vmem:[%s1 + $0x258] sm:$0xff]
  %v89 = vld [vmem:[%s1 + $0x260] sm:$0xff]
  %v90 = vld [vmem:[%s1 + $0x268] sm:$0xff]
  %v91 = vld [vmem:[%s1 + $0x270] sm:$0xff]
  %v92 = vld [vmem:[%s1 + $0x278] sm:$0xff]
  %v93 = vld [vmem:[%s1 + $0x280] sm:$0xff]
  %v94 = vld [vmem:[%s1 + $0x288] sm:$0xff]
  %v95 = vld [vmem:[%s1 + $0x290] sm:$0xff]
  %v96 = vld [vmem:[%s1 + $0x298] sm:$0xff]
  %v97 = vld [vmem:[%s1 + $0x2a0] sm:$0xff]
  %v98 = vld [vmem:[%s1 + $0x2a8] sm:$0xff]
  %v99 = vld [vmem:[%s1 + $0x2b0] sm:$0xff]
  %v100 = vld [vmem:[%s1 + $0x2b8] sm:$0xff]
  %v101 = vld [vmem:[%s1 + $0x2c0] sm:$0xff]
  %v102 = vld [vmem:[%s1 + $0x2c8] sm:$0xff]
  %v103 = vld [vmem:[%s1 + $0x2d0] sm:$0xff]
  %v104 = vld [vmem:[%s1 + $0x2d8] sm:$0xff]
  %v105 = vld [vmem:[%s1 + $0x2e0] sm:$0xff]
  %v106 = vld [vmem:[%s1 + $0x2e8] sm:$0xff]
  %v107 = vld [vmem:[%s1 + $0x2f0] sm:$0xff]
  %v108 = vld [vmem:[%s1 + $0x2f8] sm:$0xff]
  %v109 = vld [vmem:[%s1 + $0x300] sm:$0xff]
  %v110 = vld [vmem:[%s1 + $0x308] sm:$0xff]
  %v111 = vld [vmem:[%s1 + $0x310] sm:$0xff]
  %v112 = vld [vmem:[%s1 + $0x318] sm:$0xff]
  %v113 = vld [vmem:[%s1 + $0x320] sm:$0xff]
  %v114 = vld [vmem:[%s1 + $0x328] sm:$0xff]
  %v115 = vld [vmem:[%s1 + $0x330] sm:$0xff]
  %v116 = vld [vmem:[%s1 + $0x338] sm:$0xff]
  %v117 = vld [vmem:[%s1 + $0x340] sm:$0xff]
  %v118 = vld [vmem:[%s1 + $0x348] sm:$0xff]
  %v119 = vld [vmem:[%s1 + $0x350] sm:$0xff]
  %v120 = vld [vmem:[%s1 + $0x358] sm:$0xff]
  %v121 = vld [vmem:[%s1 + $0x360] sm:$0xff]
  %v122 = vld [vmem:[%s1 + $0x368] sm:$0xff]
  %v123 = vld [vmem:[%s1 + $0x370] sm:$0xff]
  %v124 = vld [vmem:[%s1 + $0x378] sm:$0xff]
  %v125 = vld [vmem:[%s1 + $0x380] sm:$0xff]
  %v126 = vld [vmem:[%s1 + $0x388] sm:$0xff]
  %v127 = vld [vmem:[%s1 + $0x390] sm:$0xff]
  %v128 = vld [vmem:[%s1 + $0x398] sm:$0xff]
  %v129 = vld [vmem:[%s1 + $0x3a0] sm:$0xff]
  %v130 = vld [vmem:[%s1 + $0x3a8] sm:$0xff]
  %v131 = vld [vmem:[%s1 + $0x3b0] sm:$0xff]
  %v132 = vld [vmem:[%s1 + $0x3b8] sm:$0xff]
  %v133 = vld [vmem:[%s1 + $0x3c0] sm:$0xff]
  %v134 = vld [vmem:[%s1 + $0x3c8] sm:$0xff]
  %v135 = vld [vmem:[%s1 + $0x3d0] sm:$0xff]
  %v136 = vld [vmem:[%s1 + $0x3d8] sm:$0xff]
  %v137 = vld [vmem:[%s1 + $0x3e0] sm:$0xff]
  %v138 = vld [vmem:[%s1 + $0x3e8] sm:$0xff]
  %v139 = vld [vmem:[%s1 + $0x3f0] sm:$0xff]
  %v140 = vld [vmem:[%s1 + $0x3f8] sm:$0xff]
  %v141 = vld [vmem:[%s1 + $0x400] sm:$0xff]
  %v142 = vld [vmem:[%s1 + $0x408] sm:$0xff]
  %v143 = vld [vmem:[%s1 + $0x410] sm:$0xff]
  %v144 = vld [vmem:[%s1 + $0x418] sm:$0xff]
  %v145 = vld [vmem:[%s1 + $0x420] sm:$0xff]
  %v146 = vld [vmem:[%s1 + $0x428] sm:$0xff]
  %v147 = vld [vmem:[%s1 + $0x430] sm:$0xff]
  %v148 = vld [vmem:[%s1 + $0x438] sm:$0xff]
  %v149 = vld [vmem:[%s1 + $0x440] sm:$0xff]
  %v150 = vld [vmem:[%s1 + $0x448] sm:$0xff]
  %v151 = vld [vmem:[%s1 + $0x450] sm:$0xff]
  %v152 = vld [vmem:[%s1 + $0x458] sm:$0xff]
  %v153 = vld [vmem:[%s1 + $0x460] sm:$0xff]
  %v154 = vld [vmem:[%s1 + $0x468] sm:$0xff]
  %v155 = vld [vmem:[%s1 + $0x470] sm:$0xff]
  %v156 = vld [vmem:[%s1 + $0x478] sm:$0xff]
  %v157 = vld [vmem:[%s1 + $0x480] sm:$0xff]
  %v158 = vld [vmem:[%s1 + $0x488] sm:$0xff]
  %v159 = vld [vmem:[%s1 + $0x490] sm:$0xff]
  %v160 = vld [vmem:[%s1 + $0x498] sm:$0xff]
  %v161 = vld [vmem:[%s1 + $0x4a0] sm:$0xff]
  %v162 = vld [vmem:[%s1 + $0x4a8] sm:$0xff]
  %v163 = vld [vmem:[%s1 + $0x4b0] sm:$0xff]
  %v164 = vld [vmem:[%s1 + $0x4b8] sm:$0xff]
  %v165 = vld [vmem:[%s1 + $0x4c0] sm:$0xff]
  %v166 = vld [vmem:[%s1 + $0x4c8] sm:$0xff]
  %v167 = vld [vmem:[%s1 + $0x4d0] sm:$0xff]
  %v168 = vld [vmem:[%s1 + $0x4d8] sm:$0xff]
  %v169 = vld [vmem:[%s1 + $0x4e0] sm:$0xff]
  %v170 = vld [vmem:[%s1 + $0x4e8] sm:$0xff]
  %v171 = vld [vmem:[%s1 + $0x4f0] sm:$0xff]
  %v172 = vld [vmem:[%s1 + $0x4f8] sm:$0xff]
  %v173 = vld [vmem:[%s1 + $0x500] sm:$0xff]
  %v174 = vld [vmem:[%s1 + $0x508] sm:$0xff]
  %v175 = vld [vmem:[%s1 + $0x510] sm:$0xff]
  %v176 = vld [vmem:[%s1 + $0x518] sm:$0xff]
  %v177 = vld [vmem:[%s1 + $0x520] sm:$0xff]
  %v178 = vld [vmem:[%s1 + $0x528] sm:$0xff]
  %v179 = vld [vmem:[%s1 + $0x530] sm:$0xff]
  %v180 = vld [vmem:[%s1 + $0x538] sm:$0xff]
  %v181 = vld [vmem:[%s1 + $0x540] sm:$0xff]
  %v182 = vld [vmem:[%s1 + $0x548] sm:$0xff]
  %v183 = vld [vmem:[%s1 + $0x550] sm:$0xff]
  %v184 = vld [vmem:[%s1 + $0x558] sm:$0xff]
  %v185 = vld [vmem:[%s1 + $0x560] sm:$0xff]
  %v186 = vld [vmem:[%s1 + $0x568] sm:$0xff]
  %v187 = vld [vmem:[%s1 + $0x570] sm:$0xff]
  %v188 = vld [vmem:[%s1 + $0x578] sm:$0xff]
  %v189 = vld [vmem:[%s1 + $0x580] sm:$0xff]
  %v190 = vld [vmem:[%s1 + $0x588] sm:$0xff]
  %v191 = vld [vmem:[%s1 + $0x590] sm:$0xff]
  %v192 = vld [vmem:[%s1 + $0x598] sm:$0xff]
  %v193 = vld [vmem:[%s1 + $0x5a0] sm:$0xff]
  %v194 = vld [vmem:[%s1 + $0x5a8] sm:$0xff]
  %v195 = vld [vmem:[%s1 + $0x5b0] sm:$0xff]
  %v196 = vld [vmem:[%s1 + $0x5b8] sm:$0xff]
  %v197 = vld [vmem:[%s1 + $0x5c0] sm:$0xff]
  %v198 = vld [vmem:[%s1 + $0x5c8] sm:$0xff]
  %v199 = vld [vmem:[%s1 + $0x5d0] sm:$0xff]
  %v200 = vld [vmem:[%s1 + $0x5d8] sm:$0xff]
  %v201 = vld [vmem:[%s1 + $0x5e0] sm:$0xff]
  %v202 = vld [vmem:[%s1 + $0x5e8] sm:$0xff]
  %v203 = vld [vmem:[%s1 + $0x5f0] sm:$0xff]
  %v204 = vld [vmem:[%s1 + $0x5f8] sm:$0xff]
  %v205 = vld [vmem:[%s1 + $0x600] sm:$0xff]
  %v206 = vld [vmem:[%s1 + $0x608] sm:$0xff]
  %v207 = vld [vmem:[%s1 + $0x610] sm:$0xff]
  %v208 = vld [vmem:[%s1 + $0x618] sm:$0xff]
  %v209 = vld [vmem:[%s1 + $0x620] sm:$0xff]
  %v210 = vld [vmem:[%s1 + $0x628] sm:$0xff]
  %v211 = vld [vmem:[%s1 + $0x630] sm:$0xff]
  %v212 = vld [vmem:[%s1 + $0x638] sm:$0xff]
  %v213 = vld [vmem:[%s1 + $0x640] sm:$0xff]
  %v214 = vld [vmem:[%s1 + $0x648] sm:$0xff]
  %v215 = vld [vmem:[%s1 + $0x650] sm:$0xff]
  %v216 = vld [vmem:[%s1 + $0x658] sm:$0xff]
  %v217 = vld [vmem:[%s1 + $0x660] sm:$0xff]
  %v218 = vld [vmem:[%s1 + $0x668] sm:$0xff]
  %v219 = vld [vmem:[%s1 + $0x670] sm:$0xff]
  %v220 = vld [vmem:[%s1 + $0x678] sm:$0xff]
  %v221 = vld [vmem:[%s1 + $0x680] sm:$0xff]
  %v222 = vld [vmem:[%s1 + $0x688] sm:$0xff]
  %v223 = vld [vmem:[%s1 + $0x690] sm:$0xff]
  %v224 = vld [vmem:[%s1 + $0x698] sm:$0xff]
  %v225 = vld [vmem:[%s1 + $0x6a0] sm:$0xff]
  %v226 = vld [vmem:[%s1 + $0x6a8] sm:$0xff]
  %v227 = vld [vmem:[%s1 + $0x6b0] sm:$0xff]
  %v228 = vld [vmem:[%s1 + $0x6b8] sm:$0xff]
  %v229 = vld [vmem:[%s1 + $0x6c0] sm:$0xff]
  %v230 = vld [vmem:[%s1 + $0x6c8] sm:$0xff]
  %v231 = vld [vmem:[%s1 + $0x6d0] sm:$0xff]
  %v232 = vld [vmem:[%s1 + $0x6d8] sm:$0xff]
  %v233 = vld [vmem:[%s1 + $0x6e0] sm:$0xff]
  %v234 = vld [vmem:[%s1 + $0x6e8] sm:$0xff]
  %v235 = vld [vmem:[%s1 + $0x6f0] sm:$0xff]
  %v236 = vld [vmem:[%s1 + $0x6f8] sm:$0xff]
  %v237 = vld [vmem:[%s1 + $0x700] sm:$0xff]
  %v238 = vld [vmem:[%s1 + $0x708] sm:$0xff]
  %v239 = vld [vmem:[%s1 + $0x710] sm:$0xff]
  %v240 = vld [vmem:[%s1 + $0x718] sm:$0xff]
  %v241 = vld [vmem:[%s1 + $0x720] sm:$0xff]
  %v242 = vld [vmem:[%s1 + $0x728] sm:$0xff]
  %v243 = vld [vmem:[%s1 + $0x730] sm:$0xff]
  %v244 = vld [vmem:[%s1 + $0x738] sm:$0xff]
  %v245 = vld [vmem:[%s1 + $0x740] sm:$0xff]
  %v246 = vld [vmem:[%s1 + $0x748] sm:$0xff]
  %v247 = vld [vmem:[%s1 + $0x750] sm:$0xff]
  %v248 = vld [vmem:[%s1 + $0x758] sm:$0xff]
  %v249 = vld [vmem:[%s1 + $0x760] sm:$0xff]
  %v250 = vld [vmem:[%s1 + $0x768] sm:$0xff]
  %v251 = vld [vmem:[%s1 + $0x770] sm:$0xff]
  %v252 = vld [vmem:[%s1 + $0x778] sm:$0xff]
  %v253 = vld [vmem:[%s1 + $0x780] sm:$0xff]
  %v254 = vld [vmem:[%s1 + $0x788] sm:$0xff]
  %v255 = vld [vmem:[%s1 + $0x790] sm:$0xff]
  %v256 = vld [vmem:[%s1 + $0x798] sm:$0xff]
  %v257 = vld [vmem:[%s1 + $0x7a0] sm:$0xff]
  %v258 = vld [vmem:[%s1 + $0x7a8] sm:$0xff]
  %v259 = vld [vmem:[%s1 + $0x7b0] sm:$0xff]
  %v260 = vld [vmem:[%s1 + $0x7b8] sm:$0xff]
  %v261 = vld [vmem:[%s1 + $0x7c0] sm:$0xff]
  %v262 = vld [vmem:[%s1 + $0x7c8] sm:$0xff]
  %v263 = vld [vmem:[%s1 + $0x7d0] sm:$0xff]
  %v264 = vld [vmem:[%s1 + $0x7d8] sm:$0xff]
  %v265 = vld [vmem:[%s1 + $0x7e0] sm:$0xff]
  %v266 = vld [vmem:[%s1 + $0x7e8] sm:$0xff]
  %v267 = vld [vmem:[%s1 + $0x7f0] sm:$0xff]
  %v268 = vld [vmem:[%s1 + $0x7f8] sm:$0xff]
  %v269 = vld [vmem:[%s1 + $0x800] sm:$0xff]
  %v270 = vld [vmem:[%s1 + $0x808] sm:$0xff]
  %v271 = vld [vmem:[%s1 + $0x810] sm:$0xff]
  %v272 = vld [vmem:[%s1 + $0x818] sm:$0xff]
  %v273 = vld [vmem:[%s1 + $0x820] sm:$0xff]
  %v274 = vld [vmem:[%s1 + $0x828] sm:$0xff]
  %v275 = vld [vmem:[%s1 + $0x830] sm:$0xff]
  %v276 = vld [vmem:[%s1 + $0x838] sm:$0xff]
  %v277 = vld [vmem:[%s1 + $0x840] sm:$0xff]
  %v278 = vld [vmem:[%s1 + $0x848] sm:$0xff]
  %v279 = vld [vmem:[%s1 + $0x850] sm:$0xff]
  %v280 = vld [vmem:[%s1 + $0x858] sm:$0xff]
  %v281 = vld [vmem:[%s1 + $0x860] sm:$0xff]
  %v282 = vld [vmem:[%s1 + $0x868] sm:$0xff]
  %v283 = vld [vmem:[%s1 + $0x870] sm:$0xff]
  %v284 = vld [vmem:[%s1 + $0x878] sm:$0xff]
  %v285 = vld [vmem:[%s1 + $0x880] sm:$0xff]
  %v286 = vld [vmem:[%s1 + $0x888] sm:$0xff]
  %v287 = vld [vmem:[%s1 + $0x890] sm:$0xff]
  %v288 = vld [vmem:[%s1 + $0x898] sm:$0xff]
  %v289 = vld [vmem:[%s1 + $0x8a0] sm:$0xff]
  %v290 = vld [vmem:[%s1 + $0x8a8] sm:$0xff]
  %v291 = vld [vmem:[%s1 + $0x8b0] sm:$0xff]
  %v292 = vld [vmem:[%s1 + $0x8b8] sm:$0xff]
  %v293 = vld [vmem:[%s1 + $0x8c0] sm:$0xff]
  %v294 = vld [vmem:[%s1 + $0x8c8] sm:$0xff]
  %v295 = vld [vmem:[%s1 + $0x8d0] sm:$0xff]
  %v296 = vld [vmem:[%s1 + $0x8d8] sm:$0xff]
  %v297 = vld [vmem:[%s1 + $0x8e0] sm:$0xff]
  %v298 = vld [vmem:[%s1 + $0x8e8] sm:$0xff]
  %v299 = vld [vmem:[%s1 + $0x8f0] sm:$0xff]
  %v300 = vld [vmem:[%s1 + $0x8f8] sm:$0xff]
  %v301 = vld [vmem:[%s1 + $0x900] sm:$0xff]
  %v302 = vld [vmem:[%s1 + $0x908] sm:$0xff]
  %v303 = vld [vmem:[%s1 + $0x910] sm:$0xff]
  %v304 = vld [vmem:[%s1 + $0x918] sm:$0xff]
  %v305 = vld [vmem:[%s1 + $0x920] sm:$0xff]
  %v306 = vld [vmem:[%s1 + $0x928] sm:$0xff]
  %v307 = vld [vmem:[%s1 + $0x930] sm:$0xff]
  %v308 = vld [vmem:[%s1 + $0x938] sm:$0xff]
  %v309 = vld [vmem:[%s1 + $0x940] sm:$0xff]
  %v310 = vld [vmem:[%s1 + $0x948] sm:$0xff]
  %v311 = vld [vmem:[%s1 + $0x950] sm:$0xff]
  %v312 = vld [vmem:[%s1 + $0x958] sm:$0xff]
  %v313 = vld [vmem:[%s1 + $0x960] sm:$0xff]
  %v314 = vld [vmem:[%s1 + $0x968] sm:$0xff]
  %v315 = vld [vmem:[%s1 + $0x970] sm:$0xff]
  %v316 = vld [vmem:[%s1 + $0x978] sm:$0xff]
  %v317 = vld [vmem:[%s1 + $0x980] sm:$0xff]
  %v318 = vld [vmem:[%s1 + $0x988] sm:$0xff]
  %v319 = vld [vmem:[%s1 + $0x990] sm:$0xff]
  %v320 = vld [vmem:[%s1 + $0x998] sm:$0xff]
  %v321 = vld [vmem:[%s1 + $0x9a0] sm:$0xff]
  %v322 = vld [vmem:[%s1 + $0x9a8] sm:$0xff]
  %v323 = vld [vmem:[%s1 + $0x9b0] sm:$0xff]
  %v324 = vld [vmem:[%s1 + $0x9b8] sm:$0xff]
  %v325 = vld [vmem:[%s1 + $0x9c0] sm:$0xff]
  %v326 = vld [vmem:[%s1 + $0x9c8] sm:$0xff]
  %v327 = vld [vmem:[%s1 + $0x9d0] sm:$0xff]
  %v328 = vld [vmem:[%s1 + $0x9d8] sm:$0xff]
  %v329 = vld [vmem:[%s1 + $0x9e0] sm:$0xff]
  %v330 = vld [vmem:[%s1 + $0x9e8] sm:$0xff]
  %v331 = vld [vmem:[%s1 + $0x9f0] sm:$0xff]
  %v332 = vld [vmem:[%s1 + $0x9f8] sm:$0xff]
  %v333 = vld [vmem:[%s1 + $0xa00] sm:$0xff]
  %v334 = vld [vmem:[%s1 + $0xa08] sm:$0xff]
  %v335 = vld [vmem:[%s1 + $0xa10] sm:$0xff]
  %v336 = vld [vmem:[%s1 + $0xa18] sm:$0xff]
  %v337 = vld [vmem:[%s1 + $0xa20] sm:$0xff]
  %v338 = vld [vmem:[%s1 + $0xa28] sm:$0xff]
  %v339 = vld [vmem:[%s1 + $0xa30] sm:$0xff]
  %v340 = vld [vmem:[%s1 + $0xa38] sm:$0xff]
  %v341 = vld [vmem:[%s1 + $0xa40] sm:$0xff]
  %v342 = vld [vmem:[%s1 + $0xa48] sm:$0xff]
  %v343 = vld [vmem:[%s1 + $0xa50] sm:$0xff]
  %v344 = vld [vmem:[%s1 + $0xa58] sm:$0xff]
  %v345 = vld [vmem:[%s1 + $0xa60] sm:$0xff]
  %v346 = vld [vmem:[%s1 + $0xa68] sm:$0xff]
  %v347 = vld [vmem:[%s1 + $0xa70] sm:$0xff]
  %v348 = vld [vmem:[%s1 + $0xa78] sm:$0xff]
  %v349 = vld [vmem:[%s1 + $0xa80] sm:$0xff]
  %v350 = vld [vmem:[%s1 + $0xa88] sm:$0xff]
  %v351 = vld [vmem:[%s1 + $0xa90] sm:$0xff]
  %v352 = vld [vmem:[%s1 + $0xa98] sm:$0xff]
  %vm353 = vcmask 654336
  %v355 = vsel %vm353, %v11, 0
  %v358 = vsel %vm353, %v12, 0
  %360 = vmatprep.subr.mxu0 0.0
  %361 = vmatpush1.msra.mxu0 0.0
  %362 = vmatprep.subr.mxu0 0.0
  %363 = vmatpush1.msra.mxu0 0.0
  %364 = vmatprep.subr.mxu0 0.0
  %365 = vmatpush1.msra.mxu0 0.0
  %366 = vmatprep.subr.mxu0 0.0
  %367 = vmatpush1.msra.mxu0 0.0
  %368 = vmatprep.subr.mxu0 0.0
  %369 = vmatpush1.msra.mxu0 0.0
  %370 = vmatprep.subr.mxu0 0.0
  %371 = vmatpush1.msra.mxu0 0.0
  %372 = vmatprep.subr.mxu0 %v320
  %373 = vmatpush1.msra.mxu0 %v319
  %374 = vmatprep.subr.mxu0 %v286
  %375 = vmatpush1.msra.mxu0 %v285
  %376 = vmatprep.subr.mxu0 %v252
  %377 = vmatpush1.msra.mxu0 %v251
  %378 = vmatprep.subr.mxu0 %v218
  %379 = vmatpush1.msra.mxu0 %v217
  %380 = vmatprep.subr.mxu0 %v184
  %381 = vmatpush1.msra.mxu0 %v183
  %382 = vmatprep.subr.mxu0 %v150
  %383 = vmatpush1.msra.mxu0 %v149
  %384 = vmatprep.subr.mxu0 %v116
  %385 = vmatpush1.msra.mxu0 %v115
  %386 = vmatprep.subr.mxu0 %v82
  %387 = vmatpush1.msra.mxu0 %v81
  %388 = vmatprep.subr.mxu0 %v48
  %389 = vmatpush1.msra.mxu0 %v47
  %390 = vmatprep.subr.mxu0 %v14
  %391 = vmatpush1.msra.mxu0 %v13
  %392 = vmatprep.subr.mxu0 0.0
  %393 = vmatpush2.msra.mxu0 0.0
  %394 = vmatprep.subr.mxu0 0.0
  %395 = vmatpush2.msra.mxu0 0.0
  %396 = vmatprep.subr.mxu0 0.0
  %397 = vmatpush2.msra.mxu0 0.0
  %398 = vmatprep.subr.mxu0 0.0
  %399 = vmatpush2.msra.mxu0 0.0
  %400 = vmatprep.subr.mxu0 0.0
  %401 = vmatpush2.msra.mxu0 0.0
  %402 = vmatprep.subr.mxu0 0.0
  %403 = vmatpush2.msra.mxu0 0.0
  %404 = vmatprep.subr.mxu0 0.0
  %405 = vmatpush2.msra.mxu0 0.0
  %406 = vmatprep.subr.mxu0 0.0
  %407 = vmatpush2.msra.mxu0 0.0
  %408 = vmatprep.subr.mxu0 0.0
  %409 = vmatpush2.msra.mxu0 0.0
  %410 = vmatprep.subr.mxu0 0.0
  %411 = vmatpush2.msra.mxu0 0.0
  %412 = vmatprep.subr.mxu0 0.0
  %413 = vmatpush2.msra.mxu0 0.0
  %414 = vmatprep.subr.mxu0 0.0
  %415 = vmatpush2.msra.mxu0 0.0
  %416 = vmatprep.subr.mxu0 0.0
  %417 = vmatpush2.msra.mxu0 0.0
  %418 = vmatprep.subr.mxu0 0.0
  %419 = vmatpush2.msra.mxu0 0.0
  %420 = vmatprep.subr.mxu0 0.0
  %421 = vmatpush2.msra.mxu0 0.0
  %422 = vmatprep.subr.mxu0 0.0
  %423 = vmatpush2.msra.mxu0 0.0
  %424 = vmatprep.mubr.f32.mxu0 0.0
  %425 = vmatmul.mubr.f32.gmra.mxu0 %v355
  %v426 = vpop.f32.mrf.mxu0
  %v427 = vadd.f32 0.0, %v426
  %v428 = vpop.f32.mrf.mxu0
  %v429 = vadd.f32 0.0, %v428
  %430 = vmatprep.mubr.f32.mxu0 0.0
  %431 = vmatmul.mubr.f32.gmra.mxu0 %v358
  %v432 = vpop.f32.mrf.mxu0
  %v433 = vadd.f32 0.0, %v432
  %v434 = vpop.f32.mrf.mxu0
  %v435 = vadd.f32 0.0, %v434
  %436 = vdwg.mxu0
  %437 = vmatprep.subr.mxu0 0.0
  %438 = vmatpush1.msra.mxu0 0.0
  %439 = vmatprep.subr.mxu0 0.0
  %440 = vmatpush1.msra.mxu0 0.0
  %441 = vmatprep.subr.mxu0 0.0
  %442 = vmatpush1.msra.mxu0 0.0
  %443 = vmatprep.subr.mxu0 0.0
  %444 = vmatpush1.msra.mxu0 0.0
  %445 = vmatprep.subr.mxu0 0.0
  %446 = vmatpush1.msra.mxu0 0.0
  %447 = vmatprep.subr.mxu0 0.0
  %448 = vmatpush1.msra.mxu0 0.0
  %449 = vmatprep.subr.mxu0 %v322
  %450 = vmatpush1.msra.mxu0 %v321
  %451 = vmatprep.subr.mxu0 %v288
  %452 = vmatpush1.msra.mxu0 %v287
  %453 = vmatprep.subr.mxu0 %v254
  %454 = vmatpush1.msra.mxu0 %v253
  %455 = vmatprep.subr.mxu0 %v220
  %456 = vmatpush1.msra.mxu0 %v219
  %457 = vmatprep.subr.mxu0 %v186
  %458 = vmatpush1.msra.mxu0 %v185
  %459 = vmatprep.subr.mxu0 %v152
  %460 = vmatpush1.msra.mxu0 %v151
  %461 = vmatprep.subr.mxu0 %v118
  %462 = vmatpush1.msra.mxu0 %v117
  %463 = vmatprep.subr.mxu0 %v84
  %464 = vmatpush1.msra.mxu0 %v83
  %465 = vmatprep.subr.mxu0 %v50
  %466 = vmatpush1.msra.mxu0 %v49
  %467 = vmatprep.subr.mxu0 %v16
  %468 = vmatpush1.msra.mxu0 %v15
  %469 = vmatprep.subr.mxu0 0.0
  %470 = vmatpush2.msra.mxu0 0.0
  %471 = vmatprep.subr.mxu0 0.0
  %472 = vmatpush2.msra.mxu0 0.0
  %473 = vmatprep.subr.mxu0 0.0
  %474 = vmatpush2.msra.mxu0 0.0
  %475 = vmatprep.subr.mxu0 0.0
  %476 = vmatpush2.msra.mxu0 0.0
  %477 = vmatprep.subr.mxu0 0.0
  %478 = vmatpush2.msra.mxu0 0.0
  %479 = vmatprep.subr.mxu0 0.0
  %480 = vmatpush2.msra.mxu0 0.0
  %481 = vmatprep.subr.mxu0 0.0
  %482 = vmatpush2.msra.mxu0 0.0
  %483 = vmatprep.subr.mxu0 0.0
  %484 = vmatpush2.msra.mxu0 0.0
  %485 = vmatprep.subr.mxu0 0.0
  %486 = vmatpush2.msra.mxu0 0.0
  %487 = vmatprep.subr.mxu0 0.0
  %488 = vmatpush2.msra.mxu0 0.0
  %489 = vmatprep.subr.mxu0 0.0
  %490 = vmatpush2.msra.mxu0 0.0
  %491 = vmatprep.subr.mxu0 0.0
  %492 = vmatpush2.msra.mxu0 0.0
  %493 = vmatprep.subr.mxu0 0.0
  %494 = vmatpush2.msra.mxu0 0.0
  %495 = vmatprep.subr.mxu0 0.0
  %496 = vmatpush2.msra.mxu0 0.0
  %497 = vmatprep.subr.mxu0 0.0
  %498 = vmatpush2.msra.mxu0 0.0
  %499 = vmatprep.subr.mxu0 0.0
  %500 = vmatpush2.msra.mxu0 0.0
  %501 = vmatprep.mubr.f32.mxu0 0.0
  %502 = vmatmul.mubr.f32.gmra.mxu0 %v355
  %v503 = vpop.f32.mrf.mxu0
  %v504 = vadd.f32 0.0, %v503
  %v505 = vpop.f32.mrf.mxu0
  %v506 = vadd.f32 0.0, %v505
  %507 = vmatprep.mubr.f32.mxu0 0.0
  %508 = vmatmul.mubr.f32.gmra.mxu0 %v358
  %v509 = vpop.f32.mrf.mxu0
  %v510 = vadd.f32 0.0, %v509
  %v511 = vpop.f32.mrf.mxu0
  %v512 = vadd.f32 0.0, %v511
  %513 = vdwg.mxu0
  %514 = vmatprep.subr.mxu0 0.0
  %515 = vmatpush1.msra.mxu0 0.0
  %516 = vmatprep.subr.mxu0 0.0
  %517 = vmatpush1.msra.mxu0 0.0
  %518 = vmatprep.subr.mxu0 0.0
  %519 = vmatpush1.msra.mxu0 0.0
  %520 = vmatprep.subr.mxu0 0.0
  %521 = vmatpush1.msra.mxu0 0.0
  %522 = vmatprep.subr.mxu0 0.0
  %523 = vmatpush1.msra.mxu0 0.0
  %524 = vmatprep.subr.mxu0 0.0
  %525 = vmatpush1.msra.mxu0 0.0
  %526 = vmatprep.subr.mxu0 %v324
  %527 = vmatpush1.msra.mxu0 %v323
  %528 = vmatprep.subr.mxu0 %v290
  %529 = vmatpush1.msra.mxu0 %v289
  %530 = vmatprep.subr.mxu0 %v256
  %531 = vmatpush1.msra.mxu0 %v255
  %532 = vmatprep.subr.mxu0 %v222
  %533 = vmatpush1.msra.mxu0 %v221
  %534 = vmatprep.subr.mxu0 %v188
  %535 = vmatpush1.msra.mxu0 %v187
  %536 = vmatprep.subr.mxu0 %v154
  %537 = vmatpush1.msra.mxu0 %v153
  %538 = vmatprep.subr.mxu0 %v120
  %539 = vmatpush1.msra.mxu0 %v119
  %540 = vmatprep.subr.mxu0 %v86
  %541 = vmatpush1.msra.mxu0 %v85
  %542 = vmatprep.subr.mxu0 %v52
  %543 = vmatpush1.msra.mxu0 %v51
  %544 = vmatprep.subr.mxu0 %v18
  %545 = vmatpush1.msra.mxu0 %v17
  %546 = vmatprep.subr.mxu0 0.0
  %547 = vmatpush2.msra.mxu0 0.0
  %548 = vmatprep.subr.mxu0 0.0
  %549 = vmatpush2.msra.mxu0 0.0
  %550 = vmatprep.subr.mxu0 0.0
  %551 = vmatpush2.msra.mxu0 0.0
  %552 = vmatprep.subr.mxu0 0.0
  %553 = vmatpush2.msra.mxu0 0.0
  %554 = vmatprep.subr.mxu0 0.0
  %555 = vmatpush2.msra.mxu0 0.0
  %556 = vmatprep.subr.mxu0 0.0
  %557 = vmatpush2.msra.mxu0 0.0
  %558 = vmatprep.subr.mxu0 0.0
  %559 = vmatpush2.msra.mxu0 0.0
  %560 = vmatprep.subr.mxu0 0.0
  %561 = vmatpush2.msra.mxu0 0.0
  %562 = vmatprep.subr.mxu0 0.0
  %563 = vmatpush2.msra.mxu0 0.0
  %564 = vmatprep.subr.mxu0 0.0
  %565 = vmatpush2.msra.mxu0 0.0
  %566 = vmatprep.subr.mxu0 0.0
  %567 = vmatpush2.msra.mxu0 0.0
  %568 = vmatprep.subr.mxu0 0.0
  %569 = vmatpush2.msra.mxu0 0.0
  %570 = vmatprep.subr.mxu0 0.0
  %571 = vmatpush2.msra.mxu0 0.0
  %572 = vmatprep.subr.mxu0 0.0
  %573 = vmatpush2.msra.mxu0 0.0
  %574 = vmatprep.subr.mxu0 0.0
  %575 = vmatpush2.msra.mxu0 0.0
  %576 = vmatprep.subr.mxu0 0.0
  %577 = vmatpush2.msra.mxu0 0.0
  %578 = vmatprep.mubr.f32.mxu0 0.0
  %579 = vmatmul.mubr.f32.gmra.mxu0 %v355
  %v580 = vpop.f32.mrf.mxu0
  %v581 = vadd.f32 0.0, %v580
  %v582 = vpop.f32.mrf.mxu0
  %v583 = vadd.f32 0.0, %v582
  %584 = vmatprep.mubr.f32.mxu0 0.0
  %585 = vmatmul.mubr.f32.gmra.mxu0 %v358
  %v586 = vpop.f32.mrf.mxu0
  %v587 = vadd.f32 0.0, %v586
  %v588 = vpop.f32.mrf.mxu0
  %v589 = vadd.f32 0.0, %v588
  %590 = vdwg.mxu0
  %591 = vmatprep.subr.mxu0 0.0
  %592 = vmatpush1.msra.mxu0 0.0
  %593 = vmatprep.subr.mxu0 0.0
  %594 = vmatpush1.msra.mxu0 0.0
  %595 = vmatprep.subr.mxu0 0.0
  %596 = vmatpush1.msra.mxu0 0.0
  %597 = vmatprep.subr.mxu0 0.0
  %598 = vmatpush1.msra.mxu0 0.0
  %599 = vmatprep.subr.mxu0 0.0
  %600 = vmatpush1.msra.mxu0 0.0
  %601 = vmatprep.subr.mxu0 0.0
  %602 = vmatpush1.msra.mxu0 0.0
  %603 = vmatprep.subr.mxu0 %v326
  %604 = vmatpush1.msra.mxu0 %v325
  %605 = vmatprep.subr.mxu0 %v292
  %606 = vmatpush1.msra.mxu0 %v291
  %607 = vmatprep.subr.mxu0 %v258
  %608 = vmatpush1.msra.mxu0 %v257
  %609 = vmatprep.subr.mxu0 %v224
  %610 = vmatpush1.msra.mxu0 %v223
  %611 = vmatprep.subr.mxu0 %v190
  %612 = vmatpush1.msra.mxu0 %v189
  %613 = vmatprep.subr.mxu0 %v156
  %614 = vmatpush1.msra.mxu0 %v155
  %615 = vmatprep.subr.mxu0 %v122
  %616 = vmatpush1.msra.mxu0 %v121
  %617 = vmatprep.subr.mxu0 %v88
  %618 = vmatpush1.msra.mxu0 %v87
  %619 = vmatprep.subr.mxu0 %v54
  %620 = vmatpush1.msra.mxu0 %v53
  %621 = vmatprep.subr.mxu0 %v20
  %622 = vmatpush1.msra.mxu0 %v19
  %623 = vmatprep.subr.mxu0 0.0
  %624 = vmatpush2.msra.mxu0 0.0
  %625 = vmatprep.subr.mxu0 0.0
  %626 = vmatpush2.msra.mxu0 0.0
  %627 = vmatprep.subr.mxu0 0.0
  %628 = vmatpush2.msra.mxu0 0.0
  %629 = vmatprep.subr.mxu0 0.0
  %630 = vmatpush2.msra.mxu0 0.0
  %631 = vmatprep.subr.mxu0 0.0
  %632 = vmatpush2.msra.mxu0 0.0
  %633 = vmatprep.subr.mxu0 0.0
  %634 = vmatpush2.msra.mxu0 0.0
  %635 = vmatprep.subr.mxu0 0.0
  %636 = vmatpush2.msra.mxu0 0.0
  %637 = vmatprep.subr.mxu0 0.0
  %638 = vmatpush2.msra.mxu0 0.0
  %639 = vmatprep.subr.mxu0 0.0
  %640 = vmatpush2.msra.mxu0 0.0
  %641 = vmatprep.subr.mxu0 0.0
  %642 = vmatpush2.msra.mxu0 0.0
  %643 = vmatprep.subr.mxu0 0.0
  %644 = vmatpush2.msra.mxu0 0.0
  %645 = vmatprep.subr.mxu0 0.0
  %646 = vmatpush2.msra.mxu0 0.0
  %647 = vmatprep.subr.mxu0 0.0
  %648 = vmatpush2.msra.mxu0 0.0
  %649 = vmatprep.subr.mxu0 0.0
  %650 = vmatpush2.msra.mxu0 0.0
  %651 = vmatprep.subr.mxu0 0.0
  %652 = vmatpush2.msra.mxu0 0.0
  %653 = vmatprep.subr.mxu0 0.0
  %654 = vmatpush2.msra.mxu0 0.0
  %655 = vmatprep.mubr.f32.mxu0 0.0
  %656 = vmatmul.mubr.f32.gmra.mxu0 %v355
  %v657 = vpop.f32.mrf.mxu0
  %v658 = vadd.f32 0.0, %v657
  %v659 = vpop.f32.mrf.mxu0
  %v660 = vadd.f32 0.0, %v659
  %661 = vmatprep.mubr.f32.mxu0 0.0
  %662 = vmatmul.mubr.f32.gmra.mxu0 %v358
  %v663 = vpop.f32.mrf.mxu0
  %v664 = vadd.f32 0.0, %v663
  %v665 = vpop.f32.mrf.mxu0
  %v666 = vadd.f32 0.0, %v665
  %667 = vdwg.mxu0
  %668 = vmatprep.subr.mxu0 0.0
  %669 = vmatpush1.msra.mxu0 0.0
  %670 = vmatprep.subr.mxu0 0.0
  %671 = vmatpush1.msra.mxu0 0.0
  %672 = vmatprep.subr.mxu0 0.0
  %673 = vmatpush1.msra.mxu0 0.0
  %674 = vmatprep.subr.mxu0 0.0
  %675 = vmatpush1.msra.mxu0 0.0
  %676 = vmatprep.subr.mxu0 0.0
  %677 = vmatpush1.msra.mxu0 0.0
  %678 = vmatprep.subr.mxu0 0.0
  %679 = vmatpush1.msra.mxu0 0.0
  %680 = vmatprep.subr.mxu0 %v328
  %681 = vmatpush1.msra.mxu0 %v327
  %682 = vmatprep.subr.mxu0 %v294
  %683 = vmatpush1.msra.mxu0 %v293
  %684 = vmatprep.subr.mxu0 %v260
  %685 = vmatpush1.msra.mxu0 %v259
  %686 = vmatprep.subr.mxu0 %v226
  %687 = vmatpush1.msra.mxu0 %v225
  %688 = vmatprep.subr.mxu0 %v192
  %689 = vmatpush1.msra.mxu0 %v191
  %690 = vmatprep.subr.mxu0 %v158
  %691 = vmatpush1.msra.mxu0 %v157
  %692 = vmatprep.subr.mxu0 %v124
  %693 = vmatpush1.msra.mxu0 %v123
  %694 = vmatprep.subr.mxu0 %v90
  %695 = vmatpush1.msra.mxu0 %v89
  %696 = vmatprep.subr.mxu0 %v56
  %697 = vmatpush1.msra.mxu0 %v55
  %698 = vmatprep.subr.mxu0 %v22
  %699 = vmatpush1.msra.mxu0 %v21
  %700 = vmatprep.subr.mxu0 0.0
  %701 = vmatpush2.msra.mxu0 0.0
  %702 = vmatprep.subr.mxu0 0.0
  %703 = vmatpush2.msra.mxu0 0.0
  %704 = vmatprep.subr.mxu0 0.0
  %705 = vmatpush2.msra.mxu0 0.0
  %706 = vmatprep.subr.mxu0 0.0
  %707 = vmatpush2.msra.mxu0 0.0
  %708 = vmatprep.subr.mxu0 0.0
  %709 = vmatpush2.msra.mxu0 0.0
  %710 = vmatprep.subr.mxu0 0.0
  %711 = vmatpush2.msra.mxu0 0.0
  %712 = vmatprep.subr.mxu0 0.0
  %713 = vmatpush2.msra.mxu0 0.0
  %714 = vmatprep.subr.mxu0 0.0
  %715 = vmatpush2.msra.mxu0 0.0
  %716 = vmatprep.subr.mxu0 0.0
  %717 = vmatpush2.msra.mxu0 0.0
  %718 = vmatprep.subr.mxu0 0.0
  %719 = vmatpush2.msra.mxu0 0.0
  %720 = vmatprep.subr.mxu0 0.0
  %721 = vmatpush2.msra.mxu0 0.0
  %722 = vmatprep.subr.mxu0 0.0
  %723 = vmatpush2.msra.mxu0 0.0
  %724 = vmatprep.subr.mxu0 0.0
  %725 = vmatpush2.msra.mxu0 0.0
  %726 = vmatprep.subr.mxu0 0.0
  %727 = vmatpush2.msra.mxu0 0.0
  %728 = vmatprep.subr.mxu0 0.0
  %729 = vmatpush2.msra.mxu0 0.0
  %730 = vmatprep.subr.mxu0 0.0
  %731 = vmatpush2.msra.mxu0 0.0
  %732 = vmatprep.mubr.f32.mxu0 0.0
  %733 = vmatmul.mubr.f32.gmra.mxu0 %v355
  %v734 = vpop.f32.mrf.mxu0
  %v735 = vadd.f32 0.0, %v734
  %v736 = vpop.f32.mrf.mxu0
  %v737 = vadd.f32 0.0, %v736
  %738 = vmatprep.mubr.f32.mxu0 0.0
  %739 = vmatmul.mubr.f32.gmra.mxu0 %v358
  %v740 = vpop.f32.mrf.mxu0
  %v741 = vadd.f32 0.0, %v740
  %v742 = vpop.f32.mrf.mxu0
  %v743 = vadd.f32 0.0, %v742
  %744 = vdwg.mxu0
  %745 = vmatprep.subr.mxu0 0.0
  %746 = vmatpush1.msra.mxu0 0.0
  %747 = vmatprep.subr.mxu0 0.0
  %748 = vmatpush1.msra.mxu0 0.0
  %749 = vmatprep.subr.mxu0 0.0
  %750 = vmatpush1.msra.mxu0 0.0
  %751 = vmatprep.subr.mxu0 0.0
  %752 = vmatpush1.msra.mxu0 0.0
  %753 = vmatprep.subr.mxu0 0.0
  %754 = vmatpush1.msra.mxu0 0.0
  %755 = vmatprep.subr.mxu0 0.0
  %756 = vmatpush1.msra.mxu0 0.0
  %757 = vmatprep.subr.mxu0 %v330
  %758 = vmatpush1.msra.mxu0 %v329
  %759 = vmatprep.subr.mxu0 %v296
  %760 = vmatpush1.msra.mxu0 %v295
  %761 = vmatprep.subr.mxu0 %v262
  %762 = vmatpush1.msra.mxu0 %v261
  %763 = vmatprep.subr.mxu0 %v228
  %764 = vmatpush1.msra.mxu0 %v227
  %765 = vmatprep.subr.mxu0 %v194
  %766 = vmatpush1.msra.mxu0 %v193
  %767 = vmatprep.subr.mxu0 %v160
  %768 = vmatpush1.msra.mxu0 %v159
  %769 = vmatprep.subr.mxu0 %v126
  %770 = vmatpush1.msra.mxu0 %v125
  %771 = vmatprep.subr.mxu0 %v92
  %772 = vmatpush1.msra.mxu0 %v91
  %773 = vmatprep.subr.mxu0 %v58
  %774 = vmatpush1.msra.mxu0 %v57
  %775 = vmatprep.subr.mxu0 %v24
  %776 = vmatpush1.msra.mxu0 %v23
  %777 = vmatprep.subr.mxu0 0.0
  %778 = vmatpush2.msra.mxu0 0.0
  %779 = vmatprep.subr.mxu0 0.0
  %780 = vmatpush2.msra.mxu0 0.0
  %781 = vmatprep.subr.mxu0 0.0
  %782 = vmatpush2.msra.mxu0 0.0
  %783 = vmatprep.subr.mxu0 0.0
  %784 = vmatpush2.msra.mxu0 0.0
  %785 = vmatprep.subr.mxu0 0.0
  %786 = vmatpush2.msra.mxu0 0.0
  %787 = vmatprep.subr.mxu0 0.0
  %788 = vmatpush2.msra.mxu0 0.0
  %789 = vmatprep.subr.mxu0 0.0
  %790 = vmatpush2.msra.mxu0 0.0
  %791 = vmatprep.subr.mxu0 0.0
  %792 = vmatpush2.msra.mxu0 0.0
  %793 = vmatprep.subr.mxu0 0.0
  %794 = vmatpush2.msra.mxu0 0.0
  %795 = vmatprep.subr.mxu0 0.0
  %796 = vmatpush2.msra.mxu0 0.0
  %797 = vmatprep.subr.mxu0 0.0
  %798 = vmatpush2.msra.mxu0 0.0
  %799 = vmatprep.subr.mxu0 0.0
  %800 = vmatpush2.msra.mxu0 0.0
  %801 = vmatprep.subr.mxu0 0.0
  %802 = vmatpush2.msra.mxu0 0.0
  %803 = vmatprep.subr.mxu0 0.0
  %804 = vmatpush2.msra.mxu0 0.0
  %805 = vmatprep.subr.mxu0 0.0
  %806 = vmatpush2.msra.mxu0 0.0
  %807 = vmatprep.subr.mxu0 0.0
  %808 = vmatpush2.msra.mxu0 0.0
  %809 = vmatprep.mubr.f32.mxu0 0.0
  %810 = vmatmul.mubr.f32.gmra.mxu0 %v355
  %v811 = vpop.f32.mrf.mxu0
  %v812 = vadd.f32 0.0, %v811
  %v813 = vpop.f32.mrf.mxu0
  %v814 = vadd.f32 0.0, %v813
  %815 = vmatprep.mubr.f32.mxu0 0.0
  %816 = vmatmul.mubr.f32.gmra.mxu0 %v358
  %v817 = vpop.f32.mrf.mxu0
  %v818 = vadd.f32 0.0, %v817
  %v819 = vpop.f32.mrf.mxu0
  %v820 = vadd.f32 0.0, %v819
  %821 = vdwg.mxu0
  %822 = vmatprep.subr.mxu0 0.0
  %823 = vmatpush1.msra.mxu0 0.0
  %824 = vmatprep.subr.mxu0 0.0
  %825 = vmatpush1.msra.mxu0 0.0
  %826 = vmatprep.subr.mxu0 0.0
  %827 = vmatpush1.msra.mxu0 0.0
  %828 = vmatprep.subr.mxu0 0.0
  %829 = vmatpush1.msra.mxu0 0.0
  %830 = vmatprep.subr.mxu0 0.0
  %831 = vmatpush1.msra.mxu0 0.0
  %832 = vmatprep.subr.mxu0 0.0
  %833 = vmatpush1.msra.mxu0 0.0
  %834 = vmatprep.subr.mxu0 %v332
  %835 = vmatpush1.msra.mxu0 %v331
  %836 = vmatprep.subr.mxu0 %v298
  %837 = vmatpush1.msra.mxu0 %v297
  %838 = vmatprep.subr.mxu0 %v264
  %839 = vmatpush1.msra.mxu0 %v263
  %840 = vmatprep.subr.mxu0 %v230
  %841 = vmatpush1.msra.mxu0 %v229
  %842 = vmatprep.subr.mxu0 %v196
  %843 = vmatpush1.msra.mxu0 %v195
  %844 = vmatprep.subr.mxu0 %v162
  %845 = vmatpush1.msra.mxu0 %v161
  %846 = vmatprep.subr.mxu0 %v128
  %847 = vmatpush1.msra.mxu0 %v127
  %848 = vmatprep.subr.mxu0 %v94
  %849 = vmatpush1.msra.mxu0 %v93
  %850 = vmatprep.subr.mxu0 %v60
  %851 = vmatpush1.msra.mxu0 %v59
  %852 = vmatprep.subr.mxu0 %v26
  %853 = vmatpush1.msra.mxu0 %v25
  %854 = vmatprep.subr.mxu0 0.0
  %855 = vmatpush2.msra.mxu0 0.0
  %856 = vmatprep.subr.mxu0 0.0
  %857 = vmatpush2.msra.mxu0 0.0
  %858 = vmatprep.subr.mxu0 0.0
  %859 = vmatpush2.msra.mxu0 0.0
  %860 = vmatprep.subr.mxu0 0.0
  %861 = vmatpush2.msra.mxu0 0.0
  %862 = vmatprep.subr.mxu0 0.0
  %863 = vmatpush2.msra.mxu0 0.0
  %864 = vmatprep.subr.mxu0 0.0
  %865 = vmatpush2.msra.mxu0 0.0
  %866 = vmatprep.subr.mxu0 0.0
  %867 = vmatpush2.msra.mxu0 0.0
  %868 = vmatprep.subr.mxu0 0.0
  %869 = vmatpush2.msra.mxu0 0.0
  %870 = vmatprep.subr.mxu0 0.0
  %871 = vmatpush2.msra.mxu0 0.0
  %872 = vmatprep.subr.mxu0 0.0
  %873 = vmatpush2.msra.mxu0 0.0
  %874 = vmatprep.subr.mxu0 0.0
  %875 = vmatpush2.msra.mxu0 0.0
  %876 = vmatprep.subr.mxu0 0.0
  %877 = vmatpush2.msra.mxu0 0.0
  %878 = vmatprep.subr.mxu0 0.0
  %879 = vmatpush2.msra.mxu0 0.0
  %880 = vmatprep.subr.mxu0 0.0
  %881 = vmatpush2.msra.mxu0 0.0
  %882 = vmatprep.subr.mxu0 0.0
  %883 = vmatpush2.msra.mxu0 0.0
  %884 = vmatprep.subr.mxu0 0.0
  %885 = vmatpush2.msra.mxu0 0.0
  %886 = vmatprep.mubr.f32.mxu0 0.0
  %887 = vmatmul.mubr.f32.gmra.mxu0 %v355
  %v888 = vpop.f32.mrf.mxu0
  %v889 = vadd.f32 0.0, %v888
  %v890 = vpop.f32.mrf.mxu0
  %v891 = vadd.f32 0.0, %v890
  %892 = vmatprep.mubr.f32.mxu0 0.0
  %893 = vmatmul.mubr.f32.gmra.mxu0 %v358
  %v894 = vpop.f32.mrf.mxu0
  %v895 = vadd.f32 0.0, %v894
  %v896 = vpop.f32.mrf.mxu0
  %v897 = vadd.f32 0.0, %v896
  %898 = vdwg.mxu0
  %899 = vmatprep.subr.mxu0 0.0
  %900 = vmatpush1.msra.mxu0 0.0
  %901 = vmatprep.subr.mxu0 0.0
  %902 = vmatpush1.msra.mxu0 0.0
  %903 = vmatprep.subr.mxu0 0.0
  %904 = vmatpush1.msra.mxu0 0.0
  %905 = vmatprep.subr.mxu0 0.0
  %906 = vmatpush1.msra.mxu0 0.0
  %907 = vmatprep.subr.mxu0 0.0
  %908 = vmatpush1.msra.mxu0 0.0
  %909 = vmatprep.subr.mxu0 0.0
  %910 = vmatpush1.msra.mxu0 0.0
  %911 = vmatprep.subr.mxu0 %v334
  %912 = vmatpush1.msra.mxu0 %v333
  %913 = vmatprep.subr.mxu0 %v300
  %914 = vmatpush1.msra.mxu0 %v299
  %915 = vmatprep.subr.mxu0 %v266
  %916 = vmatpush1.msra.mxu0 %v265
  %917 = vmatprep.subr.mxu0 %v232
  %918 = vmatpush1.msra.mxu0 %v231
  %919 = vmatprep.subr.mxu0 %v198
  %920 = vmatpush1.msra.mxu0 %v197
  %921 = vmatprep.subr.mxu0 %v164
  %922 = vmatpush1.msra.mxu0 %v163
  %923 = vmatprep.subr.mxu0 %v130
  %924 = vmatpush1.msra.mxu0 %v129
  %925 = vmatprep.subr.mxu0 %v96
  %926 = vmatpush1.msra.mxu0 %v95
  %927 = vmatprep.subr.mxu0 %v62
  %928 = vmatpush1.msra.mxu0 %v61
  %929 = vmatprep.subr.mxu0 %v28
  %930 = vmatpush1.msra.mxu0 %v27
  %931 = vmatprep.subr.mxu0 0.0
  %932 = vmatpush2.msra.mxu0 0.0
  %933 = vmatprep.subr.mxu0 0.0
  %934 = vmatpush2.msra.mxu0 0.0
  %935 = vmatprep.subr.mxu0 0.0
  %936 = vmatpush2.msra.mxu0 0.0
  %937 = vmatprep.subr.mxu0 0.0
  %938 = vmatpush2.msra.mxu0 0.0
  %939 = vmatprep.subr.mxu0 0.0
  %940 = vmatpush2.msra.mxu0 0.0
  %941 = vmatprep.subr.mxu0 0.0
  %942 = vmatpush2.msra.mxu0 0.0
  %943 = vmatprep.subr.mxu0 0.0
  %944 = vmatpush2.msra.mxu0 0.0
  %945 = vmatprep.subr.mxu0 0.0
  %946 = vmatpush2.msra.mxu0 0.0
  %947 = vmatprep.subr.mxu0 0.0
  %948 = vmatpush2.msra.mxu0 0.0
  %949 = vmatprep.subr.mxu0 0.0
  %950 = vmatpush2.msra.mxu0 0.0
  %951 = vmatprep.subr.mxu0 0.0
  %952 = vmatpush2.msra.mxu0 0.0
  %953 = vmatprep.subr.mxu0 0.0
  %954 = vmatpush2.msra.mxu0 0.0
  %955 = vmatprep.subr.mxu0 0.0
  %956 = vmatpush2.msra.mxu0 0.0
  %957 = vmatprep.subr.mxu0 0.0
  %958 = vmatpush2.msra.mxu0 0.0
  %959 = vmatprep.subr.mxu0 0.0
  %960 = vmatpush2.msra.mxu0 0.0
  %961 = vmatprep.subr.mxu0 0.0
  %962 = vmatpush2.msra.mxu0 0.0
  %963 = vmatprep.mubr.f32.mxu0 0.0
  %964 = vmatmul.mubr.f32.gmra.mxu0 %v355
  %v965 = vpop.f32.mrf.mxu0
  %v966 = vadd.f32 0.0, %v965
  %v967 = vpop.f32.mrf.mxu0
  %v968 = vadd.f32 0.0, %v967
  %969 = vmatprep.mubr.f32.mxu0 0.0
  %970 = vmatmul.mubr.f32.gmra.mxu0 %v358
  %v971 = vpop.f32.mrf.mxu0
  %v972 = vadd.f32 0.0, %v971
  %v973 = vpop.f32.mrf.mxu0
  %v974 = vadd.f32 0.0, %v973
  %975 = vdwg.mxu0
  %976 = vmatprep.subr.mxu0 0.0
  %977 = vmatpush1.msra.mxu0 0.0
  %978 = vmatprep.subr.mxu0 0.0
  %979 = vmatpush1.msra.mxu0 0.0
  %980 = vmatprep.subr.mxu0 0.0
  %981 = vmatpush1.msra.mxu0 0.0
  %982 = vmatprep.subr.mxu0 0.0
  %983 = vmatpush1.msra.mxu0 0.0
  %984 = vmatprep.subr.mxu0 0.0
  %985 = vmatpush1.msra.mxu0 0.0
  %986 = vmatprep.subr.mxu0 0.0
  %987 = vmatpush1.msra.mxu0 0.0
  %988 = vmatprep.subr.mxu0 %v336
  %989 = vmatpush1.msra.mxu0 %v335
  %990 = vmatprep.subr.mxu0 %v302
  %991 = vmatpush1.msra.mxu0 %v301
  %992 = vmatprep.subr.mxu0 %v268
  %993 = vmatpush1.msra.mxu0 %v267
  %994 = vmatprep.subr.mxu0 %v234
  %995 = vmatpush1.msra.mxu0 %v233
  %996 = vmatprep.subr.mxu0 %v200
  %997 = vmatpush1.msra.mxu0 %v199
  %998 = vmatprep.subr.mxu0 %v166
  %999 = vmatpush1.msra.mxu0 %v165
  %1000 = vmatprep.subr.mxu0 %v132
  %1001 = vmatpush1.msra.mxu0 %v131
  %1002 = vmatprep.subr.mxu0 %v98
  %1003 = vmatpush1.msra.mxu0 %v97
  %1004 = vmatprep.subr.mxu0 %v64
  %1005 = vmatpush1.msra.mxu0 %v63
  %1006 = vmatprep.subr.mxu0 %v30
  %1007 = vmatpush1.msra.mxu0 %v29
  %1008 = vmatprep.subr.mxu0 0.0
  %1009 = vmatpush2.msra.mxu0 0.0
  %1010 = vmatprep.subr.mxu0 0.0
  %1011 = vmatpush2.msra.mxu0 0.0
  %1012 = vmatprep.subr.mxu0 0.0
  %1013 = vmatpush2.msra.mxu0 0.0
  %1014 = vmatprep.subr.mxu0 0.0
  %1015 = vmatpush2.msra.mxu0 0.0
  %1016 = vmatprep.subr.mxu0 0.0
  %1017 = vmatpush2.msra.mxu0 0.0
  %1018 = vmatprep.subr.mxu0 0.0
  %1019 = vmatpush2.msra.mxu0 0.0
  %1020 = vmatprep.subr.mxu0 0.0
  %1021 = vmatpush2.msra.mxu0 0.0
  %1022 = vmatprep.subr.mxu0 0.0
  %1023 = vmatpush2.msra.mxu0 0.0
  %1024 = vmatprep.subr.mxu0 0.0
  %1025 = vmatpush2.msra.mxu0 0.0
  %1026 = vmatprep.subr.mxu0 0.0
  %1027 = vmatpush2.msra.mxu0 0.0
  %1028 = vmatprep.subr.mxu0 0.0
  %1029 = vmatpush2.msra.mxu0 0.0
  %1030 = vmatprep.subr.mxu0 0.0
  %1031 = vmatpush2.msra.mxu0 0.0
  %1032 = vmatprep.subr.mxu0 0.0
  %1033 = vmatpush2.msra.mxu0 0.0
  %1034 = vmatprep.subr.mxu0 0.0
  %1035 = vmatpush2.msra.mxu0 0.0
  %1036 = vmatprep.subr.mxu0 0.0
  %1037 = vmatpush2.msra.mxu0 0.0
  %1038 = vmatprep.subr.mxu0 0.0
  %1039 = vmatpush2.msra.mxu0 0.0
  %1040 = vmatprep.mubr.f32.mxu0 0.0
  %1041 = vmatmul.mubr.f32.gmra.mxu0 %v355
  %v1042 = vpop.f32.mrf.mxu0
  %v1043 = vadd.f32 0.0, %v1042
  %v1044 = vpop.f32.mrf.mxu0
  %v1045 = vadd.f32 0.0, %v1044
  %1046 = vmatprep.mubr.f32.mxu0 0.0
  %1047 = vmatmul.mubr.f32.gmra.mxu0 %v358
  %v1048 = vpop.f32.mrf.mxu0
  %v1049 = vadd.f32 0.0, %v1048
  %v1050 = vpop.f32.mrf.mxu0
  %v1051 = vadd.f32 0.0, %v1050
  %1052 = vdwg.mxu0
  %1053 = vmatprep.subr.mxu0 0.0
  %1054 = vmatpush1.msra.mxu0 0.0
  %1055 = vmatprep.subr.mxu0 0.0
  %1056 = vmatpush1.msra.mxu0 0.0
  %1057 = vmatprep.subr.mxu0 0.0
  %1058 = vmatpush1.msra.mxu0 0.0
  %1059 = vmatprep.subr.mxu0 0.0
  %1060 = vmatpush1.msra.mxu0 0.0
  %1061 = vmatprep.subr.mxu0 0.0
  %1062 = vmatpush1.msra.mxu0 0.0
  %1063 = vmatprep.subr.mxu0 0.0
  %1064 = vmatpush1.msra.mxu0 0.0
  %1065 = vmatprep.subr.mxu0 %v338
  %1066 = vmatpush1.msra.mxu0 %v337
  %1067 = vmatprep.subr.mxu0 %v304
  %1068 = vmatpush1.msra.mxu0 %v303
  %1069 = vmatprep.subr.mxu0 %v270
  %1070 = vmatpush1.msra.mxu0 %v269
  %1071 = vmatprep.subr.mxu0 %v236
  %1072 = vmatpush1.msra.mxu0 %v235
  %1073 = vmatprep.subr.mxu0 %v202
  %1074 = vmatpush1.msra.mxu0 %v201
  %1075 = vmatprep.subr.mxu0 %v168
  %1076 = vmatpush1.msra.mxu0 %v167
  %1077 = vmatprep.subr.mxu0 %v134
  %1078 = vmatpush1.msra.mxu0 %v133
  %1079 = vmatprep.subr.mxu0 %v100
  %1080 = vmatpush1.msra.mxu0 %v99
  %1081 = vmatprep.subr.mxu0 %v66
  %1082 = vmatpush1.msra.mxu0 %v65
  %1083 = vmatprep.subr.mxu0 %v32
  %1084 = vmatpush1.msra.mxu0 %v31
  %1085 = vmatprep.subr.mxu0 0.0
  %1086 = vmatpush2.msra.mxu0 0.0
  %1087 = vmatprep.subr.mxu0 0.0
  %1088 = vmatpush2.msra.mxu0 0.0
  %1089 = vmatprep.subr.mxu0 0.0
  %1090 = vmatpush2.msra.mxu0 0.0
  %1091 = vmatprep.subr.mxu0 0.0
  %1092 = vmatpush2.msra.mxu0 0.0
  %1093 = vmatprep.subr.mxu0 0.0
  %1094 = vmatpush2.msra.mxu0 0.0
  %1095 = vmatprep.subr.mxu0 0.0
  %1096 = vmatpush2.msra.mxu0 0.0
  %1097 = vmatprep.subr.mxu0 0.0
  %1098 = vmatpush2.msra.mxu0 0.0
  %1099 = vmatprep.subr.mxu0 0.0
  %1100 = vmatpush2.msra.mxu0 0.0
  %1101 = vmatprep.subr.mxu0 0.0
  %1102 = vmatpush2.msra.mxu0 0.0
  %1103 = vmatprep.subr.mxu0 0.0
  %1104 = vmatpush2.msra.mxu0 0.0
  %1105 = vmatprep.subr.mxu0 0.0
  %1106 = vmatpush2.msra.mxu0 0.0
  %1107 = vmatprep.subr.mxu0 0.0
  %1108 = vmatpush2.msra.mxu0 0.0
  %1109 = vmatprep.subr.mxu0 0.0
  %1110 = vmatpush2.msra.mxu0 0.0
  %1111 = vmatprep.subr.mxu0 0.0
  %1112 = vmatpush2.msra.mxu0 0.0
  %1113 = vmatprep.subr.mxu0 0.0
  %1114 = vmatpush2.msra.mxu0 0.0
  %1115 = vmatprep.subr.mxu0 0.0
  %1116 = vmatpush2.msra.mxu0 0.0
  %1117 = vmatprep.mubr.f32.mxu0 0.0
  %1118 = vmatmul.mubr.f32.gmra.mxu0 %v355
  %v1119 = vpop.f32.mrf.mxu0
  %v1120 = vadd.f32 0.0, %v1119
  %v1121 = vpop.f32.mrf.mxu0
  %v1122 = vadd.f32 0.0, %v1121
  %1123 = vmatprep.mubr.f32.mxu0 0.0
  %1124 = vmatmul.mubr.f32.gmra.mxu0 %v358
  %v1125 = vpop.f32.mrf.mxu0
  %v1126 = vadd.f32 0.0, %v1125
  %v1127 = vpop.f32.mrf.mxu0
  %v1128 = vadd.f32 0.0, %v1127
  %1129 = vdwg.mxu0
  %1130 = vmatprep.subr.mxu0 0.0
  %1131 = vmatpush1.msra.mxu0 0.0
  %1132 = vmatprep.subr.mxu0 0.0
  %1133 = vmatpush1.msra.mxu0 0.0
  %1134 = vmatprep.subr.mxu0 0.0
  %1135 = vmatpush1.msra.mxu0 0.0
  %1136 = vmatprep.subr.mxu0 0.0
  %1137 = vmatpush1.msra.mxu0 0.0
  %1138 = vmatprep.subr.mxu0 0.0
  %1139 = vmatpush1.msra.mxu0 0.0
  %1140 = vmatprep.subr.mxu0 0.0
  %1141 = vmatpush1.msra.mxu0 0.0
  %1142 = vmatprep.subr.mxu0 %v340
  %1143 = vmatpush1.msra.mxu0 %v339
  %1144 = vmatprep.subr.mxu0 %v306
  %1145 = vmatpush1.msra.mxu0 %v305
  %1146 = vmatprep.subr.mxu0 %v272
  %1147 = vmatpush1.msra.mxu0 %v271
  %1148 = vmatprep.subr.mxu0 %v238
  %1149 = vmatpush1.msra.mxu0 %v237
  %1150 = vmatprep.subr.mxu0 %v204
  %1151 = vmatpush1.msra.mxu0 %v203
  %1152 = vmatprep.subr.mxu0 %v170
  %1153 = vmatpush1.msra.mxu0 %v169
  %1154 = vmatprep.subr.mxu0 %v136
  %1155 = vmatpush1.msra.mxu0 %v135
  %1156 = vmatprep.subr.mxu0 %v102
  %1157 = vmatpush1.msra.mxu0 %v101
  %1158 = vmatprep.subr.mxu0 %v68
  %1159 = vmatpush1.msra.mxu0 %v67
  %1160 = vmatprep.subr.mxu0 %v34
  %1161 = vmatpush1.msra.mxu0 %v33
  %1162 = vmatprep.subr.mxu0 0.0
  %1163 = vmatpush2.msra.mxu0 0.0
  %1164 = vmatprep.subr.mxu0 0.0
  %1165 = vmatpush2.msra.mxu0 0.0
  %1166 = vmatprep.subr.mxu0 0.0
  %1167 = vmatpush2.msra.mxu0 0.0
  %1168 = vmatprep.subr.mxu0 0.0
  %1169 = vmatpush2.msra.mxu0 0.0
  %1170 = vmatprep.subr.mxu0 0.0
  %1171 = vmatpush2.msra.mxu0 0.0
  %1172 = vmatprep.subr.mxu0 0.0
  %1173 = vmatpush2.msra.mxu0 0.0
  %1174 = vmatprep.subr.mxu0 0.0
  %1175 = vmatpush2.msra.mxu0 0.0
  %1176 = vmatprep.subr.mxu0 0.0
  %1177 = vmatpush2.msra.mxu0 0.0
  %1178 = vmatprep.subr.mxu0 0.0
  %1179 = vmatpush2.msra.mxu0 0.0
  %1180 = vmatprep.subr.mxu0 0.0
  %1181 = vmatpush2.msra.mxu0 0.0
  %1182 = vmatprep.subr.mxu0 0.0
  %1183 = vmatpush2.msra.mxu0 0.0
  %1184 = vmatprep.subr.mxu0 0.0
  %1185 = vmatpush2.msra.mxu0 0.0
  %1186 = vmatprep.subr.mxu0 0.0
  %1187 = vmatpush2.msra.mxu0 0.0
  %1188 = vmatprep.subr.mxu0 0.0
  %1189 = vmatpush2.msra.mxu0 0.0
  %1190 = vmatprep.subr.mxu0 0.0
  %1191 = vmatpush2.msra.mxu0 0.0
  %1192 = vmatprep.subr.mxu0 0.0
  %1193 = vmatpush2.msra.mxu0 0.0
  %1194 = vmatprep.mubr.f32.mxu0 0.0
  %1195 = vmatmul.mubr.f32.gmra.mxu0 %v355
  %v1196 = vpop.f32.mrf.mxu0
  %v1197 = vadd.f32 0.0, %v1196
  %v1198 = vpop.f32.mrf.mxu0
  %v1199 = vadd.f32 0.0, %v1198
  %1200 = vmatprep.mubr.f32.mxu0 0.0
  %1201 = vmatmul.mubr.f32.gmra.mxu0 %v358
  %v1202 = vpop.f32.mrf.mxu0
  %v1203 = vadd.f32 0.0, %v1202
  %v1204 = vpop.f32.mrf.mxu0
  %v1205 = vadd.f32 0.0, %v1204
  %1206 = vdwg.mxu0
  %1207 = vmatprep.subr.mxu0 0.0
  %1208 = vmatpush1.msra.mxu0 0.0
  %1209 = vmatprep.subr.mxu0 0.0
  %1210 = vmatpush1.msra.mxu0 0.0
  %1211 = vmatprep.subr.mxu0 0.0
  %1212 = vmatpush1.msra.mxu0 0.0
  %1213 = vmatprep.subr.mxu0 0.0
  %1214 = vmatpush1.msra.mxu0 0.0
  %1215 = vmatprep.subr.mxu0 0.0
  %1216 = vmatpush1.msra.mxu0 0.0
  %1217 = vmatprep.subr.mxu0 0.0
  %1218 = vmatpush1.msra.mxu0 0.0
  %1219 = vmatprep.subr.mxu0 %v342
  %1220 = vmatpush1.msra.mxu0 %v341
  %1221 = vmatprep.subr.mxu0 %v308
  %1222 = vmatpush1.msra.mxu0 %v307
  %1223 = vmatprep.subr.mxu0 %v274
  %1224 = vmatpush1.msra.mxu0 %v273
  %1225 = vmatprep.subr.mxu0 %v240
  %1226 = vmatpush1.msra.mxu0 %v239
  %1227 = vmatprep.subr.mxu0 %v206
  %1228 = vmatpush1.msra.mxu0 %v205
  %1229 = vmatprep.subr.mxu0 %v172
  %1230 = vmatpush1.msra.mxu0 %v171
  %1231 = vmatprep.subr.mxu0 %v138
  %1232 = vmatpush1.msra.mxu0 %v137
  %1233 = vmatprep.subr.mxu0 %v104
  %1234 = vmatpush1.msra.mxu0 %v103
  %1235 = vmatprep.subr.mxu0 %v70
  %1236 = vmatpush1.msra.mxu0 %v69
  %1237 = vmatprep.subr.mxu0 %v36
  %1238 = vmatpush1.msra.mxu0 %v35
  %1239 = vmatprep.subr.mxu0 0.0
  %1240 = vmatpush2.msra.mxu0 0.0
  %1241 = vmatprep.subr.mxu0 0.0
  %1242 = vmatpush2.msra.mxu0 0.0
  %1243 = vmatprep.subr.mxu0 0.0
  %1244 = vmatpush2.msra.mxu0 0.0
  %1245 = vmatprep.subr.mxu0 0.0
  %1246 = vmatpush2.msra.mxu0 0.0
  %1247 = vmatprep.subr.mxu0 0.0
  %1248 = vmatpush2.msra.mxu0 0.0
  %1249 = vmatprep.subr.mxu0 0.0
  %1250 = vmatpush2.msra.mxu0 0.0
  %1251 = vmatprep.subr.mxu0 0.0
  %1252 = vmatpush2.msra.mxu0 0.0
  %1253 = vmatprep.subr.mxu0 0.0
  %1254 = vmatpush2.msra.mxu0 0.0
  %1255 = vmatprep.subr.mxu0 0.0
  %1256 = vmatpush2.msra.mxu0 0.0
  %1257 = vmatprep.subr.mxu0 0.0
  %1258 = vmatpush2.msra.mxu0 0.0
  %1259 = vmatprep.subr.mxu0 0.0
  %1260 = vmatpush2.msra.mxu0 0.0
  %1261 = vmatprep.subr.mxu0 0.0
  %1262 = vmatpush2.msra.mxu0 0.0
  %1263 = vmatprep.subr.mxu0 0.0
  %1264 = vmatpush2.msra.mxu0 0.0
  %1265 = vmatprep.subr.mxu0 0.0
  %1266 = vmatpush2.msra.mxu0 0.0
  %1267 = vmatprep.subr.mxu0 0.0
  %1268 = vmatpush2.msra.mxu0 0.0
  %1269 = vmatprep.subr.mxu0 0.0
  %1270 = vmatpush2.msra.mxu0 0.0
  %1271 = vmatprep.mubr.f32.mxu0 0.0
  %1272 = vmatmul.mubr.f32.gmra.mxu0 %v355
  %v1273 = vpop.f32.mrf.mxu0
  %v1274 = vadd.f32 0.0, %v1273
  %v1275 = vpop.f32.mrf.mxu0
  %v1276 = vadd.f32 0.0, %v1275
  %1277 = vmatprep.mubr.f32.mxu0 0.0
  %1278 = vmatmul.mubr.f32.gmra.mxu0 %v358
  %v1279 = vpop.f32.mrf.mxu0
  %v1280 = vadd.f32 0.0, %v1279
  %v1281 = vpop.f32.mrf.mxu0
  %v1282 = vadd.f32 0.0, %v1281
  %1283 = vdwg.mxu0
  %1284 = vmatprep.subr.mxu0 0.0
  %1285 = vmatpush1.msra.mxu0 0.0
  %1286 = vmatprep.subr.mxu0 0.0
  %1287 = vmatpush1.msra.mxu0 0.0
  %1288 = vmatprep.subr.mxu0 0.0
  %1289 = vmatpush1.msra.mxu0 0.0
  %1290 = vmatprep.subr.mxu0 0.0
  %1291 = vmatpush1.msra.mxu0 0.0
  %1292 = vmatprep.subr.mxu0 0.0
  %1293 = vmatpush1.msra.mxu0 0.0
  %1294 = vmatprep.subr.mxu0 0.0
  %1295 = vmatpush1.msra.mxu0 0.0
  %1296 = vmatprep.subr.mxu0 %v344
  %1297 = vmatpush1.msra.mxu0 %v343
  %1298 = vmatprep.subr.mxu0 %v310
  %1299 = vmatpush1.msra.mxu0 %v309
  %1300 = vmatprep.subr.mxu0 %v276
  %1301 = vmatpush1.msra.mxu0 %v275
  %1302 = vmatprep.subr.mxu0 %v242
  %1303 = vmatpush1.msra.mxu0 %v241
  %1304 = vmatprep.subr.mxu0 %v208
  %1305 = vmatpush1.msra.mxu0 %v207
  %1306 = vmatprep.subr.mxu0 %v174
  %1307 = vmatpush1.msra.mxu0 %v173
  %1308 = vmatprep.subr.mxu0 %v140
  %1309 = vmatpush1.msra.mxu0 %v139
  %1310 = vmatprep.subr.mxu0 %v106
  %1311 = vmatpush1.msra.mxu0 %v105
  %1312 = vmatprep.subr.mxu0 %v72
  %1313 = vmatpush1.msra.mxu0 %v71
  %1314 = vmatprep.subr.mxu0 %v38
  %1315 = vmatpush1.msra.mxu0 %v37
  %1316 = vmatprep.subr.mxu0 0.0
  %1317 = vmatpush2.msra.mxu0 0.0
  %1318 = vmatprep.subr.mxu0 0.0
  %1319 = vmatpush2.msra.mxu0 0.0
  %1320 = vmatprep.subr.mxu0 0.0
  %1321 = vmatpush2.msra.mxu0 0.0
  %1322 = vmatprep.subr.mxu0 0.0
  %1323 = vmatpush2.msra.mxu0 0.0
  %1324 = vmatprep.subr.mxu0 0.0
  %1325 = vmatpush2.msra.mxu0 0.0
  %1326 = vmatprep.subr.mxu0 0.0
  %1327 = vmatpush2.msra.mxu0 0.0
  %1328 = vmatprep.subr.mxu0 0.0
  %1329 = vmatpush2.msra.mxu0 0.0
  %1330 = vmatprep.subr.mxu0 0.0
  %1331 = vmatpush2.msra.mxu0 0.0
  %1332 = vmatprep.subr.mxu0 0.0
  %1333 = vmatpush2.msra.mxu0 0.0
  %1334 = vmatprep.subr.mxu0 0.0
  %1335 = vmatpush2.msra.mxu0 0.0
  %1336 = vmatprep.subr.mxu0 0.0
  %1337 = vmatpush2.msra.mxu0 0.0
  %1338 = vmatprep.subr.mxu0 0.0
  %1339 = vmatpush2.msra.mxu0 0.0
  %1340 = vmatprep.subr.mxu0 0.0
  %1341 = vmatpush2.msra.mxu0 0.0
  %1342 = vmatprep.subr.mxu0 0.0
  %1343 = vmatpush2.msra.mxu0 0.0
  %1344 = vmatprep.subr.mxu0 0.0
  %1345 = vmatpush2.msra.mxu0 0.0
  %1346 = vmatprep.subr.mxu0 0.0
  %1347 = vmatpush2.msra.mxu0 0.0
  %1348 = vmatprep.mubr.f32.mxu0 0.0
  %1349 = vmatmul.mubr.f32.gmra.mxu0 %v355
  %v1350 = vpop.f32.mrf.mxu0
  %v1351 = vadd.f32 0.0, %v1350
  %v1352 = vpop.f32.mrf.mxu0
  %v1353 = vadd.f32 0.0, %v1352
  %1354 = vmatprep.mubr.f32.mxu0 0.0
  %1355 = vmatmul.mubr.f32.gmra.mxu0 %v358
  %v1356 = vpop.f32.mrf.mxu0
  %v1357 = vadd.f32 0.0, %v1356
  %v1358 = vpop.f32.mrf.mxu0
  %v1359 = vadd.f32 0.0, %v1358
  %1360 = vdwg.mxu0
  %1361 = vmatprep.subr.mxu0 0.0
  %1362 = vmatpush1.msra.mxu0 0.0
  %1363 = vmatprep.subr.mxu0 0.0
  %1364 = vmatpush1.msra.mxu0 0.0
  %1365 = vmatprep.subr.mxu0 0.0
  %1366 = vmatpush1.msra.mxu0 0.0
  %1367 = vmatprep.subr.mxu0 0.0
  %1368 = vmatpush1.msra.mxu0 0.0
  %1369 = vmatprep.subr.mxu0 0.0
  %1370 = vmatpush1.msra.mxu0 0.0
  %1371 = vmatprep.subr.mxu0 0.0
  %1372 = vmatpush1.msra.mxu0 0.0
  %1373 = vmatprep.subr.mxu0 %v346
  %1374 = vmatpush1.msra.mxu0 %v345
  %1375 = vmatprep.subr.mxu0 %v312
  %1376 = vmatpush1.msra.mxu0 %v311
  %1377 = vmatprep.subr.mxu0 %v278
  %1378 = vmatpush1.msra.mxu0 %v277
  %1379 = vmatprep.subr.mxu0 %v244
  %1380 = vmatpush1.msra.mxu0 %v243
  %1381 = vmatprep.subr.mxu0 %v210
  %1382 = vmatpush1.msra.mxu0 %v209
  %1383 = vmatprep.subr.mxu0 %v176
  %1384 = vmatpush1.msra.mxu0 %v175
  %1385 = vmatprep.subr.mxu0 %v142
  %1386 = vmatpush1.msra.mxu0 %v141
  %1387 = vmatprep.subr.mxu0 %v108
  %1388 = vmatpush1.msra.mxu0 %v107
  %1389 = vmatprep.subr.mxu0 %v74
  %1390 = vmatpush1.msra.mxu0 %v73
  %1391 = vmatprep.subr.mxu0 %v40
  %1392 = vmatpush1.msra.mxu0 %v39
  %1393 = vmatprep.subr.mxu0 0.0
  %1394 = vmatpush2.msra.mxu0 0.0
  %1395 = vmatprep.subr.mxu0 0.0
  %1396 = vmatpush2.msra.mxu0 0.0
  %1397 = vmatprep.subr.mxu0 0.0
  %1398 = vmatpush2.msra.mxu0 0.0
  %1399 = vmatprep.subr.mxu0 0.0
  %1400 = vmatpush2.msra.mxu0 0.0
  %1401 = vmatprep.subr.mxu0 0.0
  %1402 = vmatpush2.msra.mxu0 0.0
  %1403 = vmatprep.subr.mxu0 0.0
  %1404 = vmatpush2.msra.mxu0 0.0
  %1405 = vmatprep.subr.mxu0 0.0
  %1406 = vmatpush2.msra.mxu0 0.0
  %1407 = vmatprep.subr.mxu0 0.0
  %1408 = vmatpush2.msra.mxu0 0.0
  %1409 = vmatprep.subr.mxu0 0.0
  %1410 = vmatpush2.msra.mxu0 0.0
  %1411 = vmatprep.subr.mxu0 0.0
  %1412 = vmatpush2.msra.mxu0 0.0
  %1413 = vmatprep.subr.mxu0 0.0
  %1414 = vmatpush2.msra.mxu0 0.0
  %1415 = vmatprep.subr.mxu0 0.0
  %1416 = vmatpush2.msra.mxu0 0.0
  %1417 = vmatprep.subr.mxu0 0.0
  %1418 = vmatpush2.msra.mxu0 0.0
  %1419 = vmatprep.subr.mxu0 0.0
  %1420 = vmatpush2.msra.mxu0 0.0
  %1421 = vmatprep.subr.mxu0 0.0
  %1422 = vmatpush2.msra.mxu0 0.0
  %1423 = vmatprep.subr.mxu0 0.0
  %1424 = vmatpush2.msra.mxu0 0.0
  %1425 = vmatprep.mubr.f32.mxu0 0.0
  %1426 = vmatmul.mubr.f32.gmra.mxu0 %v355
  %v1427 = vpop.f32.mrf.mxu0
  %v1428 = vadd.f32 0.0, %v1427
  %v1429 = vpop.f32.mrf.mxu0
  %v1430 = vadd.f32 0.0, %v1429
  %1431 = vmatprep.mubr.f32.mxu0 0.0
  %1432 = vmatmul.mubr.f32.gmra.mxu0 %v358
  %v1433 = vpop.f32.mrf.mxu0
  %v1434 = vadd.f32 0.0, %v1433
  %v1435 = vpop.f32.mrf.mxu0
  %v1436 = vadd.f32 0.0, %v1435
  %1437 = vdwg.mxu0
  %1438 = vmatprep.subr.mxu0 0.0
  %1439 = vmatpush1.msra.mxu0 0.0
  %1440 = vmatprep.subr.mxu0 0.0
  %1441 = vmatpush1.msra.mxu0 0.0
  %1442 = vmatprep.subr.mxu0 0.0
  %1443 = vmatpush1.msra.mxu0 0.0
  %1444 = vmatprep.subr.mxu0 0.0
  %1445 = vmatpush1.msra.mxu0 0.0
  %1446 = vmatprep.subr.mxu0 0.0
  %1447 = vmatpush1.msra.mxu0 0.0
  %1448 = vmatprep.subr.mxu0 0.0
  %1449 = vmatpush1.msra.mxu0 0.0
  %1450 = vmatprep.subr.mxu0 %v348
  %1451 = vmatpush1.msra.mxu0 %v347
  %1452 = vmatprep.subr.mxu0 %v314
  %1453 = vmatpush1.msra.mxu0 %v313
  %1454 = vmatprep.subr.mxu0 %v280
  %1455 = vmatpush1.msra.mxu0 %v279
  %1456 = vmatprep.subr.mxu0 %v246
  %1457 = vmatpush1.msra.mxu0 %v245
  %1458 = vmatprep.subr.mxu0 %v212
  %1459 = vmatpush1.msra.mxu0 %v211
  %1460 = vmatprep.subr.mxu0 %v178
  %1461 = vmatpush1.msra.mxu0 %v177
  %1462 = vmatprep.subr.mxu0 %v144
  %1463 = vmatpush1.msra.mxu0 %v143
  %1464 = vmatprep.subr.mxu0 %v110
  %1465 = vmatpush1.msra.mxu0 %v109
  %1466 = vmatprep.subr.mxu0 %v76
  %1467 = vmatpush1.msra.mxu0 %v75
  %1468 = vmatprep.subr.mxu0 %v42
  %1469 = vmatpush1.msra.mxu0 %v41
  %1470 = vmatprep.subr.mxu0 0.0
  %1471 = vmatpush2.msra.mxu0 0.0
  %1472 = vmatprep.subr.mxu0 0.0
  %1473 = vmatpush2.msra.mxu0 0.0
  %1474 = vmatprep.subr.mxu0 0.0
  %1475 = vmatpush2.msra.mxu0 0.0
  %1476 = vmatprep.subr.mxu0 0.0
  %1477 = vmatpush2.msra.mxu0 0.0
  %1478 = vmatprep.subr.mxu0 0.0
  %1479 = vmatpush2.msra.mxu0 0.0
  %1480 = vmatprep.subr.mxu0 0.0
  %1481 = vmatpush2.msra.mxu0 0.0
  %1482 = vmatprep.subr.mxu0 0.0
  %1483 = vmatpush2.msra.mxu0 0.0
  %1484 = vmatprep.subr.mxu0 0.0
  %1485 = vmatpush2.msra.mxu0 0.0
  %1486 = vmatprep.subr.mxu0 0.0
  %1487 = vmatpush2.msra.mxu0 0.0
  %1488 = vmatprep.subr.mxu0 0.0
  %1489 = vmatpush2.msra.mxu0 0.0
  %1490 = vmatprep.subr.mxu0 0.0
  %1491 = vmatpush2.msra.mxu0 0.0
  %1492 = vmatprep.subr.mxu0 0.0
  %1493 = vmatpush2.msra.mxu0 0.0
  %1494 = vmatprep.subr.mxu0 0.0
  %1495 = vmatpush2.msra.mxu0 0.0
  %1496 = vmatprep.subr.mxu0 0.0
  %1497 = vmatpush2.msra.mxu0 0.0
  %1498 = vmatprep.subr.mxu0 0.0
  %1499 = vmatpush2.msra.mxu0 0.0
  %1500 = vmatprep.subr.mxu0 0.0
  %1501 = vmatpush2.msra.mxu0 0.0
  %1502 = vmatprep.mubr.f32.mxu0 0.0
  %1503 = vmatmul.mubr.f32.gmra.mxu0 %v355
  %v1504 = vpop.f32.mrf.mxu0
  %v1505 = vadd.f32 0.0, %v1504
  %v1506 = vpop.f32.mrf.mxu0
  %v1507 = vadd.f32 0.0, %v1506
  %1508 = vmatprep.mubr.f32.mxu0 0.0
  %1509 = vmatmul.mubr.f32.gmra.mxu0 %v358
  %v1510 = vpop.f32.mrf.mxu0
  %v1511 = vadd.f32 0.0, %v1510
  %v1512 = vpop.f32.mrf.mxu0
  %v1513 = vadd.f32 0.0, %v1512
  %1514 = vdwg.mxu0
  %1515 = vmatprep.subr.mxu0 0.0
  %1516 = vmatpush1.msra.mxu0 0.0
  %1517 = vmatprep.subr.mxu0 0.0
  %1518 = vmatpush1.msra.mxu0 0.0
  %1519 = vmatprep.subr.mxu0 0.0
  %1520 = vmatpush1.msra.mxu0 0.0
  %1521 = vmatprep.subr.mxu0 0.0
  %1522 = vmatpush1.msra.mxu0 0.0
  %1523 = vmatprep.subr.mxu0 0.0
  %1524 = vmatpush1.msra.mxu0 0.0
  %1525 = vmatprep.subr.mxu0 0.0
  %1526 = vmatpush1.msra.mxu0 0.0
  %1527 = vmatprep.subr.mxu0 %v350
  %1528 = vmatpush1.msra.mxu0 %v349
  %1529 = vmatprep.subr.mxu0 %v316
  %1530 = vmatpush1.msra.mxu0 %v315
  %1531 = vmatprep.subr.mxu0 %v282
  %1532 = vmatpush1.msra.mxu0 %v281
  %1533 = vmatprep.subr.mxu0 %v248
  %1534 = vmatpush1.msra.mxu0 %v247
  %1535 = vmatprep.subr.mxu0 %v214
  %1536 = vmatpush1.msra.mxu0 %v213
  %1537 = vmatprep.subr.mxu0 %v180
  %1538 = vmatpush1.msra.mxu0 %v179
  %1539 = vmatprep.subr.mxu0 %v146
  %1540 = vmatpush1.msra.mxu0 %v145
  %1541 = vmatprep.subr.mxu0 %v112
  %1542 = vmatpush1.msra.mxu0 %v111
  %1543 = vmatprep.subr.mxu0 %v78
  %1544 = vmatpush1.msra.mxu0 %v77
  %1545 = vmatprep.subr.mxu0 %v44
  %1546 = vmatpush1.msra.mxu0 %v43
  %1547 = vmatprep.subr.mxu0 0.0
  %1548 = vmatpush2.msra.mxu0 0.0
  %1549 = vmatprep.subr.mxu0 0.0
  %1550 = vmatpush2.msra.mxu0 0.0
  %1551 = vmatprep.subr.mxu0 0.0
  %1552 = vmatpush2.msra.mxu0 0.0
  %1553 = vmatprep.subr.mxu0 0.0
  %1554 = vmatpush2.msra.mxu0 0.0
  %1555 = vmatprep.subr.mxu0 0.0
  %1556 = vmatpush2.msra.mxu0 0.0
  %1557 = vmatprep.subr.mxu0 0.0
  %1558 = vmatpush2.msra.mxu0 0.0
  %1559 = vmatprep.subr.mxu0 0.0
  %1560 = vmatpush2.msra.mxu0 0.0
  %1561 = vmatprep.subr.mxu0 0.0
  %1562 = vmatpush2.msra.mxu0 0.0
  %1563 = vmatprep.subr.mxu0 0.0
  %1564 = vmatpush2.msra.mxu0 0.0
  %1565 = vmatprep.subr.mxu0 0.0
  %1566 = vmatpush2.msra.mxu0 0.0
  %1567 = vmatprep.subr.mxu0 0.0
  %1568 = vmatpush2.msra.mxu0 0.0
  %1569 = vmatprep.subr.mxu0 0.0
  %1570 = vmatpush2.msra.mxu0 0.0
  %1571 = vmatprep.subr.mxu0 0.0
  %1572 = vmatpush2.msra.mxu0 0.0
  %1573 = vmatprep.subr.mxu0 0.0
  %1574 = vmatpush2.msra.mxu0 0.0
  %1575 = vmatprep.subr.mxu0 0.0
  %1576 = vmatpush2.msra.mxu0 0.0
  %1577 = vmatprep.subr.mxu0 0.0
  %1578 = vmatpush2.msra.mxu0 0.0
  %1579 = vmatprep.mubr.f32.mxu0 0.0
  %1580 = vmatmul.mubr.f32.gmra.mxu0 %v355
  %v1581 = vpop.f32.mrf.mxu0
  %v1582 = vadd.f32 0.0, %v1581
  %v1583 = vpop.f32.mrf.mxu0
  %v1584 = vadd.f32 0.0, %v1583
  %1585 = vmatprep.mubr.f32.mxu0 0.0
  %1586 = vmatmul.mubr.f32.gmra.mxu0 %v358
  %v1587 = vpop.f32.mrf.mxu0
  %v1588 = vadd.f32 0.0, %v1587
  %v1589 = vpop.f32.mrf.mxu0
  %v1590 = vadd.f32 0.0, %v1589
  %1591 = vdwg.mxu0
  %1592 = vmatprep.subr.mxu0 0.0
  %1593 = vmatpush1.msra.mxu0 0.0
  %1594 = vmatprep.subr.mxu0 0.0
  %1595 = vmatpush1.msra.mxu0 0.0
  %1596 = vmatprep.subr.mxu0 0.0
  %1597 = vmatpush1.msra.mxu0 0.0
  %1598 = vmatprep.subr.mxu0 0.0
  %1599 = vmatpush1.msra.mxu0 0.0
  %1600 = vmatprep.subr.mxu0 0.0
  %1601 = vmatpush1.msra.mxu0 0.0
  %1602 = vmatprep.subr.mxu0 0.0
  %1603 = vmatpush1.msra.mxu0 0.0
  %1604 = vmatprep.subr.mxu0 %v352
  %1605 = vmatpush1.msra.mxu0 %v351
  %1606 = vmatprep.subr.mxu0 %v318
  %1607 = vmatpush1.msra.mxu0 %v317
  %1608 = vmatprep.subr.mxu0 %v284
  %1609 = vmatpush1.msra.mxu0 %v283
  %1610 = vmatprep.subr.mxu0 %v250
  %1611 = vmatpush1.msra.mxu0 %v249
  %1612 = vmatprep.subr.mxu0 %v216
  %1613 = vmatpush1.msra.mxu0 %v215
  %1614 = vmatprep.subr.mxu0 %v182
  %1615 = vmatpush1.msra.mxu0 %v181
  %1616 = vmatprep.subr.mxu0 %v148
  %1617 = vmatpush1.msra.mxu0 %v147
  %1618 = vmatprep.subr.mxu0 %v114
  %1619 = vmatpush1.msra.mxu0 %v113
  %1620 = vmatprep.subr.mxu0 %v80
  %1621 = vmatpush1.msra.mxu0 %v79
  %1622 = vmatprep.subr.mxu0 %v46
  %1623 = vmatpush1.msra.mxu0 %v45
  %1624 = vmatprep.subr.mxu0 0.0
  %1625 = vmatpush2.msra.mxu0 0.0
  %1626 = vmatprep.subr.mxu0 0.0
  %1627 = vmatpush2.msra.mxu0 0.0
  %1628 = vmatprep.subr.mxu0 0.0
  %1629 = vmatpush2.msra.mxu0 0.0
  %1630 = vmatprep.subr.mxu0 0.0
  %1631 = vmatpush2.msra.mxu0 0.0
  %1632 = vmatprep.subr.mxu0 0.0
  %1633 = vmatpush2.msra.mxu0 0.0
  %1634 = vmatprep.subr.mxu0 0.0
  %1635 = vmatpush2.msra.mxu0 0.0
  %1636 = vmatprep.subr.mxu0 0.0
  %1637 = vmatpush2.msra.mxu0 0.0
  %1638 = vmatprep.subr.mxu0 0.0
  %1639 = vmatpush2.msra.mxu0 0.0
  %1640 = vmatprep.subr.mxu0 0.0
  %1641 = vmatpush2.msra.mxu0 0.0
  %1642 = vmatprep.subr.mxu0 0.0
  %1643 = vmatpush2.msra.mxu0 0.0
  %1644 = vmatprep.subr.mxu0 0.0
  %1645 = vmatpush2.msra.mxu0 0.0
  %1646 = vmatprep.subr.mxu0 0.0
  %1647 = vmatpush2.msra.mxu0 0.0
  %1648 = vmatprep.subr.mxu0 0.0
  %1649 = vmatpush2.msra.mxu0 0.0
  %1650 = vmatprep.subr.mxu0 0.0
  %1651 = vmatpush2.msra.mxu0 0.0
  %1652 = vmatprep.subr.mxu0 0.0
  %1653 = vmatpush2.msra.mxu0 0.0
  %1654 = vmatprep.subr.mxu0 0.0
  %1655 = vmatpush2.msra.mxu0 0.0
  %1656 = vmatprep.mubr.f32.mxu0 0.0
  %1657 = vmatmul.mubr.f32.gmra.mxu0 %v355
  %v1658 = vpop.f32.mrf.mxu0
  %v1659 = vadd.f32 0.0, %v1658
  %v1660 = vpop.f32.mrf.mxu0
  %v1661 = vadd.f32 0.0, %v1660
  %1662 = vmatprep.mubr.f32.mxu0 0.0
  %1663 = vmatmul.mubr.f32.gmra.mxu0 %v358
  %v1664 = vpop.f32.mrf.mxu0
  %v1665 = vadd.f32 0.0, %v1664
  %v1666 = vpop.f32.mrf.mxu0
  %v1667 = vadd.f32 0.0, %v1666
  %1668 = vdwg.mxu0
  %1669 = vst [vmem:[%s2] sm:$0xff] %v427
  %1670 = vst [vmem:[%s2 + $0x8] sm:$0xff] %v429
  %1671 = vst [vmem:[%s2 + $0x10] sm:$0xff] %v504
  %1672 = vst [vmem:[%s2 + $0x18] sm:$0xff] %v506
  %1673 = vst [vmem:[%s2 + $0x20] sm:$0xff] %v581
  %1674 = vst [vmem:[%s2 + $0x28] sm:$0xff] %v583
  %1675 = vst [vmem:[%s2 + $0x30] sm:$0xff] %v658
  %1676 = vst [vmem:[%s2 + $0x38] sm:$0xff] %v660
  %1677 = vst [vmem:[%s2 + $0x40] sm:$0xff] %v735
  %1678 = vst [vmem:[%s2 + $0x48] sm:$0xff] %v737
  %1679 = vst [vmem:[%s2 + $0x50] sm:$0xff] %v812
  %1680 = vst [vmem:[%s2 + $0x58] sm:$0xff] %v814
  %1681 = vst [vmem:[%s2 + $0x60] sm:$0xff] %v889
  %1682 = vst [vmem:[%s2 + $0x68] sm:$0xff] %v891
  %1683 = vst [vmem:[%s2 + $0x70] sm:$0xff] %v966
  %1684 = vst [vmem:[%s2 + $0x78] sm:$0xff] %v968
  %1685 = vst [vmem:[%s2 + $0x80] sm:$0xff] %v1043
  %1686 = vst [vmem:[%s2 + $0x88] sm:$0xff] %v1045
  %1687 = vst [vmem:[%s2 + $0x90] sm:$0xff] %v1120
  %1688 = vst [vmem:[%s2 + $0x98] sm:$0xff] %v1122
  %1689 = vst [vmem:[%s2 + $0xa0] sm:$0xff] %v1197
  %1690 = vst [vmem:[%s2 + $0xa8] sm:$0xff] %v1199
  %1691 = vst [vmem:[%s2 + $0xb0] sm:$0xff] %v1274
  %1692 = vst [vmem:[%s2 + $0xb8] sm:$0xff] %v1276
  %1693 = vst [vmem:[%s2 + $0xc0] sm:$0xff] %v1351
  %1694 = vst [vmem:[%s2 + $0xc8] sm:$0xff] %v1353
  %1695 = vst [vmem:[%s2 + $0xd0] sm:$0xff] %v1428
  %1696 = vst [vmem:[%s2 + $0xd8] sm:$0xff] %v1430
  %1697 = vst [vmem:[%s2 + $0xe0] sm:$0xff] %v1505
  %1698 = vst [vmem:[%s2 + $0xe8] sm:$0xff] %v1507
  %1699 = vst [vmem:[%s2 + $0xf0] sm:$0xff] %v1582
  %1700 = vst [vmem:[%s2 + $0xf8] sm:$0xff] %v1584
  %1701 = vst [vmem:[%s2 + $0x100] sm:$0xff] %v1659
  %vm1702 = vcmask 64512
  %1703 = vst.msk [vmem:[%s2 + $0x108] sm:$0xff] %vm1702, %v1661
  %1704 = vst [vmem:[%s2 + $0x110] sm:$0xff] %v433
  %1705 = vst [vmem:[%s2 + $0x118] sm:$0xff] %v435
  %1706 = vst [vmem:[%s2 + $0x120] sm:$0xff] %v510
  %1707 = vst [vmem:[%s2 + $0x128] sm:$0xff] %v512
  %1708 = vst [vmem:[%s2 + $0x130] sm:$0xff] %v587
  %1709 = vst [vmem:[%s2 + $0x138] sm:$0xff] %v589
  %1710 = vst [vmem:[%s2 + $0x140] sm:$0xff] %v664
  %1711 = vst [vmem:[%s2 + $0x148] sm:$0xff] %v666
  %1712 = vst [vmem:[%s2 + $0x150] sm:$0xff] %v741
  %1713 = vst [vmem:[%s2 + $0x158] sm:$0xff] %v743
  %1714 = vst [vmem:[%s2 + $0x160] sm:$0xff] %v818
  %1715 = vst [vmem:[%s2 + $0x168] sm:$0xff] %v820
  %1716 = vst [vmem:[%s2 + $0x170] sm:$0xff] %v895
  %1717 = vst [vmem:[%s2 + $0x178] sm:$0xff] %v897
  %1718 = vst [vmem:[%s2 + $0x180] sm:$0xff] %v972
  %1719 = vst [vmem:[%s2 + $0x188] sm:$0xff] %v974
  %1720 = vst [vmem:[%s2 + $0x190] sm:$0xff] %v1049
  %1721 = vst [vmem:[%s2 + $0x198] sm:$0xff] %v1051
  %1722 = vst [vmem:[%s2 + $0x1a0] sm:$0xff] %v1126
  %1723 = vst [vmem:[%s2 + $0x1a8] sm:$0xff] %v1128
  %1724 = vst [vmem:[%s2 + $0x1b0] sm:$0xff] %v1203
  %1725 = vst [vmem:[%s2 + $0x1b8] sm:$0xff] %v1205
  %1726 = vst [vmem:[%s2 + $0x1c0] sm:$0xff] %v1280
  %1727 = vst [vmem:[%s2 + $0x1c8] sm:$0xff] %v1282
  %1728 = vst [vmem:[%s2 + $0x1d0] sm:$0xff] %v1357
  %1729 = vst [vmem:[%s2 + $0x1d8] sm:$0xff] %v1359
  %1730 = vst [vmem:[%s2 + $0x1e0] sm:$0xff] %v1434
  %1731 = vst [vmem:[%s2 + $0x1e8] sm:$0xff] %v1436
  %1732 = vst [vmem:[%s2 + $0x1f0] sm:$0xff] %v1511
  %1733 = vst [vmem:[%s2 + $0x1f8] sm:$0xff] %v1513
  %1734 = vst [vmem:[%s2 + $0x200] sm:$0xff] %v1588
  %1735 = vst [vmem:[%s2 + $0x208] sm:$0xff] %v1590
  %1736 = vst [vmem:[%s2 + $0x210] sm:$0xff] %v1665
  %1737 = vst.msk [vmem:[%s2 + $0x218] sm:$0xff] %vm1702, %v1667
  // Predicated region
  $region10: #{decoder3d_forward.10} parent=0 // pred_check
    _
  $region11: #{decoder3d_forward.10} parent=0 // pred_check_branch
    %1739 = sbr.rel (0) target = $region13
  $region12: #{decoder3d_forward.10} parent=0 // pred_region
    _
  $region13: #{decoder3d_forward.10} parent=0 // pred_fallthru
    _
  // Predicated region
  $region14: #{decoder3d_forward.10} parent=0 // pred_check
    _
  $region15: #{decoder3d_forward.10} parent=0 // pred_check_branch
    %1741 = sbr.rel (0) target = $region17
  $region16: #{decoder3d_forward.10} parent=0 // pred_region
    _
  $region17: #{decoder3d_forward.10} parent=0 // pred_fallthru
    _

// kernel: decoder3d_forward.11
$region0: #{decoder3d_forward.11}
  #allocation0 [shape = 'u32[]', space=smem, size = 0x4, offset = 0x4, fixed_abs, tag = 'smem constant byte address 0x4 - core index']
  #allocation1 [shape = 'u32[144,128]{1,0:T(1,128)}', space=vmem, size = 0x12000, scoped, tag = 'internal scratch']
  %s0 = inlined_call_operand.vmem [shape: f32[80,529], index: 0, kind: input, shape index: {}]
  %s1 = inlined_call_operand.vmem [shape: f32[529,256], index: 1, kind: input, shape index: {}]
  %s2 = inlined_call_operand.vmem [shape: f32[80,256], index: 2, kind: output, shape index: {}]
  %s3 = sld [smem:[#allocation0]]
  $region41: #{decoder3d_forward.11} parent=0
    _
  %s5 = ssub.s32 1, %s3
  %s6 = scalar_select 0, %s5, %s3
  loop: start=0, step=1, limit=4
  $region2: #{decoder3d_forward.11} parent=0 // loop_pre_header
    _
  $region3: #{decoder3d_forward.11} parent=0 // loop_header
    %s8 = sphi 0, %s12
    %p9 = scmp.ge.s32.totalorder %s8, 4
    %s15 = sphi 0, %s27
    %s16 = sphi 0, %s23
    %s17 = sphi 0, %s15
    %s18 = sphi 0, %s16
    %s19 = sphi 0, %s17
    %s20 = sphi 0, %s18
    %s30 = sphi 0, %s32
    %s33 = sphi 0, %s30
    %s34 = sphi 0, %s33
    %s50 = sphi 0, %s34
    %s56 = sphi 0, %s58
    %s59 = sphi 0, %s56
    %s60 = sphi 0, %s59
    %s76 = sphi 0, %s60
    %s84 = sphi 0, %s86
    %s87 = sphi 0, %s84
    %s88 = sphi 0, %s87
    %s104 = sphi 0, %s88
  $region4: #{decoder3d_forward.11} parent=0 // loop_header_branch
    %11 = sbr.rel (%p9) target = $region8
  $region5: #{decoder3d_forward.11} parent=0 // loop_body
    %s13 = ssub.s32 %s8, 1
    %s14 = ssub.s32 %s8, 2
    %s21 = sadd.s32 1, %s16
    %p22 = scmp.ge.s32.totalorder %s21, 1
    %s23 = scalar_select %p22, 0, %s21
    %s24 = sadd.s32 1, %s15
    %s25 = scalar_select %p22, %s24, %s15
    %p26 = scmp.ge.s32.totalorder %s25, 2
    %s27 = scalar_select %p26, 0, %s25
    %s28 = ssub.s32 %s15, %s27
    %p29 = scmp.eq.s32.totalorder %s28, 0
    %s31 = sadd.s32 %s30, 1
    %s32 = scalar_select %p29, %s30, %s31
    %p35 = pneg %p29
    %p36 = scmp.eq.s32.totalorder %s8, 1
    %p37 = por %p35, %p36
    %p38 = scmp.ne.s32.totalorder %s30, %s33
    %p39 = scmp.eq.s32.totalorder %s8, 0
    %p40 = por %p38, %p39
    %p41 = scmp.ne.s32.totalorder %s30, %s33
    %p42 = scmp.eq.s32.totalorder %s13, 1
    %p43 = por %p41, %p42
    %p44 = scmp.ne.s32.totalorder %s33, %s34
    %p45 = scmp.eq.s32.totalorder %s13, 0
    %p46 = por %p44, %p45
    %p47 = scmp.ne.s32.totalorder %s33, %s34
    %p48 = scmp.eq.s32.totalorder %s14, 1
    %p49 = por %p47, %p48
    %p51 = scmp.ne.s32.totalorder %s34, %s50
    %p52 = scmp.eq.s32.totalorder %s14, 0
    %p53 = por %p51, %p52
    %s54 = ssub.s32 %s16, %s23
    %p55 = scmp.eq.s32.totalorder %s54, 0
    %s57 = sadd.s32 %s56, 1
    %s58 = scalar_select %p55, %s56, %s57
    %p61 = pneg %p55
    %p62 = scmp.eq.s32.totalorder %s8, 1
    %p63 = por %p61, %p62
    %p64 = scmp.ne.s32.totalorder %s56, %s59
    %p65 = scmp.eq.s32.totalorder %s8, 0
    %p66 = por %p64, %p65
    %p67 = scmp.ne.s32.totalorder %s56, %s59
    %p68 = scmp.eq.s32.totalorder %s13, 1
    %p69 = por %p67, %p68
    %p70 = scmp.ne.s32.totalorder %s59, %s60
    %p71 = scmp.eq.s32.totalorder %s13, 0
    %p72 = por %p70, %p71
    %p73 = scmp.ne.s32.totalorder %s59, %s60
    %p74 = scmp.eq.s32.totalorder %s14, 1
    %p75 = por %p73, %p74
    %p77 = scmp.ne.s32.totalorder %s60, %s76
    %p78 = scmp.eq.s32.totalorder %s14, 0
    %p79 = por %p77, %p78
    %s80 = ssub.s32 %s15, %s27
    %s81 = ssub.s32 %s16, %s23
    %s82 = sor.u32 %s80, %s81
    %p83 = scmp.eq.s32.totalorder %s82, 0
    %s85 = sadd.s32 %s84, 1
    %s86 = scalar_select %p83, %s84, %s85
    %p89 = pneg %p83
    %p90 = scmp.eq.s32.totalorder %s8, 1
    %p91 = por %p89, %p90
    %p92 = scmp.ne.s32.totalorder %s84, %s87
    %p93 = scmp.eq.s32.totalorder %s8, 0
    %p94 = por %p92, %p93
    %p95 = scmp.ne.s32.totalorder %s84, %s87
    %p96 = scmp.eq.s32.totalorder %s13, 1
    %p97 = por %p95, %p96
    %p98 = scmp.ne.s32.totalorder %s87, %s88
    %p99 = scmp.eq.s32.totalorder %s13, 0
    %p100 = por %p98, %p99
    %p101 = scmp.ne.s32.totalorder %s87, %s88
    %p102 = scmp.eq.s32.totalorder %s14, 1
    %p103 = por %p101, %p102
    %p105 = scmp.ne.s32.totalorder %s88, %s104
    %p106 = scmp.eq.s32.totalorder %s14, 0
    %p107 = por %p105, %p106
    %p108 = scmp.le.s32.totalorder 1, %s8
    %p109 = scmp.lt.s32.totalorder %s8, 3
    %p110 = pnand %p108, %p109
    %p111 = pneg %p110
    // Predicated region
    $region9: #{decoder3d_forward.11} parent=5 // pred_check
      _
    $region10: #{decoder3d_forward.11} parent=5 // pred_check_branch
      %113 = sbr.rel (%p110) target = $region12
    $region11: #{decoder3d_forward.11} parent=5 // pred_region
      %s114 = ssub.s32 %s8, 1
      // Predicated region
      $region13: #{decoder3d_forward.11} parent=11 // pred_check
        %p115 = pneg %p72
      $region14: #{decoder3d_forward.11} parent=11 // pred_check_branch
        %117 = sbr.rel (%p115) target = $region16
      $region15: #{decoder3d_forward.11} parent=11 // pred_region
        %s118 = smul.u32 2, %s18
        %p119 = scmp.lt.s32.totalorder %s118, 1
        %s120 = scalar_select %p119, %s118, 1
        %s121 = smul.addr %s120, 8
        %s122 = scalar_lea.vmem %s1, %s121
        %s123 = smul.u32 2, %s18
      $region16: #{decoder3d_forward.11} parent=11 // pred_fallthru
        _
    $region12: #{decoder3d_forward.11} parent=5 // pred_fallthru
      _
    %p124 = scmp.lt.s32.totalorder %s8, 2
    // Predicated region
    $region17: #{decoder3d_forward.11} parent=5 // pred_check
      %p125 = pneg %p124
    $region18: #{decoder3d_forward.11} parent=5 // pred_check_branch
      %127 = sbr.rel (%p125) target = $region20
    $region19: #{decoder3d_forward.11} parent=5 // pred_region
      // Predicated region
      $region21: #{decoder3d_forward.11} parent=19 // pred_check
        %p128 = pneg %p40
      $region22: #{decoder3d_forward.11} parent=19 // pred_check_branch
        %130 = sbr.rel (%p128) target = $region24
      $region23: #{decoder3d_forward.11} parent=19 // pred_region
        %s131 = smul.u32 5, %s15
        %p132 = scmp.lt.s32.totalorder %s131, 9
        %s133 = scalar_select %p132, %s131, 9
        %s134 = smul.addr %s133, 5
        %s135 = smul.addr %s134, 8
        %s136 = scalar_lea.vmem %s0, %s135
        %s137 = smul.u32 5, %s15
      $region24: #{decoder3d_forward.11} parent=19 // pred_fallthru
        _
    $region20: #{decoder3d_forward.11} parent=5 // pred_fallthru
      _
    %p138 = scmp.le.s32.totalorder 1, %s8
    %p139 = scmp.lt.s32.totalorder %s8, 3
    %p140 = pnand %p138, %p139
    %p141 = pneg %p140
    // Predicated region
    $region25: #{decoder3d_forward.11} parent=5 // pred_check
      _
    $region26: #{decoder3d_forward.11} parent=5 // pred_check_branch
      %143 = sbr.rel (%p140) target = $region28
    $region27: #{decoder3d_forward.11} parent=5 // pred_region
      %s144 = ssub.s32 %s8, 1
      %s145 = smul.u32 5, %s17
      %p146 = scmp.lt.s32.totalorder %s145, 9
      %s147 = scalar_select %p146, %s145, 9
      %s148 = smul.addr %s147, 5
      %s149 = smul.addr %s148, 8
      %s150 = scalar_lea.vmem %s0, %s149
      %p151 = pneg %p46
      %p152 = pneg %p43
      %s153 = smul.u32 2, %s18
      %p154 = scmp.lt.s32.totalorder %s153, 1
      %s155 = scalar_select %p154, %s153, 1
      %s156 = smul.addr %s155, 8
      %s157 = scalar_lea.vmem %s1, %s156
      %p158 = pneg %p72
      %p159 = pneg %p69
      %p160 = pneg %p100
      %p161 = pneg %p97
      %s162 = smul.u32 5, %s17
      %s163 = smul.u32 2, %s18
      %p164 = scmp.lt.s32.totalorder %s162, 9
      %s165 = scalar_select %p164, %s162, 9
      %p166 = scmp.lt.s32.totalorder %s163, 1
      %s167 = scalar_select %p166, %s163, 1
      %s168 = smul.addr %s165, 2
      %s169 = sadd.s32 %s167, %s168
      %s170 = smul.addr %s169, 8
      %s171 = scalar_lea.vmem %s2, %s170
      %s172 = smul.u32 5, %s17
      %p173 = scmp.lt.s32.totalorder %s172, 9
      %s174 = scalar_select %p173, %s172, 9
      %s175 = smul.addr %s174, 5
      %s176 = smul.addr %s175, 8
      %s177 = scalar_lea.vmem %s0, %s176
      %s178 = smul.u32 5, %s17
      %s179 = smul.u32 2, %s18
      %p180 = scmp.lt.s32.totalorder %s179, 1
      %s181 = scalar_select %p180, %s179, 1
      %s182 = smul.addr %s181, 8
      %s183 = scalar_lea.vmem %s1, %s182
      %s184 = smul.u32 2, %s18
      %s185 = smul.u32 5, %s17
      %s186 = smul.u32 2, %s18
      %p187 = scmp.lt.s32.totalorder %s185, 9
      %s188 = scalar_select %p187, %s185, 9
      %p189 = scmp.lt.s32.totalorder %s186, 1
      %s190 = scalar_select %p189, %s186, 1
      %s191 = smul.addr %s188, 2
      %s192 = sadd.s32 %s190, %s191
      %s193 = smul.addr %s192, 8
      %s194 = scalar_lea.vmem %s2, %s193
      %s195 = smul.u32 5, %s17
      %s196 = smul.u32 2, %s18
      %v197 = vld [vmem:[%s177] sm:$0xff]
      %v198 = vld [vmem:[%s177 + $0x8] sm:$0xff]
      %v199 = vld [vmem:[%s177 + $0x10] sm:$0xff]
      %v200 = vld [vmem:[%s177 + $0x18] sm:$0xff]
      %v201 = vld [vmem:[%s177 + $0x20] sm:$0xff]
      %v202 = vld [vmem:[%s177 + $0x28] sm:$0xff]
      %v203 = vld [vmem:[%s177 + $0x30] sm:$0xff]
      %v204 = vld [vmem:[%s177 + $0x38] sm:$0xff]
      %v205 = vld [vmem:[%s177 + $0x40] sm:$0xff]
      %v206 = vld [vmem:[%s177 + $0x48] sm:$0xff]
      %v207 = vld [vmem:[%s177 + $0x50] sm:$0xff]
      %v208 = vld [vmem:[%s177 + $0x58] sm:$0xff]
      %v209 = vld [vmem:[%s177 + $0x60] sm:$0xff]
      %v210 = vld [vmem:[%s177 + $0x68] sm:$0xff]
      %v211 = vld [vmem:[%s177 + $0x70] sm:$0xff]
      %v212 = vld [vmem:[%s177 + $0x78] sm:$0xff]
      %v213 = vld [vmem:[%s177 + $0x80] sm:$0xff]
      %v214 = vld [vmem:[%s177 + $0x88] sm:$0xff]
      %v215 = vld [vmem:[%s177 + $0x90] sm:$0xff]
      %v216 = vld [vmem:[%s177 + $0x98] sm:$0xff]
      %v217 = vld [vmem:[%s177 + $0xa0] sm:$0xff]
      %v218 = vld [vmem:[%s177 + $0xa8] sm:$0xff]
      %v219 = vld [vmem:[%s177 + $0xb0] sm:$0xff]
      %v220 = vld [vmem:[%s177 + $0xb8] sm:$0xff]
      %v221 = vld [vmem:[%s177 + $0xc0] sm:$0xff]
      %v222 = vld [vmem:[%s183] sm:$0xff]
      %v223 = vld [vmem:[%s183 + $0x8] sm:$0xff]
      %v224 = vld [vmem:[%s183 + $0x10] sm:$0xff]
      %v225 = vld [vmem:[%s183 + $0x18] sm:$0xff]
      %v226 = vld [vmem:[%s183 + $0x20] sm:$0xff]
      %v227 = vld [vmem:[%s183 + $0x28] sm:$0xff]
      %v228 = vld [vmem:[%s183 + $0x30] sm:$0xff]
      %v229 = vld [vmem:[%s183 + $0x38] sm:$0xff]
      %v230 = vld [vmem:[%s183 + $0x40] sm:$0xff]
      %v231 = vld [vmem:[%s183 + $0x48] sm:$0xff]
      %v232 = vld [vmem:[%s183 + $0x50] sm:$0xff]
      %v233 = vld [vmem:[%s183 + $0x58] sm:$0xff]
      %v234 = vld [vmem:[%s183 + $0x60] sm:$0xff]
      %v235 = vld [vmem:[%s183 + $0x68] sm:$0xff]
      %v236 = vld [vmem:[%s183 + $0x70] sm:$0xff]
      %v237 = vld [vmem:[%s183 + $0x78] sm:$0xff]
      %v238 = vld [vmem:[%s183 + $0x80] sm:$0xff]
      %v239 = vld [vmem:[%s183 + $0x88] sm:$0xff]
      %v240 = vld [vmem:[%s183 + $0x90] sm:$0xff]
      %v241 = vld [vmem:[%s183 + $0x98] sm:$0xff]
      %v242 = vld [vmem:[%s183 + $0xa0] sm:$0xff]
      %v243 = vld [vmem:[%s183 + $0xa8] sm:$0xff]
      %v244 = vld [vmem:[%s183 + $0xb0] sm:$0xff]
      %v245 = vld [vmem:[%s183 + $0xb8] sm:$0xff]
      %v246 = vld [vmem:[%s183 + $0xc0] sm:$0xff]
      %v247 = vld [vmem:[%s183 + $0xc8] sm:$0xff]
      %v248 = vld [vmem:[%s183 + $0xd0] sm:$0xff]
      %v249 = vld [vmem:[%s183 + $0xd8] sm:$0xff]
      %v250 = vld [vmem:[%s183 + $0xe0] sm:$0xff]
      %v251 = vld [vmem:[%s183 + $0xe8] sm:$0xff]
      %v252 = vld [vmem:[%s183 + $0xf0] sm:$0xff]
      %v253 = vld [vmem:[%s183 + $0xf8] sm:$0xff]
      %v254 = vld [vmem:[%s183 + $0x100] sm:$0xff]
      %v255 = vld [vmem:[%s183 + $0x108] sm:$0xff]
      %v256 = vld [vmem:[%s183 + $0x110] sm:$0xff]
      %v257 = vld [vmem:[%s183 + $0x118] sm:$0xff]
      %v258 = vld [vmem:[%s183 + $0x120] sm:$0xff]
      %v259 = vld [vmem:[%s183 + $0x128] sm:$0xff]
      %v260 = vld [vmem:[%s183 + $0x130] sm:$0xff]
      %v261 = vld [vmem:[%s183 + $0x138] sm:$0xff]
      %v262 = vld [vmem:[%s183 + $0x140] sm:$0xff]
      %v263 = vld [vmem:[%s183 + $0x148] sm:$0xff]
      %v264 = vld [vmem:[%s183 + $0x150] sm:$0xff]
      %v265 = vld [vmem:[%s183 + $0x158] sm:$0xff]
      %v266 = vld [vmem:[%s183 + $0x160] sm:$0xff]
      %v267 = vld [vmem:[%s183 + $0x168] sm:$0xff]
      %v268 = vld [vmem:[%s183 + $0x170] sm:$0xff]
      %v269 = vld [vmem:[%s183 + $0x178] sm:$0xff]
      %v270 = vld [vmem:[%s183 + $0x180] sm:$0xff]
      %v271 = vld [vmem:[%s183 + $0x188] sm:$0xff]
      %v272 = vld [vmem:[%s183 + $0x190] sm:$0xff]
      %v273 = vld [vmem:[%s183 + $0x198] sm:$0xff]
      %v274 = vld [vmem:[%s183 + $0x1a0] sm:$0xff]
      %v275 = vld [vmem:[%s183 + $0x1a8] sm:$0xff]
      %v276 = vld [vmem:[%s183 + $0x1b0] sm:$0xff]
      %v277 = vld [vmem:[%s183 + $0x1b8] sm:$0xff]
      %v278 = vld [vmem:[%s183 + $0x1c0] sm:$0xff]
      %v279 = vld [vmem:[%s183 + $0x1c8] sm:$0xff]
      %v280 = vld [vmem:[%s183 + $0x1d0] sm:$0xff]
      %v281 = vld [vmem:[%s183 + $0x1d8] sm:$0xff]
      %v282 = vld [vmem:[%s183 + $0x1e0] sm:$0xff]
      %v283 = vld [vmem:[%s183 + $0x1e8] sm:$0xff]
      %v284 = vld [vmem:[%s183 + $0x1f0] sm:$0xff]
      %v285 = vld [vmem:[%s183 + $0x1f8] sm:$0xff]
      %v286 = vld [vmem:[%s183 + $0x200] sm:$0xff]
      %v287 = vld [vmem:[%s183 + $0x208] sm:$0xff]
      %v288 = vld [vmem:[%s183 + $0x210] sm:$0xff]
      %v289 = vld [vmem:[%s183 + $0x218] sm:$0xff]
      %v290 = vld [vmem:[%s183 + $0x220] sm:$0xff]
      %v291 = vld [vmem:[%s183 + $0x228] sm:$0xff]
      %v292 = vld [vmem:[%s183 + $0x230] sm:$0xff]
      %v293 = vld [vmem:[%s183 + $0x238] sm:$0xff]
      %v294 = vld [vmem:[%s183 + $0x240] sm:$0xff]
      %v295 = vld [vmem:[%s183 + $0x248] sm:$0xff]
      %v296 = vld [vmem:[%s183 + $0x250] sm:$0xff]
      %v297 = vld [vmem:[%s183 + $0x258] sm:$0xff]
      %v298 = vld [vmem:[%s183 + $0x260] sm:$0xff]
      %v299 = vld [vmem:[%s183 + $0x268] sm:$0xff]
      %v300 = vld [vmem:[%s183 + $0x270] sm:$0xff]
      %v301 = vld [vmem:[%s183 + $0x278] sm:$0xff]
      %v302 = vld [vmem:[%s183 + $0x280] sm:$0xff]
      %v303 = vld [vmem:[%s183 + $0x288] sm:$0xff]
      %v304 = vld [vmem:[%s183 + $0x290] sm:$0xff]
      %v305 = vld [vmem:[%s183 + $0x298] sm:$0xff]
      %v306 = vld [vmem:[%s183 + $0x2a0] sm:$0xff]
      %v307 = vld [vmem:[%s183 + $0x2a8] sm:$0xff]
      %v308 = vld [vmem:[%s183 + $0x2b0] sm:$0xff]
      %v309 = vld [vmem:[%s183 + $0x2b8] sm:$0xff]
      %v310 = vld [vmem:[%s183 + $0x2c0] sm:$0xff]
      %v311 = vld [vmem:[%s183 + $0x2c8] sm:$0xff]
      %v312 = vld [vmem:[%s183 + $0x2d0] sm:$0xff]
      %v313 = vld [vmem:[%s183 + $0x2d8] sm:$0xff]
      %v314 = vld [vmem:[%s183 + $0x2e0] sm:$0xff]
      %v315 = vld [vmem:[%s183 + $0x2e8] sm:$0xff]
      %v316 = vld [vmem:[%s183 + $0x2f0] sm:$0xff]
      %v317 = vld [vmem:[%s183 + $0x2f8] sm:$0xff]
      %v318 = vld [vmem:[%s183 + $0x300] sm:$0xff]
      %v319 = vld [vmem:[%s183 + $0x308] sm:$0xff]
      %v320 = vld [vmem:[%s183 + $0x310] sm:$0xff]
      %v321 = vld [vmem:[%s183 + $0x318] sm:$0xff]
      %v322 = vld [vmem:[%s183 + $0x320] sm:$0xff]
      %v323 = vld [vmem:[%s183 + $0x328] sm:$0xff]
      %v324 = vld [vmem:[%s183 + $0x330] sm:$0xff]
      %v325 = vld [vmem:[%s183 + $0x338] sm:$0xff]
      %v326 = vld [vmem:[%s183 + $0x340] sm:$0xff]
      %v327 = vld [vmem:[%s183 + $0x348] sm:$0xff]
      %v328 = vld [vmem:[%s183 + $0x350] sm:$0xff]
      %v329 = vld [vmem:[%s183 + $0x358] sm:$0xff]
      %v330 = vld [vmem:[%s183 + $0x360] sm:$0xff]
      %v331 = vld [vmem:[%s183 + $0x368] sm:$0xff]
      %v332 = vld [vmem:[%s183 + $0x370] sm:$0xff]
      %v333 = vld [vmem:[%s183 + $0x378] sm:$0xff]
      %v334 = vld [vmem:[%s183 + $0x380] sm:$0xff]
      %v335 = vld [vmem:[%s183 + $0x388] sm:$0xff]
      %v336 = vld [vmem:[%s183 + $0x390] sm:$0xff]
      %v337 = vld [vmem:[%s183 + $0x398] sm:$0xff]
      %v338 = vld [vmem:[%s183 + $0x3a0] sm:$0xff]
      %v339 = vld [vmem:[%s183 + $0x3a8] sm:$0xff]
      %v340 = vld [vmem:[%s183 + $0x3b0] sm:$0xff]
      %v341 = vld [vmem:[%s183 + $0x3b8] sm:$0xff]
      %v342 = vld [vmem:[%s183 + $0x3c0] sm:$0xff]
      %v343 = vld [vmem:[%s183 + $0x3c8] sm:$0xff]
      %v344 = vld [vmem:[%s183 + $0x3d0] sm:$0xff]
      %v345 = vld [vmem:[%s183 + $0x3d8] sm:$0xff]
      %v346 = vld [vmem:[%s183 + $0x3e0] sm:$0xff]
      %v347 = vld [vmem:[%s183 + $0x3e8] sm:$0xff]
      %v348 = vld [vmem:[%s183 + $0x3f0] sm:$0xff]
      %v349 = vld [vmem:[%s183 + $0x3f8] sm:$0xff]
      %v350 = vld [vmem:[%s183 + $0x400] sm:$0xff]
      %v351 = vld [vmem:[%s183 + $0x408] sm:$0xff]
      %v352 = vld [vmem:[%s183 + $0x410] sm:$0xff]
      %v353 = vld [vmem:[%s183 + $0x418] sm:$0xff]
      %v354 = vld [vmem:[%s183 + $0x420] sm:$0x1]
      %v355 = vld [vmem:[%s183 + $0x428] sm:$0x1]
      %vm356 = vcmask 138240
      %v358 = vsel %vm356, %v201, 0
      %v361 = vsel %vm356, %v206, 0
      %v364 = vsel %vm356, %v211, 0
      %v367 = vsel %vm356, %v216, 0
      %v370 = vsel %vm356, %v221, 0
      %vm372 = vcmask 1040384
      %v374 = vsel %vm372, %v354, 0
      %v377 = vsel %vm372, %v355, 0
      %379 = vmatprep.subr.mxu0 %v253
      %380 = vmatpush1.msra.mxu0 %v252
      %381 = vmatprep.subr.mxu0 %v251
      %382 = vmatpush1.msra.mxu0 %v250
      %383 = vmatprep.subr.mxu0 %v249
      %384 = vmatpush1.msra.mxu0 %v248
      %385 = vmatprep.subr.mxu0 %v247
      %386 = vmatpush1.msra.mxu0 %v246
      %387 = vmatprep.subr.mxu0 %v245
      %388 = vmatpush1.msra.mxu0 %v244
      %389 = vmatprep.subr.mxu0 %v243
      %390 = vmatpush1.msra.mxu0 %v242
      %391 = vmatprep.subr.mxu0 %v241
      %392 = vmatpush1.msra.mxu0 %v240
      %393 = vmatprep.subr.mxu0 %v239
      %394 = vmatpush1.msra.mxu0 %v238
      %395 = vmatprep.subr.mxu0 %v237
      %396 = vmatpush1.msra.mxu0 %v236
      %397 = vmatprep.subr.mxu0 %v235
      %398 = vmatpush1.msra.mxu0 %v234
      %399 = vmatprep.subr.mxu0 %v233
      %400 = vmatpush1.msra.mxu0 %v232
      %401 = vmatprep.subr.mxu0 %v231
      %402 = vmatpush1.msra.mxu0 %v230
      %403 = vmatprep.subr.mxu0 %v229
      %404 = vmatpush1.msra.mxu0 %v228
      %405 = vmatprep.subr.mxu0 %v227
      %406 = vmatpush1.msra.mxu0 %v226
      %407 = vmatprep.subr.mxu0 %v225
      %408 = vmatpush1.msra.mxu0 %v224
      %409 = vmatprep.subr.mxu0 %v223
      %410 = vmatpush1.msra.mxu0 %v222
      %411 = vmatprep.subr.mxu0 %v285
      %412 = vmatpush2.msra.mxu0 %v284
      %413 = vmatprep.subr.mxu0 %v283
      %414 = vmatpush2.msra.mxu0 %v282
      %415 = vmatprep.subr.mxu0 %v281
      %416 = vmatpush2.msra.mxu0 %v280
      %417 = vmatprep.subr.mxu0 %v279
      %418 = vmatpush2.msra.mxu0 %v278
      %419 = vmatprep.subr.mxu0 %v277
      %420 = vmatpush2.msra.mxu0 %v276
      %421 = vmatprep.subr.mxu0 %v275
      %422 = vmatpush2.msra.mxu0 %v274
      %423 = vmatprep.subr.mxu0 %v273
      %424 = vmatpush2.msra.mxu0 %v272
      %425 = vmatprep.subr.mxu0 %v271
      %426 = vmatpush2.msra.mxu0 %v270
      %427 = vmatprep.subr.mxu0 %v269
      %428 = vmatpush2.msra.mxu0 %v268
      %429 = vmatprep.subr.mxu0 %v267
      %430 = vmatpush2.msra.mxu0 %v266
      %431 = vmatprep.subr.mxu0 %v265
      %432 = vmatpush2.msra.mxu0 %v264
      %433 = vmatprep.subr.mxu0 %v263
      %434 = vmatpush2.msra.mxu0 %v262
      %435 = vmatprep.subr.mxu0 %v261
      %436 = vmatpush2.msra.mxu0 %v260
      %437 = vmatprep.subr.mxu0 %v259
      %438 = vmatpush2.msra.mxu0 %v258
      %439 = vmatprep.subr.mxu0 %v257
      %440 = vmatpush2.msra.mxu0 %v256
      %441 = vmatprep.subr.mxu0 %v255
      %442 = vmatpush2.msra.mxu0 %v254
      %443 = vmatprep.mubr.f32.mxu0 %v198
      %444 = vmatmul.mubr.f32.gmra.mxu0 %v197
      %v445 = vpop.f32.mrf.mxu0
      %v446 = vadd.f32 0.0, %v445
      %v447 = vpop.f32.mrf.mxu0
      %v448 = vadd.f32 0.0, %v447
      %449 = vmatprep.mubr.f32.mxu0 %v203
      %450 = vmatmul.mubr.f32.gmra.mxu0 %v202
      %v451 = vpop.f32.mrf.mxu0
      %v452 = vadd.f32 0.0, %v451
      %v453 = vpop.f32.mrf.mxu0
      %v454 = vadd.f32 0.0, %v453
      %455 = vmatprep.mubr.f32.mxu0 %v208
      %456 = vmatmul.mubr.f32.gmra.mxu0 %v207
      %v457 = vpop.f32.mrf.mxu0
      %v458 = vadd.f32 0.0, %v457
      %v459 = vpop.f32.mrf.mxu0
      %v460 = vadd.f32 0.0, %v459
      %461 = vmatprep.mubr.f32.mxu0 %v213
      %462 = vmatmul.mubr.f32.gmra.mxu0 %v212
      %v463 = vpop.f32.mrf.mxu0
      %v464 = vadd.f32 0.0, %v463
      %v465 = vpop.f32.mrf.mxu0
      %v466 = vadd.f32 0.0, %v465
      %467 = vmatprep.mubr.f32.mxu0 %v218
      %468 = vmatmul.mubr.f32.gmra.mxu0 %v217
      %v469 = vpop.f32.mrf.mxu0
      %v470 = vadd.f32 0.0, %v469
      %v471 = vpop.f32.mrf.mxu0
      %v472 = vadd.f32 0.0, %v471
      %473 = vdwg.mxu0
      %474 = vmatprep.subr.mxu0 %v317
      %475 = vmatpush1.msra.mxu0 %v316
      %476 = vmatprep.subr.mxu0 %v315
      %477 = vmatpush1.msra.mxu0 %v314
      %478 = vmatprep.subr.mxu0 %v313
      %479 = vmatpush1.msra.mxu0 %v312
      %480 = vmatprep.subr.mxu0 %v311
      %481 = vmatpush1.msra.mxu0 %v310
      %482 = vmatprep.subr.mxu0 %v309
      %483 = vmatpush1.msra.mxu0 %v308
      %484 = vmatprep.subr.mxu0 %v307
      %485 = vmatpush1.msra.mxu0 %v306
      %486 = vmatprep.subr.mxu0 %v305
      %487 = vmatpush1.msra.mxu0 %v304
      %488 = vmatprep.subr.mxu0 %v303
      %489 = vmatpush1.msra.mxu0 %v302
      %490 = vmatprep.subr.mxu0 %v301
      %491 = vmatpush1.msra.mxu0 %v300
      %492 = vmatprep.subr.mxu0 %v299
      %493 = vmatpush1.msra.mxu0 %v298
      %494 = vmatprep.subr.mxu0 %v297
      %495 = vmatpush1.msra.mxu0 %v296
      %496 = vmatprep.subr.mxu0 %v295
      %497 = vmatpush1.msra.mxu0 %v294
      %498 = vmatprep.subr.mxu0 %v293
      %499 = vmatpush1.msra.mxu0 %v292
      %500 = vmatprep.subr.mxu0 %v291
      %501 = vmatpush1.msra.mxu0 %v290
      %502 = vmatprep.subr.mxu0 %v289
      %503 = vmatpush1.msra.mxu0 %v288
      %504 = vmatprep.subr.mxu0 %v287
      %505 = vmatpush1.msra.mxu0 %v286
      %506 = vmatprep.subr.mxu0 %v349
      %507 = vmatpush2.msra.mxu0 %v348
      %508 = vmatprep.subr.mxu0 %v347
      %509 = vmatpush2.msra.mxu0 %v346
      %510 = vmatprep.subr.mxu0 %v345
      %511 = vmatpush2.msra.mxu0 %v344
      %512 = vmatprep.subr.mxu0 %v343
      %513 = vmatpush2.msra.mxu0 %v342
      %514 = vmatprep.subr.mxu0 %v341
      %515 = vmatpush2.msra.mxu0 %v340
      %516 = vmatprep.subr.mxu0 %v339
      %517 = vmatpush2.msra.mxu0 %v338
      %518 = vmatprep.subr.mxu0 %v337
      %519 = vmatpush2.msra.mxu0 %v336
      %520 = vmatprep.subr.mxu0 %v335
      %521 = vmatpush2.msra.mxu0 %v334
      %522 = vmatprep.subr.mxu0 %v333
      %523 = vmatpush2.msra.mxu0 %v332
      %524 = vmatprep.subr.mxu0 %v331
      %525 = vmatpush2.msra.mxu0 %v330
      %526 = vmatprep.subr.mxu0 %v329
      %527 = vmatpush2.msra.mxu0 %v328
      %528 = vmatprep.subr.mxu0 %v327
      %529 = vmatpush2.msra.mxu0 %v326
      %530 = vmatprep.subr.mxu0 %v325
      %531 = vmatpush2.msra.mxu0 %v324
      %532 = vmatprep.subr.mxu0 %v323
      %533 = vmatpush2.msra.mxu0 %v322
      %534 = vmatprep.subr.mxu0 %v321
      %535 = vmatpush2.msra.mxu0 %v320
      %536 = vmatprep.subr.mxu0 %v319
      %537 = vmatpush2.msra.mxu0 %v318
      %538 = vmatprep.mubr.f32.mxu0 %v200
      %539 = vmatmul.mubr.f32.gmra.mxu0 %v199
      %v540 = vpop.f32.mrf.mxu0
      %v541 = vadd.f32 %v446, %v540
      %v542 = vpop.f32.mrf.mxu0
      %v543 = vadd.f32 %v448, %v542
      %544 = vmatprep.mubr.f32.mxu0 %v205
      %545 = vmatmul.mubr.f32.gmra.mxu0 %v204
      %v546 = vpop.f32.mrf.mxu0
      %v547 = vadd.f32 %v452, %v546
      %v548 = vpop.f32.mrf.mxu0
      %v549 = vadd.f32 %v454, %v548
      %550 = vmatprep.mubr.f32.mxu0 %v210
      %551 = vmatmul.mubr.f32.gmra.mxu0 %v209
      %v552 = vpop.f32.mrf.mxu0
      %v553 = vadd.f32 %v458, %v552
      %v554 = vpop.f32.mrf.mxu0
      %v555 = vadd.f32 %v460, %v554
      %556 = vmatprep.mubr.f32.mxu0 %v215
      %557 = vmatmul.mubr.f32.gmra.mxu0 %v214
      %v558 = vpop.f32.mrf.mxu0
      %v559 = vadd.f32 %v464, %v558
      %v560 = vpop.f32.mrf.mxu0
      %v561 = vadd.f32 %v466, %v560
      %562 = vmatprep.mubr.f32.mxu0 %v220
      %563 = vmatmul.mubr.f32.gmra.mxu0 %v219
      %v564 = vpop.f32.mrf.mxu0
      %v565 = vadd.f32 %v470, %v564
      %v566 = vpop.f32.mrf.mxu0
      %v567 = vadd.f32 %v472, %v566
      %568 = vdwg.mxu0
      %569 = vmatprep.subr.mxu0 0.0
      %570 = vmatpush1.msra.mxu0 0.0
      %571 = vmatprep.subr.mxu0 0.0
      %572 = vmatpush1.msra.mxu0 0.0
      %573 = vmatprep.subr.mxu0 0.0
      %574 = vmatpush1.msra.mxu0 0.0
      %575 = vmatprep.subr.mxu0 0.0
      %576 = vmatpush1.msra.mxu0 0.0
      %577 = vmatprep.subr.mxu0 0.0
      %578 = vmatpush1.msra.mxu0 0.0
      %579 = vmatprep.subr.mxu0 0.0
      %580 = vmatpush1.msra.mxu0 0.0
      %581 = vmatprep.subr.mxu0 0.0
      %582 = vmatpush1.msra.mxu0 0.0
      %583 = vmatprep.subr.mxu0 0.0
      %584 = vmatpush1.msra.mxu0 0.0
      %585 = vmatprep.subr.mxu0 0.0
      %586 = vmatpush1.msra.mxu0 0.0
      %587 = vmatprep.subr.mxu0 0.0
      %588 = vmatpush1.msra.mxu0 0.0
      %589 = vmatprep.subr.mxu0 0.0
      %590 = vmatpush1.msra.mxu0 0.0
      %591 = vmatprep.subr.mxu0 0.0
      %592 = vmatpush1.msra.mxu0 0.0
      %593 = vmatprep.subr.mxu0 0.0
      %594 = vmatpush1.msra.mxu0 0.0
      %595 = vmatprep.subr.mxu0 %v377
      %596 = vmatpush1.msra.mxu0 %v374
      %597 = vmatprep.subr.mxu0 %v353
      %598 = vmatpush1.msra.mxu0 %v352
      %599 = vmatprep.subr.mxu0 %v351
      %600 = vmatpush1.msra.mxu0 %v350
      %601 = vmatprep.subr.mxu0 0.0
      %602 = vmatpush2.msra.mxu0 0.0
      %603 = vmatprep.subr.mxu0 0.0
      %604 = vmatpush2.msra.mxu0 0.0
      %605 = vmatprep.subr.mxu0 0.0
      %606 = vmatpush2.msra.mxu0 0.0
      %607 = vmatprep.subr.mxu0 0.0
      %608 = vmatpush2.msra.mxu0 0.0
      %609 = vmatprep.subr.mxu0 0.0
      %610 = vmatpush2.msra.mxu0 0.0
      %611 = vmatprep.subr.mxu0 0.0
      %612 = vmatpush2.msra.mxu0 0.0
      %613 = vmatprep.subr.mxu0 0.0
      %614 = vmatpush2.msra.mxu0 0.0
      %615 = vmatprep.subr.mxu0 0.0
      %616 = vmatpush2.msra.mxu0 0.0
      %617 = vmatprep.subr.mxu0 0.0
      %618 = vmatpush2.msra.mxu0 0.0
      %619 = vmatprep.subr.mxu0 0.0
      %620 = vmatpush2.msra.mxu0 0.0
      %621 = vmatprep.subr.mxu0 0.0
      %622 = vmatpush2.msra.mxu0 0.0
      %623 = vmatprep.subr.mxu0 0.0
      %624 = vmatpush2.msra.mxu0 0.0
      %625 = vmatprep.subr.mxu0 0.0
      %626 = vmatpush2.msra.mxu0 0.0
      %627 = vmatprep.subr.mxu0 0.0
      %628 = vmatpush2.msra.mxu0 0.0
      %629 = vmatprep.subr.mxu0 0.0
      %630 = vmatpush2.msra.mxu0 0.0
      %631 = vmatprep.subr.mxu0 0.0
      %632 = vmatpush2.msra.mxu0 0.0
      %633 = vmatprep.mubr.f32.mxu0 0.0
      %634 = vmatmul.mubr.f32.gmra.mxu0 %v358
      %v635 = vpop.f32.mrf.mxu0
      %v636 = vadd.f32 %v541, %v635
      %v637 = vpop.f32.mrf.mxu0
      %v638 = vadd.f32 %v543, %v637
      %639 = vmatprep.mubr.f32.mxu0 0.0
      %640 = vmatmul.mubr.f32.gmra.mxu0 %v361
      %v641 = vpop.f32.mrf.mxu0
      %v642 = vadd.f32 %v547, %v641
      %v643 = vpop.f32.mrf.mxu0
      %v644 = vadd.f32 %v549, %v643
      %645 = vmatprep.mubr.f32.mxu0 0.0
      %646 = vmatmul.mubr.f32.gmra.mxu0 %v364
      %v647 = vpop.f32.mrf.mxu0
      %v648 = vadd.f32 %v553, %v647
      %v649 = vpop.f32.mrf.mxu0
      %v650 = vadd.f32 %v555, %v649
      %651 = vmatprep.mubr.f32.mxu0 0.0
      %652 = vmatmul.mubr.f32.gmra.mxu0 %v367
      %v653 = vpop.f32.mrf.mxu0
      %v654 = vadd.f32 %v559, %v653
      %v655 = vpop.f32.mrf.mxu0
      %v656 = vadd.f32 %v561, %v655
      %657 = vmatprep.mubr.f32.mxu0 0.0
      %658 = vmatmul.mubr.f32.gmra.mxu0 %v370
      %v659 = vpop.f32.mrf.mxu0
      %v660 = vadd.f32 %v565, %v659
      %v661 = vpop.f32.mrf.mxu0
      %v662 = vadd.f32 %v567, %v661
      %663 = vdwg.mxu0
      %664 = vst [vmem:[%s194] sm:$0xff] %v636
      %665 = vst [vmem:[%s194 + $0x8] sm:$0xff] %v638
      %666 = vst [vmem:[%s194 + $0x10] sm:$0xff] %v642
      %667 = vst [vmem:[%s194 + $0x18] sm:$0xff] %v644
      %668 = vst [vmem:[%s194 + $0x20] sm:$0xff] %v648
      %669 = vst [vmem:[%s194 + $0x28] sm:$0xff] %v650
      %670 = vst [vmem:[%s194 + $0x30] sm:$0xff] %v654
      %671 = vst [vmem:[%s194 + $0x38] sm:$0xff] %v656
      %672 = vst [vmem:[%s194 + $0x40] sm:$0xff] %v660
      %673 = vst [vmem:[%s194 + $0x48] sm:$0xff] %v662
      %s674 = smul.u32 5, %s17
      %s675 = smul.u32 2, %s18
      %p676 = scmp.lt.s32.totalorder %s674, 9
      %s677 = scalar_select %p676, %s674, 9
      %p678 = scmp.lt.s32.totalorder %s675, 1
      %s679 = scalar_select %p678, %s675, 1
      %s680 = smul.addr %s677, 2
      %s681 = sadd.s32 %s679, %s680
      %s682 = smul.addr %s681, 8
      %s683 = scalar_lea.vmem %s2, %s682
      // Predicated region
      $region29: #{decoder3d_forward.11} parent=27 // pred_check
        %p684 = pneg %p97
      $region30: #{decoder3d_forward.11} parent=27 // pred_check_branch
        %686 = sbr.rel (%p684) target = $region32
      $region31: #{decoder3d_forward.11} parent=27 // pred_region
        %s687 = smul.u32 5, %s17
        %s688 = smul.u32 2, %s18
      $region32: #{decoder3d_forward.11} parent=27 // pred_fallthru
        _
    $region28: #{decoder3d_forward.11} parent=5 // pred_fallthru
      _
    %p689 = scmp.le.s32.totalorder 2, %s8
    // Predicated region
    $region33: #{decoder3d_forward.11} parent=5 // pred_check
      %p690 = pneg %p689
    $region34: #{decoder3d_forward.11} parent=5 // pred_check_branch
      %692 = sbr.rel (%p690) target = $region36
    $region35: #{decoder3d_forward.11} parent=5 // pred_region
      %s693 = ssub.s32 %s8, 2
      // Predicated region
      $region37: #{decoder3d_forward.11} parent=35 // pred_check
        %p694 = pneg %p103
      $region38: #{decoder3d_forward.11} parent=35 // pred_check_branch
        %696 = sbr.rel (%p694) target = $region40
      $region39: #{decoder3d_forward.11} parent=35 // pred_region
        %s697 = smul.u32 5, %s19
        %s698 = smul.u32 2, %s20
        %p699 = scmp.lt.s32.totalorder %s697, 9
        %s700 = scalar_select %p699, %s697, 9
        %p701 = scmp.lt.s32.totalorder %s698, 1
        %s702 = scalar_select %p701, %s698, 1
        %s703 = smul.addr %s700, 2
        %s704 = sadd.s32 %s702, %s703
        %s705 = smul.addr %s704, 8
        %s706 = scalar_lea.vmem %s2, %s705
      $region40: #{decoder3d_forward.11} parent=35 // pred_fallthru
        _
    $region36: #{decoder3d_forward.11} parent=5 // pred_fallthru
      _
  $region6: #{decoder3d_forward.11} parent=0 // loop_footer
    %s12 = sadd.s32 1, %s8
  $region7: #{decoder3d_forward.11} parent=0 // loop_footer_branch
    %7 = sbr.rel target = $region3
  $region8: #{decoder3d_forward.11} parent=0 // loop_exit
    _

</llo_original>
